<compile_context>
chip_gen: v7x
topology: tpu7x:2x2x1
jax: 0.10.0
libtpu: 0.0.40
codegen_flags: <defaults>
</compile_context>

<pallas_src>
import functools
import math

import jax
import jax.numpy as jnp
from jax.experimental import pallas as pl
from jax.experimental.pallas import tpu as pltpu

LANE = 128
SUBLANE = 8


def _round_up(n, m):
    return ((n + m - 1) // m) * m


# ----------------------------- fused Pallas kernel ---------------------------


def _snail_fused_kernel(*refs, blocks, t, t_pad, c_in_pad):
    """Whole SNAIL forward; activation stays resident in VMEM."""
    n_blk = len(blocks)
    x_ref = refs[0]
    w_refs = refs[1:1 + n_blk]        # one fused bf16 weight per block
    b_ref = refs[1 + n_blk]           # all biases packed into one f32 row
    o_ref = refs[2 + n_blk]           # f32 output (padded channel layout)
    act_ref = refs[3 + n_blk]         # bf16 resident copy of the activation

    # Hoisted iotas (JAX does not CSE broadcast_in_dim).
    row_tt = jax.lax.broadcasted_iota(jnp.int32, (t_pad, t_pad), 0)
    col_tt = jax.lax.broadcasted_iota(jnp.int32, (t_pad, t_pad), 1)
    attn_mask = col_tt > row_tt
    if t < t_pad:                     # also mask padded key positions
        attn_mask = attn_mask | (col_tt >= t)
    row_t1 = jax.lax.broadcasted_iota(jnp.int32, (t_pad, 1), 0)

    # Slab 0: the (zero-padded) input, written once in f32 and once in bf16.
    x = x_ref[...]
    o_ref[:, :c_in_pad] = x
    act_ref[:, :c_in_pad] = x.astype(jnp.bfloat16)

    for bi, blk in enumerate(blocks):
        c_in = blk["c_in_pad"]
        dst = blk["dst"]
        act16 = act_ref[:, :c_in]                      # bf16 MXU operand
        w = w_refs[bi][...]                            # bf16 fused weight
        b = b_ref[:, blk["b_off"]:blk["b_off"] + blk["b_width"]]

        if blk["kind"] == "attn":
            ksz = blk["key_size"]
            vw = blk["value_width"]
            # Fused QKV projection (1/sqrt(key_size) already folded into Wq).
            qkv = jnp.dot(act16, w, preferred_element_type=jnp.float32) + b
            q16 = qkv[:, :ksz].astype(jnp.bfloat16)
            k16 = qkv[:, ksz:2 * ksz].astype(jnp.bfloat16)
            v16 = qkv[:, 2 * ksz:].astype(jnp.bfloat16)
            logits = jax.lax.dot_general(
                q16, k16, (((1,), (1,)), ((), ())),
                preferred_element_type=jnp.float32)
            logits = jnp.where(attn_mask, -1e30, logits)   # finite mask: no NaN
            m = jnp.max(logits, axis=-1, keepdims=True)
            p = jnp.exp(logits - m)
            p = p / jnp.sum(p, axis=-1, keepdims=True)
            pv = jnp.dot(p.astype(jnp.bfloat16), v16,
                         preferred_element_type=jnp.float32)
            if blk["merge"]:
                # attn1's 32-wide value shares the input's 128-lane slab; its
                # weight columns are zero where the input lives, so a simple
                # add merges the two and keeps the store lane-dense.
                pv = o_ref[:, dst:dst + vw] + pv
            o_ref[:, dst:dst + vw] = pv
            act_ref[:, dst:dst + vw] = pv.astype(jnp.bfloat16)

        else:  # gated causal dilated conv1d (kernel size 2), both taps fused
            filt = blk["filters"]
            d = blk["dilation"]
            y = jnp.dot(act16, w, preferred_element_type=jnp.float32)
            y0 = y[:, :2 * filt]       # tap at t-d (before the causal shift)
            y1 = y[:, 2 * filt:]       # tap at t
            # Causal shift by d rows on the XLU: out[r] = y0[r-d]; rows < d
            # (wrapped rows from the roll) are zeroed -> causal zero padding.
            y0 = pltpu.roll(y0, d, axis=0)
            y0 = jnp.where(row_t1 < d, 0.0, y0)
            fg = y0 + y1 + b
            gated = jnp.tanh(fg[:, :filt]) * jax.nn.sigmoid(fg[:, filt:])
            o_ref[:, dst:dst + filt] = gated
            act_ref[:, dst:dst + filt] = gated.astype(jnp.bfloat16)


# ------------------------------ parameter setup ------------------------------


def _uniform(key, shape, bound):
    return jax.random.uniform(key, shape, jnp.float32, -bound, bound)


def _init_linear(key, fan_in, fan_out):
    kw, kb = jax.random.split(key)
    bound = 1.0 / math.sqrt(fan_in)
    return _uniform(kw, (fan_in, fan_out), bound), _uniform(kb, (1, fan_out), bound)


def _embed_rows(w_true, rows_pad, true_cols):
    """Scatter true weight rows into a zero (rows_pad, N) matrix so the weight
    lines up with the 128-lane-aligned padded channel layout."""
    wp = jnp.zeros((rows_pad, w_true.shape[1]), jnp.float32)
    return wp.at[jnp.asarray(true_cols, dtype=jnp.int32), :].set(w_true)


class SnailPallas:
    """Mirrors Snail.__init__ channel bookkeeping; forward = one fused kernel."""

    def __init__(self, input_size, seq_length, key):
        self.input_size = input_size
        self.seq_length = seq_length
        self.no_layer = int(math.ceil(math.log(seq_length, 2)))
        self.t = seq_length
        self.t_pad = max(SUBLANE, _round_up(seq_length, SUBLANE))

        self._blocks = []       # static descriptors consumed by the kernel
        self._weights = []      # one fused bf16 weight per block
        self._bias_parts = []   # per-block f32 biases (packed at the end)
        self._bias_off = 0
        self._slabs = []        # (padded col offset, true width) per slab
        self._ref_blocks = []   # unfused f32 params for the pure-JAX reference
        self._true_cols = []    # padded column index of every true channel
        self._c_true = 0
        self._c_pad = 0

        keys = iter(jax.random.split(key, 3 + 2 * self.no_layer))

        # slab 0: the input itself, zero padded to a full 128-lane slab.
        self.c_in_pad = _round_up(input_size, LANE)
        self._slabs.append((0, input_size))
        self._true_cols.extend(range(input_size))
        self._c_true = input_size
        self._c_pad = self.c_in_pad

        # attn1 -> tc1 -> attn2 -> tc2 -> attn3 (canonical SNAIL layout).
        # attn1's 32-wide value is merged into the input's 128-lane slab.
        self._add_attention(next(keys), key_size=64, value_size=32, merge=True)
        for i in range(self.no_layer):
            self._add_dense(next(keys), filters=128, dilation=2 ** i)
        self._add_attention(next(keys), key_size=256, value_size=128)
        for i in range(self.no_layer):
            self._add_dense(next(keys), filters=128, dilation=2 ** i)
        self._add_attention(next(keys), key_size=512, value_size=256)

        self.out_filters = self._c_true
        self.c_total_pad = self._c_pad
        self._bias = jnp.concatenate(self._bias_parts, axis=1)

        # -------- cost estimate + VMEM budget (computed from actual bytes) ---
        T = self.t_pad
        flops = 0
        trans = 0
        for blk in self._blocks:
            cin = blk["c_in_pad"]
            if blk["kind"] == "attn":
                ksz, vw = blk["key_size"], blk["value_width"]
                flops += 2 * T * cin * (2 * ksz + vw) + 2 * T * T * ksz + 2 * T * T * vw
                trans += T * T
            else:
                flops += 2 * T * cin * 4 * blk["filters"]
                trans += 2 * T * blk["filters"]
        weight_bytes = sum(int(w.size) * 2 for w in self._weights)
        bias_bytes = int(self._bias.size) * 4
        in_bytes = T * self.c_in_pad * 4
        out_bytes = T * self.c_total_pad * 4
        scratch_bytes = T * self.c_total_pad * 2
        bytes_accessed = weight_bytes + bias_bytes + in_bytes + out_bytes
        resident = bytes_accessed + scratch_bytes
        vmem_limit = int(min(100 * 2 ** 20, max(32 * 2 ** 20, 2 * resident)))

        kernel = functools.partial(
            _snail_fused_kernel, blocks=tuple(self._blocks), t=self.t,
            t_pad=self.t_pad, c_in_pad=self.c_in_pad)
        n_in = 1 + len(self._weights) + 1
        vmem_spec = pl.BlockSpec(memory_space=pltpu.MemorySpace.VMEM)
        self._forward = pl.pallas_call(
            kernel,
            out_shape=jax.ShapeDtypeStruct((self.t_pad, self.c_total_pad),
                                           jnp.float32),
            in_specs=[vmem_spec] * n_in,
            out_specs=vmem_spec,
            scratch_shapes=[pltpu.VMEM((self.t_pad, self.c_total_pad),
                                       jnp.bfloat16)],
            compiler_params=pltpu.CompilerParams(vmem_limit_bytes=vmem_limit),
            cost_estimate=pl.CostEstimate(flops=flops, transcendentals=trans,
                                          bytes_accessed=bytes_accessed),
        )

    # -------------------------- block construction ---------------------------

    def _add_attention(self, key, key_size, value_size, merge=False):
        fan_in = self._c_true
        kq, kk, kv = jax.random.split(key, 3)
        wq, bq = _init_linear(kq, fan_in, key_size)
        wk, bk = _init_linear(kk, fan_in, key_size)
        wv, bv = _init_linear(kv, fan_in, value_size)
        scale = 1.0 / math.sqrt(key_size)
        self._ref_blocks.append(("attn", (wq, bq, wk, bk, wv, bv), scale))

        if merge:
            v_width = self.c_in_pad          # share the input's 128-lane slab
            v_off = self.input_size
            dst = 0
        else:
            v_width = _round_up(value_size, LANE)
            v_off = 0
            dst = self._c_pad

        wv_blk = jnp.zeros((fan_in, v_width), jnp.float32)
        wv_blk = wv_blk.at[:, v_off:v_off + value_size].set(wv)
        bv_blk = jnp.zeros((1, v_width), jnp.float32)
        bv_blk = bv_blk.at[:, v_off:v_off + value_size].set(bv)

        # Fused QKV weight; 1/sqrt(key_size) folded into the Q columns.
        w_qkv = jnp.concatenate([wq * scale, wk, wv_blk], axis=1)
        b_qkv = jnp.concatenate([bq * scale, bk, bv_blk], axis=1)
        w_qkv = _embed_rows(w_qkv, self._c_pad, self._true_cols)

        b_off = self._bias_off
        self._bias_parts.append(b_qkv)
        self._bias_off += b_qkv.shape[1]

        self._weights.append(w_qkv.astype(jnp.bfloat16))
        self._blocks.append(dict(kind="attn", key_size=key_size,
                                 value_width=v_width, merge=merge,
                                 c_in_pad=self._c_pad, dst=dst,
                                 b_off=b_off, b_width=b_qkv.shape[1]))

        self._slabs.append((dst + v_off, value_size))
        self._true_cols.extend(range(dst + v_off, dst + v_off + value_size))
        self._c_true += value_size
        if not merge:
            self._c_pad += v_width

    def _add_dense(self, key, filters, dilation):
        fan_in = self._c_true
        # PyTorch Conv1d(kernel_size=2) init: fan_in = in_channels * 2
        bound = 1.0 / math.sqrt(fan_in * 2)
        ks = jax.random.split(key, 6)
        wf0 = _uniform(ks[0], (fan_in, filters), bound)
        wf1 = _uniform(ks[1], (fan_in, filters), bound)
        bf = _uniform(ks[2], (1, filters), bound)
        wg0 = _uniform(ks[3], (fan_in, filters), bound)
        wg1 = _uniform(ks[4], (fan_in, filters), bound)
        bg = _uniform(ks[5], (1, filters), bound)
        self._ref_blocks.append(("dense", (wf0, wf1, bf, wg0, wg1, bg), dilation))

        # Fuse BOTH conv taps and the f|g gates into one (C_pad, 4F) matmul:
        # columns [wf0 | wg0 | wf1 | wg1]; first 2F columns are the t-d tap.
        w = jnp.concatenate([wf0, wg0, wf1, wg1], axis=1)
        w = _embed_rows(w, self._c_pad, self._true_cols)
        b = jnp.concatenate([bf, bg], axis=1)

        b_off = self._bias_off
        self._bias_parts.append(b)
        self._bias_off += b.shape[1]

        dst = self._c_pad
        self._weights.append(w.astype(jnp.bfloat16))
        self._blocks.append(dict(kind="dense", filters=filters,
                                 dilation=dilation, c_in_pad=self._c_pad,
                                 dst=dst, b_off=b_off, b_width=b.shape[1]))
        self._slabs.append((dst, filters))
        self._true_cols.extend(range(dst, dst + filters))
        self._c_true += filters
        self._c_pad += filters

    # -------------------------------- forward --------------------------------

    def __call__(self, x):
        assert x.ndim == 2
        t, c = x.shape
        assert (t, c) == (self.seq_length, self.input_size)
        x_pad = jnp.zeros((self.t_pad, self.c_in_pad), jnp.float32)
        x_pad = x_pad.at[:t, :c].set(x.astype(jnp.float32))
        out_pad = self._forward(x_pad, *self._weights, self._bias)
        # Reassemble the true concatenated channel layout (glue, one concat).
        pieces = [out_pad[:t, o:o + w] for (o, w) in self._slabs]
        return jnp.concatenate(pieces, axis=1)

    # Pure-JAX f32 reference of the same forward (sanity check only).
    def reference(self, x):
        x = x.astype(jnp.float32)
        t = x.shape[0]
        row = jnp.arange(t)[:, None]
        col = jnp.arange(t)[None, :]
        for kind, params, extra in self._ref_blocks:
            if kind == "attn":
                wq, bq, wk, bk, wv, bv = params
                q = x @ wq + bq
                k = x @ wk + bk
                v = x @ wv + bv
                logits = (q @ k.T) * extra
                logits = jnp.where(col > row, -jnp.inf, logits)
                p = jax.nn.softmax(logits, axis=-1)
                x = jnp.concatenate([x, p @ v], axis=1)
            else:
                wf0, wf1, bf, wg0, wg1, bg = params
                d = extra
                xp = jnp.pad(x, ((d, 0), (0, 0)))[:t, :]
                f = xp @ wf0 + x @ wf1 + bf
                g = xp @ wg0 + x @ wg1 + bg
                x = jnp.concatenate([x, jnp.tanh(f) * jax.nn.sigmoid(g)], axis=1)
        return x


if __name__ == "__main__":
    input_size, seq_length = 4, 8
    key = jax.random.PRNGKey(0)
    pkey, xkey = jax.random.split(key)

    model = SnailPallas(input_size, seq_length, pkey)
    x = jax.random.normal(xkey, (seq_length, input_size), dtype=jnp.float32)

    out = jax.block_until_ready(model(x))

    expected = (seq_length, model.out_filters)   # (8, 1188) for these sizes
    assert out.shape == expected, (out.shape, expected)
    assert bool(jnp.all(jnp.isfinite(out)))

    # Loose sanity check vs a pure-JAX f32 reference (kernel uses bf16 MXU
    # operands throughout, so tolerances are generous).
    ref = jax.block_until_ready(model.reference(x))
    assert bool(jnp.allclose(out, ref, atol=2e-1, rtol=2e-1)), float(
        jnp.max(jnp.abs(out - ref)))

    print("KERNEL_OK")
</pallas_src>

<mosaic_0001>
module attributes {stable_mosaic.version = 11 : i64} {
  func.func @_snail_fused_kernel(%arg0: memref<8x128xf32, #tpu.memory_space<vmem>>, %arg1: memref<128x256xbf16, #tpu.memory_space<vmem>>, %arg2: memref<128x512xbf16, #tpu.memory_space<vmem>>, %arg3: memref<256x512xbf16, #tpu.memory_space<vmem>>, %arg4: memref<384x512xbf16, #tpu.memory_space<vmem>>, %arg5: memref<512x640xbf16, #tpu.memory_space<vmem>>, %arg6: memref<640x512xbf16, #tpu.memory_space<vmem>>, %arg7: memref<768x512xbf16, #tpu.memory_space<vmem>>, %arg8: memref<896x512xbf16, #tpu.memory_space<vmem>>, %arg9: memref<1024x1280xbf16, #tpu.memory_space<vmem>>, %arg10: memref<1x3712xf32, #tpu.memory_space<vmem>>, %arg11: memref<8x1280xf32, #tpu.memory_space<vmem>>, %arg12: memref<8x1280xbf16, #tpu.memory_space<vmem>>) attributes {dimension_semantics = [], scalar_prefetch = 0 : i64, scratch_operands = 1 : i64, tpu.core_type = #tpu.core_type<tc>} {
    %0 = tpu.iota {dimensions = array<i32: 0>} : vector<8x8xi32>
    %1 = tpu.iota {dimensions = array<i32: 1>} : vector<8x8xi32>
    %2 = arith.cmpi sgt, %1, %0 : vector<8x8xi32>
    %3 = tpu.iota {dimensions = array<i32: 0>} : vector<8x1xi32>
    %c0 = arith.constant 0 : index
    %c0_0 = arith.constant 0 : index
    %4 = vector.load %arg0[%c0, %c0_0] : memref<8x128xf32, #tpu.memory_space<vmem>>, vector<8x128xf32>
    %c0_1 = arith.constant 0 : index
    %c0_2 = arith.constant 0 : index
    %5 = vector.load %arg11[%c0_1, %c0_2] : memref<8x1280xf32, #tpu.memory_space<vmem>>, vector<8x128xf32>
    tpu.vector_store %arg11[%c0_1, %c0_2], %4 {strides = array<i32>} : memref<8x1280xf32, #tpu.memory_space<vmem>>, vector<8x128xf32>,
    %6 = arith.truncf %4 : vector<8x128xf32> to vector<8x128xbf16>
    %c0_3 = arith.constant 0 : index
    %c0_4 = arith.constant 0 : index
    %7 = vector.load %arg12[%c0_3, %c0_4] : memref<8x1280xbf16, #tpu.memory_space<vmem>>, vector<8x128xbf16>
    tpu.vector_store %arg12[%c0_3, %c0_4], %6 {strides = array<i32>} : memref<8x1280xbf16, #tpu.memory_space<vmem>>, vector<8x128xbf16>,
    %c0_5 = arith.constant 0 : index
    %c0_6 = arith.constant 0 : index
    %8 = vector.load %arg12[%c0_5, %c0_6] : memref<8x1280xbf16, #tpu.memory_space<vmem>>, vector<8x128xbf16>
    %c0_7 = arith.constant 0 : index
    %c0_8 = arith.constant 0 : index
    %9 = vector.load %arg1[%c0_7, %c0_8] : memref<128x256xbf16, #tpu.memory_space<vmem>>, vector<128x256xbf16>
    %c0_9 = arith.constant 0 : index
    %c0_10 = arith.constant 0 : index
    %10 = vector.load %arg10[%c0_9, %c0_10] : memref<1x3712xf32, #tpu.memory_space<vmem>>, vector<1x256xf32>
    %cst = arith.constant dense<0.000000e+00> : vector<8x256xf32>
    %11 = tpu.matmul %8, %9, %cst {dimension_numbers = #tpu.dot_dimension_numbers<[1], [0], [0], [1], [0, 0, 1, 1], [], []>} : vector<8x128xbf16>, vector<128x256xbf16>, vector<8x256xf32> -> vector<8x256xf32>
    %12 = vector.broadcast %10 : vector<1x256xf32> to vector<8x256xf32>
    %13 = arith.addf %11, %12 : vector<8x256xf32>
    %14 = vector.extract_strided_slice %13 {offsets = [0, 0], sizes = [8, 64], strides = [1, 1]} : vector<8x256xf32> to vector<8x64xf32>
    %15 = arith.truncf %14 : vector<8x64xf32> to vector<8x64xbf16>
    %16 = vector.extract_strided_slice %13 {offsets = [0, 64], sizes = [8, 64], strides = [1, 1]} : vector<8x256xf32> to vector<8x64xf32>
    %17 = arith.truncf %16 : vector<8x64xf32> to vector<8x64xbf16>
    %18 = vector.extract_strided_slice %13 {offsets = [0, 128], sizes = [8, 128], strides = [1, 1]} : vector<8x256xf32> to vector<8x128xf32>
    %19 = arith.truncf %18 : vector<8x128xf32> to vector<8x128xbf16>
    %cst_11 = arith.constant dense<0.000000e+00> : vector<8x8xf32>
    %20 = tpu.matmul %15, %17, %cst_11 {dimension_numbers = #tpu.dot_dimension_numbers<[1], [1], [0], [0], [0, 0, 1, 0], [], []>} : vector<8x64xbf16>, vector<8x64xbf16>, vector<8x8xf32> -> vector<8x8xf32>
    %cst_12 = arith.constant -1.000000e+30 : f32
    %21 = vector.broadcast %cst_12 : f32 to vector<8x8xf32>
    %22 = arith.select %2, %21, %20 : vector<8x8xi1>, vector<8x8xf32>
    %cst_13 = arith.constant dense<0xFF800000> : vector<8xf32>
    %23 = vector.multi_reduction <maximumf>, %22, %cst_13 [1] : vector<8x8xf32> to vector<8xf32>
    %24 = vector.shape_cast %23 : vector<8xf32> to vector<8x1xf32>
    %25 = vector.broadcast %24 : vector<8x1xf32> to vector<8x8xf32>
    %26 = arith.subf %22, %25 : vector<8x8xf32>
    %27 = math.exp %26 : vector<8x8xf32>
    %cst_14 = arith.constant dense<0.000000e+00> : vector<8xf32>
    %28 = vector.multi_reduction <add>, %27, %cst_14 [1] : vector<8x8xf32> to vector<8xf32>
    %29 = vector.shape_cast %28 : vector<8xf32> to vector<8x1xf32>
    %30 = vector.broadcast %29 : vector<8x1xf32> to vector<8x8xf32>
    %31 = arith.divf %27, %30 : vector<8x8xf32>
    %32 = arith.truncf %31 : vector<8x8xf32> to vector<8x8xbf16>
    %cst_15 = arith.constant dense<0.000000e+00> : vector<8x128xf32>
    %33 = tpu.matmul %32, %19, %cst_15 {dimension_numbers = #tpu.dot_dimension_numbers<[1], [0], [0], [1], [0, 0, 1, 1], [], []>} : vector<8x8xbf16>, vector<8x128xbf16>, vector<8x128xf32> -> vector<8x128xf32>
    %c0_16 = arith.constant 0 : index
    %c0_17 = arith.constant 0 : index
    %34 = vector.load %arg11[%c0_16, %c0_17] : memref<8x1280xf32, #tpu.memory_space<vmem>>, vector<8x128xf32>
    %35 = arith.addf %34, %33 : vector<8x128xf32>
    %c0_18 = arith.constant 0 : index
    %c0_19 = arith.constant 0 : index
    %36 = vector.load %arg11[%c0_18, %c0_19] : memref<8x1280xf32, #tpu.memory_space<vmem>>, vector<8x128xf32>
    tpu.vector_store %arg11[%c0_18, %c0_19], %35 {strides = array<i32>} : memref<8x1280xf32, #tpu.memory_space<vmem>>, vector<8x128xf32>,
    %37 = arith.truncf %35 : vector<8x128xf32> to vector<8x128xbf16>
    %c0_20 = arith.constant 0 : index
    %c0_21 = arith.constant 0 : index
    %38 = vector.load %arg12[%c0_20, %c0_21] : memref<8x1280xbf16, #tpu.memory_space<vmem>>, vector<8x128xbf16>
    tpu.vector_store %arg12[%c0_20, %c0_21], %37 {strides = array<i32>} : memref<8x1280xbf16, #tpu.memory_space<vmem>>, vector<8x128xbf16>,
    %c0_22 = arith.constant 0 : index
    %c0_23 = arith.constant 0 : index
    %39 = vector.load %arg12[%c0_22, %c0_23] : memref<8x1280xbf16, #tpu.memory_space<vmem>>, vector<8x128xbf16>
    %c0_24 = arith.constant 0 : index
    %c0_25 = arith.constant 0 : index
    %40 = vector.load %arg2[%c0_24, %c0_25] : memref<128x512xbf16, #tpu.memory_space<vmem>>, vector<128x512xbf16>
    %c0_26 = arith.constant 0 : index
    %c256 = arith.constant 256 : index
    %41 = vector.load %arg10[%c0_26, %c256] : memref<1x3712xf32, #tpu.memory_space<vmem>>, vector<1x256xf32>
    %cst_27 = arith.constant dense<0.000000e+00> : vector<8x512xf32>
    %42 = tpu.matmul %39, %40, %cst_27 {dimension_numbers = #tpu.dot_dimension_numbers<[1], [0], [0], [1], [0, 0, 1, 1], [], []>} : vector<8x128xbf16>, vector<128x512xbf16>, vector<8x512xf32> -> vector<8x512xf32>
    %43 = vector.extract_strided_slice %42 {offsets = [0, 0], sizes = [8, 256], strides = [1, 1]} : vector<8x512xf32> to vector<8x256xf32>
    %44 = vector.extract_strided_slice %42 {offsets = [0, 256], sizes = [8, 256], strides = [1, 1]} : vector<8x512xf32> to vector<8x256xf32>
    %c1_i32 = arith.constant 1 : i32
    %45 = tpu.dynamic_rotate %43 by %c1_i32 dim 0 : vector<8x256xf32>, i32 -> vector<8x256xf32>
    %c1_i32_28 = arith.constant 1 : i32
    %46 = vector.broadcast %c1_i32_28 : i32 to vector<8x1xi32>
    %47 = arith.cmpi slt, %3, %46 : vector<8x1xi32>
    %cst_29 = arith.constant 0.000000e+00 : f32
    %48 = vector.shape_cast %47 : vector<8x1xi1> to vector<8x1xi1>
    %49 = vector.broadcast %48 : vector<8x1xi1> to vector<8x256xi1>
    %50 = vector.broadcast %cst_29 : f32 to vector<8x256xf32>
    %51 = arith.select %49, %50, %45 : vector<8x256xi1>, vector<8x256xf32>
    %52 = arith.addf %51, %44 : vector<8x256xf32>
    %53 = vector.broadcast %41 : vector<1x256xf32> to vector<8x256xf32>
    %54 = arith.addf %52, %53 : vector<8x256xf32>
    %55 = vector.extract_strided_slice %54 {offsets = [0, 0], sizes = [8, 128], strides = [1, 1]} : vector<8x256xf32> to vector<8x128xf32>
    %56 = math.tanh %55 : vector<8x128xf32>
    %57 = vector.extract_strided_slice %54 {offsets = [0, 128], sizes = [8, 128], strides = [1, 1]} : vector<8x256xf32> to vector<8x128xf32>
    %58 = arith.negf %57 : vector<8x128xf32>
    %59 = math.exp %58 : vector<8x128xf32>
    %cst_30 = arith.constant 1.000000e+00 : f32
    %60 = vector.broadcast %cst_30 : f32 to vector<8x128xf32>
    %61 = arith.addf %60, %59 : vector<8x128xf32>
    %62 = arith.divf %60, %61 : vector<8x128xf32>
    %63 = arith.mulf %56, %62 : vector<8x128xf32>
    %c0_31 = arith.constant 0 : index
    %c128 = arith.constant 128 : index
    %64 = vector.load %arg11[%c0_31, %c128] : memref<8x1280xf32, #tpu.memory_space<vmem>>, vector<8x128xf32>
    tpu.vector_store %arg11[%c0_31, %c128], %63 {strides = array<i32>} : memref<8x1280xf32, #tpu.memory_space<vmem>>, vector<8x128xf32>,
    %65 = arith.truncf %63 : vector<8x128xf32> to vector<8x128xbf16>
    %c0_32 = arith.constant 0 : index
    %c128_33 = arith.constant 128 : index
    %66 = vector.load %arg12[%c0_32, %c128_33] : memref<8x1280xbf16, #tpu.memory_space<vmem>>, vector<8x128xbf16>
    tpu.vector_store %arg12[%c0_32, %c128_33], %65 {strides = array<i32>} : memref<8x1280xbf16, #tpu.memory_space<vmem>>, vector<8x128xbf16>,
    %c0_34 = arith.constant 0 : index
    %c0_35 = arith.constant 0 : index
    %67 = vector.load %arg12[%c0_34, %c0_35] : memref<8x1280xbf16, #tpu.memory_space<vmem>>, vector<8x256xbf16>
    %c0_36 = arith.constant 0 : index
    %c0_37 = arith.constant 0 : index
    %68 = vector.load %arg3[%c0_36, %c0_37] : memref<256x512xbf16, #tpu.memory_space<vmem>>, vector<256x512xbf16>
    %c0_38 = arith.constant 0 : index
    %c512 = arith.constant 512 : index
    %69 = vector.load %arg10[%c0_38, %c512] : memref<1x3712xf32, #tpu.memory_space<vmem>>, vector<1x256xf32>
    %cst_39 = arith.constant dense<0.000000e+00> : vector<8x512xf32>
    %70 = tpu.matmul %67, %68, %cst_39 {dimension_numbers = #tpu.dot_dimension_numbers<[1], [0], [0], [1], [0, 0, 1, 1], [], []>} : vector<8x256xbf16>, vector<256x512xbf16>, vector<8x512xf32> -> vector<8x512xf32>
    %71 = vector.extract_strided_slice %70 {offsets = [0, 0], sizes = [8, 256], strides = [1, 1]} : vector<8x512xf32> to vector<8x256xf32>
    %72 = vector.extract_strided_slice %70 {offsets = [0, 256], sizes = [8, 256], strides = [1, 1]} : vector<8x512xf32> to vector<8x256xf32>
    %c2_i32 = arith.constant 2 : i32
    %73 = tpu.dynamic_rotate %71 by %c2_i32 dim 0 : vector<8x256xf32>, i32 -> vector<8x256xf32>
    %c2_i32_40 = arith.constant 2 : i32
    %74 = vector.broadcast %c2_i32_40 : i32 to vector<8x1xi32>
    %75 = arith.cmpi slt, %3, %74 : vector<8x1xi32>
    %cst_41 = arith.constant 0.000000e+00 : f32
    %76 = vector.shape_cast %75 : vector<8x1xi1> to vector<8x1xi1>
    %77 = vector.broadcast %76 : vector<8x1xi1> to vector<8x256xi1>
    %78 = vector.broadcast %cst_41 : f32 to vector<8x256xf32>
    %79 = arith.select %77, %78, %73 : vector<8x256xi1>, vector<8x256xf32>
    %80 = arith.addf %79, %72 : vector<8x256xf32>
    %81 = vector.broadcast %69 : vector<1x256xf32> to vector<8x256xf32>
    %82 = arith.addf %80, %81 : vector<8x256xf32>
    %83 = vector.extract_strided_slice %82 {offsets = [0, 0], sizes = [8, 128], strides = [1, 1]} : vector<8x256xf32> to vector<8x128xf32>
    %84 = math.tanh %83 : vector<8x128xf32>
    %85 = vector.extract_strided_slice %82 {offsets = [0, 128], sizes = [8, 128], strides = [1, 1]} : vector<8x256xf32> to vector<8x128xf32>
    %86 = arith.negf %85 : vector<8x128xf32>
    %87 = math.exp %86 : vector<8x128xf32>
    %cst_42 = arith.constant 1.000000e+00 : f32
    %88 = vector.broadcast %cst_42 : f32 to vector<8x128xf32>
    %89 = arith.addf %88, %87 : vector<8x128xf32>
    %90 = arith.divf %88, %89 : vector<8x128xf32>
    %91 = arith.mulf %84, %90 : vector<8x128xf32>
    %c0_43 = arith.constant 0 : index
    %c256_44 = arith.constant 256 : index
    %92 = vector.load %arg11[%c0_43, %c256_44] : memref<8x1280xf32, #tpu.memory_space<vmem>>, vector<8x128xf32>
    tpu.vector_store %arg11[%c0_43, %c256_44], %91 {strides = array<i32>} : memref<8x1280xf32, #tpu.memory_space<vmem>>, vector<8x128xf32>,
    %93 = arith.truncf %91 : vector<8x128xf32> to vector<8x128xbf16>
    %c0_45 = arith.constant 0 : index
    %c256_46 = arith.constant 256 : index
    %94 = vector.load %arg12[%c0_45, %c256_46] : memref<8x1280xbf16, #tpu.memory_space<vmem>>, vector<8x128xbf16>
    tpu.vector_store %arg12[%c0_45, %c256_46], %93 {strides = array<i32>} : memref<8x1280xbf16, #tpu.memory_space<vmem>>, vector<8x128xbf16>,
    %c0_47 = arith.constant 0 : index
    %c0_48 = arith.constant 0 : index
    %95 = vector.load %arg12[%c0_47, %c0_48] : memref<8x1280xbf16, #tpu.memory_space<vmem>>, vector<8x384xbf16>
    %c0_49 = arith.constant 0 : index
    %c0_50 = arith.constant 0 : index
    %96 = vector.load %arg4[%c0_49, %c0_50] : memref<384x512xbf16, #tpu.memory_space<vmem>>, vector<384x512xbf16>
    %c0_51 = arith.constant 0 : index
    %c768 = arith.constant 768 : index
    %97 = vector.load %arg10[%c0_51, %c768] : memref<1x3712xf32, #tpu.memory_space<vmem>>, vector<1x256xf32>
    %cst_52 = arith.constant dense<0.000000e+00> : vector<8x512xf32>
    %98 = tpu.matmul %95, %96, %cst_52 {dimension_numbers = #tpu.dot_dimension_numbers<[1], [0], [0], [1], [0, 0, 1, 1], [], []>} : vector<8x384xbf16>, vector<384x512xbf16>, vector<8x512xf32> -> vector<8x512xf32>
    %99 = vector.extract_strided_slice %98 {offsets = [0, 0], sizes = [8, 256], strides = [1, 1]} : vector<8x512xf32> to vector<8x256xf32>
    %100 = vector.extract_strided_slice %98 {offsets = [0, 256], sizes = [8, 256], strides = [1, 1]} : vector<8x512xf32> to vector<8x256xf32>
    %c4_i32 = arith.constant 4 : i32
    %101 = tpu.dynamic_rotate %99 by %c4_i32 dim 0 : vector<8x256xf32>, i32 -> vector<8x256xf32>
    %c4_i32_53 = arith.constant 4 : i32
    %102 = vector.broadcast %c4_i32_53 : i32 to vector<8x1xi32>
    %103 = arith.cmpi slt, %3, %102 : vector<8x1xi32>
    %cst_54 = arith.constant 0.000000e+00 : f32
    %104 = vector.shape_cast %103 : vector<8x1xi1> to vector<8x1xi1>
    %105 = vector.broadcast %104 : vector<8x1xi1> to vector<8x256xi1>
    %106 = vector.broadcast %cst_54 : f32 to vector<8x256xf32>
    %107 = arith.select %105, %106, %101 : vector<8x256xi1>, vector<8x256xf32>
    %108 = arith.addf %107, %100 : vector<8x256xf32>
    %109 = vector.broadcast %97 : vector<1x256xf32> to vector<8x256xf32>
    %110 = arith.addf %108, %109 : vector<8x256xf32>
    %111 = vector.extract_strided_slice %110 {offsets = [0, 0], sizes = [8, 128], strides = [1, 1]} : vector<8x256xf32> to vector<8x128xf32>
    %112 = math.tanh %111 : vector<8x128xf32>
    %113 = vector.extract_strided_slice %110 {offsets = [0, 128], sizes = [8, 128], strides = [1, 1]} : vector<8x256xf32> to vector<8x128xf32>
    %114 = arith.negf %113 : vector<8x128xf32>
    %115 = math.exp %114 : vector<8x128xf32>
    %cst_55 = arith.constant 1.000000e+00 : f32
    %116 = vector.broadcast %cst_55 : f32 to vector<8x128xf32>
    %117 = arith.addf %116, %115 : vector<8x128xf32>
    %118 = arith.divf %116, %117 : vector<8x128xf32>
    %119 = arith.mulf %112, %118 : vector<8x128xf32>
    %c0_56 = arith.constant 0 : index
    %c384 = arith.constant 384 : index
    %120 = vector.load %arg11[%c0_56, %c384] : memref<8x1280xf32, #tpu.memory_space<vmem>>, vector<8x128xf32>
    tpu.vector_store %arg11[%c0_56, %c384], %119 {strides = array<i32>} : memref<8x1280xf32, #tpu.memory_space<vmem>>, vector<8x128xf32>,
    %121 = arith.truncf %119 : vector<8x128xf32> to vector<8x128xbf16>
    %c0_57 = arith.constant 0 : index
    %c384_58 = arith.constant 384 : index
    %122 = vector.load %arg12[%c0_57, %c384_58] : memref<8x1280xbf16, #tpu.memory_space<vmem>>, vector<8x128xbf16>
    tpu.vector_store %arg12[%c0_57, %c384_58], %121 {strides = array<i32>} : memref<8x1280xbf16, #tpu.memory_space<vmem>>, vector<8x128xbf16>,
    %c0_59 = arith.constant 0 : index
    %c0_60 = arith.constant 0 : index
    %123 = vector.load %arg12[%c0_59, %c0_60] : memref<8x1280xbf16, #tpu.memory_space<vmem>>, vector<8x512xbf16>
    %c0_61 = arith.constant 0 : index
    %c0_62 = arith.constant 0 : index
    %124 = vector.load %arg5[%c0_61, %c0_62] : memref<512x640xbf16, #tpu.memory_space<vmem>>, vector<512x640xbf16>
    %c0_63 = arith.constant 0 : index
    %c1024 = arith.constant 1024 : index
    %125 = vector.load %arg10[%c0_63, %c1024] : memref<1x3712xf32, #tpu.memory_space<vmem>>, vector<1x640xf32>
    %cst_64 = arith.constant dense<0.000000e+00> : vector<8x640xf32>
    %126 = tpu.matmul %123, %124, %cst_64 {dimension_numbers = #tpu.dot_dimension_numbers<[1], [0], [0], [1], [0, 0, 1, 1], [], []>} : vector<8x512xbf16>, vector<512x640xbf16>, vector<8x640xf32> -> vector<8x640xf32>
    %127 = vector.broadcast %125 : vector<1x640xf32> to vector<8x640xf32>
    %128 = arith.addf %126, %127 : vector<8x640xf32>
    %129 = vector.extract_strided_slice %128 {offsets = [0, 0], sizes = [8, 256], strides = [1, 1]} : vector<8x640xf32> to vector<8x256xf32>
    %130 = arith.truncf %129 : vector<8x256xf32> to vector<8x256xbf16>
    %131 = vector.extract_strided_slice %128 {offsets = [0, 256], sizes = [8, 256], strides = [1, 1]} : vector<8x640xf32> to vector<8x256xf32>
    %132 = arith.truncf %131 : vector<8x256xf32> to vector<8x256xbf16>
    %133 = vector.extract_strided_slice %128 {offsets = [0, 512], sizes = [8, 128], strides = [1, 1]} : vector<8x640xf32> to vector<8x128xf32>
    %134 = arith.truncf %133 : vector<8x128xf32> to vector<8x128xbf16>
    %cst_65 = arith.constant dense<0.000000e+00> : vector<8x8xf32>
    %135 = tpu.matmul %130, %132, %cst_65 {dimension_numbers = #tpu.dot_dimension_numbers<[1], [1], [0], [0], [0, 0, 1, 0], [], []>} : vector<8x256xbf16>, vector<8x256xbf16>, vector<8x8xf32> -> vector<8x8xf32>
    %cst_66 = arith.constant -1.000000e+30 : f32
    %136 = vector.broadcast %cst_66 : f32 to vector<8x8xf32>
    %137 = arith.select %2, %136, %135 : vector<8x8xi1>, vector<8x8xf32>
    %cst_67 = arith.constant dense<0xFF800000> : vector<8xf32>
    %138 = vector.multi_reduction <maximumf>, %137, %cst_67 [1] : vector<8x8xf32> to vector<8xf32>
    %139 = vector.shape_cast %138 : vector<8xf32> to vector<8x1xf32>
    %140 = vector.broadcast %139 : vector<8x1xf32> to vector<8x8xf32>
    %141 = arith.subf %137, %140 : vector<8x8xf32>
    %142 = math.exp %141 : vector<8x8xf32>
    %cst_68 = arith.constant dense<0.000000e+00> : vector<8xf32>
    %143 = vector.multi_reduction <add>, %142, %cst_68 [1] : vector<8x8xf32> to vector<8xf32>
    %144 = vector.shape_cast %143 : vector<8xf32> to vector<8x1xf32>
    %145 = vector.broadcast %144 : vector<8x1xf32> to vector<8x8xf32>
    %146 = arith.divf %142, %145 : vector<8x8xf32>
    %147 = arith.truncf %146 : vector<8x8xf32> to vector<8x8xbf16>
    %cst_69 = arith.constant dense<0.000000e+00> : vector<8x128xf32>
    %148 = tpu.matmul %147, %134, %cst_69 {dimension_numbers = #tpu.dot_dimension_numbers<[1], [0], [0], [1], [0, 0, 1, 1], [], []>} : vector<8x8xbf16>, vector<8x128xbf16>, vector<8x128xf32> -> vector<8x128xf32>
    %c0_70 = arith.constant 0 : index
    %c512_71 = arith.constant 512 : index
    %149 = vector.load %arg11[%c0_70, %c512_71] : memref<8x1280xf32, #tpu.memory_space<vmem>>, vector<8x128xf32>
    tpu.vector_store %arg11[%c0_70, %c512_71], %148 {strides = array<i32>} : memref<8x1280xf32, #tpu.memory_space<vmem>>, vector<8x128xf32>,
    %150 = arith.truncf %148 : vector<8x128xf32> to vector<8x128xbf16>
    %c0_72 = arith.constant 0 : index
    %c512_73 = arith.constant 512 : index
    %151 = vector.load %arg12[%c0_72, %c512_73] : memref<8x1280xbf16, #tpu.memory_space<vmem>>, vector<8x128xbf16>
    tpu.vector_store %arg12[%c0_72, %c512_73], %150 {strides = array<i32>} : memref<8x1280xbf16, #tpu.memory_space<vmem>>, vector<8x128xbf16>,
    %c0_74 = arith.constant 0 : index
    %c0_75 = arith.constant 0 : index
    %152 = vector.load %arg12[%c0_74, %c0_75] : memref<8x1280xbf16, #tpu.memory_space<vmem>>, vector<8x640xbf16>
    %c0_76 = arith.constant 0 : index
    %c0_77 = arith.constant 0 : index
    %153 = vector.load %arg6[%c0_76, %c0_77] : memref<640x512xbf16, #tpu.memory_space<vmem>>, vector<640x512xbf16>
    %c0_78 = arith.constant 0 : index
    %c1664 = arith.constant 1664 : index
    %154 = vector.load %arg10[%c0_78, %c1664] : memref<1x3712xf32, #tpu.memory_space<vmem>>, vector<1x256xf32>
    %cst_79 = arith.constant dense<0.000000e+00> : vector<8x512xf32>
    %155 = tpu.matmul %152, %153, %cst_79 {dimension_numbers = #tpu.dot_dimension_numbers<[1], [0], [0], [1], [0, 0, 1, 1], [], []>} : vector<8x640xbf16>, vector<640x512xbf16>, vector<8x512xf32> -> vector<8x512xf32>
    %156 = vector.extract_strided_slice %155 {offsets = [0, 0], sizes = [8, 256], strides = [1, 1]} : vector<8x512xf32> to vector<8x256xf32>
    %157 = vector.extract_strided_slice %155 {offsets = [0, 256], sizes = [8, 256], strides = [1, 1]} : vector<8x512xf32> to vector<8x256xf32>
    %c1_i32_80 = arith.constant 1 : i32
    %158 = tpu.dynamic_rotate %156 by %c1_i32_80 dim 0 : vector<8x256xf32>, i32 -> vector<8x256xf32>
    %c1_i32_81 = arith.constant 1 : i32
    %159 = vector.broadcast %c1_i32_81 : i32 to vector<8x1xi32>
    %160 = arith.cmpi slt, %3, %159 : vector<8x1xi32>
    %cst_82 = arith.constant 0.000000e+00 : f32
    %161 = vector.shape_cast %160 : vector<8x1xi1> to vector<8x1xi1>
    %162 = vector.broadcast %161 : vector<8x1xi1> to vector<8x256xi1>
    %163 = vector.broadcast %cst_82 : f32 to vector<8x256xf32>
    %164 = arith.select %162, %163, %158 : vector<8x256xi1>, vector<8x256xf32>
    %165 = arith.addf %164, %157 : vector<8x256xf32>
    %166 = vector.broadcast %154 : vector<1x256xf32> to vector<8x256xf32>
    %167 = arith.addf %165, %166 : vector<8x256xf32>
    %168 = vector.extract_strided_slice %167 {offsets = [0, 0], sizes = [8, 128], strides = [1, 1]} : vector<8x256xf32> to vector<8x128xf32>
    %169 = math.tanh %168 : vector<8x128xf32>
    %170 = vector.extract_strided_slice %167 {offsets = [0, 128], sizes = [8, 128], strides = [1, 1]} : vector<8x256xf32> to vector<8x128xf32>
    %171 = arith.negf %170 : vector<8x128xf32>
    %172 = math.exp %171 : vector<8x128xf32>
    %cst_83 = arith.constant 1.000000e+00 : f32
    %173 = vector.broadcast %cst_83 : f32 to vector<8x128xf32>
    %174 = arith.addf %173, %172 : vector<8x128xf32>
    %175 = arith.divf %173, %174 : vector<8x128xf32>
    %176 = arith.mulf %169, %175 : vector<8x128xf32>
    %c0_84 = arith.constant 0 : index
    %c640 = arith.constant 640 : index
    %177 = vector.load %arg11[%c0_84, %c640] : memref<8x1280xf32, #tpu.memory_space<vmem>>, vector<8x128xf32>
    tpu.vector_store %arg11[%c0_84, %c640], %176 {strides = array<i32>} : memref<8x1280xf32, #tpu.memory_space<vmem>>, vector<8x128xf32>,
    %178 = arith.truncf %176 : vector<8x128xf32> to vector<8x128xbf16>
    %c0_85 = arith.constant 0 : index
    %c640_86 = arith.constant 640 : index
    %179 = vector.load %arg12[%c0_85, %c640_86] : memref<8x1280xbf16, #tpu.memory_space<vmem>>, vector<8x128xbf16>
    tpu.vector_store %arg12[%c0_85, %c640_86], %178 {strides = array<i32>} : memref<8x1280xbf16, #tpu.memory_space<vmem>>, vector<8x128xbf16>,
    %c0_87 = arith.constant 0 : index
    %c0_88 = arith.constant 0 : index
    %180 = vector.load %arg12[%c0_87, %c0_88] : memref<8x1280xbf16, #tpu.memory_space<vmem>>, vector<8x768xbf16>
    %c0_89 = arith.constant 0 : index
    %c0_90 = arith.constant 0 : index
    %181 = vector.load %arg7[%c0_89, %c0_90] : memref<768x512xbf16, #tpu.memory_space<vmem>>, vector<768x512xbf16>
    %c0_91 = arith.constant 0 : index
    %c1920 = arith.constant 1920 : index
    %182 = vector.load %arg10[%c0_91, %c1920] : memref<1x3712xf32, #tpu.memory_space<vmem>>, vector<1x256xf32>
    %cst_92 = arith.constant dense<0.000000e+00> : vector<8x512xf32>
    %183 = tpu.matmul %180, %181, %cst_92 {dimension_numbers = #tpu.dot_dimension_numbers<[1], [0], [0], [1], [0, 0, 1, 1], [], []>} : vector<8x768xbf16>, vector<768x512xbf16>, vector<8x512xf32> -> vector<8x512xf32>
    %184 = vector.extract_strided_slice %183 {offsets = [0, 0], sizes = [8, 256], strides = [1, 1]} : vector<8x512xf32> to vector<8x256xf32>
    %185 = vector.extract_strided_slice %183 {offsets = [0, 256], sizes = [8, 256], strides = [1, 1]} : vector<8x512xf32> to vector<8x256xf32>
    %c2_i32_93 = arith.constant 2 : i32
    %186 = tpu.dynamic_rotate %184 by %c2_i32_93 dim 0 : vector<8x256xf32>, i32 -> vector<8x256xf32>
    %c2_i32_94 = arith.constant 2 : i32
    %187 = vector.broadcast %c2_i32_94 : i32 to vector<8x1xi32>
    %188 = arith.cmpi slt, %3, %187 : vector<8x1xi32>
    %cst_95 = arith.constant 0.000000e+00 : f32
    %189 = vector.shape_cast %188 : vector<8x1xi1> to vector<8x1xi1>
    %190 = vector.broadcast %189 : vector<8x1xi1> to vector<8x256xi1>
    %191 = vector.broadcast %cst_95 : f32 to vector<8x256xf32>
    %192 = arith.select %190, %191, %186 : vector<8x256xi1>, vector<8x256xf32>
    %193 = arith.addf %192, %185 : vector<8x256xf32>
    %194 = vector.broadcast %182 : vector<1x256xf32> to vector<8x256xf32>
    %195 = arith.addf %193, %194 : vector<8x256xf32>
    %196 = vector.extract_strided_slice %195 {offsets = [0, 0], sizes = [8, 128], strides = [1, 1]} : vector<8x256xf32> to vector<8x128xf32>
    %197 = math.tanh %196 : vector<8x128xf32>
    %198 = vector.extract_strided_slice %195 {offsets = [0, 128], sizes = [8, 128], strides = [1, 1]} : vector<8x256xf32> to vector<8x128xf32>
    %199 = arith.negf %198 : vector<8x128xf32>
    %200 = math.exp %199 : vector<8x128xf32>
    %cst_96 = arith.constant 1.000000e+00 : f32
    %201 = vector.broadcast %cst_96 : f32 to vector<8x128xf32>
    %202 = arith.addf %201, %200 : vector<8x128xf32>
    %203 = arith.divf %201, %202 : vector<8x128xf32>
    %204 = arith.mulf %197, %203 : vector<8x128xf32>
    %c0_97 = arith.constant 0 : index
    %c768_98 = arith.constant 768 : index
    %205 = vector.load %arg11[%c0_97, %c768_98] : memref<8x1280xf32, #tpu.memory_space<vmem>>, vector<8x128xf32>
    tpu.vector_store %arg11[%c0_97, %c768_98], %204 {strides = array<i32>} : memref<8x1280xf32, #tpu.memory_space<vmem>>, vector<8x128xf32>,
    %206 = arith.truncf %204 : vector<8x128xf32> to vector<8x128xbf16>
    %c0_99 = arith.constant 0 : index
    %c768_100 = arith.constant 768 : index
    %207 = vector.load %arg12[%c0_99, %c768_100] : memref<8x1280xbf16, #tpu.memory_space<vmem>>, vector<8x128xbf16>
    tpu.vector_store %arg12[%c0_99, %c768_100], %206 {strides = array<i32>} : memref<8x1280xbf16, #tpu.memory_space<vmem>>, vector<8x128xbf16>,
    %c0_101 = arith.constant 0 : index
    %c0_102 = arith.constant 0 : index
    %208 = vector.load %arg12[%c0_101, %c0_102] : memref<8x1280xbf16, #tpu.memory_space<vmem>>, vector<8x896xbf16>
    %c0_103 = arith.constant 0 : index
    %c0_104 = arith.constant 0 : index
    %209 = vector.load %arg8[%c0_103, %c0_104] : memref<896x512xbf16, #tpu.memory_space<vmem>>, vector<896x512xbf16>
    %c0_105 = arith.constant 0 : index
    %c2176 = arith.constant 2176 : index
    %210 = vector.load %arg10[%c0_105, %c2176] : memref<1x3712xf32, #tpu.memory_space<vmem>>, vector<1x256xf32>
    %cst_106 = arith.constant dense<0.000000e+00> : vector<8x512xf32>
    %211 = tpu.matmul %208, %209, %cst_106 {dimension_numbers = #tpu.dot_dimension_numbers<[1], [0], [0], [1], [0, 0, 1, 1], [], []>} : vector<8x896xbf16>, vector<896x512xbf16>, vector<8x512xf32> -> vector<8x512xf32>
    %212 = vector.extract_strided_slice %211 {offsets = [0, 0], sizes = [8, 256], strides = [1, 1]} : vector<8x512xf32> to vector<8x256xf32>
    %213 = vector.extract_strided_slice %211 {offsets = [0, 256], sizes = [8, 256], strides = [1, 1]} : vector<8x512xf32> to vector<8x256xf32>
    %c4_i32_107 = arith.constant 4 : i32
    %214 = tpu.dynamic_rotate %212 by %c4_i32_107 dim 0 : vector<8x256xf32>, i32 -> vector<8x256xf32>
    %c4_i32_108 = arith.constant 4 : i32
    %215 = vector.broadcast %c4_i32_108 : i32 to vector<8x1xi32>
    %216 = arith.cmpi slt, %3, %215 : vector<8x1xi32>
    %cst_109 = arith.constant 0.000000e+00 : f32
    %217 = vector.shape_cast %216 : vector<8x1xi1> to vector<8x1xi1>
    %218 = vector.broadcast %217 : vector<8x1xi1> to vector<8x256xi1>
    %219 = vector.broadcast %cst_109 : f32 to vector<8x256xf32>
    %220 = arith.select %218, %219, %214 : vector<8x256xi1>, vector<8x256xf32>
    %221 = arith.addf %220, %213 : vector<8x256xf32>
    %222 = vector.broadcast %210 : vector<1x256xf32> to vector<8x256xf32>
    %223 = arith.addf %221, %222 : vector<8x256xf32>
    %224 = vector.extract_strided_slice %223 {offsets = [0, 0], sizes = [8, 128], strides = [1, 1]} : vector<8x256xf32> to vector<8x128xf32>
    %225 = math.tanh %224 : vector<8x128xf32>
    %226 = vector.extract_strided_slice %223 {offsets = [0, 128], sizes = [8, 128], strides = [1, 1]} : vector<8x256xf32> to vector<8x128xf32>
    %227 = arith.negf %226 : vector<8x128xf32>
    %228 = math.exp %227 : vector<8x128xf32>
    %cst_110 = arith.constant 1.000000e+00 : f32
    %229 = vector.broadcast %cst_110 : f32 to vector<8x128xf32>
    %230 = arith.addf %229, %228 : vector<8x128xf32>
    %231 = arith.divf %229, %230 : vector<8x128xf32>
    %232 = arith.mulf %225, %231 : vector<8x128xf32>
    %c0_111 = arith.constant 0 : index
    %c896 = arith.constant 896 : index
    %233 = vector.load %arg11[%c0_111, %c896] : memref<8x1280xf32, #tpu.memory_space<vmem>>, vector<8x128xf32>
    tpu.vector_store %arg11[%c0_111, %c896], %232 {strides = array<i32>} : memref<8x1280xf32, #tpu.memory_space<vmem>>, vector<8x128xf32>,
    %234 = arith.truncf %232 : vector<8x128xf32> to vector<8x128xbf16>
    %c0_112 = arith.constant 0 : index
    %c896_113 = arith.constant 896 : index
    %235 = vector.load %arg12[%c0_112, %c896_113] : memref<8x1280xbf16, #tpu.memory_space<vmem>>, vector<8x128xbf16>
    tpu.vector_store %arg12[%c0_112, %c896_113], %234 {strides = array<i32>} : memref<8x1280xbf16, #tpu.memory_space<vmem>>, vector<8x128xbf16>,
    %c0_114 = arith.constant 0 : index
    %c0_115 = arith.constant 0 : index
    %236 = vector.load %arg12[%c0_114, %c0_115] : memref<8x1280xbf16, #tpu.memory_space<vmem>>, vector<8x1024xbf16>
    %c0_116 = arith.constant 0 : index
    %c0_117 = arith.constant 0 : index
    %237 = vector.load %arg9[%c0_116, %c0_117] : memref<1024x1280xbf16, #tpu.memory_space<vmem>>, vector<1024x1280xbf16>
    %c0_118 = arith.constant 0 : index
    %c2432 = arith.constant 2432 : index
    %238 = vector.load %arg10[%c0_118, %c2432] : memref<1x3712xf32, #tpu.memory_space<vmem>>, vector<1x1280xf32>
    %cst_119 = arith.constant dense<0.000000e+00> : vector<8x1280xf32>
    %239 = tpu.matmul %236, %237, %cst_119 {dimension_numbers = #tpu.dot_dimension_numbers<[1], [0], [0], [1], [0, 0, 1, 1], [], []>} : vector<8x1024xbf16>, vector<1024x1280xbf16>, vector<8x1280xf32> -> vector<8x1280xf32>
    %240 = vector.broadcast %238 : vector<1x1280xf32> to vector<8x1280xf32>
    %241 = arith.addf %239, %240 : vector<8x1280xf32>
    %242 = vector.extract_strided_slice %241 {offsets = [0, 0], sizes = [8, 512], strides = [1, 1]} : vector<8x1280xf32> to vector<8x512xf32>
    %243 = arith.truncf %242 : vector<8x512xf32> to vector<8x512xbf16>
    %244 = vector.extract_strided_slice %241 {offsets = [0, 512], sizes = [8, 512], strides = [1, 1]} : vector<8x1280xf32> to vector<8x512xf32>
    %245 = arith.truncf %244 : vector<8x512xf32> to vector<8x512xbf16>
    %246 = vector.extract_strided_slice %241 {offsets = [0, 1024], sizes = [8, 256], strides = [1, 1]} : vector<8x1280xf32> to vector<8x256xf32>
    %247 = arith.truncf %246 : vector<8x256xf32> to vector<8x256xbf16>
    %cst_120 = arith.constant dense<0.000000e+00> : vector<8x8xf32>
    %248 = tpu.matmul %243, %245, %cst_120 {dimension_numbers = #tpu.dot_dimension_numbers<[1], [1], [0], [0], [0, 0, 1, 0], [], []>} : vector<8x512xbf16>, vector<8x512xbf16>, vector<8x8xf32> -> vector<8x8xf32>
    %cst_121 = arith.constant -1.000000e+30 : f32
    %249 = vector.broadcast %cst_121 : f32 to vector<8x8xf32>
    %250 = arith.select %2, %249, %248 : vector<8x8xi1>, vector<8x8xf32>
    %cst_122 = arith.constant dense<0xFF800000> : vector<8xf32>
    %251 = vector.multi_reduction <maximumf>, %250, %cst_122 [1] : vector<8x8xf32> to vector<8xf32>
    %252 = vector.shape_cast %251 : vector<8xf32> to vector<8x1xf32>
    %253 = vector.broadcast %252 : vector<8x1xf32> to vector<8x8xf32>
    %254 = arith.subf %250, %253 : vector<8x8xf32>
    %255 = math.exp %254 : vector<8x8xf32>
    %cst_123 = arith.constant dense<0.000000e+00> : vector<8xf32>
    %256 = vector.multi_reduction <add>, %255, %cst_123 [1] : vector<8x8xf32> to vector<8xf32>
    %257 = vector.shape_cast %256 : vector<8xf32> to vector<8x1xf32>
    %258 = vector.broadcast %257 : vector<8x1xf32> to vector<8x8xf32>
    %259 = arith.divf %255, %258 : vector<8x8xf32>
    %260 = arith.truncf %259 : vector<8x8xf32> to vector<8x8xbf16>
    %cst_124 = arith.constant dense<0.000000e+00> : vector<8x256xf32>
    %261 = tpu.matmul %260, %247, %cst_124 {dimension_numbers = #tpu.dot_dimension_numbers<[1], [0], [0], [1], [0, 0, 1, 1], [], []>} : vector<8x8xbf16>, vector<8x256xbf16>, vector<8x256xf32> -> vector<8x256xf32>
    %c0_125 = arith.constant 0 : index
    %c1024_126 = arith.constant 1024 : index
    %262 = vector.load %arg11[%c0_125, %c1024_126] : memref<8x1280xf32, #tpu.memory_space<vmem>>, vector<8x256xf32>
    tpu.vector_store %arg11[%c0_125, %c1024_126], %261 {strides = array<i32>} : memref<8x1280xf32, #tpu.memory_space<vmem>>, vector<8x256xf32>,
    %263 = arith.truncf %261 : vector<8x256xf32> to vector<8x256xbf16>
    %c0_127 = arith.constant 0 : index
    %c1024_128 = arith.constant 1024 : index
    %264 = vector.load %arg12[%c0_127, %c1024_128] : memref<8x1280xbf16, #tpu.memory_space<vmem>>, vector<8x256xbf16>
    tpu.vector_store %arg12[%c0_127, %c1024_128], %263 {strides = array<i32>} : memref<8x1280xbf16, #tpu.memory_space<vmem>>, vector<8x256xbf16>,
    return
  }
}

</mosaic_0001>

<llo_original>
// kernel: tpu_custom_call.1
$region0: #{tpu_custom_call.1}
  #allocation0 [shape = 'u32[]', space=smem, size = 0x4, offset = 0x4, fixed_abs, tag = 'smem constant byte address 0x4 - core index']
  #allocation1 [shape = 'u32[144,128]{1,0:T(1,128)}', space=vmem, size = 0x12000, scoped, tag = 'internal scratch']
  #allocation2 [shape = 'bf16[8,1280]{1,0:T(8,128)(2,1)}', space=vmem, size = 0x5000, scoped, tag = 'scratch operand']
  %s0 = inlined_call_operand.hbm [shape: f32[8,128], index: 0, kind: input, shape index: {}]
  %s1 = inlined_call_operand.hbm [shape: bf16[128,256], index: 1, kind: input, shape index: {}]
  %s2 = inlined_call_operand.hbm [shape: bf16[128,512], index: 2, kind: input, shape index: {}]
  %s3 = inlined_call_operand.hbm [shape: bf16[256,512], index: 3, kind: input, shape index: {}]
  %s4 = inlined_call_operand.hbm [shape: bf16[384,512], index: 4, kind: input, shape index: {}]
  %s5 = inlined_call_operand.hbm [shape: bf16[512,640], index: 5, kind: input, shape index: {}]
  %s6 = inlined_call_operand.hbm [shape: bf16[640,512], index: 6, kind: input, shape index: {}]
  %s7 = inlined_call_operand.hbm [shape: bf16[768,512], index: 7, kind: input, shape index: {}]
  %s8 = inlined_call_operand.hbm [shape: bf16[896,512], index: 8, kind: input, shape index: {}]
  %s9 = inlined_call_operand.hbm [shape: bf16[1024,1280], index: 9, kind: input, shape index: {}]
  %s10 = inlined_call_operand.hbm [shape: f32[1,3712], index: 10, kind: input, shape index: {}]
  %s11 = inlined_call_operand.hbm [shape: f32[8,1280], index: 11, kind: output, shape index: {}]
  %s12 = sld [smem:[#allocation0]]
  $region98: #{tpu_custom_call.1} parent=0
    _
  %s14 = ssub.s32 1, %s12
  %s15 = scalar_select 0, %s14, %s12
  $region1: #{tpu_custom_call.1} parent=0
    #allocation3 [shape = 'u8[4096]{0}', space=vmem, size = 0x1000, scoped, tag = 'input window, operand 0, single buffered']
    #allocation4 [shape = 's32[1]{0}', space=sflag, size = 0x4, scoped, tag = 'scoped memory for tpu_custom_call.1']
    #allocation5 [shape = 's32[1]{0}', space=sflag, size = 0x4, scoped, tag = 'scoped memory for tpu_custom_call.1']
    #allocation6 [shape = 'u8[65536]{0}', space=vmem, size = 0x10000, scoped, tag = 'input window, operand 1, single buffered']
    #allocation7 [shape = 's32[1]{0}', space=sflag, size = 0x4, scoped, tag = 'scoped memory for tpu_custom_call.1']
    #allocation8 [shape = 'u8[131072]{0}', space=vmem, size = 0x20000, scoped, tag = 'input window, operand 2, single buffered']
    #allocation9 [shape = 'u8[262144]{0}', space=vmem, size = 0x40000, scoped, tag = 'input window, operand 3, single buffered']
    #allocation10 [shape = 's32[1]{0}', space=sflag, size = 0x4, scoped, tag = 'scoped memory for tpu_custom_call.1']
    #allocation11 [shape = 'u8[393216]{0}', space=vmem, size = 0x60000, scoped, tag = 'input window, operand 4, single buffered']
    #allocation12 [shape = 'u8[655360]{0}', space=vmem, size = 0xa0000, scoped, tag = 'input window, operand 5, single buffered']
    #allocation13 [shape = 's32[1]{0}', space=sflag, size = 0x4, scoped, tag = 'scoped memory for tpu_custom_call.1']
    #allocation14 [shape = 'u8[655360]{0}', space=vmem, size = 0xa0000, scoped, tag = 'input window, operand 6, single buffered']
    #allocation15 [shape = 'u8[786432]{0}', space=vmem, size = 0xc0000, scoped, tag = 'input window, operand 7, single buffered']
    #allocation16 [shape = 's32[1]{0}', space=sflag, size = 0x4, scoped, tag = 'scoped memory for tpu_custom_call.1']
    #allocation17 [shape = 'u8[917504]{0}', space=vmem, size = 0xe0000, scoped, tag = 'input window, operand 8, single buffered']
    #allocation18 [shape = 'u8[2621440]{0}', space=vmem, size = 0x280000, scoped, tag = 'input window, operand 9, single buffered']
    #allocation19 [shape = 's32[1]{0}', space=sflag, size = 0x4, scoped, tag = 'scoped memory for tpu_custom_call.1']
    #allocation20 [shape = 'u8[14848]{0}', space=vmem, size = 0x3c00, scoped, tag = 'input window, operand 10, single buffered']
    #allocation21 [shape = 'u8[40960]{0}', space=vmem, size = 0xa000, scoped, tag = 'output window, operand 0, single buffered']
    %16 = vsyncpa [#allocation4], 0
    %17 = vsyncpa [#allocation7], 0
    %18 = vsyncpa [#allocation10], 0
    %19 = vsyncpa [#allocation13], 0
    %20 = vsyncpa [#allocation16], 0
    %21 = vsyncpa [#allocation19], 0
    %22 = vsyncpa [#allocation5], 0
    // Predicated region
    $region2: #{tpu_custom_call.1} parent=1 // pred_check
      _
    $region3: #{tpu_custom_call.1} parent=1 // pred_check_branch
      %24 = sbr.rel (0) target = $region5
    $region4: #{tpu_custom_call.1} parent=1 // pred_region
      %s26 = ssub.s32 128, 128
      %27 = vsyncadd [#allocation4], %s26
      %s29 = sshll.u32 [#allocation3], 4
      %s30 = int_to_ptr.vmem [resolvable:$true] %s29
      %32 = dma.hbm_to_vmem [thread:$0]  %s0, 128, %s30, [#allocation4]
    $region5: #{tpu_custom_call.1} parent=1 // pred_fallthru
      _
    // Predicated region
    $region6: #{tpu_custom_call.1} parent=1 // pred_check
      _
    $region7: #{tpu_custom_call.1} parent=1 // pred_check_branch
      %34 = sbr.rel (0) target = $region9
    $region8: #{tpu_custom_call.1} parent=1 // pred_region
      %s36 = ssub.s32 2048, 2048
      %37 = vsyncadd [#allocation7], %s36
      %s38 = sshll.u32 [#allocation6], 4
      %s39 = int_to_ptr.vmem [resolvable:$true] %s38
      %44 = dma.hbm_to_vmem [thread:$0]  %s1, 2048, %s39, [#allocation7], 128, 128, 8
    $region9: #{tpu_custom_call.1} parent=1 // pred_fallthru
      _
    // Predicated region
    $region10: #{tpu_custom_call.1} parent=1 // pred_check
      _
    $region11: #{tpu_custom_call.1} parent=1 // pred_check_branch
      %46 = sbr.rel (0) target = $region13
    $region12: #{tpu_custom_call.1} parent=1 // pred_region
      %s48 = ssub.s32 4096, 4096
      %49 = vsyncadd [#allocation7], %s48
      %s50 = sshll.u32 [#allocation8], 4
      %s51 = int_to_ptr.vmem [resolvable:$true] %s50
      %56 = dma.hbm_to_vmem [thread:$0]  %s2, 4096, %s51, [#allocation7], 256, 256, 16
    $region13: #{tpu_custom_call.1} parent=1 // pred_fallthru
      _
    // Predicated region
    $region14: #{tpu_custom_call.1} parent=1 // pred_check
      _
    $region15: #{tpu_custom_call.1} parent=1 // pred_check_branch
      %58 = sbr.rel (0) target = $region17
    $region16: #{tpu_custom_call.1} parent=1 // pred_region
      %s60 = ssub.s32 8192, 8192
      %61 = vsyncadd [#allocation10], %s60
      %s62 = sshll.u32 [#allocation9], 4
      %s63 = int_to_ptr.vmem [resolvable:$true] %s62
      %68 = dma.hbm_to_vmem [thread:$0]  %s3, 8192, %s63, [#allocation10], 256, 256, 16
    $region17: #{tpu_custom_call.1} parent=1 // pred_fallthru
      _
    // Predicated region
    $region18: #{tpu_custom_call.1} parent=1 // pred_check
      _
    $region19: #{tpu_custom_call.1} parent=1 // pred_check_branch
      %70 = sbr.rel (0) target = $region21
    $region20: #{tpu_custom_call.1} parent=1 // pred_region
      %s72 = ssub.s32 12288, 12288
      %73 = vsyncadd [#allocation10], %s72
      %s74 = sshll.u32 [#allocation11], 4
      %s75 = int_to_ptr.vmem [resolvable:$true] %s74
      %80 = dma.hbm_to_vmem [thread:$0]  %s4, 12288, %s75, [#allocation10], 256, 256, 16
    $region21: #{tpu_custom_call.1} parent=1 // pred_fallthru
      _
    // Predicated region
    $region22: #{tpu_custom_call.1} parent=1 // pred_check
      _
    $region23: #{tpu_custom_call.1} parent=1 // pred_check_branch
      %82 = sbr.rel (0) target = $region25
    $region24: #{tpu_custom_call.1} parent=1 // pred_region
      %s84 = ssub.s32 20480, 20480
      %85 = vsyncadd [#allocation13], %s84
      %s86 = sshll.u32 [#allocation12], 4
      %s87 = int_to_ptr.vmem [resolvable:$true] %s86
      %92 = dma.hbm_to_vmem [thread:$0]  %s5, 20480, %s87, [#allocation13], 320, 320, 20
    $region25: #{tpu_custom_call.1} parent=1 // pred_fallthru
      _
    // Predicated region
    $region26: #{tpu_custom_call.1} parent=1 // pred_check
      _
    $region27: #{tpu_custom_call.1} parent=1 // pred_check_branch
      %94 = sbr.rel (0) target = $region29
    $region28: #{tpu_custom_call.1} parent=1 // pred_region
      %s96 = ssub.s32 20480, 20480
      %97 = vsyncadd [#allocation13], %s96
      %s98 = sshll.u32 [#allocation14], 4
      %s99 = int_to_ptr.vmem [resolvable:$true] %s98
      %104 = dma.hbm_to_vmem [thread:$0]  %s6, 20480, %s99, [#allocation13], 256, 256, 16
    $region29: #{tpu_custom_call.1} parent=1 // pred_fallthru
      _
    // Predicated region
    $region30: #{tpu_custom_call.1} parent=1 // pred_check
      _
    $region31: #{tpu_custom_call.1} parent=1 // pred_check_branch
      %106 = sbr.rel (0) target = $region33
    $region32: #{tpu_custom_call.1} parent=1 // pred_region
      %s108 = ssub.s32 24576, 24576
      %109 = vsyncadd [#allocation16], %s108
      %s110 = sshll.u32 [#allocation15], 4
      %s111 = int_to_ptr.vmem [resolvable:$true] %s110
      %116 = dma.hbm_to_vmem [thread:$0]  %s7, 24576, %s111, [#allocation16], 256, 256, 16
    $region33: #{tpu_custom_call.1} parent=1 // pred_fallthru
      _
    // Predicated region
    $region34: #{tpu_custom_call.1} parent=1 // pred_check
      _
    $region35: #{tpu_custom_call.1} parent=1 // pred_check_branch
      %118 = sbr.rel (0) target = $region37
    $region36: #{tpu_custom_call.1} parent=1 // pred_region
      %s120 = ssub.s32 28672, 28672
      %121 = vsyncadd [#allocation16], %s120
      %s122 = sshll.u32 [#allocation17], 4
      %s123 = int_to_ptr.vmem [resolvable:$true] %s122
      %128 = dma.hbm_to_vmem [thread:$0]  %s8, 28672, %s123, [#allocation16], 256, 256, 16
    $region37: #{tpu_custom_call.1} parent=1 // pred_fallthru
      _
    // Predicated region
    $region38: #{tpu_custom_call.1} parent=1 // pred_check
      _
    $region39: #{tpu_custom_call.1} parent=1 // pred_check_branch
      %130 = sbr.rel (0) target = $region41
    $region40: #{tpu_custom_call.1} parent=1 // pred_region
      %s132 = ssub.s32 81920, 81920
      %133 = vsyncadd [#allocation19], %s132
      %s134 = sshll.u32 [#allocation18], 4
      %s135 = int_to_ptr.vmem [resolvable:$true] %s134
      %140 = dma.hbm_to_vmem [thread:$0]  %s9, 81920, %s135, [#allocation19], 640, 640, 40
    $region41: #{tpu_custom_call.1} parent=1 // pred_fallthru
      _
    // Predicated region
    $region42: #{tpu_custom_call.1} parent=1 // pred_check
      _
    $region43: #{tpu_custom_call.1} parent=1 // pred_check_branch
      %142 = sbr.rel (0) target = $region45
    $region44: #{tpu_custom_call.1} parent=1 // pred_region
      %s144 = ssub.s32 464, 464
      %145 = vsyncadd [#allocation19], %s144
      %s147 = sshll.u32 [#allocation20], 4
      %s148 = int_to_ptr.vmem [resolvable:$true] %s147
      %150 = dma.hbm_to_vmem [thread:$0]  %s10, 464, %s148, [#allocation19]
    $region45: #{tpu_custom_call.1} parent=1 // pred_fallthru
      _
    // Predicated region
    $region46: #{tpu_custom_call.1} parent=1 // pred_check
      _
    $region47: #{tpu_custom_call.1} parent=1 // pred_check_branch
      %152 = sbr.rel (0) target = $region49
    $region48: #{tpu_custom_call.1} parent=1 // pred_region
      %153 = dma.done [#allocation4], 128
    $region49: #{tpu_custom_call.1} parent=1 // pred_fallthru
      _
    // Predicated region
    $region50: #{tpu_custom_call.1} parent=1 // pred_check
      _
    $region51: #{tpu_custom_call.1} parent=1 // pred_check_branch
      %155 = sbr.rel (0) target = $region53
    $region52: #{tpu_custom_call.1} parent=1 // pred_region
      %156 = dma.done [#allocation7], 2048
    $region53: #{tpu_custom_call.1} parent=1 // pred_fallthru
      _
    // Predicated region
    $region54: #{tpu_custom_call.1} parent=1 // pred_check
      _
    $region55: #{tpu_custom_call.1} parent=1 // pred_check_branch
      %158 = sbr.rel (0) target = $region57
    $region56: #{tpu_custom_call.1} parent=1 // pred_region
      %159 = dma.done [#allocation7], 4096
    $region57: #{tpu_custom_call.1} parent=1 // pred_fallthru
      _
    // Predicated region
    $region58: #{tpu_custom_call.1} parent=1 // pred_check
      _
    $region59: #{tpu_custom_call.1} parent=1 // pred_check_branch
      %161 = sbr.rel (0) target = $region61
    $region60: #{tpu_custom_call.1} parent=1 // pred_region
      %162 = dma.done [#allocation10], 8192
    $region61: #{tpu_custom_call.1} parent=1 // pred_fallthru
      _
    // Predicated region
    $region62: #{tpu_custom_call.1} parent=1 // pred_check
      _
    $region63: #{tpu_custom_call.1} parent=1 // pred_check_branch
      %164 = sbr.rel (0) target = $region65
    $region64: #{tpu_custom_call.1} parent=1 // pred_region
      %165 = dma.done [#allocation10], 12288
    $region65: #{tpu_custom_call.1} parent=1 // pred_fallthru
      _
    // Predicated region
    $region66: #{tpu_custom_call.1} parent=1 // pred_check
      _
    $region67: #{tpu_custom_call.1} parent=1 // pred_check_branch
      %167 = sbr.rel (0) target = $region69
    $region68: #{tpu_custom_call.1} parent=1 // pred_region
      %168 = dma.done [#allocation13], 20480
    $region69: #{tpu_custom_call.1} parent=1 // pred_fallthru
      _
    // Predicated region
    $region70: #{tpu_custom_call.1} parent=1 // pred_check
      _
    $region71: #{tpu_custom_call.1} parent=1 // pred_check_branch
      %170 = sbr.rel (0) target = $region73
    $region72: #{tpu_custom_call.1} parent=1 // pred_region
      %171 = dma.done [#allocation13], 20480
    $region73: #{tpu_custom_call.1} parent=1 // pred_fallthru
      _
    // Predicated region
    $region74: #{tpu_custom_call.1} parent=1 // pred_check
      _
    $region75: #{tpu_custom_call.1} parent=1 // pred_check_branch
      %173 = sbr.rel (0) target = $region77
    $region76: #{tpu_custom_call.1} parent=1 // pred_region
      %174 = dma.done [#allocation16], 24576
    $region77: #{tpu_custom_call.1} parent=1 // pred_fallthru
      _
    // Predicated region
    $region78: #{tpu_custom_call.1} parent=1 // pred_check
      _
    $region79: #{tpu_custom_call.1} parent=1 // pred_check_branch
      %176 = sbr.rel (0) target = $region81
    $region80: #{tpu_custom_call.1} parent=1 // pred_region
      %177 = dma.done [#allocation16], 28672
    $region81: #{tpu_custom_call.1} parent=1 // pred_fallthru
      _
    // Predicated region
    $region82: #{tpu_custom_call.1} parent=1 // pred_check
      _
    $region83: #{tpu_custom_call.1} parent=1 // pred_check_branch
      %179 = sbr.rel (0) target = $region85
    $region84: #{tpu_custom_call.1} parent=1 // pred_region
      %180 = dma.done [#allocation19], 81920
    $region85: #{tpu_custom_call.1} parent=1 // pred_fallthru
      _
    // Predicated region
    $region86: #{tpu_custom_call.1} parent=1 // pred_check
      _
    $region87: #{tpu_custom_call.1} parent=1 // pred_check_branch
      %182 = sbr.rel (0) target = $region89
    $region88: #{tpu_custom_call.1} parent=1 // pred_region
      %183 = dma.done [#allocation19], 464
    $region89: #{tpu_custom_call.1} parent=1 // pred_fallthru
      _
    %v185 = vlaneseq
    %v186 = vshrl.u32 %v185, 7
    %v187 = vlaneseq
    %v188 = vand.u32 %v187, 127
    %vm189 = vcmp.gt.s32.totalorder %v188, %v186
    %v190 = vld [vmem:[#allocation3] sm:$0xff]
    %191 = vst [vmem:[#allocation21] sm:$0xff] %v190
    %v192 = vpack.c.bf16 %v190, %v190
    %193 = vst [vmem:[#allocation2] sm:$0xf] %v192
    %v194 = vld [vmem:[#allocation2] sm:$0xf]
    %v195 = vld [vmem:[#allocation6] sm:$0xff]
    %v196 = vld [vmem:[#allocation6 + $0x8] sm:$0xff]
    %v197 = vld [vmem:[#allocation6 + $0x10] sm:$0xff]
    %v198 = vld [vmem:[#allocation6 + $0x18] sm:$0xff]
    %v199 = vld [vmem:[#allocation6 + $0x20] sm:$0xff]
    %v200 = vld [vmem:[#allocation6 + $0x28] sm:$0xff]
    %v201 = vld [vmem:[#allocation6 + $0x30] sm:$0xff]
    %v202 = vld [vmem:[#allocation6 + $0x38] sm:$0xff]
    %v203 = vld [vmem:[#allocation6 + $0x40] sm:$0xff]
    %v204 = vld [vmem:[#allocation6 + $0x48] sm:$0xff]
    %v205 = vld [vmem:[#allocation6 + $0x50] sm:$0xff]
    %v206 = vld [vmem:[#allocation6 + $0x58] sm:$0xff]
    %v207 = vld [vmem:[#allocation6 + $0x60] sm:$0xff]
    %v208 = vld [vmem:[#allocation6 + $0x68] sm:$0xff]
    %v209 = vld [vmem:[#allocation6 + $0x70] sm:$0xff]
    %v210 = vld [vmem:[#allocation6 + $0x78] sm:$0xff]
    %v211 = vld [vmem:[#allocation20] sm:$0x3]
    %v213 = vlaneseq
    %v214 = vshrl.u32 %v213, 7
    %v215 = vsub.s32 0, %v214
    %v216 = vrot.slane %v211, %v215
    %v217 = vlaneseq
    %v218 = vshrl.u32 %v217, 7
    %v219 = vsub.s32 1, %v218
    %v220 = vrot.slane %v211, %v219
    %v239 = vunpack.c.l.b16 %v195
    %v240 = vunpack.c.h.b16 %v195
    %v241 = vunpack.c.l.b16 %v196
    %v242 = vunpack.c.h.b16 %v196
    %v243 = vunpack.c.l.b16 %v197
    %v244 = vunpack.c.h.b16 %v197
    %v245 = vunpack.c.l.b16 %v198
    %v246 = vunpack.c.h.b16 %v198
    %v247 = vunpack.c.l.b16 %v199
    %v248 = vunpack.c.h.b16 %v199
    %v249 = vunpack.c.l.b16 %v200
    %v250 = vunpack.c.h.b16 %v200
    %v251 = vunpack.c.l.b16 %v201
    %v252 = vunpack.c.h.b16 %v201
    %v253 = vunpack.c.l.b16 %v202
    %v254 = vunpack.c.h.b16 %v202
    %v255 = vunpack.c.l.b16 %v203
    %v256 = vunpack.c.h.b16 %v203
    %v257 = vunpack.c.l.b16 %v204
    %v258 = vunpack.c.h.b16 %v204
    %v259 = vunpack.c.l.b16 %v205
    %v260 = vunpack.c.h.b16 %v205
    %v261 = vunpack.c.l.b16 %v206
    %v262 = vunpack.c.h.b16 %v206
    %v263 = vunpack.c.l.b16 %v207
    %v264 = vunpack.c.h.b16 %v207
    %v265 = vunpack.c.l.b16 %v208
    %v266 = vunpack.c.h.b16 %v208
    %v267 = vunpack.c.l.b16 %v209
    %v268 = vunpack.c.h.b16 %v209
    %v269 = vunpack.c.l.b16 %v210
    %v270 = vunpack.c.h.b16 %v210
    %v271 = vpack.c.b16 %v241, %v239
    %v272 = vpack.c.b16 %v242, %v240
    %v273 = vpack.c.b16 %v245, %v243
    %v274 = vpack.c.b16 %v246, %v244
    %v275 = vpack.c.b16 %v249, %v247
    %v276 = vpack.c.b16 %v250, %v248
    %v277 = vpack.c.b16 %v253, %v251
    %v278 = vpack.c.b16 %v254, %v252
    %v279 = vpack.c.b16 %v257, %v255
    %v280 = vpack.c.b16 %v258, %v256
    %v281 = vpack.c.b16 %v261, %v259
    %v282 = vpack.c.b16 %v262, %v260
    %v283 = vpack.c.b16 %v265, %v263
    %v284 = vpack.c.b16 %v266, %v264
    %v285 = vpack.c.b16 %v269, %v267
    %v286 = vpack.c.b16 %v270, %v268
    %303 = vmatprep.subr.bf16.mxu0 %v272
    %304 = vmatpush1.bf16.msra.mxu0 %v271
    %305 = vmatprep.subr.bf16.mxu0 %v274
    %306 = vmatpush1.bf16.msra.mxu0 %v273
    %307 = vmatprep.subr.bf16.mxu0 %v276
    %308 = vmatpush1.bf16.msra.mxu0 %v275
    %309 = vmatprep.subr.bf16.mxu0 %v278
    %310 = vmatpush1.bf16.msra.mxu0 %v277
    %311 = vmatprep.subr.bf16.mxu0 %v280
    %312 = vmatpush1.bf16.msra.mxu0 %v279
    %313 = vmatprep.subr.bf16.mxu0 %v282
    %314 = vmatpush1.bf16.msra.mxu0 %v281
    %315 = vmatprep.subr.bf16.mxu0 %v284
    %316 = vmatpush1.bf16.msra.mxu0 %v283
    %317 = vmatprep.subr.bf16.mxu0 %v286
    %318 = vmatpush1.bf16.msra.mxu0 %v285
    %319 = vmatprep.subr.bf16.mxu0 0
    %320 = vmatpush1.bf16.msra.mxu0 0
    %321 = vmatprep.subr.bf16.mxu0 0
    %322 = vmatpush1.bf16.msra.mxu0 0
    %323 = vmatprep.subr.bf16.mxu0 0
    %324 = vmatpush1.bf16.msra.mxu0 0
    %325 = vmatprep.subr.bf16.mxu0 0
    %326 = vmatpush1.bf16.msra.mxu0 0
    %327 = vmatprep.subr.bf16.mxu0 0
    %328 = vmatpush1.bf16.msra.mxu0 0
    %329 = vmatprep.subr.bf16.mxu0 0
    %330 = vmatpush1.bf16.msra.mxu0 0
    %331 = vmatprep.subr.bf16.mxu0 0
    %332 = vmatpush1.bf16.msra.mxu0 0
    %333 = vmatprep.subr.bf16.mxu0 0
    %334 = vmatpush1.bf16.msra.mxu0 0
    %335 = vmatprep.mubr.bf16.mxu0 0
    %336 = vmatmul.mubr.bf16.gmra.mrb[0].mxu0 %v194
    %v337 = vpop.f32.mrb[0].mxu0
    %v338 = vadd.f32 %v216, %v337
    %v339 = vpop.f32.mrb[0].mxu0
    %v340 = vadd.f32 %v220, %v339
    %v341 = vpop.f32.mrb[0].mxu0
    %v342 = vpop.f32.mrb[0].mxu0
    %343 = vdwg.mxu0
    %v344 = vpack.c.bf16 %v338, %v338
    %v345 = vpack.c.bf16 %v340, %v340
    %347 = vrot.lane.b32.xlu0 %v344, 64
    %v348 = vpop.permute.xlu0 %347
    %vm349 = vcmask 523264
    %v351 = vsel %vm349, %v344, 0
    %v354 = vsel %vm349, %v348, 0
    %356 = vmatprep.subr.bf16.mxu0 0
    %357 = vmatpush1.bf16.xpose.msra.mxu0 %v354
    %358 = vmatprep.subr.bf16.mxu0 0
    %359 = vmatpush1.bf16.xpose.msra.mxu0 0
    %360 = vmatprep.subr.bf16.mxu0 0
    %361 = vmatpush1.bf16.xpose.msra.mxu0 0
    %362 = vmatprep.subr.bf16.mxu0 0
    %363 = vmatpush1.bf16.xpose.msra.mxu0 0
    %364 = vmatprep.subr.bf16.mxu0 0
    %365 = vmatpush1.bf16.xpose.msra.mxu0 0
    %366 = vmatprep.subr.bf16.mxu0 0
    %367 = vmatpush1.bf16.xpose.msra.mxu0 0
    %368 = vmatprep.subr.bf16.mxu0 0
    %369 = vmatpush1.bf16.xpose.msra.mxu0 0
    %370 = vmatprep.subr.bf16.mxu0 0
    %371 = vmatpush1.bf16.xpose.msra.mxu0 0
    %372 = vmatprep.subr.bf16.mxu0 0
    %373 = vmatpush1.bf16.xpose.msra.mxu0 0
    %374 = vmatprep.subr.bf16.mxu0 0
    %375 = vmatpush1.bf16.xpose.msra.mxu0 0
    %376 = vmatprep.subr.bf16.mxu0 0
    %377 = vmatpush1.bf16.xpose.msra.mxu0 0
    %378 = vmatprep.subr.bf16.mxu0 0
    %379 = vmatpush1.bf16.xpose.msra.mxu0 0
    %380 = vmatprep.subr.bf16.mxu0 0
    %381 = vmatpush1.bf16.xpose.msra.mxu0 0
    %382 = vmatprep.subr.bf16.mxu0 0
    %383 = vmatpush1.bf16.xpose.msra.mxu0 0
    %384 = vmatprep.subr.bf16.mxu0 0
    %385 = vmatpush1.bf16.xpose.msra.mxu0 0
    %386 = vmatprep.subr.bf16.mxu0 0
    %387 = vmatpush1.bf16.xpose.msra.mxu0 0
    %388 = vmatprep.mubr.bf16.mxu0 0
    %389 = vmatmul.mubr.bf16.gmra.mrb[0].mxu0 %v351
    %v390 = vpop.f32.mrb[0].mxu0
    %v391 = vadd.f32 0.0, %v390
    %v392 = vpop.f32.mrb[0].mxu0
    %v393 = vpop.f32.mrb[0].mxu0
    %v394 = vpop.f32.mrb[0].mxu0
    %395 = vdwg.mxu0
    %v396 = vsel %vm189, -1e+30, %v391
    %vm397 = vcmask 64512
    %v398 = vsel %vm397, %v396, -inf
    %399 = vmax.xlane.f32.xlu0 %v398
    %v400 = vpop.xlane.xlu0 %399
    %v401 = vsub.f32 %v396, %v400
    %v402 = vmul.f32 %v401, 1.442695
    %v403 = vpow.pop %v402
    %v404 = vsel %vm397, %v403, 0.0
    %405 = vadd.xlane.f32.xlu0 %v404
    %v406 = vpop.xlane.xlu0 %405
    %v407 = vrcp.pop %v406
    %v408 = vmul.f32 %v403, %v407
    %v409 = vpack.c.bf16 %v408, %v408
    %v411 = vsel %vm397, %v409, 0
    %vm413 = vcmask 1043456
    %v415 = vsel %vm413, %v345, 0
    %417 = vmatprep.subr.bf16.mxu0 0
    %418 = vmatpush1.bf16.msra.mxu0 %v415
    %419 = vmatprep.subr.bf16.mxu0 0
    %420 = vmatpush1.bf16.msra.mxu0 0
    %421 = vmatprep.subr.bf16.mxu0 0
    %422 = vmatpush1.bf16.msra.mxu0 0
    %423 = vmatprep.subr.bf16.mxu0 0
    %424 = vmatpush1.bf16.msra.mxu0 0
    %425 = vmatprep.subr.bf16.mxu0 0
    %426 = vmatpush1.bf16.msra.mxu0 0
    %427 = vmatprep.subr.bf16.mxu0 0
    %428 = vmatpush1.bf16.msra.mxu0 0
    %429 = vmatprep.subr.bf16.mxu0 0
    %430 = vmatpush1.bf16.msra.mxu0 0
    %431 = vmatprep.subr.bf16.mxu0 0
    %432 = vmatpush1.bf16.msra.mxu0 0
    %433 = vmatprep.subr.bf16.mxu0 0
    %434 = vmatpush1.bf16.msra.mxu0 0
    %435 = vmatprep.subr.bf16.mxu0 0
    %436 = vmatpush1.bf16.msra.mxu0 0
    %437 = vmatprep.subr.bf16.mxu0 0
    %438 = vmatpush1.bf16.msra.mxu0 0
    %439 = vmatprep.subr.bf16.mxu0 0
    %440 = vmatpush1.bf16.msra.mxu0 0
    %441 = vmatprep.subr.bf16.mxu0 0
    %442 = vmatpush1.bf16.msra.mxu0 0
    %443 = vmatprep.subr.bf16.mxu0 0
    %444 = vmatpush1.bf16.msra.mxu0 0
    %445 = vmatprep.subr.bf16.mxu0 0
    %446 = vmatpush1.bf16.msra.mxu0 0
    %447 = vmatprep.subr.bf16.mxu0 0
    %448 = vmatpush1.bf16.msra.mxu0 0
    %449 = vmatprep.mubr.bf16.mxu0 0
    %450 = vmatmul.mubr.bf16.gmra.mrb[0].mxu0 %v411
    %v451 = vpop.f32.mrb[0].mxu0
    %v452 = vadd.f32 0.0, %v451
    %v453 = vpop.f32.mrb[0].mxu0
    %v454 = vpop.f32.mrb[0].mxu0
    %v455 = vpop.f32.mrb[0].mxu0
    %456 = vdwg.mxu0
    %v457 = vld [vmem:[#allocation21] sm:$0xff]
    %v458 = vadd.f32 %v457, %v452
    %459 = vst [vmem:[#allocation21] sm:$0xff] %v458
    %v460 = vpack.c.bf16 %v458, %v458
    %461 = vst [vmem:[#allocation2] sm:$0xf] %v460
    %v462 = vld [vmem:[#allocation2] sm:$0xf]
    %v463 = vld [vmem:[#allocation8] sm:$0xff]
    %v464 = vld [vmem:[#allocation8 + $0x8] sm:$0xff]
    %v465 = vld [vmem:[#allocation8 + $0x10] sm:$0xff]
    %v466 = vld [vmem:[#allocation8 + $0x18] sm:$0xff]
    %v467 = vld [vmem:[#allocation8 + $0x20] sm:$0xff]
    %v468 = vld [vmem:[#allocation8 + $0x28] sm:$0xff]
    %v469 = vld [vmem:[#allocation8 + $0x30] sm:$0xff]
    %v470 = vld [vmem:[#allocation8 + $0x38] sm:$0xff]
    %v471 = vld [vmem:[#allocation8 + $0x40] sm:$0xff]
    %v472 = vld [vmem:[#allocation8 + $0x48] sm:$0xff]
    %v473 = vld [vmem:[#allocation8 + $0x50] sm:$0xff]
    %v474 = vld [vmem:[#allocation8 + $0x58] sm:$0xff]
    %v475 = vld [vmem:[#allocation8 + $0x60] sm:$0xff]
    %v476 = vld [vmem:[#allocation8 + $0x68] sm:$0xff]
    %v477 = vld [vmem:[#allocation8 + $0x70] sm:$0xff]
    %v478 = vld [vmem:[#allocation8 + $0x78] sm:$0xff]
    %v479 = vld [vmem:[#allocation8 + $0x80] sm:$0xff]
    %v480 = vld [vmem:[#allocation8 + $0x88] sm:$0xff]
    %v481 = vld [vmem:[#allocation8 + $0x90] sm:$0xff]
    %v482 = vld [vmem:[#allocation8 + $0x98] sm:$0xff]
    %v483 = vld [vmem:[#allocation8 + $0xa0] sm:$0xff]
    %v484 = vld [vmem:[#allocation8 + $0xa8] sm:$0xff]
    %v485 = vld [vmem:[#allocation8 + $0xb0] sm:$0xff]
    %v486 = vld [vmem:[#allocation8 + $0xb8] sm:$0xff]
    %v487 = vld [vmem:[#allocation8 + $0xc0] sm:$0xff]
    %v488 = vld [vmem:[#allocation8 + $0xc8] sm:$0xff]
    %v489 = vld [vmem:[#allocation8 + $0xd0] sm:$0xff]
    %v490 = vld [vmem:[#allocation8 + $0xd8] sm:$0xff]
    %v491 = vld [vmem:[#allocation8 + $0xe0] sm:$0xff]
    %v492 = vld [vmem:[#allocation8 + $0xe8] sm:$0xff]
    %v493 = vld [vmem:[#allocation8 + $0xf0] sm:$0xff]
    %v494 = vld [vmem:[#allocation8 + $0xf8] sm:$0xff]
    %v495 = vld [vmem:[#allocation20 + $0x2] sm:$0x3]
    %v528 = vunpack.c.l.b16 %v463
    %v529 = vunpack.c.h.b16 %v463
    %v530 = vunpack.c.l.b16 %v464
    %v531 = vunpack.c.h.b16 %v464
    %v532 = vunpack.c.l.b16 %v465
    %v533 = vunpack.c.h.b16 %v465
    %v534 = vunpack.c.l.b16 %v466
    %v535 = vunpack.c.h.b16 %v466
    %v536 = vunpack.c.l.b16 %v467
    %v537 = vunpack.c.h.b16 %v467
    %v538 = vunpack.c.l.b16 %v468
    %v539 = vunpack.c.h.b16 %v468
    %v540 = vunpack.c.l.b16 %v469
    %v541 = vunpack.c.h.b16 %v469
    %v542 = vunpack.c.l.b16 %v470
    %v543 = vunpack.c.h.b16 %v470
    %v544 = vunpack.c.l.b16 %v471
    %v545 = vunpack.c.h.b16 %v471
    %v546 = vunpack.c.l.b16 %v472
    %v547 = vunpack.c.h.b16 %v472
    %v548 = vunpack.c.l.b16 %v473
    %v549 = vunpack.c.h.b16 %v473
    %v550 = vunpack.c.l.b16 %v474
    %v551 = vunpack.c.h.b16 %v474
    %v552 = vunpack.c.l.b16 %v475
    %v553 = vunpack.c.h.b16 %v475
    %v554 = vunpack.c.l.b16 %v476
    %v555 = vunpack.c.h.b16 %v476
    %v556 = vunpack.c.l.b16 %v477
    %v557 = vunpack.c.h.b16 %v477
    %v558 = vunpack.c.l.b16 %v478
    %v559 = vunpack.c.h.b16 %v478
    %v560 = vunpack.c.l.b16 %v479
    %v561 = vunpack.c.h.b16 %v479
    %v562 = vunpack.c.l.b16 %v480
    %v563 = vunpack.c.h.b16 %v480
    %v564 = vunpack.c.l.b16 %v481
    %v565 = vunpack.c.h.b16 %v481
    %v566 = vunpack.c.l.b16 %v482
    %v567 = vunpack.c.h.b16 %v482
    %v568 = vunpack.c.l.b16 %v483
    %v569 = vunpack.c.h.b16 %v483
    %v570 = vunpack.c.l.b16 %v484
    %v571 = vunpack.c.h.b16 %v484
    %v572 = vunpack.c.l.b16 %v485
    %v573 = vunpack.c.h.b16 %v485
    %v574 = vunpack.c.l.b16 %v486
    %v575 = vunpack.c.h.b16 %v486
    %v576 = vunpack.c.l.b16 %v487
    %v577 = vunpack.c.h.b16 %v487
    %v578 = vunpack.c.l.b16 %v488
    %v579 = vunpack.c.h.b16 %v488
    %v580 = vunpack.c.l.b16 %v489
    %v581 = vunpack.c.h.b16 %v489
    %v582 = vunpack.c.l.b16 %v490
    %v583 = vunpack.c.h.b16 %v490
    %v584 = vunpack.c.l.b16 %v491
    %v585 = vunpack.c.h.b16 %v491
    %v586 = vunpack.c.l.b16 %v492
    %v587 = vunpack.c.h.b16 %v492
    %v588 = vunpack.c.l.b16 %v493
    %v589 = vunpack.c.h.b16 %v493
    %v590 = vunpack.c.l.b16 %v494
    %v591 = vunpack.c.h.b16 %v494
    %v592 = vpack.c.b16 %v532, %v528
    %v593 = vpack.c.b16 %v533, %v529
    %v594 = vpack.c.b16 %v534, %v530
    %v595 = vpack.c.b16 %v535, %v531
    %v596 = vpack.c.b16 %v540, %v536
    %v597 = vpack.c.b16 %v541, %v537
    %v598 = vpack.c.b16 %v542, %v538
    %v599 = vpack.c.b16 %v543, %v539
    %v600 = vpack.c.b16 %v548, %v544
    %v601 = vpack.c.b16 %v549, %v545
    %v602 = vpack.c.b16 %v550, %v546
    %v603 = vpack.c.b16 %v551, %v547
    %v604 = vpack.c.b16 %v556, %v552
    %v605 = vpack.c.b16 %v557, %v553
    %v606 = vpack.c.b16 %v558, %v554
    %v607 = vpack.c.b16 %v559, %v555
    %v608 = vpack.c.b16 %v564, %v560
    %v609 = vpack.c.b16 %v565, %v561
    %v610 = vpack.c.b16 %v566, %v562
    %v611 = vpack.c.b16 %v567, %v563
    %v612 = vpack.c.b16 %v572, %v568
    %v613 = vpack.c.b16 %v573, %v569
    %v614 = vpack.c.b16 %v574, %v570
    %v615 = vpack.c.b16 %v575, %v571
    %v616 = vpack.c.b16 %v580, %v576
    %v617 = vpack.c.b16 %v581, %v577
    %v618 = vpack.c.b16 %v582, %v578
    %v619 = vpack.c.b16 %v583, %v579
    %v620 = vpack.c.b16 %v588, %v584
    %v621 = vpack.c.b16 %v589, %v585
    %v622 = vpack.c.b16 %v590, %v586
    %v623 = vpack.c.b16 %v591, %v587
    %656 = vmatprep.subr.bf16.mxu0 %v593
    %657 = vmatpush1.bf16.msra.mxu0 %v592
    %658 = vmatprep.subr.bf16.mxu0 %v597
    %659 = vmatpush1.bf16.msra.mxu0 %v596
    %660 = vmatprep.subr.bf16.mxu0 %v601
    %661 = vmatpush1.bf16.msra.mxu0 %v600
    %662 = vmatprep.subr.bf16.mxu0 %v605
    %663 = vmatpush1.bf16.msra.mxu0 %v604
    %664 = vmatprep.subr.bf16.mxu0 %v609
    %665 = vmatpush1.bf16.msra.mxu0 %v608
    %666 = vmatprep.subr.bf16.mxu0 %v613
    %667 = vmatpush1.bf16.msra.mxu0 %v612
    %668 = vmatprep.subr.bf16.mxu0 %v617
    %669 = vmatpush1.bf16.msra.mxu0 %v616
    %670 = vmatprep.subr.bf16.mxu0 %v621
    %671 = vmatpush1.bf16.msra.mxu0 %v620
    %672 = vmatprep.subr.bf16.mxu0 0
    %673 = vmatpush1.bf16.msra.mxu0 0
    %674 = vmatprep.subr.bf16.mxu0 0
    %675 = vmatpush1.bf16.msra.mxu0 0
    %676 = vmatprep.subr.bf16.mxu0 0
    %677 = vmatpush1.bf16.msra.mxu0 0
    %678 = vmatprep.subr.bf16.mxu0 0
    %679 = vmatpush1.bf16.msra.mxu0 0
    %680 = vmatprep.subr.bf16.mxu0 0
    %681 = vmatpush1.bf16.msra.mxu0 0
    %682 = vmatprep.subr.bf16.mxu0 0
    %683 = vmatpush1.bf16.msra.mxu0 0
    %684 = vmatprep.subr.bf16.mxu0 0
    %685 = vmatpush1.bf16.msra.mxu0 0
    %686 = vmatprep.subr.bf16.mxu0 0
    %687 = vmatpush1.bf16.msra.mxu0 0
    %688 = vmatprep.mubr.bf16.mxu0 0
    %689 = vmatmul.mubr.bf16.gmra.mrb[0].mxu0 %v462
    %v690 = vpop.f32.mrb[0].mxu0
    %v691 = vadd.f32 0.0, %v690
    %v692 = vpop.f32.mrb[0].mxu0
    %v693 = vadd.f32 0.0, %v692
    %v694 = vpop.f32.mrb[0].mxu0
    %v695 = vpop.f32.mrb[0].mxu0
    %696 = vdwg.mxu0
    %697 = vmatprep.subr.bf16.mxu0 %v595
    %698 = vmatpush1.bf16.msra.mxu0 %v594
    %699 = vmatprep.subr.bf16.mxu0 %v599
    %700 = vmatpush1.bf16.msra.mxu0 %v598
    %701 = vmatprep.subr.bf16.mxu0 %v603
    %702 = vmatpush1.bf16.msra.mxu0 %v602
    %703 = vmatprep.subr.bf16.mxu0 %v607
    %704 = vmatpush1.bf16.msra.mxu0 %v606
    %705 = vmatprep.subr.bf16.mxu0 %v611
    %706 = vmatpush1.bf16.msra.mxu0 %v610
    %707 = vmatprep.subr.bf16.mxu0 %v615
    %708 = vmatpush1.bf16.msra.mxu0 %v614
    %709 = vmatprep.subr.bf16.mxu0 %v619
    %710 = vmatpush1.bf16.msra.mxu0 %v618
    %711 = vmatprep.subr.bf16.mxu0 %v623
    %712 = vmatpush1.bf16.msra.mxu0 %v622
    %713 = vmatprep.subr.bf16.mxu0 0
    %714 = vmatpush1.bf16.msra.mxu0 0
    %715 = vmatprep.subr.bf16.mxu0 0
    %716 = vmatpush1.bf16.msra.mxu0 0
    %717 = vmatprep.subr.bf16.mxu0 0
    %718 = vmatpush1.bf16.msra.mxu0 0
    %719 = vmatprep.subr.bf16.mxu0 0
    %720 = vmatpush1.bf16.msra.mxu0 0
    %721 = vmatprep.subr.bf16.mxu0 0
    %722 = vmatpush1.bf16.msra.mxu0 0
    %723 = vmatprep.subr.bf16.mxu0 0
    %724 = vmatpush1.bf16.msra.mxu0 0
    %725 = vmatprep.subr.bf16.mxu0 0
    %726 = vmatpush1.bf16.msra.mxu0 0
    %727 = vmatprep.subr.bf16.mxu0 0
    %728 = vmatpush1.bf16.msra.mxu0 0
    %729 = vmatprep.mubr.bf16.mxu0 0
    %730 = vmatmul.mubr.bf16.gmra.mrb[0].mxu0 %v462
    %v731 = vpop.f32.mrb[0].mxu0
    %v732 = vadd.f32 0.0, %v731
    %v733 = vpop.f32.mrb[0].mxu0
    %v734 = vadd.f32 0.0, %v733
    %v735 = vpop.f32.mrb[0].mxu0
    %v736 = vpop.f32.mrb[0].mxu0
    %737 = vdwg.mxu0
    %v738 = vrot.slane %v691, 7
    %v739 = vrot.slane %v693, 7
    %vm740 = vcmp.lt.s32.totalorder %v186, 1
    %v741 = vsel %vm740, 1, 0
    %vm742 = vcmp.eq.s32.totalorder %v741, 1
    %v743 = vsel %vm742, 0.0, %v738
    %v744 = vsel %vm742, 0.0, %v739
    %v745 = vadd.f32 %v743, %v732
    %v746 = vadd.f32 %v744, %v734
    %v748 = vlaneseq
    %v749 = vshrl.u32 %v748, 7
    %v750 = vsub.s32 0, %v749
    %v751 = vrot.slane %v495, %v750
    %v752 = vlaneseq
    %v753 = vshrl.u32 %v752, 7
    %v754 = vsub.s32 1, %v753
    %v755 = vrot.slane %v495, %v754
    %v758 = vadd.f32 %v745, %v751
    %v759 = vadd.f32 %v746, %v755
    %v760 = vtanh.pop %v758
    %v761 = vxor.u32 %v759, 2147483648
    %v762 = vmul.f32 %v761, 1.442695
    %v763 = vpow.pop %v762
    %v764 = vadd.f32 %v763, 1.0
    %v765 = vrcp.pop %v764
    %v766 = vmul.f32 1.0, %v765
    %v767 = vmul.f32 %v760, %v766
    %768 = vst [vmem:[#allocation21 + $0x8] sm:$0xff] %v767
    %v769 = vpack.c.bf16 %v767, %v767
    %770 = vst [vmem:[#allocation2 + $0x4] sm:$0xf] %v769
    %v771 = vld [vmem:[#allocation2] sm:$0xff]
    %v772 = vld [vmem:[#allocation9] sm:$0xff]
    %v773 = vld [vmem:[#allocation9 + $0x8] sm:$0xff]
    %v774 = vld [vmem:[#allocation9 + $0x10] sm:$0xff]
    %v775 = vld [vmem:[#allocation9 + $0x18] sm:$0xff]
    %v776 = vld [vmem:[#allocation9 + $0x20] sm:$0xff]
    %v777 = vld [vmem:[#allocation9 + $0x28] sm:$0xff]
    %v778 = vld [vmem:[#allocation9 + $0x30] sm:$0xff]
    %v779 = vld [vmem:[#allocation9 + $0x38] sm:$0xff]
    %v780 = vld [vmem:[#allocation9 + $0x40] sm:$0xff]
    %v781 = vld [vmem:[#allocation9 + $0x48] sm:$0xff]
    %v782 = vld [vmem:[#allocation9 + $0x50] sm:$0xff]
    %v783 = vld [vmem:[#allocation9 + $0x58] sm:$0xff]
    %v784 = vld [vmem:[#allocation9 + $0x60] sm:$0xff]
    %v785 = vld [vmem:[#allocation9 + $0x68] sm:$0xff]
    %v786 = vld [vmem:[#allocation9 + $0x70] sm:$0xff]
    %v787 = vld [vmem:[#allocation9 + $0x78] sm:$0xff]
    %v788 = vld [vmem:[#allocation9 + $0x80] sm:$0xff]
    %v789 = vld [vmem:[#allocation9 + $0x88] sm:$0xff]
    %v790 = vld [vmem:[#allocation9 + $0x90] sm:$0xff]
    %v791 = vld [vmem:[#allocation9 + $0x98] sm:$0xff]
    %v792 = vld [vmem:[#allocation9 + $0xa0] sm:$0xff]
    %v793 = vld [vmem:[#allocation9 + $0xa8] sm:$0xff]
    %v794 = vld [vmem:[#allocation9 + $0xb0] sm:$0xff]
    %v795 = vld [vmem:[#allocation9 + $0xb8] sm:$0xff]
    %v796 = vld [vmem:[#allocation9 + $0xc0] sm:$0xff]
    %v797 = vld [vmem:[#allocation9 + $0xc8] sm:$0xff]
    %v798 = vld [vmem:[#allocation9 + $0xd0] sm:$0xff]
    %v799 = vld [vmem:[#allocation9 + $0xd8] sm:$0xff]
    %v800 = vld [vmem:[#allocation9 + $0xe0] sm:$0xff]
    %v801 = vld [vmem:[#allocation9 + $0xe8] sm:$0xff]
    %v802 = vld [vmem:[#allocation9 + $0xf0] sm:$0xff]
    %v803 = vld [vmem:[#allocation9 + $0xf8] sm:$0xff]
    %v804 = vld [vmem:[#allocation9 + $0x100] sm:$0xff]
    %v805 = vld [vmem:[#allocation9 + $0x108] sm:$0xff]
    %v806 = vld [vmem:[#allocation9 + $0x110] sm:$0xff]
    %v807 = vld [vmem:[#allocation9 + $0x118] sm:$0xff]
    %v808 = vld [vmem:[#allocation9 + $0x120] sm:$0xff]
    %v809 = vld [vmem:[#allocation9 + $0x128] sm:$0xff]
    %v810 = vld [vmem:[#allocation9 + $0x130] sm:$0xff]
    %v811 = vld [vmem:[#allocation9 + $0x138] sm:$0xff]
    %v812 = vld [vmem:[#allocation9 + $0x140] sm:$0xff]
    %v813 = vld [vmem:[#allocation9 + $0x148] sm:$0xff]
    %v814 = vld [vmem:[#allocation9 + $0x150] sm:$0xff]
    %v815 = vld [vmem:[#allocation9 + $0x158] sm:$0xff]
    %v816 = vld [vmem:[#allocation9 + $0x160] sm:$0xff]
    %v817 = vld [vmem:[#allocation9 + $0x168] sm:$0xff]
    %v818 = vld [vmem:[#allocation9 + $0x170] sm:$0xff]
    %v819 = vld [vmem:[#allocation9 + $0x178] sm:$0xff]
    %v820 = vld [vmem:[#allocation9 + $0x180] sm:$0xff]
    %v821 = vld [vmem:[#allocation9 + $0x188] sm:$0xff]
    %v822 = vld [vmem:[#allocation9 + $0x190] sm:$0xff]
    %v823 = vld [vmem:[#allocation9 + $0x198] sm:$0xff]
    %v824 = vld [vmem:[#allocation9 + $0x1a0] sm:$0xff]
    %v825 = vld [vmem:[#allocation9 + $0x1a8] sm:$0xff]
    %v826 = vld [vmem:[#allocation9 + $0x1b0] sm:$0xff]
    %v827 = vld [vmem:[#allocation9 + $0x1b8] sm:$0xff]
    %v828 = vld [vmem:[#allocation9 + $0x1c0] sm:$0xff]
    %v829 = vld [vmem:[#allocation9 + $0x1c8] sm:$0xff]
    %v830 = vld [vmem:[#allocation9 + $0x1d0] sm:$0xff]
    %v831 = vld [vmem:[#allocation9 + $0x1d8] sm:$0xff]
    %v832 = vld [vmem:[#allocation9 + $0x1e0] sm:$0xff]
    %v833 = vld [vmem:[#allocation9 + $0x1e8] sm:$0xff]
    %v834 = vld [vmem:[#allocation9 + $0x1f0] sm:$0xff]
    %v835 = vld [vmem:[#allocation9 + $0x1f8] sm:$0xff]
    %v836 = vld [vmem:[#allocation20 + $0x4] sm:$0x3]
    %v838 = vunpack.c.l.b16 %v771
    %v839 = vunpack.c.h.b16 %v771
    %v840 = vpack.c.b16 %v838, %v838
    %v841 = vpack.c.b16 %v839, %v839
    %v908 = vunpack.c.l.b16 %v772
    %v909 = vunpack.c.h.b16 %v772
    %v910 = vunpack.c.l.b16 %v773
    %v911 = vunpack.c.h.b16 %v773
    %v912 = vunpack.c.l.b16 %v774
    %v913 = vunpack.c.h.b16 %v774
    %v914 = vunpack.c.l.b16 %v775
    %v915 = vunpack.c.h.b16 %v775
    %v916 = vunpack.c.l.b16 %v776
    %v917 = vunpack.c.h.b16 %v776
    %v918 = vunpack.c.l.b16 %v777
    %v919 = vunpack.c.h.b16 %v777
    %v920 = vunpack.c.l.b16 %v778
    %v921 = vunpack.c.h.b16 %v778
    %v922 = vunpack.c.l.b16 %v779
    %v923 = vunpack.c.h.b16 %v779
    %v924 = vunpack.c.l.b16 %v780
    %v925 = vunpack.c.h.b16 %v780
    %v926 = vunpack.c.l.b16 %v781
    %v927 = vunpack.c.h.b16 %v781
    %v928 = vunpack.c.l.b16 %v782
    %v929 = vunpack.c.h.b16 %v782
    %v930 = vunpack.c.l.b16 %v783
    %v931 = vunpack.c.h.b16 %v783
    %v932 = vunpack.c.l.b16 %v784
    %v933 = vunpack.c.h.b16 %v784
    %v934 = vunpack.c.l.b16 %v785
    %v935 = vunpack.c.h.b16 %v785
    %v936 = vunpack.c.l.b16 %v786
    %v937 = vunpack.c.h.b16 %v786
    %v938 = vunpack.c.l.b16 %v787
    %v939 = vunpack.c.h.b16 %v787
    %v940 = vunpack.c.l.b16 %v788
    %v941 = vunpack.c.h.b16 %v788
    %v942 = vunpack.c.l.b16 %v789
    %v943 = vunpack.c.h.b16 %v789
    %v944 = vunpack.c.l.b16 %v790
    %v945 = vunpack.c.h.b16 %v790
    %v946 = vunpack.c.l.b16 %v791
    %v947 = vunpack.c.h.b16 %v791
    %v948 = vunpack.c.l.b16 %v792
    %v949 = vunpack.c.h.b16 %v792
    %v950 = vunpack.c.l.b16 %v793
    %v951 = vunpack.c.h.b16 %v793
    %v952 = vunpack.c.l.b16 %v794
    %v953 = vunpack.c.h.b16 %v794
    %v954 = vunpack.c.l.b16 %v795
    %v955 = vunpack.c.h.b16 %v795
    %v956 = vunpack.c.l.b16 %v796
    %v957 = vunpack.c.h.b16 %v796
    %v958 = vunpack.c.l.b16 %v797
    %v959 = vunpack.c.h.b16 %v797
    %v960 = vunpack.c.l.b16 %v798
    %v961 = vunpack.c.h.b16 %v798
    %v962 = vunpack.c.l.b16 %v799
    %v963 = vunpack.c.h.b16 %v799
    %v964 = vunpack.c.l.b16 %v800
    %v965 = vunpack.c.h.b16 %v800
    %v966 = vunpack.c.l.b16 %v801
    %v967 = vunpack.c.h.b16 %v801
    %v968 = vunpack.c.l.b16 %v802
    %v969 = vunpack.c.h.b16 %v802
    %v970 = vunpack.c.l.b16 %v803
    %v971 = vunpack.c.h.b16 %v803
    %v972 = vunpack.c.l.b16 %v804
    %v973 = vunpack.c.h.b16 %v804
    %v974 = vunpack.c.l.b16 %v805
    %v975 = vunpack.c.h.b16 %v805
    %v976 = vunpack.c.l.b16 %v806
    %v977 = vunpack.c.h.b16 %v806
    %v978 = vunpack.c.l.b16 %v807
    %v979 = vunpack.c.h.b16 %v807
    %v980 = vunpack.c.l.b16 %v808
    %v981 = vunpack.c.h.b16 %v808
    %v982 = vunpack.c.l.b16 %v809
    %v983 = vunpack.c.h.b16 %v809
    %v984 = vunpack.c.l.b16 %v810
    %v985 = vunpack.c.h.b16 %v810
    %v986 = vunpack.c.l.b16 %v811
    %v987 = vunpack.c.h.b16 %v811
    %v988 = vunpack.c.l.b16 %v812
    %v989 = vunpack.c.h.b16 %v812
    %v990 = vunpack.c.l.b16 %v813
    %v991 = vunpack.c.h.b16 %v813
    %v992 = vunpack.c.l.b16 %v814
    %v993 = vunpack.c.h.b16 %v814
    %v994 = vunpack.c.l.b16 %v815
    %v995 = vunpack.c.h.b16 %v815
    %v996 = vunpack.c.l.b16 %v816
    %v997 = vunpack.c.h.b16 %v816
    %v998 = vunpack.c.l.b16 %v817
    %v999 = vunpack.c.h.b16 %v817
    %v1000 = vunpack.c.l.b16 %v818
    %v1001 = vunpack.c.h.b16 %v818
    %v1002 = vunpack.c.l.b16 %v819
    %v1003 = vunpack.c.h.b16 %v819
    %v1004 = vunpack.c.l.b16 %v820
    %v1005 = vunpack.c.h.b16 %v820
    %v1006 = vunpack.c.l.b16 %v821
    %v1007 = vunpack.c.h.b16 %v821
    %v1008 = vunpack.c.l.b16 %v822
    %v1009 = vunpack.c.h.b16 %v822
    %v1010 = vunpack.c.l.b16 %v823
    %v1011 = vunpack.c.h.b16 %v823
    %v1012 = vunpack.c.l.b16 %v824
    %v1013 = vunpack.c.h.b16 %v824
    %v1014 = vunpack.c.l.b16 %v825
    %v1015 = vunpack.c.h.b16 %v825
    %v1016 = vunpack.c.l.b16 %v826
    %v1017 = vunpack.c.h.b16 %v826
    %v1018 = vunpack.c.l.b16 %v827
    %v1019 = vunpack.c.h.b16 %v827
    %v1020 = vunpack.c.l.b16 %v828
    %v1021 = vunpack.c.h.b16 %v828
    %v1022 = vunpack.c.l.b16 %v829
    %v1023 = vunpack.c.h.b16 %v829
    %v1024 = vunpack.c.l.b16 %v830
    %v1025 = vunpack.c.h.b16 %v830
    %v1026 = vunpack.c.l.b16 %v831
    %v1027 = vunpack.c.h.b16 %v831
    %v1028 = vunpack.c.l.b16 %v832
    %v1029 = vunpack.c.h.b16 %v832
    %v1030 = vunpack.c.l.b16 %v833
    %v1031 = vunpack.c.h.b16 %v833
    %v1032 = vunpack.c.l.b16 %v834
    %v1033 = vunpack.c.h.b16 %v834
    %v1034 = vunpack.c.l.b16 %v835
    %v1035 = vunpack.c.h.b16 %v835
    %v1036 = vpack.c.b16 %v912, %v908
    %v1037 = vpack.c.b16 %v913, %v909
    %v1038 = vpack.c.b16 %v914, %v910
    %v1039 = vpack.c.b16 %v915, %v911
    %v1040 = vpack.c.b16 %v920, %v916
    %v1041 = vpack.c.b16 %v921, %v917
    %v1042 = vpack.c.b16 %v922, %v918
    %v1043 = vpack.c.b16 %v923, %v919
    %v1044 = vpack.c.b16 %v928, %v924
    %v1045 = vpack.c.b16 %v929, %v925
    %v1046 = vpack.c.b16 %v930, %v926
    %v1047 = vpack.c.b16 %v931, %v927
    %v1048 = vpack.c.b16 %v936, %v932
    %v1049 = vpack.c.b16 %v937, %v933
    %v1050 = vpack.c.b16 %v938, %v934
    %v1051 = vpack.c.b16 %v939, %v935
    %v1052 = vpack.c.b16 %v944, %v940
    %v1053 = vpack.c.b16 %v945, %v941
    %v1054 = vpack.c.b16 %v946, %v942
    %v1055 = vpack.c.b16 %v947, %v943
    %v1056 = vpack.c.b16 %v952, %v948
    %v1057 = vpack.c.b16 %v953, %v949
    %v1058 = vpack.c.b16 %v954, %v950
    %v1059 = vpack.c.b16 %v955, %v951
    %v1060 = vpack.c.b16 %v960, %v956
    %v1061 = vpack.c.b16 %v961, %v957
    %v1062 = vpack.c.b16 %v962, %v958
    %v1063 = vpack.c.b16 %v963, %v959
    %v1064 = vpack.c.b16 %v968, %v964
    %v1065 = vpack.c.b16 %v969, %v965
    %v1066 = vpack.c.b16 %v970, %v966
    %v1067 = vpack.c.b16 %v971, %v967
    %v1068 = vpack.c.b16 %v976, %v972
    %v1069 = vpack.c.b16 %v977, %v973
    %v1070 = vpack.c.b16 %v978, %v974
    %v1071 = vpack.c.b16 %v979, %v975
    %v1072 = vpack.c.b16 %v984, %v980
    %v1073 = vpack.c.b16 %v985, %v981
    %v1074 = vpack.c.b16 %v986, %v982
    %v1075 = vpack.c.b16 %v987, %v983
    %v1076 = vpack.c.b16 %v992, %v988
    %v1077 = vpack.c.b16 %v993, %v989
    %v1078 = vpack.c.b16 %v994, %v990
    %v1079 = vpack.c.b16 %v995, %v991
    %v1080 = vpack.c.b16 %v1000, %v996
    %v1081 = vpack.c.b16 %v1001, %v997
    %v1082 = vpack.c.b16 %v1002, %v998
    %v1083 = vpack.c.b16 %v1003, %v999
    %v1084 = vpack.c.b16 %v1008, %v1004
    %v1085 = vpack.c.b16 %v1009, %v1005
    %v1086 = vpack.c.b16 %v1010, %v1006
    %v1087 = vpack.c.b16 %v1011, %v1007
    %v1088 = vpack.c.b16 %v1016, %v1012
    %v1089 = vpack.c.b16 %v1017, %v1013
    %v1090 = vpack.c.b16 %v1018, %v1014
    %v1091 = vpack.c.b16 %v1019, %v1015
    %v1092 = vpack.c.b16 %v1024, %v1020
    %v1093 = vpack.c.b16 %v1025, %v1021
    %v1094 = vpack.c.b16 %v1026, %v1022
    %v1095 = vpack.c.b16 %v1027, %v1023
    %v1096 = vpack.c.b16 %v1032, %v1028
    %v1097 = vpack.c.b16 %v1033, %v1029
    %v1098 = vpack.c.b16 %v1034, %v1030
    %v1099 = vpack.c.b16 %v1035, %v1031
    %1164 = vmatprep.subr.bf16.mxu0 %v1037
    %1165 = vmatpush1.bf16.msra.mxu0 %v1036
    %1166 = vmatprep.subr.bf16.mxu0 %v1041
    %1167 = vmatpush1.bf16.msra.mxu0 %v1040
    %1168 = vmatprep.subr.bf16.mxu0 %v1045
    %1169 = vmatpush1.bf16.msra.mxu0 %v1044
    %1170 = vmatprep.subr.bf16.mxu0 %v1049
    %1171 = vmatpush1.bf16.msra.mxu0 %v1048
    %1172 = vmatprep.subr.bf16.mxu0 %v1053
    %1173 = vmatpush1.bf16.msra.mxu0 %v1052
    %1174 = vmatprep.subr.bf16.mxu0 %v1057
    %1175 = vmatpush1.bf16.msra.mxu0 %v1056
    %1176 = vmatprep.subr.bf16.mxu0 %v1061
    %1177 = vmatpush1.bf16.msra.mxu0 %v1060
    %1178 = vmatprep.subr.bf16.mxu0 %v1065
    %1179 = vmatpush1.bf16.msra.mxu0 %v1064
    %1180 = vmatprep.subr.bf16.mxu0 %v1069
    %1181 = vmatpush1.bf16.msra.mxu0 %v1068
    %1182 = vmatprep.subr.bf16.mxu0 %v1073
    %1183 = vmatpush1.bf16.msra.mxu0 %v1072
    %1184 = vmatprep.subr.bf16.mxu0 %v1077
    %1185 = vmatpush1.bf16.msra.mxu0 %v1076
    %1186 = vmatprep.subr.bf16.mxu0 %v1081
    %1187 = vmatpush1.bf16.msra.mxu0 %v1080
    %1188 = vmatprep.subr.bf16.mxu0 %v1085
    %1189 = vmatpush1.bf16.msra.mxu0 %v1084
    %1190 = vmatprep.subr.bf16.mxu0 %v1089
    %1191 = vmatpush1.bf16.msra.mxu0 %v1088
    %1192 = vmatprep.subr.bf16.mxu0 %v1093
    %1193 = vmatpush1.bf16.msra.mxu0 %v1092
    %1194 = vmatprep.subr.bf16.mxu0 %v1097
    %1195 = vmatpush1.bf16.msra.mxu0 %v1096
    %1196 = vmatprep.mubr.bf16.mxu0 %v841
    %1197 = vmatmul.mubr.bf16.gmra.mrb[0].mxu0 %v840
    %v1198 = vpop.f32.mrb[0].mxu0
    %v1199 = vadd.f32 0.0, %v1198
    %v1200 = vpop.f32.mrb[0].mxu0
    %v1201 = vadd.f32 0.0, %v1200
    %v1202 = vpop.f32.mrb[0].mxu0
    %v1203 = vpop.f32.mrb[0].mxu0
    %1204 = vdwg.mxu0
    %1205 = vmatprep.subr.bf16.mxu0 %v1039
    %1206 = vmatpush1.bf16.msra.mxu0 %v1038
    %1207 = vmatprep.subr.bf16.mxu0 %v1043
    %1208 = vmatpush1.bf16.msra.mxu0 %v1042
    %1209 = vmatprep.subr.bf16.mxu0 %v1047
    %1210 = vmatpush1.bf16.msra.mxu0 %v1046
    %1211 = vmatprep.subr.bf16.mxu0 %v1051
    %1212 = vmatpush1.bf16.msra.mxu0 %v1050
    %1213 = vmatprep.subr.bf16.mxu0 %v1055
    %1214 = vmatpush1.bf16.msra.mxu0 %v1054
    %1215 = vmatprep.subr.bf16.mxu0 %v1059
    %1216 = vmatpush1.bf16.msra.mxu0 %v1058
    %1217 = vmatprep.subr.bf16.mxu0 %v1063
    %1218 = vmatpush1.bf16.msra.mxu0 %v1062
    %1219 = vmatprep.subr.bf16.mxu0 %v1067
    %1220 = vmatpush1.bf16.msra.mxu0 %v1066
    %1221 = vmatprep.subr.bf16.mxu0 %v1071
    %1222 = vmatpush1.bf16.msra.mxu0 %v1070
    %1223 = vmatprep.subr.bf16.mxu0 %v1075
    %1224 = vmatpush1.bf16.msra.mxu0 %v1074
    %1225 = vmatprep.subr.bf16.mxu0 %v1079
    %1226 = vmatpush1.bf16.msra.mxu0 %v1078
    %1227 = vmatprep.subr.bf16.mxu0 %v1083
    %1228 = vmatpush1.bf16.msra.mxu0 %v1082
    %1229 = vmatprep.subr.bf16.mxu0 %v1087
    %1230 = vmatpush1.bf16.msra.mxu0 %v1086
    %1231 = vmatprep.subr.bf16.mxu0 %v1091
    %1232 = vmatpush1.bf16.msra.mxu0 %v1090
    %1233 = vmatprep.subr.bf16.mxu0 %v1095
    %1234 = vmatpush1.bf16.msra.mxu0 %v1094
    %1235 = vmatprep.subr.bf16.mxu0 %v1099
    %1236 = vmatpush1.bf16.msra.mxu0 %v1098
    %1237 = vmatprep.mubr.bf16.mxu0 %v841
    %1238 = vmatmul.mubr.bf16.gmra.mrb[0].mxu0 %v840
    %v1239 = vpop.f32.mrb[0].mxu0
    %v1240 = vadd.f32 0.0, %v1239
    %v1241 = vpop.f32.mrb[0].mxu0
    %v1242 = vadd.f32 0.0, %v1241
    %v1243 = vpop.f32.mrb[0].mxu0
    %v1244 = vpop.f32.mrb[0].mxu0
    %1245 = vdwg.mxu0
    %v1246 = vrot.slane %v1199, 6
    %v1247 = vrot.slane %v1201, 6
    %vm1248 = vcmp.lt.s32.totalorder %v186, 2
    %v1249 = vsel %vm1248, 1, 0
    %vm1250 = vcmp.eq.s32.totalorder %v1249, 1
    %v1251 = vsel %vm1250, 0.0, %v1246
    %v1252 = vsel %vm1250, 0.0, %v1247
    %v1253 = vadd.f32 %v1251, %v1240
    %v1254 = vadd.f32 %v1252, %v1242
    %v1256 = vlaneseq
    %v1257 = vshrl.u32 %v1256, 7
    %v1258 = vsub.s32 0, %v1257
    %v1259 = vrot.slane %v836, %v1258
    %v1260 = vlaneseq
    %v1261 = vshrl.u32 %v1260, 7
    %v1262 = vsub.s32 1, %v1261
    %v1263 = vrot.slane %v836, %v1262
    %v1266 = vadd.f32 %v1253, %v1259
    %v1267 = vadd.f32 %v1254, %v1263
    %v1268 = vtanh.pop %v1266
    %v1269 = vxor.u32 %v1267, 2147483648
    %v1270 = vmul.f32 %v1269, 1.442695
    %v1271 = vpow.pop %v1270
    %v1272 = vadd.f32 %v1271, 1.0
    %v1273 = vrcp.pop %v1272
    %v1274 = vmul.f32 1.0, %v1273
    %v1275 = vmul.f32 %v1268, %v1274
    %1276 = vst [vmem:[#allocation21 + $0x10] sm:$0xff] %v1275
    %v1277 = vpack.c.bf16 %v1275, %v1275
    %1278 = vst [vmem:[#allocation2 + $0x8] sm:$0xf] %v1277
    %v1279 = vld [vmem:[#allocation2] sm:$0xff]
    %v1280 = vld [vmem:[#allocation2 + $0x8] sm:$0xf]
    %v1281 = vld [vmem:[#allocation11] sm:$0xff]
    %v1282 = vld [vmem:[#allocation11 + $0x8] sm:$0xff]
    %v1283 = vld [vmem:[#allocation11 + $0x10] sm:$0xff]
    %v1284 = vld [vmem:[#allocation11 + $0x18] sm:$0xff]
    %v1285 = vld [vmem:[#allocation11 + $0x20] sm:$0xff]
    %v1286 = vld [vmem:[#allocation11 + $0x28] sm:$0xff]
    %v1287 = vld [vmem:[#allocation11 + $0x30] sm:$0xff]
    %v1288 = vld [vmem:[#allocation11 + $0x38] sm:$0xff]
    %v1289 = vld [vmem:[#allocation11 + $0x40] sm:$0xff]
    %v1290 = vld [vmem:[#allocation11 + $0x48] sm:$0xff]
    %v1291 = vld [vmem:[#allocation11 + $0x50] sm:$0xff]
    %v1292 = vld [vmem:[#allocation11 + $0x58] sm:$0xff]
    %v1293 = vld [vmem:[#allocation11 + $0x60] sm:$0xff]
    %v1294 = vld [vmem:[#allocation11 + $0x68] sm:$0xff]
    %v1295 = vld [vmem:[#allocation11 + $0x70] sm:$0xff]
    %v1296 = vld [vmem:[#allocation11 + $0x78] sm:$0xff]
    %v1297 = vld [vmem:[#allocation11 + $0x80] sm:$0xff]
    %v1298 = vld [vmem:[#allocation11 + $0x88] sm:$0xff]
    %v1299 = vld [vmem:[#allocation11 + $0x90] sm:$0xff]
    %v1300 = vld [vmem:[#allocation11 + $0x98] sm:$0xff]
    %v1301 = vld [vmem:[#allocation11 + $0xa0] sm:$0xff]
    %v1302 = vld [vmem:[#allocation11 + $0xa8] sm:$0xff]
    %v1303 = vld [vmem:[#allocation11 + $0xb0] sm:$0xff]
    %v1304 = vld [vmem:[#allocation11 + $0xb8] sm:$0xff]
    %v1305 = vld [vmem:[#allocation11 + $0xc0] sm:$0xff]
    %v1306 = vld [vmem:[#allocation11 + $0xc8] sm:$0xff]
    %v1307 = vld [vmem:[#allocation11 + $0xd0] sm:$0xff]
    %v1308 = vld [vmem:[#allocation11 + $0xd8] sm:$0xff]
    %v1309 = vld [vmem:[#allocation11 + $0xe0] sm:$0xff]
    %v1310 = vld [vmem:[#allocation11 + $0xe8] sm:$0xff]
    %v1311 = vld [vmem:[#allocation11 + $0xf0] sm:$0xff]
    %v1312 = vld [vmem:[#allocation11 + $0xf8] sm:$0xff]
    %v1313 = vld [vmem:[#allocation11 + $0x100] sm:$0xff]
    %v1314 = vld [vmem:[#allocation11 + $0x108] sm:$0xff]
    %v1315 = vld [vmem:[#allocation11 + $0x110] sm:$0xff]
    %v1316 = vld [vmem:[#allocation11 + $0x118] sm:$0xff]
    %v1317 = vld [vmem:[#allocation11 + $0x120] sm:$0xff]
    %v1318 = vld [vmem:[#allocation11 + $0x128] sm:$0xff]
    %v1319 = vld [vmem:[#allocation11 + $0x130] sm:$0xff]
    %v1320 = vld [vmem:[#allocation11 + $0x138] sm:$0xff]
    %v1321 = vld [vmem:[#allocation11 + $0x140] sm:$0xff]
    %v1322 = vld [vmem:[#allocation11 + $0x148] sm:$0xff]
    %v1323 = vld [vmem:[#allocation11 + $0x150] sm:$0xff]
    %v1324 = vld [vmem:[#allocation11 + $0x158] sm:$0xff]
    %v1325 = vld [vmem:[#allocation11 + $0x160] sm:$0xff]
    %v1326 = vld [vmem:[#allocation11 + $0x168] sm:$0xff]
    %v1327 = vld [vmem:[#allocation11 + $0x170] sm:$0xff]
    %v1328 = vld [vmem:[#allocation11 + $0x178] sm:$0xff]
    %v1329 = vld [vmem:[#allocation11 + $0x180] sm:$0xff]
    %v1330 = vld [vmem:[#allocation11 + $0x188] sm:$0xff]
    %v1331 = vld [vmem:[#allocation11 + $0x190] sm:$0xff]
    %v1332 = vld [vmem:[#allocation11 + $0x198] sm:$0xff]
    %v1333 = vld [vmem:[#allocation11 + $0x1a0] sm:$0xff]
    %v1334 = vld [vmem:[#allocation11 + $0x1a8] sm:$0xff]
    %v1335 = vld [vmem:[#allocation11 + $0x1b0] sm:$0xff]
    %v1336 = vld [vmem:[#allocation11 + $0x1b8] sm:$0xff]
    %v1337 = vld [vmem:[#allocation11 + $0x1c0] sm:$0xff]
    %v1338 = vld [vmem:[#allocation11 + $0x1c8] sm:$0xff]
    %v1339 = vld [vmem:[#allocation11 + $0x1d0] sm:$0xff]
    %v1340 = vld [vmem:[#allocation11 + $0x1d8] sm:$0xff]
    %v1341 = vld [vmem:[#allocation11 + $0x1e0] sm:$0xff]
    %v1342 = vld [vmem:[#allocation11 + $0x1e8] sm:$0xff]
    %v1343 = vld [vmem:[#allocation11 + $0x1f0] sm:$0xff]
    %v1344 = vld [vmem:[#allocation11 + $0x1f8] sm:$0xff]
    %v1345 = vld [vmem:[#allocation11 + $0x200] sm:$0xff]
    %v1346 = vld [vmem:[#allocation11 + $0x208] sm:$0xff]
    %v1347 = vld [vmem:[#allocation11 + $0x210] sm:$0xff]
    %v1348 = vld [vmem:[#allocation11 + $0x218] sm:$0xff]
    %v1349 = vld [vmem:[#allocation11 + $0x220] sm:$0xff]
    %v1350 = vld [vmem:[#allocation11 + $0x228] sm:$0xff]
    %v1351 = vld [vmem:[#allocation11 + $0x230] sm:$0xff]
    %v1352 = vld [vmem:[#allocation11 + $0x238] sm:$0xff]
    %v1353 = vld [vmem:[#allocation11 + $0x240] sm:$0xff]
    %v1354 = vld [vmem:[#allocation11 + $0x248] sm:$0xff]
    %v1355 = vld [vmem:[#allocation11 + $0x250] sm:$0xff]
    %v1356 = vld [vmem:[#allocation11 + $0x258] sm:$0xff]
    %v1357 = vld [vmem:[#allocation11 + $0x260] sm:$0xff]
    %v1358 = vld [vmem:[#allocation11 + $0x268] sm:$0xff]
    %v1359 = vld [vmem:[#allocation11 + $0x270] sm:$0xff]
    %v1360 = vld [vmem:[#allocation11 + $0x278] sm:$0xff]
    %v1361 = vld [vmem:[#allocation11 + $0x280] sm:$0xff]
    %v1362 = vld [vmem:[#allocation11 + $0x288] sm:$0xff]
    %v1363 = vld [vmem:[#allocation11 + $0x290] sm:$0xff]
    %v1364 = vld [vmem:[#allocation11 + $0x298] sm:$0xff]
    %v1365 = vld [vmem:[#allocation11 + $0x2a0] sm:$0xff]
    %v1366 = vld [vmem:[#allocation11 + $0x2a8] sm:$0xff]
    %v1367 = vld [vmem:[#allocation11 + $0x2b0] sm:$0xff]
    %v1368 = vld [vmem:[#allocation11 + $0x2b8] sm:$0xff]
    %v1369 = vld [vmem:[#allocation11 + $0x2c0] sm:$0xff]
    %v1370 = vld [vmem:[#allocation11 + $0x2c8] sm:$0xff]
    %v1371 = vld [vmem:[#allocation11 + $0x2d0] sm:$0xff]
    %v1372 = vld [vmem:[#allocation11 + $0x2d8] sm:$0xff]
    %v1373 = vld [vmem:[#allocation11 + $0x2e0] sm:$0xff]
    %v1374 = vld [vmem:[#allocation11 + $0x2e8] sm:$0xff]
    %v1375 = vld [vmem:[#allocation11 + $0x2f0] sm:$0xff]
    %v1376 = vld [vmem:[#allocation11 + $0x2f8] sm:$0xff]
    %v1377 = vld [vmem:[#allocation20 + $0x6] sm:$0x3]
    %v1380 = vunpack.c.l.b16 %v1279
    %v1381 = vunpack.c.h.b16 %v1279
    %v1382 = vunpack.c.l.b16 %v1280
    %v1383 = vpack.c.b16 %v1380, %v1380
    %v1384 = vpack.c.b16 %v1381, %v1381
    %v1385 = vpack.c.b16 %v1382, %v1382
    %v1485 = vunpack.c.l.b16 %v1281
    %v1486 = vunpack.c.h.b16 %v1281
    %v1487 = vunpack.c.l.b16 %v1282
    %v1488 = vunpack.c.h.b16 %v1282
    %v1489 = vunpack.c.l.b16 %v1283
    %v1490 = vunpack.c.h.b16 %v1283
    %v1491 = vunpack.c.l.b16 %v1284
    %v1492 = vunpack.c.h.b16 %v1284
    %v1493 = vunpack.c.l.b16 %v1285
    %v1494 = vunpack.c.h.b16 %v1285
    %v1495 = vunpack.c.l.b16 %v1286
    %v1496 = vunpack.c.h.b16 %v1286
    %v1497 = vunpack.c.l.b16 %v1287
    %v1498 = vunpack.c.h.b16 %v1287
    %v1499 = vunpack.c.l.b16 %v1288
    %v1500 = vunpack.c.h.b16 %v1288
    %v1501 = vunpack.c.l.b16 %v1289
    %v1502 = vunpack.c.h.b16 %v1289
    %v1503 = vunpack.c.l.b16 %v1290
    %v1504 = vunpack.c.h.b16 %v1290
    %v1505 = vunpack.c.l.b16 %v1291
    %v1506 = vunpack.c.h.b16 %v1291
    %v1507 = vunpack.c.l.b16 %v1292
    %v1508 = vunpack.c.h.b16 %v1292
    %v1509 = vunpack.c.l.b16 %v1293
    %v1510 = vunpack.c.h.b16 %v1293
    %v1511 = vunpack.c.l.b16 %v1294
    %v1512 = vunpack.c.h.b16 %v1294
    %v1513 = vunpack.c.l.b16 %v1295
    %v1514 = vunpack.c.h.b16 %v1295
    %v1515 = vunpack.c.l.b16 %v1296
    %v1516 = vunpack.c.h.b16 %v1296
    %v1517 = vunpack.c.l.b16 %v1297
    %v1518 = vunpack.c.h.b16 %v1297
    %v1519 = vunpack.c.l.b16 %v1298
    %v1520 = vunpack.c.h.b16 %v1298
    %v1521 = vunpack.c.l.b16 %v1299
    %v1522 = vunpack.c.h.b16 %v1299
    %v1523 = vunpack.c.l.b16 %v1300
    %v1524 = vunpack.c.h.b16 %v1300
    %v1525 = vunpack.c.l.b16 %v1301
    %v1526 = vunpack.c.h.b16 %v1301
    %v1527 = vunpack.c.l.b16 %v1302
    %v1528 = vunpack.c.h.b16 %v1302
    %v1529 = vunpack.c.l.b16 %v1303
    %v1530 = vunpack.c.h.b16 %v1303
    %v1531 = vunpack.c.l.b16 %v1304
    %v1532 = vunpack.c.h.b16 %v1304
    %v1533 = vunpack.c.l.b16 %v1305
    %v1534 = vunpack.c.h.b16 %v1305
    %v1535 = vunpack.c.l.b16 %v1306
    %v1536 = vunpack.c.h.b16 %v1306
    %v1537 = vunpack.c.l.b16 %v1307
    %v1538 = vunpack.c.h.b16 %v1307
    %v1539 = vunpack.c.l.b16 %v1308
    %v1540 = vunpack.c.h.b16 %v1308
    %v1541 = vunpack.c.l.b16 %v1309
    %v1542 = vunpack.c.h.b16 %v1309
    %v1543 = vunpack.c.l.b16 %v1310
    %v1544 = vunpack.c.h.b16 %v1310
    %v1545 = vunpack.c.l.b16 %v1311
    %v1546 = vunpack.c.h.b16 %v1311
    %v1547 = vunpack.c.l.b16 %v1312
    %v1548 = vunpack.c.h.b16 %v1312
    %v1549 = vunpack.c.l.b16 %v1313
    %v1550 = vunpack.c.h.b16 %v1313
    %v1551 = vunpack.c.l.b16 %v1314
    %v1552 = vunpack.c.h.b16 %v1314
    %v1553 = vunpack.c.l.b16 %v1315
    %v1554 = vunpack.c.h.b16 %v1315
    %v1555 = vunpack.c.l.b16 %v1316
    %v1556 = vunpack.c.h.b16 %v1316
    %v1557 = vunpack.c.l.b16 %v1317
    %v1558 = vunpack.c.h.b16 %v1317
    %v1559 = vunpack.c.l.b16 %v1318
    %v1560 = vunpack.c.h.b16 %v1318
    %v1561 = vunpack.c.l.b16 %v1319
    %v1562 = vunpack.c.h.b16 %v1319
    %v1563 = vunpack.c.l.b16 %v1320
    %v1564 = vunpack.c.h.b16 %v1320
    %v1565 = vunpack.c.l.b16 %v1321
    %v1566 = vunpack.c.h.b16 %v1321
    %v1567 = vunpack.c.l.b16 %v1322
    %v1568 = vunpack.c.h.b16 %v1322
    %v1569 = vunpack.c.l.b16 %v1323
    %v1570 = vunpack.c.h.b16 %v1323
    %v1571 = vunpack.c.l.b16 %v1324
    %v1572 = vunpack.c.h.b16 %v1324
    %v1573 = vunpack.c.l.b16 %v1325
    %v1574 = vunpack.c.h.b16 %v1325
    %v1575 = vunpack.c.l.b16 %v1326
    %v1576 = vunpack.c.h.b16 %v1326
    %v1577 = vunpack.c.l.b16 %v1327
    %v1578 = vunpack.c.h.b16 %v1327
    %v1579 = vunpack.c.l.b16 %v1328
    %v1580 = vunpack.c.h.b16 %v1328
    %v1581 = vunpack.c.l.b16 %v1329
    %v1582 = vunpack.c.h.b16 %v1329
    %v1583 = vunpack.c.l.b16 %v1330
    %v1584 = vunpack.c.h.b16 %v1330
    %v1585 = vunpack.c.l.b16 %v1331
    %v1586 = vunpack.c.h.b16 %v1331
    %v1587 = vunpack.c.l.b16 %v1332
    %v1588 = vunpack.c.h.b16 %v1332
    %v1589 = vunpack.c.l.b16 %v1333
    %v1590 = vunpack.c.h.b16 %v1333
    %v1591 = vunpack.c.l.b16 %v1334
    %v1592 = vunpack.c.h.b16 %v1334
    %v1593 = vunpack.c.l.b16 %v1335
    %v1594 = vunpack.c.h.b16 %v1335
    %v1595 = vunpack.c.l.b16 %v1336
    %v1596 = vunpack.c.h.b16 %v1336
    %v1597 = vunpack.c.l.b16 %v1337
    %v1598 = vunpack.c.h.b16 %v1337
    %v1599 = vunpack.c.l.b16 %v1338
    %v1600 = vunpack.c.h.b16 %v1338
    %v1601 = vunpack.c.l.b16 %v1339
    %v1602 = vunpack.c.h.b16 %v1339
    %v1603 = vunpack.c.l.b16 %v1340
    %v1604 = vunpack.c.h.b16 %v1340
    %v1605 = vunpack.c.l.b16 %v1341
    %v1606 = vunpack.c.h.b16 %v1341
    %v1607 = vunpack.c.l.b16 %v1342
    %v1608 = vunpack.c.h.b16 %v1342
    %v1609 = vunpack.c.l.b16 %v1343
    %v1610 = vunpack.c.h.b16 %v1343
    %v1611 = vunpack.c.l.b16 %v1344
    %v1612 = vunpack.c.h.b16 %v1344
    %v1613 = vunpack.c.l.b16 %v1345
    %v1614 = vunpack.c.h.b16 %v1345
    %v1615 = vunpack.c.l.b16 %v1346
    %v1616 = vunpack.c.h.b16 %v1346
    %v1617 = vunpack.c.l.b16 %v1347
    %v1618 = vunpack.c.h.b16 %v1347
    %v1619 = vunpack.c.l.b16 %v1348
    %v1620 = vunpack.c.h.b16 %v1348
    %v1621 = vunpack.c.l.b16 %v1349
    %v1622 = vunpack.c.h.b16 %v1349
    %v1623 = vunpack.c.l.b16 %v1350
    %v1624 = vunpack.c.h.b16 %v1350
    %v1625 = vunpack.c.l.b16 %v1351
    %v1626 = vunpack.c.h.b16 %v1351
    %v1627 = vunpack.c.l.b16 %v1352
    %v1628 = vunpack.c.h.b16 %v1352
    %v1629 = vunpack.c.l.b16 %v1353
    %v1630 = vunpack.c.h.b16 %v1353
    %v1631 = vunpack.c.l.b16 %v1354
    %v1632 = vunpack.c.h.b16 %v1354
    %v1633 = vunpack.c.l.b16 %v1355
    %v1634 = vunpack.c.h.b16 %v1355
    %v1635 = vunpack.c.l.b16 %v1356
    %v1636 = vunpack.c.h.b16 %v1356
    %v1637 = vunpack.c.l.b16 %v1357
    %v1638 = vunpack.c.h.b16 %v1357
    %v1639 = vunpack.c.l.b16 %v1358
    %v1640 = vunpack.c.h.b16 %v1358
    %v1641 = vunpack.c.l.b16 %v1359
    %v1642 = vunpack.c.h.b16 %v1359
    %v1643 = vunpack.c.l.b16 %v1360
    %v1644 = vunpack.c.h.b16 %v1360
    %v1645 = vunpack.c.l.b16 %v1361
    %v1646 = vunpack.c.h.b16 %v1361
    %v1647 = vunpack.c.l.b16 %v1362
    %v1648 = vunpack.c.h.b16 %v1362
    %v1649 = vunpack.c.l.b16 %v1363
    %v1650 = vunpack.c.h.b16 %v1363
    %v1651 = vunpack.c.l.b16 %v1364
    %v1652 = vunpack.c.h.b16 %v1364
    %v1653 = vunpack.c.l.b16 %v1365
    %v1654 = vunpack.c.h.b16 %v1365
    %v1655 = vunpack.c.l.b16 %v1366
    %v1656 = vunpack.c.h.b16 %v1366
    %v1657 = vunpack.c.l.b16 %v1367
    %v1658 = vunpack.c.h.b16 %v1367
    %v1659 = vunpack.c.l.b16 %v1368
    %v1660 = vunpack.c.h.b16 %v1368
    %v1661 = vunpack.c.l.b16 %v1369
    %v1662 = vunpack.c.h.b16 %v1369
    %v1663 = vunpack.c.l.b16 %v1370
    %v1664 = vunpack.c.h.b16 %v1370
    %v1665 = vunpack.c.l.b16 %v1371
    %v1666 = vunpack.c.h.b16 %v1371
    %v1667 = vunpack.c.l.b16 %v1372
    %v1668 = vunpack.c.h.b16 %v1372
    %v1669 = vunpack.c.l.b16 %v1373
    %v1670 = vunpack.c.h.b16 %v1373
    %v1671 = vunpack.c.l.b16 %v1374
    %v1672 = vunpack.c.h.b16 %v1374
    %v1673 = vunpack.c.l.b16 %v1375
    %v1674 = vunpack.c.h.b16 %v1375
    %v1675 = vunpack.c.l.b16 %v1376
    %v1676 = vunpack.c.h.b16 %v1376
    %v1677 = vpack.c.b16 %v1489, %v1485
    %v1678 = vpack.c.b16 %v1490, %v1486
    %v1679 = vpack.c.b16 %v1491, %v1487
    %v1680 = vpack.c.b16 %v1492, %v1488
    %v1681 = vpack.c.b16 %v1497, %v1493
    %v1682 = vpack.c.b16 %v1498, %v1494
    %v1683 = vpack.c.b16 %v1499, %v1495
    %v1684 = vpack.c.b16 %v1500, %v1496
    %v1685 = vpack.c.b16 %v1505, %v1501
    %v1686 = vpack.c.b16 %v1506, %v1502
    %v1687 = vpack.c.b16 %v1507, %v1503
    %v1688 = vpack.c.b16 %v1508, %v1504
    %v1689 = vpack.c.b16 %v1513, %v1509
    %v1690 = vpack.c.b16 %v1514, %v1510
    %v1691 = vpack.c.b16 %v1515, %v1511
    %v1692 = vpack.c.b16 %v1516, %v1512
    %v1693 = vpack.c.b16 %v1521, %v1517
    %v1694 = vpack.c.b16 %v1522, %v1518
    %v1695 = vpack.c.b16 %v1523, %v1519
    %v1696 = vpack.c.b16 %v1524, %v1520
    %v1697 = vpack.c.b16 %v1529, %v1525
    %v1698 = vpack.c.b16 %v1530, %v1526
    %v1699 = vpack.c.b16 %v1531, %v1527
    %v1700 = vpack.c.b16 %v1532, %v1528
    %v1701 = vpack.c.b16 %v1537, %v1533
    %v1702 = vpack.c.b16 %v1538, %v1534
    %v1703 = vpack.c.b16 %v1539, %v1535
    %v1704 = vpack.c.b16 %v1540, %v1536
    %v1705 = vpack.c.b16 %v1545, %v1541
    %v1706 = vpack.c.b16 %v1546, %v1542
    %v1707 = vpack.c.b16 %v1547, %v1543
    %v1708 = vpack.c.b16 %v1548, %v1544
    %v1709 = vpack.c.b16 %v1553, %v1549
    %v1710 = vpack.c.b16 %v1554, %v1550
    %v1711 = vpack.c.b16 %v1555, %v1551
    %v1712 = vpack.c.b16 %v1556, %v1552
    %v1713 = vpack.c.b16 %v1561, %v1557
    %v1714 = vpack.c.b16 %v1562, %v1558
    %v1715 = vpack.c.b16 %v1563, %v1559
    %v1716 = vpack.c.b16 %v1564, %v1560
    %v1717 = vpack.c.b16 %v1569, %v1565
    %v1718 = vpack.c.b16 %v1570, %v1566
    %v1719 = vpack.c.b16 %v1571, %v1567
    %v1720 = vpack.c.b16 %v1572, %v1568
    %v1721 = vpack.c.b16 %v1577, %v1573
    %v1722 = vpack.c.b16 %v1578, %v1574
    %v1723 = vpack.c.b16 %v1579, %v1575
    %v1724 = vpack.c.b16 %v1580, %v1576
    %v1725 = vpack.c.b16 %v1585, %v1581
    %v1726 = vpack.c.b16 %v1586, %v1582
    %v1727 = vpack.c.b16 %v1587, %v1583
    %v1728 = vpack.c.b16 %v1588, %v1584
    %v1729 = vpack.c.b16 %v1593, %v1589
    %v1730 = vpack.c.b16 %v1594, %v1590
    %v1731 = vpack.c.b16 %v1595, %v1591
    %v1732 = vpack.c.b16 %v1596, %v1592
    %v1733 = vpack.c.b16 %v1601, %v1597
    %v1734 = vpack.c.b16 %v1602, %v1598
    %v1735 = vpack.c.b16 %v1603, %v1599
    %v1736 = vpack.c.b16 %v1604, %v1600
    %v1737 = vpack.c.b16 %v1609, %v1605
    %v1738 = vpack.c.b16 %v1610, %v1606
    %v1739 = vpack.c.b16 %v1611, %v1607
    %v1740 = vpack.c.b16 %v1612, %v1608
    %v1741 = vpack.c.b16 %v1617, %v1613
    %v1742 = vpack.c.b16 %v1618, %v1614
    %v1743 = vpack.c.b16 %v1619, %v1615
    %v1744 = vpack.c.b16 %v1620, %v1616
    %v1745 = vpack.c.b16 %v1625, %v1621
    %v1746 = vpack.c.b16 %v1626, %v1622
    %v1747 = vpack.c.b16 %v1627, %v1623
    %v1748 = vpack.c.b16 %v1628, %v1624
    %v1749 = vpack.c.b16 %v1633, %v1629
    %v1750 = vpack.c.b16 %v1634, %v1630
    %v1751 = vpack.c.b16 %v1635, %v1631
    %v1752 = vpack.c.b16 %v1636, %v1632
    %v1753 = vpack.c.b16 %v1641, %v1637
    %v1754 = vpack.c.b16 %v1642, %v1638
    %v1755 = vpack.c.b16 %v1643, %v1639
    %v1756 = vpack.c.b16 %v1644, %v1640
    %v1757 = vpack.c.b16 %v1649, %v1645
    %v1758 = vpack.c.b16 %v1650, %v1646
    %v1759 = vpack.c.b16 %v1651, %v1647
    %v1760 = vpack.c.b16 %v1652, %v1648
    %v1761 = vpack.c.b16 %v1657, %v1653
    %v1762 = vpack.c.b16 %v1658, %v1654
    %v1763 = vpack.c.b16 %v1659, %v1655
    %v1764 = vpack.c.b16 %v1660, %v1656
    %v1765 = vpack.c.b16 %v1665, %v1661
    %v1766 = vpack.c.b16 %v1666, %v1662
    %v1767 = vpack.c.b16 %v1667, %v1663
    %v1768 = vpack.c.b16 %v1668, %v1664
    %v1769 = vpack.c.b16 %v1673, %v1669
    %v1770 = vpack.c.b16 %v1674, %v1670
    %v1771 = vpack.c.b16 %v1675, %v1671
    %v1772 = vpack.c.b16 %v1676, %v1672
    %1869 = vmatprep.subr.bf16.mxu0 %v1678
    %1870 = vmatpush1.bf16.msra.mxu0 %v1677
    %1871 = vmatprep.subr.bf16.mxu0 %v1682
    %1872 = vmatpush1.bf16.msra.mxu0 %v1681
    %1873 = vmatprep.subr.bf16.mxu0 %v1686
    %1874 = vmatpush1.bf16.msra.mxu0 %v1685
    %1875 = vmatprep.subr.bf16.mxu0 %v1690
    %1876 = vmatpush1.bf16.msra.mxu0 %v1689
    %1877 = vmatprep.subr.bf16.mxu0 %v1694
    %1878 = vmatpush1.bf16.msra.mxu0 %v1693
    %1879 = vmatprep.subr.bf16.mxu0 %v1698
    %1880 = vmatpush1.bf16.msra.mxu0 %v1697
    %1881 = vmatprep.subr.bf16.mxu0 %v1702
    %1882 = vmatpush1.bf16.msra.mxu0 %v1701
    %1883 = vmatprep.subr.bf16.mxu0 %v1706
    %1884 = vmatpush1.bf16.msra.mxu0 %v1705
    %1885 = vmatprep.subr.bf16.mxu0 %v1710
    %1886 = vmatpush1.bf16.msra.mxu0 %v1709
    %1887 = vmatprep.subr.bf16.mxu0 %v1714
    %1888 = vmatpush1.bf16.msra.mxu0 %v1713
    %1889 = vmatprep.subr.bf16.mxu0 %v1718
    %1890 = vmatpush1.bf16.msra.mxu0 %v1717
    %1891 = vmatprep.subr.bf16.mxu0 %v1722
    %1892 = vmatpush1.bf16.msra.mxu0 %v1721
    %1893 = vmatprep.subr.bf16.mxu0 %v1726
    %1894 = vmatpush1.bf16.msra.mxu0 %v1725
    %1895 = vmatprep.subr.bf16.mxu0 %v1730
    %1896 = vmatpush1.bf16.msra.mxu0 %v1729
    %1897 = vmatprep.subr.bf16.mxu0 %v1734
    %1898 = vmatpush1.bf16.msra.mxu0 %v1733
    %1899 = vmatprep.subr.bf16.mxu0 %v1738
    %1900 = vmatpush1.bf16.msra.mxu0 %v1737
    %1901 = vmatprep.mubr.bf16.mxu0 %v1384
    %1902 = vmatmul.mubr.bf16.gmra.mrb[0].mxu0 %v1383
    %v1903 = vpop.f32.mrb[0].mxu0
    %v1904 = vadd.f32 0.0, %v1903
    %v1905 = vpop.f32.mrb[0].mxu0
    %v1906 = vadd.f32 0.0, %v1905
    %v1907 = vpop.f32.mrb[0].mxu0
    %v1908 = vpop.f32.mrb[0].mxu0
    %1909 = vdwg.mxu0
    %1910 = vmatprep.subr.bf16.mxu0 %v1742
    %1911 = vmatpush1.bf16.msra.mxu0 %v1741
    %1912 = vmatprep.subr.bf16.mxu0 %v1746
    %1913 = vmatpush1.bf16.msra.mxu0 %v1745
    %1914 = vmatprep.subr.bf16.mxu0 %v1750
    %1915 = vmatpush1.bf16.msra.mxu0 %v1749
    %1916 = vmatprep.subr.bf16.mxu0 %v1754
    %1917 = vmatpush1.bf16.msra.mxu0 %v1753
    %1918 = vmatprep.subr.bf16.mxu0 %v1758
    %1919 = vmatpush1.bf16.msra.mxu0 %v1757
    %1920 = vmatprep.subr.bf16.mxu0 %v1762
    %1921 = vmatpush1.bf16.msra.mxu0 %v1761
    %1922 = vmatprep.subr.bf16.mxu0 %v1766
    %1923 = vmatpush1.bf16.msra.mxu0 %v1765
    %1924 = vmatprep.subr.bf16.mxu0 %v1770
    %1925 = vmatpush1.bf16.msra.mxu0 %v1769
    %1926 = vmatprep.subr.bf16.mxu0 0
    %1927 = vmatpush1.bf16.msra.mxu0 0
    %1928 = vmatprep.subr.bf16.mxu0 0
    %1929 = vmatpush1.bf16.msra.mxu0 0
    %1930 = vmatprep.subr.bf16.mxu0 0
    %1931 = vmatpush1.bf16.msra.mxu0 0
    %1932 = vmatprep.subr.bf16.mxu0 0
    %1933 = vmatpush1.bf16.msra.mxu0 0
    %1934 = vmatprep.subr.bf16.mxu0 0
    %1935 = vmatpush1.bf16.msra.mxu0 0
    %1936 = vmatprep.subr.bf16.mxu0 0
    %1937 = vmatpush1.bf16.msra.mxu0 0
    %1938 = vmatprep.subr.bf16.mxu0 0
    %1939 = vmatpush1.bf16.msra.mxu0 0
    %1940 = vmatprep.subr.bf16.mxu0 0
    %1941 = vmatpush1.bf16.msra.mxu0 0
    %1942 = vmatprep.mubr.bf16.mxu0 0
    %1943 = vmatmul.mubr.bf16.gmra.mrb[0].mxu0 %v1385
    %v1944 = vpop.f32.mrb[0].mxu0
    %v1945 = vadd.f32 %v1904, %v1944
    %v1946 = vpop.f32.mrb[0].mxu0
    %v1947 = vadd.f32 %v1906, %v1946
    %v1948 = vpop.f32.mrb[0].mxu0
    %v1949 = vpop.f32.mrb[0].mxu0
    %1950 = vdwg.mxu0
    %1951 = vmatprep.subr.bf16.mxu0 %v1680
    %1952 = vmatpush1.bf16.msra.mxu0 %v1679
    %1953 = vmatprep.subr.bf16.mxu0 %v1684
    %1954 = vmatpush1.bf16.msra.mxu0 %v1683
    %1955 = vmatprep.subr.bf16.mxu0 %v1688
    %1956 = vmatpush1.bf16.msra.mxu0 %v1687
    %1957 = vmatprep.subr.bf16.mxu0 %v1692
    %1958 = vmatpush1.bf16.msra.mxu0 %v1691
    %1959 = vmatprep.subr.bf16.mxu0 %v1696
    %1960 = vmatpush1.bf16.msra.mxu0 %v1695
    %1961 = vmatprep.subr.bf16.mxu0 %v1700
    %1962 = vmatpush1.bf16.msra.mxu0 %v1699
    %1963 = vmatprep.subr.bf16.mxu0 %v1704
    %1964 = vmatpush1.bf16.msra.mxu0 %v1703
    %1965 = vmatprep.subr.bf16.mxu0 %v1708
    %1966 = vmatpush1.bf16.msra.mxu0 %v1707
    %1967 = vmatprep.subr.bf16.mxu0 %v1712
    %1968 = vmatpush1.bf16.msra.mxu0 %v1711
    %1969 = vmatprep.subr.bf16.mxu0 %v1716
    %1970 = vmatpush1.bf16.msra.mxu0 %v1715
    %1971 = vmatprep.subr.bf16.mxu0 %v1720
    %1972 = vmatpush1.bf16.msra.mxu0 %v1719
    %1973 = vmatprep.subr.bf16.mxu0 %v1724
    %1974 = vmatpush1.bf16.msra.mxu0 %v1723
    %1975 = vmatprep.subr.bf16.mxu0 %v1728
    %1976 = vmatpush1.bf16.msra.mxu0 %v1727
    %1977 = vmatprep.subr.bf16.mxu0 %v1732
    %1978 = vmatpush1.bf16.msra.mxu0 %v1731
    %1979 = vmatprep.subr.bf16.mxu0 %v1736
    %1980 = vmatpush1.bf16.msra.mxu0 %v1735
    %1981 = vmatprep.subr.bf16.mxu0 %v1740
    %1982 = vmatpush1.bf16.msra.mxu0 %v1739
    %1983 = vmatprep.mubr.bf16.mxu0 %v1384
    %1984 = vmatmul.mubr.bf16.gmra.mrb[0].mxu0 %v1383
    %v1985 = vpop.f32.mrb[0].mxu0
    %v1986 = vadd.f32 0.0, %v1985
    %v1987 = vpop.f32.mrb[0].mxu0
    %v1988 = vadd.f32 0.0, %v1987
    %v1989 = vpop.f32.mrb[0].mxu0
    %v1990 = vpop.f32.mrb[0].mxu0
    %1991 = vdwg.mxu0
    %1992 = vmatprep.subr.bf16.mxu0 %v1744
    %1993 = vmatpush1.bf16.msra.mxu0 %v1743
    %1994 = vmatprep.subr.bf16.mxu0 %v1748
    %1995 = vmatpush1.bf16.msra.mxu0 %v1747
    %1996 = vmatprep.subr.bf16.mxu0 %v1752
    %1997 = vmatpush1.bf16.msra.mxu0 %v1751
    %1998 = vmatprep.subr.bf16.mxu0 %v1756
    %1999 = vmatpush1.bf16.msra.mxu0 %v1755
    %2000 = vmatprep.subr.bf16.mxu0 %v1760
    %2001 = vmatpush1.bf16.msra.mxu0 %v1759
    %2002 = vmatprep.subr.bf16.mxu0 %v1764
    %2003 = vmatpush1.bf16.msra.mxu0 %v1763
    %2004 = vmatprep.subr.bf16.mxu0 %v1768
    %2005 = vmatpush1.bf16.msra.mxu0 %v1767
    %2006 = vmatprep.subr.bf16.mxu0 %v1772
    %2007 = vmatpush1.bf16.msra.mxu0 %v1771
    %2008 = vmatprep.subr.bf16.mxu0 0
    %2009 = vmatpush1.bf16.msra.mxu0 0
    %2010 = vmatprep.subr.bf16.mxu0 0
    %2011 = vmatpush1.bf16.msra.mxu0 0
    %2012 = vmatprep.subr.bf16.mxu0 0
    %2013 = vmatpush1.bf16.msra.mxu0 0
    %2014 = vmatprep.subr.bf16.mxu0 0
    %2015 = vmatpush1.bf16.msra.mxu0 0
    %2016 = vmatprep.subr.bf16.mxu0 0
    %2017 = vmatpush1.bf16.msra.mxu0 0
    %2018 = vmatprep.subr.bf16.mxu0 0
    %2019 = vmatpush1.bf16.msra.mxu0 0
    %2020 = vmatprep.subr.bf16.mxu0 0
    %2021 = vmatpush1.bf16.msra.mxu0 0
    %2022 = vmatprep.subr.bf16.mxu0 0
    %2023 = vmatpush1.bf16.msra.mxu0 0
    %2024 = vmatprep.mubr.bf16.mxu0 0
    %2025 = vmatmul.mubr.bf16.gmra.mrb[0].mxu0 %v1385
    %v2026 = vpop.f32.mrb[0].mxu0
    %v2027 = vadd.f32 %v1986, %v2026
    %v2028 = vpop.f32.mrb[0].mxu0
    %v2029 = vadd.f32 %v1988, %v2028
    %v2030 = vpop.f32.mrb[0].mxu0
    %v2031 = vpop.f32.mrb[0].mxu0
    %2032 = vdwg.mxu0
    %v2033 = vrot.slane %v1945, 4
    %v2034 = vrot.slane %v1947, 4
    %vm2035 = vcmp.lt.s32.totalorder %v186, 4
    %v2036 = vsel %vm2035, 1, 0
    %vm2037 = vcmp.eq.s32.totalorder %v2036, 1
    %v2038 = vsel %vm2037, 0.0, %v2033
    %v2039 = vsel %vm2037, 0.0, %v2034
    %v2040 = vadd.f32 %v2038, %v2027
    %v2041 = vadd.f32 %v2039, %v2029
    %v2043 = vlaneseq
    %v2044 = vshrl.u32 %v2043, 7
    %v2045 = vsub.s32 0, %v2044
    %v2046 = vrot.slane %v1377, %v2045
    %v2047 = vlaneseq
    %v2048 = vshrl.u32 %v2047, 7
    %v2049 = vsub.s32 1, %v2048
    %v2050 = vrot.slane %v1377, %v2049
    %v2053 = vadd.f32 %v2040, %v2046
    %v2054 = vadd.f32 %v2041, %v2050
    %v2055 = vtanh.pop %v2053
    %v2056 = vxor.u32 %v2054, 2147483648
    %v2057 = vmul.f32 %v2056, 1.442695
    %v2058 = vpow.pop %v2057
    %v2059 = vadd.f32 %v2058, 1.0
    %v2060 = vrcp.pop %v2059
    %v2061 = vmul.f32 1.0, %v2060
    %v2062 = vmul.f32 %v2055, %v2061
    %2063 = vst [vmem:[#allocation21 + $0x18] sm:$0xff] %v2062
    %v2064 = vpack.c.bf16 %v2062, %v2062
    %2065 = vst [vmem:[#allocation2 + $0xc] sm:$0xf] %v2064
    %v2066 = vld [vmem:[#allocation2] sm:$0xff]
    %v2067 = vld [vmem:[#allocation2 + $0x8] sm:$0xff]
    %v2068 = vld [vmem:[#allocation12] sm:$0xff]
    %v2069 = vld [vmem:[#allocation12 + $0x8] sm:$0xff]
    %v2070 = vld [vmem:[#allocation12 + $0x10] sm:$0xf]
    %v2071 = vld [vmem:[#allocation12 + $0x14] sm:$0xff]
    %v2072 = vld [vmem:[#allocation12 + $0x1c] sm:$0xff]
    %v2073 = vld [vmem:[#allocation12 + $0x24] sm:$0xf]
    %v2074 = vld [vmem:[#allocation12 + $0x28] sm:$0xff]
    %v2075 = vld [vmem:[#allocation12 + $0x30] sm:$0xff]
    %v2076 = vld [vmem:[#allocation12 + $0x38] sm:$0xf]
    %v2077 = vld [vmem:[#allocation12 + $0x3c] sm:$0xff]
    %v2078 = vld [vmem:[#allocation12 + $0x44] sm:$0xff]
    %v2079 = vld [vmem:[#allocation12 + $0x4c] sm:$0xf]
    %v2080 = vld [vmem:[#allocation12 + $0x50] sm:$0xff]
    %v2081 = vld [vmem:[#allocation12 + $0x58] sm:$0xff]
    %v2082 = vld [vmem:[#allocation12 + $0x60] sm:$0xf]
    %v2083 = vld [vmem:[#allocation12 + $0x64] sm:$0xff]
    %v2084 = vld [vmem:[#allocation12 + $0x6c] sm:$0xff]
    %v2085 = vld [vmem:[#allocation12 + $0x74] sm:$0xf]
    %v2086 = vld [vmem:[#allocation12 + $0x78] sm:$0xff]
    %v2087 = vld [vmem:[#allocation12 + $0x80] sm:$0xff]
    %v2088 = vld [vmem:[#allocation12 + $0x88] sm:$0xf]
    %v2089 = vld [vmem:[#allocation12 + $0x8c] sm:$0xff]
    %v2090 = vld [vmem:[#allocation12 + $0x94] sm:$0xff]
    %v2091 = vld [vmem:[#allocation12 + $0x9c] sm:$0xf]
    %v2092 = vld [vmem:[#allocation12 + $0xa0] sm:$0xff]
    %v2093 = vld [vmem:[#allocation12 + $0xa8] sm:$0xff]
    %v2094 = vld [vmem:[#allocation12 + $0xb0] sm:$0xf]
    %v2095 = vld [vmem:[#allocation12 + $0xb4] sm:$0xff]
    %v2096 = vld [vmem:[#allocation12 + $0xbc] sm:$0xff]
    %v2097 = vld [vmem:[#allocation12 + $0xc4] sm:$0xf]
    %v2098 = vld [vmem:[#allocation12 + $0xc8] sm:$0xff]
    %v2099 = vld [vmem:[#allocation12 + $0xd0] sm:$0xff]
    %v2100 = vld [vmem:[#allocation12 + $0xd8] sm:$0xf]
    %v2101 = vld [vmem:[#allocation12 + $0xdc] sm:$0xff]
    %v2102 = vld [vmem:[#allocation12 + $0xe4] sm:$0xff]
    %v2103 = vld [vmem:[#allocation12 + $0xec] sm:$0xf]
    %v2104 = vld [vmem:[#allocation12 + $0xf0] sm:$0xff]
    %v2105 = vld [vmem:[#allocation12 + $0xf8] sm:$0xff]
    %v2106 = vld [vmem:[#allocation12 + $0x100] sm:$0xf]
    %v2107 = vld [vmem:[#allocation12 + $0x104] sm:$0xff]
    %v2108 = vld [vmem:[#allocation12 + $0x10c] sm:$0xff]
    %v2109 = vld [vmem:[#allocation12 + $0x114] sm:$0xf]
    %v2110 = vld [vmem:[#allocation12 + $0x118] sm:$0xff]
    %v2111 = vld [vmem:[#allocation12 + $0x120] sm:$0xff]
    %v2112 = vld [vmem:[#allocation12 + $0x128] sm:$0xf]
    %v2113 = vld [vmem:[#allocation12 + $0x12c] sm:$0xff]
    %v2114 = vld [vmem:[#allocation12 + $0x134] sm:$0xff]
    %v2115 = vld [vmem:[#allocation12 + $0x13c] sm:$0xf]
    %v2116 = vld [vmem:[#allocation12 + $0x140] sm:$0xff]
    %v2117 = vld [vmem:[#allocation12 + $0x148] sm:$0xff]
    %v2118 = vld [vmem:[#allocation12 + $0x150] sm:$0xf]
    %v2119 = vld [vmem:[#allocation12 + $0x154] sm:$0xff]
    %v2120 = vld [vmem:[#allocation12 + $0x15c] sm:$0xff]
    %v2121 = vld [vmem:[#allocation12 + $0x164] sm:$0xf]
    %v2122 = vld [vmem:[#allocation12 + $0x168] sm:$0xff]
    %v2123 = vld [vmem:[#allocation12 + $0x170] sm:$0xff]
    %v2124 = vld [vmem:[#allocation12 + $0x178] sm:$0xf]
    %v2125 = vld [vmem:[#allocation12 + $0x17c] sm:$0xff]
    %v2126 = vld [vmem:[#allocation12 + $0x184] sm:$0xff]
    %v2127 = vld [vmem:[#allocation12 + $0x18c] sm:$0xf]
    %v2128 = vld [vmem:[#allocation12 + $0x190] sm:$0xff]
    %v2129 = vld [vmem:[#allocation12 + $0x198] sm:$0xff]
    %v2130 = vld [vmem:[#allocation12 + $0x1a0] sm:$0xf]
    %v2131 = vld [vmem:[#allocation12 + $0x1a4] sm:$0xff]
    %v2132 = vld [vmem:[#allocation12 + $0x1ac] sm:$0xff]
    %v2133 = vld [vmem:[#allocation12 + $0x1b4] sm:$0xf]
    %v2134 = vld [vmem:[#allocation12 + $0x1b8] sm:$0xff]
    %v2135 = vld [vmem:[#allocation12 + $0x1c0] sm:$0xff]
    %v2136 = vld [vmem:[#allocation12 + $0x1c8] sm:$0xf]
    %v2137 = vld [vmem:[#allocation12 + $0x1cc] sm:$0xff]
    %v2138 = vld [vmem:[#allocation12 + $0x1d4] sm:$0xff]
    %v2139 = vld [vmem:[#allocation12 + $0x1dc] sm:$0xf]
    %v2140 = vld [vmem:[#allocation12 + $0x1e0] sm:$0xff]
    %v2141 = vld [vmem:[#allocation12 + $0x1e8] sm:$0xff]
    %v2142 = vld [vmem:[#allocation12 + $0x1f0] sm:$0xf]
    %v2143 = vld [vmem:[#allocation12 + $0x1f4] sm:$0xff]
    %v2144 = vld [vmem:[#allocation12 + $0x1fc] sm:$0xff]
    %v2145 = vld [vmem:[#allocation12 + $0x204] sm:$0xf]
    %v2146 = vld [vmem:[#allocation12 + $0x208] sm:$0xff]
    %v2147 = vld [vmem:[#allocation12 + $0x210] sm:$0xff]
    %v2148 = vld [vmem:[#allocation12 + $0x218] sm:$0xf]
    %v2149 = vld [vmem:[#allocation12 + $0x21c] sm:$0xff]
    %v2150 = vld [vmem:[#allocation12 + $0x224] sm:$0xff]
    %v2151 = vld [vmem:[#allocation12 + $0x22c] sm:$0xf]
    %v2152 = vld [vmem:[#allocation12 + $0x230] sm:$0xff]
    %v2153 = vld [vmem:[#allocation12 + $0x238] sm:$0xff]
    %v2154 = vld [vmem:[#allocation12 + $0x240] sm:$0xf]
    %v2155 = vld [vmem:[#allocation12 + $0x244] sm:$0xff]
    %v2156 = vld [vmem:[#allocation12 + $0x24c] sm:$0xff]
    %v2157 = vld [vmem:[#allocation12 + $0x254] sm:$0xf]
    %v2158 = vld [vmem:[#allocation12 + $0x258] sm:$0xff]
    %v2159 = vld [vmem:[#allocation12 + $0x260] sm:$0xff]
    %v2160 = vld [vmem:[#allocation12 + $0x268] sm:$0xf]
    %v2161 = vld [vmem:[#allocation12 + $0x26c] sm:$0xff]
    %v2162 = vld [vmem:[#allocation12 + $0x274] sm:$0xff]
    %v2163 = vld [vmem:[#allocation12 + $0x27c] sm:$0xf]
    %v2164 = vld [vmem:[#allocation12 + $0x280] sm:$0xff]
    %v2165 = vld [vmem:[#allocation12 + $0x288] sm:$0xff]
    %v2166 = vld [vmem:[#allocation12 + $0x290] sm:$0xf]
    %v2167 = vld [vmem:[#allocation12 + $0x294] sm:$0xff]
    %v2168 = vld [vmem:[#allocation12 + $0x29c] sm:$0xff]
    %v2169 = vld [vmem:[#allocation12 + $0x2a4] sm:$0xf]
    %v2170 = vld [vmem:[#allocation12 + $0x2a8] sm:$0xff]
    %v2171 = vld [vmem:[#allocation12 + $0x2b0] sm:$0xff]
    %v2172 = vld [vmem:[#allocation12 + $0x2b8] sm:$0xf]
    %v2173 = vld [vmem:[#allocation12 + $0x2bc] sm:$0xff]
    %v2174 = vld [vmem:[#allocation12 + $0x2c4] sm:$0xff]
    %v2175 = vld [vmem:[#allocation12 + $0x2cc] sm:$0xf]
    %v2176 = vld [vmem:[#allocation12 + $0x2d0] sm:$0xff]
    %v2177 = vld [vmem:[#allocation12 + $0x2d8] sm:$0xff]
    %v2178 = vld [vmem:[#allocation12 + $0x2e0] sm:$0xf]
    %v2179 = vld [vmem:[#allocation12 + $0x2e4] sm:$0xff]
    %v2180 = vld [vmem:[#allocation12 + $0x2ec] sm:$0xff]
    %v2181 = vld [vmem:[#allocation12 + $0x2f4] sm:$0xf]
    %v2182 = vld [vmem:[#allocation12 + $0x2f8] sm:$0xff]
    %v2183 = vld [vmem:[#allocation12 + $0x300] sm:$0xff]
    %v2184 = vld [vmem:[#allocation12 + $0x308] sm:$0xf]
    %v2185 = vld [vmem:[#allocation12 + $0x30c] sm:$0xff]
    %v2186 = vld [vmem:[#allocation12 + $0x314] sm:$0xff]
    %v2187 = vld [vmem:[#allocation12 + $0x31c] sm:$0xf]
    %v2188 = vld [vmem:[#allocation12 + $0x320] sm:$0xff]
    %v2189 = vld [vmem:[#allocation12 + $0x328] sm:$0xff]
    %v2190 = vld [vmem:[#allocation12 + $0x330] sm:$0xf]
    %v2191 = vld [vmem:[#allocation12 + $0x334] sm:$0xff]
    %v2192 = vld [vmem:[#allocation12 + $0x33c] sm:$0xff]
    %v2193 = vld [vmem:[#allocation12 + $0x344] sm:$0xf]
    %v2194 = vld [vmem:[#allocation12 + $0x348] sm:$0xff]
    %v2195 = vld [vmem:[#allocation12 + $0x350] sm:$0xff]
    %v2196 = vld [vmem:[#allocation12 + $0x358] sm:$0xf]
    %v2197 = vld [vmem:[#allocation12 + $0x35c] sm:$0xff]
    %v2198 = vld [vmem:[#allocation12 + $0x364] sm:$0xff]
    %v2199 = vld [vmem:[#allocation12 + $0x36c] sm:$0xf]
    %v2200 = vld [vmem:[#allocation12 + $0x370] sm:$0xff]
    %v2201 = vld [vmem:[#allocation12 + $0x378] sm:$0xff]
    %v2202 = vld [vmem:[#allocation12 + $0x380] sm:$0xf]
    %v2203 = vld [vmem:[#allocation12 + $0x384] sm:$0xff]
    %v2204 = vld [vmem:[#allocation12 + $0x38c] sm:$0xff]
    %v2205 = vld [vmem:[#allocation12 + $0x394] sm:$0xf]
    %v2206 = vld [vmem:[#allocation12 + $0x398] sm:$0xff]
    %v2207 = vld [vmem:[#allocation12 + $0x3a0] sm:$0xff]
    %v2208 = vld [vmem:[#allocation12 + $0x3a8] sm:$0xf]
    %v2209 = vld [vmem:[#allocation12 + $0x3ac] sm:$0xff]
    %v2210 = vld [vmem:[#allocation12 + $0x3b4] sm:$0xff]
    %v2211 = vld [vmem:[#allocation12 + $0x3bc] sm:$0xf]
    %v2212 = vld [vmem:[#allocation12 + $0x3c0] sm:$0xff]
    %v2213 = vld [vmem:[#allocation12 + $0x3c8] sm:$0xff]
    %v2214 = vld [vmem:[#allocation12 + $0x3d0] sm:$0xf]
    %v2215 = vld [vmem:[#allocation12 + $0x3d4] sm:$0xff]
    %v2216 = vld [vmem:[#allocation12 + $0x3dc] sm:$0xff]
    %v2217 = vld [vmem:[#allocation12 + $0x3e4] sm:$0xf]
    %v2218 = vld [vmem:[#allocation12 + $0x3e8] sm:$0xff]
    %v2219 = vld [vmem:[#allocation12 + $0x3f0] sm:$0xff]
    %v2220 = vld [vmem:[#allocation12 + $0x3f8] sm:$0xf]
    %v2221 = vld [vmem:[#allocation12 + $0x3fc] sm:$0xff]
    %v2222 = vld [vmem:[#allocation12 + $0x404] sm:$0xff]
    %v2223 = vld [vmem:[#allocation12 + $0x40c] sm:$0xf]
    %v2224 = vld [vmem:[#allocation12 + $0x410] sm:$0xff]
    %v2225 = vld [vmem:[#allocation12 + $0x418] sm:$0xff]
    %v2226 = vld [vmem:[#allocation12 + $0x420] sm:$0xf]
    %v2227 = vld [vmem:[#allocation12 + $0x424] sm:$0xff]
    %v2228 = vld [vmem:[#allocation12 + $0x42c] sm:$0xff]
    %v2229 = vld [vmem:[#allocation12 + $0x434] sm:$0xf]
    %v2230 = vld [vmem:[#allocation12 + $0x438] sm:$0xff]
    %v2231 = vld [vmem:[#allocation12 + $0x440] sm:$0xff]
    %v2232 = vld [vmem:[#allocation12 + $0x448] sm:$0xf]
    %v2233 = vld [vmem:[#allocation12 + $0x44c] sm:$0xff]
    %v2234 = vld [vmem:[#allocation12 + $0x454] sm:$0xff]
    %v2235 = vld [vmem:[#allocation12 + $0x45c] sm:$0xf]
    %v2236 = vld [vmem:[#allocation12 + $0x460] sm:$0xff]
    %v2237 = vld [vmem:[#allocation12 + $0x468] sm:$0xff]
    %v2238 = vld [vmem:[#allocation12 + $0x470] sm:$0xf]
    %v2239 = vld [vmem:[#allocation12 + $0x474] sm:$0xff]
    %v2240 = vld [vmem:[#allocation12 + $0x47c] sm:$0xff]
    %v2241 = vld [vmem:[#allocation12 + $0x484] sm:$0xf]
    %v2242 = vld [vmem:[#allocation12 + $0x488] sm:$0xff]
    %v2243 = vld [vmem:[#allocation12 + $0x490] sm:$0xff]
    %v2244 = vld [vmem:[#allocation12 + $0x498] sm:$0xf]
    %v2245 = vld [vmem:[#allocation12 + $0x49c] sm:$0xff]
    %v2246 = vld [vmem:[#allocation12 + $0x4a4] sm:$0xff]
    %v2247 = vld [vmem:[#allocation12 + $0x4ac] sm:$0xf]
    %v2248 = vld [vmem:[#allocation12 + $0x4b0] sm:$0xff]
    %v2249 = vld [vmem:[#allocation12 + $0x4b8] sm:$0xff]
    %v2250 = vld [vmem:[#allocation12 + $0x4c0] sm:$0xf]
    %v2251 = vld [vmem:[#allocation12 + $0x4c4] sm:$0xff]
    %v2252 = vld [vmem:[#allocation12 + $0x4cc] sm:$0xff]
    %v2253 = vld [vmem:[#allocation12 + $0x4d4] sm:$0xf]
    %v2254 = vld [vmem:[#allocation12 + $0x4d8] sm:$0xff]
    %v2255 = vld [vmem:[#allocation12 + $0x4e0] sm:$0xff]
    %v2256 = vld [vmem:[#allocation12 + $0x4e8] sm:$0xf]
    %v2257 = vld [vmem:[#allocation12 + $0x4ec] sm:$0xff]
    %v2258 = vld [vmem:[#allocation12 + $0x4f4] sm:$0xff]
    %v2259 = vld [vmem:[#allocation12 + $0x4fc] sm:$0xf]
    %v2260 = vld [vmem:[#allocation20 + $0x8] sm:$0x1f]
    %v2262 = vlaneseq
    %v2263 = vshrl.u32 %v2262, 7
    %v2264 = vsub.s32 0, %v2263
    %v2265 = vrot.slane %v2260, %v2264
    %v2266 = vlaneseq
    %v2267 = vshrl.u32 %v2266, 7
    %v2268 = vsub.s32 1, %v2267
    %v2269 = vrot.slane %v2260, %v2268
    %v2270 = vlaneseq
    %v2271 = vshrl.u32 %v2270, 7
    %v2272 = vsub.s32 2, %v2271
    %v2273 = vrot.slane %v2260, %v2272
    %v2274 = vlaneseq
    %v2275 = vshrl.u32 %v2274, 7
    %v2276 = vsub.s32 3, %v2275
    %v2277 = vrot.slane %v2260, %v2276
    %v2278 = vlaneseq
    %v2279 = vshrl.u32 %v2278, 7
    %v2280 = vsub.s32 4, %v2279
    %v2281 = vrot.slane %v2260, %v2280
    %v2289 = vunpack.c.l.b16 %v2066
    %v2290 = vunpack.c.h.b16 %v2066
    %v2291 = vunpack.c.l.b16 %v2067
    %v2292 = vunpack.c.h.b16 %v2067
    %v2293 = vpack.c.b16 %v2289, %v2289
    %v2294 = vpack.c.b16 %v2290, %v2290
    %v2295 = vpack.c.b16 %v2291, %v2291
    %v2296 = vpack.c.b16 %v2292, %v2292
    %v2493 = vunpack.c.l.b16 %v2068
    %v2494 = vunpack.c.h.b16 %v2068
    %v2495 = vunpack.c.l.b16 %v2069
    %v2496 = vunpack.c.h.b16 %v2069
    %v2497 = vunpack.c.l.b16 %v2070
    %v2498 = vunpack.c.l.b16 %v2071
    %v2499 = vunpack.c.h.b16 %v2071
    %v2500 = vunpack.c.l.b16 %v2072
    %v2501 = vunpack.c.h.b16 %v2072
    %v2502 = vunpack.c.l.b16 %v2073
    %v2503 = vunpack.c.l.b16 %v2074
    %v2504 = vunpack.c.h.b16 %v2074
    %v2505 = vunpack.c.l.b16 %v2075
    %v2506 = vunpack.c.h.b16 %v2075
    %v2507 = vunpack.c.l.b16 %v2076
    %v2508 = vunpack.c.l.b16 %v2077
    %v2509 = vunpack.c.h.b16 %v2077
    %v2510 = vunpack.c.l.b16 %v2078
    %v2511 = vunpack.c.h.b16 %v2078
    %v2512 = vunpack.c.l.b16 %v2079
    %v2513 = vunpack.c.l.b16 %v2080
    %v2514 = vunpack.c.h.b16 %v2080
    %v2515 = vunpack.c.l.b16 %v2081
    %v2516 = vunpack.c.h.b16 %v2081
    %v2517 = vunpack.c.l.b16 %v2082
    %v2518 = vunpack.c.l.b16 %v2083
    %v2519 = vunpack.c.h.b16 %v2083
    %v2520 = vunpack.c.l.b16 %v2084
    %v2521 = vunpack.c.h.b16 %v2084
    %v2522 = vunpack.c.l.b16 %v2085
    %v2523 = vunpack.c.l.b16 %v2086
    %v2524 = vunpack.c.h.b16 %v2086
    %v2525 = vunpack.c.l.b16 %v2087
    %v2526 = vunpack.c.h.b16 %v2087
    %v2527 = vunpack.c.l.b16 %v2088
    %v2528 = vunpack.c.l.b16 %v2089
    %v2529 = vunpack.c.h.b16 %v2089
    %v2530 = vunpack.c.l.b16 %v2090
    %v2531 = vunpack.c.h.b16 %v2090
    %v2532 = vunpack.c.l.b16 %v2091
    %v2533 = vunpack.c.l.b16 %v2092
    %v2534 = vunpack.c.h.b16 %v2092
    %v2535 = vunpack.c.l.b16 %v2093
    %v2536 = vunpack.c.h.b16 %v2093
    %v2537 = vunpack.c.l.b16 %v2094
    %v2538 = vunpack.c.l.b16 %v2095
    %v2539 = vunpack.c.h.b16 %v2095
    %v2540 = vunpack.c.l.b16 %v2096
    %v2541 = vunpack.c.h.b16 %v2096
    %v2542 = vunpack.c.l.b16 %v2097
    %v2543 = vunpack.c.l.b16 %v2098
    %v2544 = vunpack.c.h.b16 %v2098
    %v2545 = vunpack.c.l.b16 %v2099
    %v2546 = vunpack.c.h.b16 %v2099
    %v2547 = vunpack.c.l.b16 %v2100
    %v2548 = vunpack.c.l.b16 %v2101
    %v2549 = vunpack.c.h.b16 %v2101
    %v2550 = vunpack.c.l.b16 %v2102
    %v2551 = vunpack.c.h.b16 %v2102
    %v2552 = vunpack.c.l.b16 %v2103
    %v2553 = vunpack.c.l.b16 %v2104
    %v2554 = vunpack.c.h.b16 %v2104
    %v2555 = vunpack.c.l.b16 %v2105
    %v2556 = vunpack.c.h.b16 %v2105
    %v2557 = vunpack.c.l.b16 %v2106
    %v2558 = vunpack.c.l.b16 %v2107
    %v2559 = vunpack.c.h.b16 %v2107
    %v2560 = vunpack.c.l.b16 %v2108
    %v2561 = vunpack.c.h.b16 %v2108
    %v2562 = vunpack.c.l.b16 %v2109
    %v2563 = vunpack.c.l.b16 %v2110
    %v2564 = vunpack.c.h.b16 %v2110
    %v2565 = vunpack.c.l.b16 %v2111
    %v2566 = vunpack.c.h.b16 %v2111
    %v2567 = vunpack.c.l.b16 %v2112
    %v2568 = vunpack.c.l.b16 %v2113
    %v2569 = vunpack.c.h.b16 %v2113
    %v2570 = vunpack.c.l.b16 %v2114
    %v2571 = vunpack.c.h.b16 %v2114
    %v2572 = vunpack.c.l.b16 %v2115
    %v2573 = vunpack.c.l.b16 %v2116
    %v2574 = vunpack.c.h.b16 %v2116
    %v2575 = vunpack.c.l.b16 %v2117
    %v2576 = vunpack.c.h.b16 %v2117
    %v2577 = vunpack.c.l.b16 %v2118
    %v2578 = vunpack.c.l.b16 %v2119
    %v2579 = vunpack.c.h.b16 %v2119
    %v2580 = vunpack.c.l.b16 %v2120
    %v2581 = vunpack.c.h.b16 %v2120
    %v2582 = vunpack.c.l.b16 %v2121
    %v2583 = vunpack.c.l.b16 %v2122
    %v2584 = vunpack.c.h.b16 %v2122
    %v2585 = vunpack.c.l.b16 %v2123
    %v2586 = vunpack.c.h.b16 %v2123
    %v2587 = vunpack.c.l.b16 %v2124
    %v2588 = vunpack.c.l.b16 %v2125
    %v2589 = vunpack.c.h.b16 %v2125
    %v2590 = vunpack.c.l.b16 %v2126
    %v2591 = vunpack.c.h.b16 %v2126
    %v2592 = vunpack.c.l.b16 %v2127
    %v2593 = vunpack.c.l.b16 %v2128
    %v2594 = vunpack.c.h.b16 %v2128
    %v2595 = vunpack.c.l.b16 %v2129
    %v2596 = vunpack.c.h.b16 %v2129
    %v2597 = vunpack.c.l.b16 %v2130
    %v2598 = vunpack.c.l.b16 %v2131
    %v2599 = vunpack.c.h.b16 %v2131
    %v2600 = vunpack.c.l.b16 %v2132
    %v2601 = vunpack.c.h.b16 %v2132
    %v2602 = vunpack.c.l.b16 %v2133
    %v2603 = vunpack.c.l.b16 %v2134
    %v2604 = vunpack.c.h.b16 %v2134
    %v2605 = vunpack.c.l.b16 %v2135
    %v2606 = vunpack.c.h.b16 %v2135
    %v2607 = vunpack.c.l.b16 %v2136
    %v2608 = vunpack.c.l.b16 %v2137
    %v2609 = vunpack.c.h.b16 %v2137
    %v2610 = vunpack.c.l.b16 %v2138
    %v2611 = vunpack.c.h.b16 %v2138
    %v2612 = vunpack.c.l.b16 %v2139
    %v2613 = vunpack.c.l.b16 %v2140
    %v2614 = vunpack.c.h.b16 %v2140
    %v2615 = vunpack.c.l.b16 %v2141
    %v2616 = vunpack.c.h.b16 %v2141
    %v2617 = vunpack.c.l.b16 %v2142
    %v2618 = vunpack.c.l.b16 %v2143
    %v2619 = vunpack.c.h.b16 %v2143
    %v2620 = vunpack.c.l.b16 %v2144
    %v2621 = vunpack.c.h.b16 %v2144
    %v2622 = vunpack.c.l.b16 %v2145
    %v2623 = vunpack.c.l.b16 %v2146
    %v2624 = vunpack.c.h.b16 %v2146
    %v2625 = vunpack.c.l.b16 %v2147
    %v2626 = vunpack.c.h.b16 %v2147
    %v2627 = vunpack.c.l.b16 %v2148
    %v2628 = vunpack.c.l.b16 %v2149
    %v2629 = vunpack.c.h.b16 %v2149
    %v2630 = vunpack.c.l.b16 %v2150
    %v2631 = vunpack.c.h.b16 %v2150
    %v2632 = vunpack.c.l.b16 %v2151
    %v2633 = vunpack.c.l.b16 %v2152
    %v2634 = vunpack.c.h.b16 %v2152
    %v2635 = vunpack.c.l.b16 %v2153
    %v2636 = vunpack.c.h.b16 %v2153
    %v2637 = vunpack.c.l.b16 %v2154
    %v2638 = vunpack.c.l.b16 %v2155
    %v2639 = vunpack.c.h.b16 %v2155
    %v2640 = vunpack.c.l.b16 %v2156
    %v2641 = vunpack.c.h.b16 %v2156
    %v2642 = vunpack.c.l.b16 %v2157
    %v2643 = vunpack.c.l.b16 %v2158
    %v2644 = vunpack.c.h.b16 %v2158
    %v2645 = vunpack.c.l.b16 %v2159
    %v2646 = vunpack.c.h.b16 %v2159
    %v2647 = vunpack.c.l.b16 %v2160
    %v2648 = vunpack.c.l.b16 %v2161
    %v2649 = vunpack.c.h.b16 %v2161
    %v2650 = vunpack.c.l.b16 %v2162
    %v2651 = vunpack.c.h.b16 %v2162
    %v2652 = vunpack.c.l.b16 %v2163
    %v2653 = vunpack.c.l.b16 %v2164
    %v2654 = vunpack.c.h.b16 %v2164
    %v2655 = vunpack.c.l.b16 %v2165
    %v2656 = vunpack.c.h.b16 %v2165
    %v2657 = vunpack.c.l.b16 %v2166
    %v2658 = vunpack.c.l.b16 %v2167
    %v2659 = vunpack.c.h.b16 %v2167
    %v2660 = vunpack.c.l.b16 %v2168
    %v2661 = vunpack.c.h.b16 %v2168
    %v2662 = vunpack.c.l.b16 %v2169
    %v2663 = vunpack.c.l.b16 %v2170
    %v2664 = vunpack.c.h.b16 %v2170
    %v2665 = vunpack.c.l.b16 %v2171
    %v2666 = vunpack.c.h.b16 %v2171
    %v2667 = vunpack.c.l.b16 %v2172
    %v2668 = vunpack.c.l.b16 %v2173
    %v2669 = vunpack.c.h.b16 %v2173
    %v2670 = vunpack.c.l.b16 %v2174
    %v2671 = vunpack.c.h.b16 %v2174
    %v2672 = vunpack.c.l.b16 %v2175
    %v2673 = vunpack.c.l.b16 %v2176
    %v2674 = vunpack.c.h.b16 %v2176
    %v2675 = vunpack.c.l.b16 %v2177
    %v2676 = vunpack.c.h.b16 %v2177
    %v2677 = vunpack.c.l.b16 %v2178
    %v2678 = vunpack.c.l.b16 %v2179
    %v2679 = vunpack.c.h.b16 %v2179
    %v2680 = vunpack.c.l.b16 %v2180
    %v2681 = vunpack.c.h.b16 %v2180
    %v2682 = vunpack.c.l.b16 %v2181
    %v2683 = vunpack.c.l.b16 %v2182
    %v2684 = vunpack.c.h.b16 %v2182
    %v2685 = vunpack.c.l.b16 %v2183
    %v2686 = vunpack.c.h.b16 %v2183
    %v2687 = vunpack.c.l.b16 %v2184
    %v2688 = vunpack.c.l.b16 %v2185
    %v2689 = vunpack.c.h.b16 %v2185
    %v2690 = vunpack.c.l.b16 %v2186
    %v2691 = vunpack.c.h.b16 %v2186
    %v2692 = vunpack.c.l.b16 %v2187
    %v2693 = vunpack.c.l.b16 %v2188
    %v2694 = vunpack.c.h.b16 %v2188
    %v2695 = vunpack.c.l.b16 %v2189
    %v2696 = vunpack.c.h.b16 %v2189
    %v2697 = vunpack.c.l.b16 %v2190
    %v2698 = vunpack.c.l.b16 %v2191
    %v2699 = vunpack.c.h.b16 %v2191
    %v2700 = vunpack.c.l.b16 %v2192
    %v2701 = vunpack.c.h.b16 %v2192
    %v2702 = vunpack.c.l.b16 %v2193
    %v2703 = vunpack.c.l.b16 %v2194
    %v2704 = vunpack.c.h.b16 %v2194
    %v2705 = vunpack.c.l.b16 %v2195
    %v2706 = vunpack.c.h.b16 %v2195
    %v2707 = vunpack.c.l.b16 %v2196
    %v2708 = vunpack.c.l.b16 %v2197
    %v2709 = vunpack.c.h.b16 %v2197
    %v2710 = vunpack.c.l.b16 %v2198
    %v2711 = vunpack.c.h.b16 %v2198
    %v2712 = vunpack.c.l.b16 %v2199
    %v2713 = vunpack.c.l.b16 %v2200
    %v2714 = vunpack.c.h.b16 %v2200
    %v2715 = vunpack.c.l.b16 %v2201
    %v2716 = vunpack.c.h.b16 %v2201
    %v2717 = vunpack.c.l.b16 %v2202
    %v2718 = vunpack.c.l.b16 %v2203
    %v2719 = vunpack.c.h.b16 %v2203
    %v2720 = vunpack.c.l.b16 %v2204
    %v2721 = vunpack.c.h.b16 %v2204
    %v2722 = vunpack.c.l.b16 %v2205
    %v2723 = vunpack.c.l.b16 %v2206
    %v2724 = vunpack.c.h.b16 %v2206
    %v2725 = vunpack.c.l.b16 %v2207
    %v2726 = vunpack.c.h.b16 %v2207
    %v2727 = vunpack.c.l.b16 %v2208
    %v2728 = vunpack.c.l.b16 %v2209
    %v2729 = vunpack.c.h.b16 %v2209
    %v2730 = vunpack.c.l.b16 %v2210
    %v2731 = vunpack.c.h.b16 %v2210
    %v2732 = vunpack.c.l.b16 %v2211
    %v2733 = vunpack.c.l.b16 %v2212
    %v2734 = vunpack.c.h.b16 %v2212
    %v2735 = vunpack.c.l.b16 %v2213
    %v2736 = vunpack.c.h.b16 %v2213
    %v2737 = vunpack.c.l.b16 %v2214
    %v2738 = vunpack.c.l.b16 %v2215
    %v2739 = vunpack.c.h.b16 %v2215
    %v2740 = vunpack.c.l.b16 %v2216
    %v2741 = vunpack.c.h.b16 %v2216
    %v2742 = vunpack.c.l.b16 %v2217
    %v2743 = vunpack.c.l.b16 %v2218
    %v2744 = vunpack.c.h.b16 %v2218
    %v2745 = vunpack.c.l.b16 %v2219
    %v2746 = vunpack.c.h.b16 %v2219
    %v2747 = vunpack.c.l.b16 %v2220
    %v2748 = vunpack.c.l.b16 %v2221
    %v2749 = vunpack.c.h.b16 %v2221
    %v2750 = vunpack.c.l.b16 %v2222
    %v2751 = vunpack.c.h.b16 %v2222
    %v2752 = vunpack.c.l.b16 %v2223
    %v2753 = vunpack.c.l.b16 %v2224
    %v2754 = vunpack.c.h.b16 %v2224
    %v2755 = vunpack.c.l.b16 %v2225
    %v2756 = vunpack.c.h.b16 %v2225
    %v2757 = vunpack.c.l.b16 %v2226
    %v2758 = vunpack.c.l.b16 %v2227
    %v2759 = vunpack.c.h.b16 %v2227
    %v2760 = vunpack.c.l.b16 %v2228
    %v2761 = vunpack.c.h.b16 %v2228
    %v2762 = vunpack.c.l.b16 %v2229
    %v2763 = vunpack.c.l.b16 %v2230
    %v2764 = vunpack.c.h.b16 %v2230
    %v2765 = vunpack.c.l.b16 %v2231
    %v2766 = vunpack.c.h.b16 %v2231
    %v2767 = vunpack.c.l.b16 %v2232
    %v2768 = vunpack.c.l.b16 %v2233
    %v2769 = vunpack.c.h.b16 %v2233
    %v2770 = vunpack.c.l.b16 %v2234
    %v2771 = vunpack.c.h.b16 %v2234
    %v2772 = vunpack.c.l.b16 %v2235
    %v2773 = vunpack.c.l.b16 %v2236
    %v2774 = vunpack.c.h.b16 %v2236
    %v2775 = vunpack.c.l.b16 %v2237
    %v2776 = vunpack.c.h.b16 %v2237
    %v2777 = vunpack.c.l.b16 %v2238
    %v2778 = vunpack.c.l.b16 %v2239
    %v2779 = vunpack.c.h.b16 %v2239
    %v2780 = vunpack.c.l.b16 %v2240
    %v2781 = vunpack.c.h.b16 %v2240
    %v2782 = vunpack.c.l.b16 %v2241
    %v2783 = vunpack.c.l.b16 %v2242
    %v2784 = vunpack.c.h.b16 %v2242
    %v2785 = vunpack.c.l.b16 %v2243
    %v2786 = vunpack.c.h.b16 %v2243
    %v2787 = vunpack.c.l.b16 %v2244
    %v2788 = vunpack.c.l.b16 %v2245
    %v2789 = vunpack.c.h.b16 %v2245
    %v2790 = vunpack.c.l.b16 %v2246
    %v2791 = vunpack.c.h.b16 %v2246
    %v2792 = vunpack.c.l.b16 %v2247
    %v2793 = vunpack.c.l.b16 %v2248
    %v2794 = vunpack.c.h.b16 %v2248
    %v2795 = vunpack.c.l.b16 %v2249
    %v2796 = vunpack.c.h.b16 %v2249
    %v2797 = vunpack.c.l.b16 %v2250
    %v2798 = vunpack.c.l.b16 %v2251
    %v2799 = vunpack.c.h.b16 %v2251
    %v2800 = vunpack.c.l.b16 %v2252
    %v2801 = vunpack.c.h.b16 %v2252
    %v2802 = vunpack.c.l.b16 %v2253
    %v2803 = vunpack.c.l.b16 %v2254
    %v2804 = vunpack.c.h.b16 %v2254
    %v2805 = vunpack.c.l.b16 %v2255
    %v2806 = vunpack.c.h.b16 %v2255
    %v2807 = vunpack.c.l.b16 %v2256
    %v2808 = vunpack.c.l.b16 %v2257
    %v2809 = vunpack.c.h.b16 %v2257
    %v2810 = vunpack.c.l.b16 %v2258
    %v2811 = vunpack.c.h.b16 %v2258
    %v2812 = vunpack.c.l.b16 %v2259
    %v2813 = vpack.c.b16 %v2498, %v2493
    %v2814 = vpack.c.b16 %v2499, %v2494
    %v2815 = vpack.c.b16 %v2500, %v2495
    %v2816 = vpack.c.b16 %v2501, %v2496
    %v2817 = vpack.c.b16 %v2502, %v2497
    %v2818 = vpack.c.b16 %v2508, %v2503
    %v2819 = vpack.c.b16 %v2509, %v2504
    %v2820 = vpack.c.b16 %v2510, %v2505
    %v2821 = vpack.c.b16 %v2511, %v2506
    %v2822 = vpack.c.b16 %v2512, %v2507
    %v2823 = vpack.c.b16 %v2518, %v2513
    %v2824 = vpack.c.b16 %v2519, %v2514
    %v2825 = vpack.c.b16 %v2520, %v2515
    %v2826 = vpack.c.b16 %v2521, %v2516
    %v2827 = vpack.c.b16 %v2522, %v2517
    %v2828 = vpack.c.b16 %v2528, %v2523
    %v2829 = vpack.c.b16 %v2529, %v2524
    %v2830 = vpack.c.b16 %v2530, %v2525
    %v2831 = vpack.c.b16 %v2531, %v2526
    %v2832 = vpack.c.b16 %v2532, %v2527
    %v2833 = vpack.c.b16 %v2538, %v2533
    %v2834 = vpack.c.b16 %v2539, %v2534
    %v2835 = vpack.c.b16 %v2540, %v2535
    %v2836 = vpack.c.b16 %v2541, %v2536
    %v2837 = vpack.c.b16 %v2542, %v2537
    %v2838 = vpack.c.b16 %v2548, %v2543
    %v2839 = vpack.c.b16 %v2549, %v2544
    %v2840 = vpack.c.b16 %v2550, %v2545
    %v2841 = vpack.c.b16 %v2551, %v2546
    %v2842 = vpack.c.b16 %v2552, %v2547
    %v2843 = vpack.c.b16 %v2558, %v2553
    %v2844 = vpack.c.b16 %v2559, %v2554
    %v2845 = vpack.c.b16 %v2560, %v2555
    %v2846 = vpack.c.b16 %v2561, %v2556
    %v2847 = vpack.c.b16 %v2562, %v2557
    %v2848 = vpack.c.b16 %v2568, %v2563
    %v2849 = vpack.c.b16 %v2569, %v2564
    %v2850 = vpack.c.b16 %v2570, %v2565
    %v2851 = vpack.c.b16 %v2571, %v2566
    %v2852 = vpack.c.b16 %v2572, %v2567
    %v2853 = vpack.c.b16 %v2578, %v2573
    %v2854 = vpack.c.b16 %v2579, %v2574
    %v2855 = vpack.c.b16 %v2580, %v2575
    %v2856 = vpack.c.b16 %v2581, %v2576
    %v2857 = vpack.c.b16 %v2582, %v2577
    %v2858 = vpack.c.b16 %v2588, %v2583
    %v2859 = vpack.c.b16 %v2589, %v2584
    %v2860 = vpack.c.b16 %v2590, %v2585
    %v2861 = vpack.c.b16 %v2591, %v2586
    %v2862 = vpack.c.b16 %v2592, %v2587
    %v2863 = vpack.c.b16 %v2598, %v2593
    %v2864 = vpack.c.b16 %v2599, %v2594
    %v2865 = vpack.c.b16 %v2600, %v2595
    %v2866 = vpack.c.b16 %v2601, %v2596
    %v2867 = vpack.c.b16 %v2602, %v2597
    %v2868 = vpack.c.b16 %v2608, %v2603
    %v2869 = vpack.c.b16 %v2609, %v2604
    %v2870 = vpack.c.b16 %v2610, %v2605
    %v2871 = vpack.c.b16 %v2611, %v2606
    %v2872 = vpack.c.b16 %v2612, %v2607
    %v2873 = vpack.c.b16 %v2618, %v2613
    %v2874 = vpack.c.b16 %v2619, %v2614
    %v2875 = vpack.c.b16 %v2620, %v2615
    %v2876 = vpack.c.b16 %v2621, %v2616
    %v2877 = vpack.c.b16 %v2622, %v2617
    %v2878 = vpack.c.b16 %v2628, %v2623
    %v2879 = vpack.c.b16 %v2629, %v2624
    %v2880 = vpack.c.b16 %v2630, %v2625
    %v2881 = vpack.c.b16 %v2631, %v2626
    %v2882 = vpack.c.b16 %v2632, %v2627
    %v2883 = vpack.c.b16 %v2638, %v2633
    %v2884 = vpack.c.b16 %v2639, %v2634
    %v2885 = vpack.c.b16 %v2640, %v2635
    %v2886 = vpack.c.b16 %v2641, %v2636
    %v2887 = vpack.c.b16 %v2642, %v2637
    %v2888 = vpack.c.b16 %v2648, %v2643
    %v2889 = vpack.c.b16 %v2649, %v2644
    %v2890 = vpack.c.b16 %v2650, %v2645
    %v2891 = vpack.c.b16 %v2651, %v2646
    %v2892 = vpack.c.b16 %v2652, %v2647
    %v2893 = vpack.c.b16 %v2658, %v2653
    %v2894 = vpack.c.b16 %v2659, %v2654
    %v2895 = vpack.c.b16 %v2660, %v2655
    %v2896 = vpack.c.b16 %v2661, %v2656
    %v2897 = vpack.c.b16 %v2662, %v2657
    %v2898 = vpack.c.b16 %v2668, %v2663
    %v2899 = vpack.c.b16 %v2669, %v2664
    %v2900 = vpack.c.b16 %v2670, %v2665
    %v2901 = vpack.c.b16 %v2671, %v2666
    %v2902 = vpack.c.b16 %v2672, %v2667
    %v2903 = vpack.c.b16 %v2678, %v2673
    %v2904 = vpack.c.b16 %v2679, %v2674
    %v2905 = vpack.c.b16 %v2680, %v2675
    %v2906 = vpack.c.b16 %v2681, %v2676
    %v2907 = vpack.c.b16 %v2682, %v2677
    %v2908 = vpack.c.b16 %v2688, %v2683
    %v2909 = vpack.c.b16 %v2689, %v2684
    %v2910 = vpack.c.b16 %v2690, %v2685
    %v2911 = vpack.c.b16 %v2691, %v2686
    %v2912 = vpack.c.b16 %v2692, %v2687
    %v2913 = vpack.c.b16 %v2698, %v2693
    %v2914 = vpack.c.b16 %v2699, %v2694
    %v2915 = vpack.c.b16 %v2700, %v2695
    %v2916 = vpack.c.b16 %v2701, %v2696
    %v2917 = vpack.c.b16 %v2702, %v2697
    %v2918 = vpack.c.b16 %v2708, %v2703
    %v2919 = vpack.c.b16 %v2709, %v2704
    %v2920 = vpack.c.b16 %v2710, %v2705
    %v2921 = vpack.c.b16 %v2711, %v2706
    %v2922 = vpack.c.b16 %v2712, %v2707
    %v2923 = vpack.c.b16 %v2718, %v2713
    %v2924 = vpack.c.b16 %v2719, %v2714
    %v2925 = vpack.c.b16 %v2720, %v2715
    %v2926 = vpack.c.b16 %v2721, %v2716
    %v2927 = vpack.c.b16 %v2722, %v2717
    %v2928 = vpack.c.b16 %v2728, %v2723
    %v2929 = vpack.c.b16 %v2729, %v2724
    %v2930 = vpack.c.b16 %v2730, %v2725
    %v2931 = vpack.c.b16 %v2731, %v2726
    %v2932 = vpack.c.b16 %v2732, %v2727
    %v2933 = vpack.c.b16 %v2738, %v2733
    %v2934 = vpack.c.b16 %v2739, %v2734
    %v2935 = vpack.c.b16 %v2740, %v2735
    %v2936 = vpack.c.b16 %v2741, %v2736
    %v2937 = vpack.c.b16 %v2742, %v2737
    %v2938 = vpack.c.b16 %v2748, %v2743
    %v2939 = vpack.c.b16 %v2749, %v2744
    %v2940 = vpack.c.b16 %v2750, %v2745
    %v2941 = vpack.c.b16 %v2751, %v2746
    %v2942 = vpack.c.b16 %v2752, %v2747
    %v2943 = vpack.c.b16 %v2758, %v2753
    %v2944 = vpack.c.b16 %v2759, %v2754
    %v2945 = vpack.c.b16 %v2760, %v2755
    %v2946 = vpack.c.b16 %v2761, %v2756
    %v2947 = vpack.c.b16 %v2762, %v2757
    %v2948 = vpack.c.b16 %v2768, %v2763
    %v2949 = vpack.c.b16 %v2769, %v2764
    %v2950 = vpack.c.b16 %v2770, %v2765
    %v2951 = vpack.c.b16 %v2771, %v2766
    %v2952 = vpack.c.b16 %v2772, %v2767
    %v2953 = vpack.c.b16 %v2778, %v2773
    %v2954 = vpack.c.b16 %v2779, %v2774
    %v2955 = vpack.c.b16 %v2780, %v2775
    %v2956 = vpack.c.b16 %v2781, %v2776
    %v2957 = vpack.c.b16 %v2782, %v2777
    %v2958 = vpack.c.b16 %v2788, %v2783
    %v2959 = vpack.c.b16 %v2789, %v2784
    %v2960 = vpack.c.b16 %v2790, %v2785
    %v2961 = vpack.c.b16 %v2791, %v2786
    %v2962 = vpack.c.b16 %v2792, %v2787
    %v2963 = vpack.c.b16 %v2798, %v2793
    %v2964 = vpack.c.b16 %v2799, %v2794
    %v2965 = vpack.c.b16 %v2800, %v2795
    %v2966 = vpack.c.b16 %v2801, %v2796
    %v2967 = vpack.c.b16 %v2802, %v2797
    %v2968 = vpack.c.b16 %v2808, %v2803
    %v2969 = vpack.c.b16 %v2809, %v2804
    %v2970 = vpack.c.b16 %v2810, %v2805
    %v2971 = vpack.c.b16 %v2811, %v2806
    %v2972 = vpack.c.b16 %v2812, %v2807
    %3133 = vmatprep.subr.bf16.mxu0 %v2814
    %3134 = vmatpush1.bf16.msra.mxu0 %v2813
    %3135 = vmatprep.subr.bf16.mxu0 %v2819
    %3136 = vmatpush1.bf16.msra.mxu0 %v2818
    %3137 = vmatprep.subr.bf16.mxu0 %v2824
    %3138 = vmatpush1.bf16.msra.mxu0 %v2823
    %3139 = vmatprep.subr.bf16.mxu0 %v2829
    %3140 = vmatpush1.bf16.msra.mxu0 %v2828
    %3141 = vmatprep.subr.bf16.mxu0 %v2834
    %3142 = vmatpush1.bf16.msra.mxu0 %v2833
    %3143 = vmatprep.subr.bf16.mxu0 %v2839
    %3144 = vmatpush1.bf16.msra.mxu0 %v2838
    %3145 = vmatprep.subr.bf16.mxu0 %v2844
    %3146 = vmatpush1.bf16.msra.mxu0 %v2843
    %3147 = vmatprep.subr.bf16.mxu0 %v2849
    %3148 = vmatpush1.bf16.msra.mxu0 %v2848
    %3149 = vmatprep.subr.bf16.mxu0 %v2854
    %3150 = vmatpush1.bf16.msra.mxu0 %v2853
    %3151 = vmatprep.subr.bf16.mxu0 %v2859
    %3152 = vmatpush1.bf16.msra.mxu0 %v2858
    %3153 = vmatprep.subr.bf16.mxu0 %v2864
    %3154 = vmatpush1.bf16.msra.mxu0 %v2863
    %3155 = vmatprep.subr.bf16.mxu0 %v2869
    %3156 = vmatpush1.bf16.msra.mxu0 %v2868
    %3157 = vmatprep.subr.bf16.mxu0 %v2874
    %3158 = vmatpush1.bf16.msra.mxu0 %v2873
    %3159 = vmatprep.subr.bf16.mxu0 %v2879
    %3160 = vmatpush1.bf16.msra.mxu0 %v2878
    %3161 = vmatprep.subr.bf16.mxu0 %v2884
    %3162 = vmatpush1.bf16.msra.mxu0 %v2883
    %3163 = vmatprep.subr.bf16.mxu0 %v2889
    %3164 = vmatpush1.bf16.msra.mxu0 %v2888
    %3165 = vmatprep.mubr.bf16.mxu0 %v2294
    %3166 = vmatmul.mubr.bf16.gmra.mrb[0].mxu0 %v2293
    %v3167 = vpop.f32.mrb[0].mxu0
    %v3168 = vadd.f32 %v2265, %v3167
    %v3169 = vpop.f32.mrb[0].mxu0
    %v3170 = vadd.f32 %v2269, %v3169
    %v3171 = vpop.f32.mrb[0].mxu0
    %v3172 = vpop.f32.mrb[0].mxu0
    %3173 = vdwg.mxu0
    %3174 = vmatprep.subr.bf16.mxu0 %v2894
    %3175 = vmatpush1.bf16.msra.mxu0 %v2893
    %3176 = vmatprep.subr.bf16.mxu0 %v2899
    %3177 = vmatpush1.bf16.msra.mxu0 %v2898
    %3178 = vmatprep.subr.bf16.mxu0 %v2904
    %3179 = vmatpush1.bf16.msra.mxu0 %v2903
    %3180 = vmatprep.subr.bf16.mxu0 %v2909
    %3181 = vmatpush1.bf16.msra.mxu0 %v2908
    %3182 = vmatprep.subr.bf16.mxu0 %v2914
    %3183 = vmatpush1.bf16.msra.mxu0 %v2913
    %3184 = vmatprep.subr.bf16.mxu0 %v2919
    %3185 = vmatpush1.bf16.msra.mxu0 %v2918
    %3186 = vmatprep.subr.bf16.mxu0 %v2924
    %3187 = vmatpush1.bf16.msra.mxu0 %v2923
    %3188 = vmatprep.subr.bf16.mxu0 %v2929
    %3189 = vmatpush1.bf16.msra.mxu0 %v2928
    %3190 = vmatprep.subr.bf16.mxu0 %v2934
    %3191 = vmatpush1.bf16.msra.mxu0 %v2933
    %3192 = vmatprep.subr.bf16.mxu0 %v2939
    %3193 = vmatpush1.bf16.msra.mxu0 %v2938
    %3194 = vmatprep.subr.bf16.mxu0 %v2944
    %3195 = vmatpush1.bf16.msra.mxu0 %v2943
    %3196 = vmatprep.subr.bf16.mxu0 %v2949
    %3197 = vmatpush1.bf16.msra.mxu0 %v2948
    %3198 = vmatprep.subr.bf16.mxu0 %v2954
    %3199 = vmatpush1.bf16.msra.mxu0 %v2953
    %3200 = vmatprep.subr.bf16.mxu0 %v2959
    %3201 = vmatpush1.bf16.msra.mxu0 %v2958
    %3202 = vmatprep.subr.bf16.mxu0 %v2964
    %3203 = vmatpush1.bf16.msra.mxu0 %v2963
    %3204 = vmatprep.subr.bf16.mxu0 %v2969
    %3205 = vmatpush1.bf16.msra.mxu0 %v2968
    %3206 = vmatprep.mubr.bf16.mxu0 %v2296
    %3207 = vmatmul.mubr.bf16.gmra.mrb[0].mxu0 %v2295
    %v3208 = vpop.f32.mrb[0].mxu0
    %v3209 = vadd.f32 %v3168, %v3208
    %v3210 = vpop.f32.mrb[0].mxu0
    %v3211 = vadd.f32 %v3170, %v3210
    %v3212 = vpop.f32.mrb[0].mxu0
    %v3213 = vpop.f32.mrb[0].mxu0
    %3214 = vdwg.mxu0
    %3215 = vmatprep.subr.bf16.mxu0 %v2816
    %3216 = vmatpush1.bf16.msra.mxu0 %v2815
    %3217 = vmatprep.subr.bf16.mxu0 %v2821
    %3218 = vmatpush1.bf16.msra.mxu0 %v2820
    %3219 = vmatprep.subr.bf16.mxu0 %v2826
    %3220 = vmatpush1.bf16.msra.mxu0 %v2825
    %3221 = vmatprep.subr.bf16.mxu0 %v2831
    %3222 = vmatpush1.bf16.msra.mxu0 %v2830
    %3223 = vmatprep.subr.bf16.mxu0 %v2836
    %3224 = vmatpush1.bf16.msra.mxu0 %v2835
    %3225 = vmatprep.subr.bf16.mxu0 %v2841
    %3226 = vmatpush1.bf16.msra.mxu0 %v2840
    %3227 = vmatprep.subr.bf16.mxu0 %v2846
    %3228 = vmatpush1.bf16.msra.mxu0 %v2845
    %3229 = vmatprep.subr.bf16.mxu0 %v2851
    %3230 = vmatpush1.bf16.msra.mxu0 %v2850
    %3231 = vmatprep.subr.bf16.mxu0 %v2856
    %3232 = vmatpush1.bf16.msra.mxu0 %v2855
    %3233 = vmatprep.subr.bf16.mxu0 %v2861
    %3234 = vmatpush1.bf16.msra.mxu0 %v2860
    %3235 = vmatprep.subr.bf16.mxu0 %v2866
    %3236 = vmatpush1.bf16.msra.mxu0 %v2865
    %3237 = vmatprep.subr.bf16.mxu0 %v2871
    %3238 = vmatpush1.bf16.msra.mxu0 %v2870
    %3239 = vmatprep.subr.bf16.mxu0 %v2876
    %3240 = vmatpush1.bf16.msra.mxu0 %v2875
    %3241 = vmatprep.subr.bf16.mxu0 %v2881
    %3242 = vmatpush1.bf16.msra.mxu0 %v2880
    %3243 = vmatprep.subr.bf16.mxu0 %v2886
    %3244 = vmatpush1.bf16.msra.mxu0 %v2885
    %3245 = vmatprep.subr.bf16.mxu0 %v2891
    %3246 = vmatpush1.bf16.msra.mxu0 %v2890
    %3247 = vmatprep.mubr.bf16.mxu0 %v2294
    %3248 = vmatmul.mubr.bf16.gmra.mrb[0].mxu0 %v2293
    %v3249 = vpop.f32.mrb[0].mxu0
    %v3250 = vadd.f32 %v2273, %v3249
    %v3251 = vpop.f32.mrb[0].mxu0
    %v3252 = vadd.f32 %v2277, %v3251
    %v3253 = vpop.f32.mrb[0].mxu0
    %v3254 = vpop.f32.mrb[0].mxu0
    %3255 = vdwg.mxu0
    %3256 = vmatprep.subr.bf16.mxu0 %v2896
    %3257 = vmatpush1.bf16.msra.mxu0 %v2895
    %3258 = vmatprep.subr.bf16.mxu0 %v2901
    %3259 = vmatpush1.bf16.msra.mxu0 %v2900
    %3260 = vmatprep.subr.bf16.mxu0 %v2906
    %3261 = vmatpush1.bf16.msra.mxu0 %v2905
    %3262 = vmatprep.subr.bf16.mxu0 %v2911
    %3263 = vmatpush1.bf16.msra.mxu0 %v2910
    %3264 = vmatprep.subr.bf16.mxu0 %v2916
    %3265 = vmatpush1.bf16.msra.mxu0 %v2915
    %3266 = vmatprep.subr.bf16.mxu0 %v2921
    %3267 = vmatpush1.bf16.msra.mxu0 %v2920
    %3268 = vmatprep.subr.bf16.mxu0 %v2926
    %3269 = vmatpush1.bf16.msra.mxu0 %v2925
    %3270 = vmatprep.subr.bf16.mxu0 %v2931
    %3271 = vmatpush1.bf16.msra.mxu0 %v2930
    %3272 = vmatprep.subr.bf16.mxu0 %v2936
    %3273 = vmatpush1.bf16.msra.mxu0 %v2935
    %3274 = vmatprep.subr.bf16.mxu0 %v2941
    %3275 = vmatpush1.bf16.msra.mxu0 %v2940
    %3276 = vmatprep.subr.bf16.mxu0 %v2946
    %3277 = vmatpush1.bf16.msra.mxu0 %v2945
    %3278 = vmatprep.subr.bf16.mxu0 %v2951
    %3279 = vmatpush1.bf16.msra.mxu0 %v2950
    %3280 = vmatprep.subr.bf16.mxu0 %v2956
    %3281 = vmatpush1.bf16.msra.mxu0 %v2955
    %3282 = vmatprep.subr.bf16.mxu0 %v2961
    %3283 = vmatpush1.bf16.msra.mxu0 %v2960
    %3284 = vmatprep.subr.bf16.mxu0 %v2966
    %3285 = vmatpush1.bf16.msra.mxu0 %v2965
    %3286 = vmatprep.subr.bf16.mxu0 %v2971
    %3287 = vmatpush1.bf16.msra.mxu0 %v2970
    %3288 = vmatprep.mubr.bf16.mxu0 %v2296
    %3289 = vmatmul.mubr.bf16.gmra.mrb[0].mxu0 %v2295
    %v3290 = vpop.f32.mrb[0].mxu0
    %v3291 = vadd.f32 %v3250, %v3290
    %v3292 = vpop.f32.mrb[0].mxu0
    %v3293 = vadd.f32 %v3252, %v3292
    %v3294 = vpop.f32.mrb[0].mxu0
    %v3295 = vpop.f32.mrb[0].mxu0
    %3296 = vdwg.mxu0
    %3297 = vmatprep.subr.bf16.mxu0 0
    %3298 = vmatpush1.bf16.msra.mxu0 %v2817
    %3299 = vmatprep.subr.bf16.mxu0 0
    %3300 = vmatpush1.bf16.msra.mxu0 %v2822
    %3301 = vmatprep.subr.bf16.mxu0 0
    %3302 = vmatpush1.bf16.msra.mxu0 %v2827
    %3303 = vmatprep.subr.bf16.mxu0 0
    %3304 = vmatpush1.bf16.msra.mxu0 %v2832
    %3305 = vmatprep.subr.bf16.mxu0 0
    %3306 = vmatpush1.bf16.msra.mxu0 %v2837
    %3307 = vmatprep.subr.bf16.mxu0 0
    %3308 = vmatpush1.bf16.msra.mxu0 %v2842
    %3309 = vmatprep.subr.bf16.mxu0 0
    %3310 = vmatpush1.bf16.msra.mxu0 %v2847
    %3311 = vmatprep.subr.bf16.mxu0 0
    %3312 = vmatpush1.bf16.msra.mxu0 %v2852
    %3313 = vmatprep.subr.bf16.mxu0 0
    %3314 = vmatpush1.bf16.msra.mxu0 %v2857
    %3315 = vmatprep.subr.bf16.mxu0 0
    %3316 = vmatpush1.bf16.msra.mxu0 %v2862
    %3317 = vmatprep.subr.bf16.mxu0 0
    %3318 = vmatpush1.bf16.msra.mxu0 %v2867
    %3319 = vmatprep.subr.bf16.mxu0 0
    %3320 = vmatpush1.bf16.msra.mxu0 %v2872
    %3321 = vmatprep.subr.bf16.mxu0 0
    %3322 = vmatpush1.bf16.msra.mxu0 %v2877
    %3323 = vmatprep.subr.bf16.mxu0 0
    %3324 = vmatpush1.bf16.msra.mxu0 %v2882
    %3325 = vmatprep.subr.bf16.mxu0 0
    %3326 = vmatpush1.bf16.msra.mxu0 %v2887
    %3327 = vmatprep.subr.bf16.mxu0 0
    %3328 = vmatpush1.bf16.msra.mxu0 %v2892
    %3329 = vmatprep.mubr.bf16.mxu0 %v2294
    %3330 = vmatmul.mubr.bf16.gmra.mrb[0].mxu0 %v2293
    %v3331 = vpop.f32.mrb[0].mxu0
    %v3332 = vadd.f32 %v2281, %v3331
    %v3333 = vpop.f32.mrb[0].mxu0
    %v3334 = vpop.f32.mrb[0].mxu0
    %v3335 = vpop.f32.mrb[0].mxu0
    %3336 = vdwg.mxu0
    %3337 = vmatprep.subr.bf16.mxu0 0
    %3338 = vmatpush1.bf16.msra.mxu0 %v2897
    %3339 = vmatprep.subr.bf16.mxu0 0
    %3340 = vmatpush1.bf16.msra.mxu0 %v2902
    %3341 = vmatprep.subr.bf16.mxu0 0
    %3342 = vmatpush1.bf16.msra.mxu0 %v2907
    %3343 = vmatprep.subr.bf16.mxu0 0
    %3344 = vmatpush1.bf16.msra.mxu0 %v2912
    %3345 = vmatprep.subr.bf16.mxu0 0
    %3346 = vmatpush1.bf16.msra.mxu0 %v2917
    %3347 = vmatprep.subr.bf16.mxu0 0
    %3348 = vmatpush1.bf16.msra.mxu0 %v2922
    %3349 = vmatprep.subr.bf16.mxu0 0
    %3350 = vmatpush1.bf16.msra.mxu0 %v2927
    %3351 = vmatprep.subr.bf16.mxu0 0
    %3352 = vmatpush1.bf16.msra.mxu0 %v2932
    %3353 = vmatprep.subr.bf16.mxu0 0
    %3354 = vmatpush1.bf16.msra.mxu0 %v2937
    %3355 = vmatprep.subr.bf16.mxu0 0
    %3356 = vmatpush1.bf16.msra.mxu0 %v2942
    %3357 = vmatprep.subr.bf16.mxu0 0
    %3358 = vmatpush1.bf16.msra.mxu0 %v2947
    %3359 = vmatprep.subr.bf16.mxu0 0
    %3360 = vmatpush1.bf16.msra.mxu0 %v2952
    %3361 = vmatprep.subr.bf16.mxu0 0
    %3362 = vmatpush1.bf16.msra.mxu0 %v2957
    %3363 = vmatprep.subr.bf16.mxu0 0
    %3364 = vmatpush1.bf16.msra.mxu0 %v2962
    %3365 = vmatprep.subr.bf16.mxu0 0
    %3366 = vmatpush1.bf16.msra.mxu0 %v2967
    %3367 = vmatprep.subr.bf16.mxu0 0
    %3368 = vmatpush1.bf16.msra.mxu0 %v2972
    %3369 = vmatprep.mubr.bf16.mxu0 %v2296
    %3370 = vmatmul.mubr.bf16.gmra.mrb[0].mxu0 %v2295
    %v3371 = vpop.f32.mrb[0].mxu0
    %v3372 = vadd.f32 %v3332, %v3371
    %v3373 = vpop.f32.mrb[0].mxu0
    %v3374 = vpop.f32.mrb[0].mxu0
    %v3375 = vpop.f32.mrb[0].mxu0
    %3376 = vdwg.mxu0
    %v3377 = vpack.c.bf16 %v3209, %v3209
    %v3378 = vpack.c.bf16 %v3211, %v3211
    %v3379 = vpack.c.bf16 %v3291, %v3291
    %v3380 = vpack.c.bf16 %v3293, %v3293
    %v3381 = vpack.c.bf16 %v3372, %v3372
    %3382 = vmatprep.subr.bf16.mxu0 %v3380
    %3383 = vmatpush1.bf16.xpose.msra.mxu0 %v3379
    %3384 = vmatprep.subr.bf16.mxu0 0
    %3385 = vmatpush1.bf16.xpose.msra.mxu0 0
    %3386 = vmatprep.subr.bf16.mxu0 0
    %3387 = vmatpush1.bf16.xpose.msra.mxu0 0
    %3388 = vmatprep.subr.bf16.mxu0 0
    %3389 = vmatpush1.bf16.xpose.msra.mxu0 0
    %3390 = vmatprep.subr.bf16.mxu0 0
    %3391 = vmatpush1.bf16.xpose.msra.mxu0 0
    %3392 = vmatprep.subr.bf16.mxu0 0
    %3393 = vmatpush1.bf16.xpose.msra.mxu0 0
    %3394 = vmatprep.subr.bf16.mxu0 0
    %3395 = vmatpush1.bf16.xpose.msra.mxu0 0
    %3396 = vmatprep.subr.bf16.mxu0 0
    %3397 = vmatpush1.bf16.xpose.msra.mxu0 0
    %3398 = vmatprep.subr.bf16.mxu0 0
    %3399 = vmatpush1.bf16.xpose.msra.mxu0 0
    %3400 = vmatprep.subr.bf16.mxu0 0
    %3401 = vmatpush1.bf16.xpose.msra.mxu0 0
    %3402 = vmatprep.subr.bf16.mxu0 0
    %3403 = vmatpush1.bf16.xpose.msra.mxu0 0
    %3404 = vmatprep.subr.bf16.mxu0 0
    %3405 = vmatpush1.bf16.xpose.msra.mxu0 0
    %3406 = vmatprep.subr.bf16.mxu0 0
    %3407 = vmatpush1.bf16.xpose.msra.mxu0 0
    %3408 = vmatprep.subr.bf16.mxu0 0
    %3409 = vmatpush1.bf16.xpose.msra.mxu0 0
    %3410 = vmatprep.subr.bf16.mxu0 0
    %3411 = vmatpush1.bf16.xpose.msra.mxu0 0
    %3412 = vmatprep.subr.bf16.mxu0 0
    %3413 = vmatpush1.bf16.xpose.msra.mxu0 0
    %3414 = vmatprep.mubr.bf16.mxu0 %v3378
    %3415 = vmatmul.mubr.bf16.gmra.mrb[0].mxu0 %v3377
    %v3416 = vpop.f32.mrb[0].mxu0
    %v3417 = vadd.f32 0.0, %v3416
    %v3418 = vpop.f32.mrb[0].mxu0
    %v3419 = vpop.f32.mrb[0].mxu0
    %v3420 = vpop.f32.mrb[0].mxu0
    %3421 = vdwg.mxu0
    %v3422 = vsel %vm189, -1e+30, %v3417
    %v3423 = vsel %vm397, %v3422, -inf
    %3424 = vmax.xlane.f32.xlu0 %v3423
    %v3425 = vpop.xlane.xlu0 %3424
    %v3426 = vsub.f32 %v3422, %v3425
    %v3427 = vmul.f32 %v3426, 1.442695
    %v3428 = vpow.pop %v3427
    %v3429 = vsel %vm397, %v3428, 0.0
    %3430 = vadd.xlane.f32.xlu0 %v3429
    %v3431 = vpop.xlane.xlu0 %3430
    %v3432 = vrcp.pop %v3431
    %v3433 = vmul.f32 %v3428, %v3432
    %v3434 = vpack.c.bf16 %v3433, %v3433
    %v3436 = vsel %vm397, %v3434, 0
    %v3439 = vsel %vm413, %v3381, 0
    %3441 = vmatprep.subr.bf16.mxu0 0
    %3442 = vmatpush1.bf16.msra.mxu0 %v3439
    %3443 = vmatprep.subr.bf16.mxu0 0
    %3444 = vmatpush1.bf16.msra.mxu0 0
    %3445 = vmatprep.subr.bf16.mxu0 0
    %3446 = vmatpush1.bf16.msra.mxu0 0
    %3447 = vmatprep.subr.bf16.mxu0 0
    %3448 = vmatpush1.bf16.msra.mxu0 0
    %3449 = vmatprep.subr.bf16.mxu0 0
    %3450 = vmatpush1.bf16.msra.mxu0 0
    %3451 = vmatprep.subr.bf16.mxu0 0
    %3452 = vmatpush1.bf16.msra.mxu0 0
    %3453 = vmatprep.subr.bf16.mxu0 0
    %3454 = vmatpush1.bf16.msra.mxu0 0
    %3455 = vmatprep.subr.bf16.mxu0 0
    %3456 = vmatpush1.bf16.msra.mxu0 0
    %3457 = vmatprep.subr.bf16.mxu0 0
    %3458 = vmatpush1.bf16.msra.mxu0 0
    %3459 = vmatprep.subr.bf16.mxu0 0
    %3460 = vmatpush1.bf16.msra.mxu0 0
    %3461 = vmatprep.subr.bf16.mxu0 0
    %3462 = vmatpush1.bf16.msra.mxu0 0
    %3463 = vmatprep.subr.bf16.mxu0 0
    %3464 = vmatpush1.bf16.msra.mxu0 0
    %3465 = vmatprep.subr.bf16.mxu0 0
    %3466 = vmatpush1.bf16.msra.mxu0 0
    %3467 = vmatprep.subr.bf16.mxu0 0
    %3468 = vmatpush1.bf16.msra.mxu0 0
    %3469 = vmatprep.subr.bf16.mxu0 0
    %3470 = vmatpush1.bf16.msra.mxu0 0
    %3471 = vmatprep.subr.bf16.mxu0 0
    %3472 = vmatpush1.bf16.msra.mxu0 0
    %3473 = vmatprep.mubr.bf16.mxu0 0
    %3474 = vmatmul.mubr.bf16.gmra.mrb[0].mxu0 %v3436
    %v3475 = vpop.f32.mrb[0].mxu0
    %v3476 = vadd.f32 0.0, %v3475
    %v3477 = vpop.f32.mrb[0].mxu0
    %v3478 = vpop.f32.mrb[0].mxu0
    %v3479 = vpop.f32.mrb[0].mxu0
    %3480 = vdwg.mxu0
    %3481 = vst [vmem:[#allocation21 + $0x20] sm:$0xff] %v3476
    %v3482 = vpack.c.bf16 %v3476, %v3476
    %3483 = vst [vmem:[#allocation2 + $0x10] sm:$0xf] %v3482
    %v3484 = vld [vmem:[#allocation2] sm:$0xff]
    %v3485 = vld [vmem:[#allocation2 + $0x8] sm:$0xff]
    %v3486 = vld [vmem:[#allocation2 + $0x10] sm:$0xf]
    %v3487 = vld [vmem:[#allocation14] sm:$0xff]
    %v3488 = vld [vmem:[#allocation14 + $0x8] sm:$0xff]
    %v3489 = vld [vmem:[#allocation14 + $0x10] sm:$0xff]
    %v3490 = vld [vmem:[#allocation14 + $0x18] sm:$0xff]
    %v3491 = vld [vmem:[#allocation14 + $0x20] sm:$0xff]
    %v3492 = vld [vmem:[#allocation14 + $0x28] sm:$0xff]
    %v3493 = vld [vmem:[#allocation14 + $0x30] sm:$0xff]
    %v3494 = vld [vmem:[#allocation14 + $0x38] sm:$0xff]
    %v3495 = vld [vmem:[#allocation14 + $0x40] sm:$0xff]
    %v3496 = vld [vmem:[#allocation14 + $0x48] sm:$0xff]
    %v3497 = vld [vmem:[#allocation14 + $0x50] sm:$0xff]
    %v3498 = vld [vmem:[#allocation14 + $0x58] sm:$0xff]
    %v3499 = vld [vmem:[#allocation14 + $0x60] sm:$0xff]
    %v3500 = vld [vmem:[#allocation14 + $0x68] sm:$0xff]
    %v3501 = vld [vmem:[#allocation14 + $0x70] sm:$0xff]
    %v3502 = vld [vmem:[#allocation14 + $0x78] sm:$0xff]
    %v3503 = vld [vmem:[#allocation14 + $0x80] sm:$0xff]
    %v3504 = vld [vmem:[#allocation14 + $0x88] sm:$0xff]
    %v3505 = vld [vmem:[#allocation14 + $0x90] sm:$0xff]
    %v3506 = vld [vmem:[#allocation14 + $0x98] sm:$0xff]
    %v3507 = vld [vmem:[#allocation14 + $0xa0] sm:$0xff]
    %v3508 = vld [vmem:[#allocation14 + $0xa8] sm:$0xff]
    %v3509 = vld [vmem:[#allocation14 + $0xb0] sm:$0xff]
    %v3510 = vld [vmem:[#allocation14 + $0xb8] sm:$0xff]
    %v3511 = vld [vmem:[#allocation14 + $0xc0] sm:$0xff]
    %v3512 = vld [vmem:[#allocation14 + $0xc8] sm:$0xff]
    %v3513 = vld [vmem:[#allocation14 + $0xd0] sm:$0xff]
    %v3514 = vld [vmem:[#allocation14 + $0xd8] sm:$0xff]
    %v3515 = vld [vmem:[#allocation14 + $0xe0] sm:$0xff]
    %v3516 = vld [vmem:[#allocation14 + $0xe8] sm:$0xff]
    %v3517 = vld [vmem:[#allocation14 + $0xf0] sm:$0xff]
    %v3518 = vld [vmem:[#allocation14 + $0xf8] sm:$0xff]
    %v3519 = vld [vmem:[#allocation14 + $0x100] sm:$0xff]
    %v3520 = vld [vmem:[#allocation14 + $0x108] sm:$0xff]
    %v3521 = vld [vmem:[#allocation14 + $0x110] sm:$0xff]
    %v3522 = vld [vmem:[#allocation14 + $0x118] sm:$0xff]
    %v3523 = vld [vmem:[#allocation14 + $0x120] sm:$0xff]
    %v3524 = vld [vmem:[#allocation14 + $0x128] sm:$0xff]
    %v3525 = vld [vmem:[#allocation14 + $0x130] sm:$0xff]
    %v3526 = vld [vmem:[#allocation14 + $0x138] sm:$0xff]
    %v3527 = vld [vmem:[#allocation14 + $0x140] sm:$0xff]
    %v3528 = vld [vmem:[#allocation14 + $0x148] sm:$0xff]
    %v3529 = vld [vmem:[#allocation14 + $0x150] sm:$0xff]
    %v3530 = vld [vmem:[#allocation14 + $0x158] sm:$0xff]
    %v3531 = vld [vmem:[#allocation14 + $0x160] sm:$0xff]
    %v3532 = vld [vmem:[#allocation14 + $0x168] sm:$0xff]
    %v3533 = vld [vmem:[#allocation14 + $0x170] sm:$0xff]
    %v3534 = vld [vmem:[#allocation14 + $0x178] sm:$0xff]
    %v3535 = vld [vmem:[#allocation14 + $0x180] sm:$0xff]
    %v3536 = vld [vmem:[#allocation14 + $0x188] sm:$0xff]
    %v3537 = vld [vmem:[#allocation14 + $0x190] sm:$0xff]
    %v3538 = vld [vmem:[#allocation14 + $0x198] sm:$0xff]
    %v3539 = vld [vmem:[#allocation14 + $0x1a0] sm:$0xff]
    %v3540 = vld [vmem:[#allocation14 + $0x1a8] sm:$0xff]
    %v3541 = vld [vmem:[#allocation14 + $0x1b0] sm:$0xff]
    %v3542 = vld [vmem:[#allocation14 + $0x1b8] sm:$0xff]
    %v3543 = vld [vmem:[#allocation14 + $0x1c0] sm:$0xff]
    %v3544 = vld [vmem:[#allocation14 + $0x1c8] sm:$0xff]
    %v3545 = vld [vmem:[#allocation14 + $0x1d0] sm:$0xff]
    %v3546 = vld [vmem:[#allocation14 + $0x1d8] sm:$0xff]
    %v3547 = vld [vmem:[#allocation14 + $0x1e0] sm:$0xff]
    %v3548 = vld [vmem:[#allocation14 + $0x1e8] sm:$0xff]
    %v3549 = vld [vmem:[#allocation14 + $0x1f0] sm:$0xff]
    %v3550 = vld [vmem:[#allocation14 + $0x1f8] sm:$0xff]
    %v3551 = vld [vmem:[#allocation14 + $0x200] sm:$0xff]
    %v3552 = vld [vmem:[#allocation14 + $0x208] sm:$0xff]
    %v3553 = vld [vmem:[#allocation14 + $0x210] sm:$0xff]
    %v3554 = vld [vmem:[#allocation14 + $0x218] sm:$0xff]
    %v3555 = vld [vmem:[#allocation14 + $0x220] sm:$0xff]
    %v3556 = vld [vmem:[#allocation14 + $0x228] sm:$0xff]
    %v3557 = vld [vmem:[#allocation14 + $0x230] sm:$0xff]
    %v3558 = vld [vmem:[#allocation14 + $0x238] sm:$0xff]
    %v3559 = vld [vmem:[#allocation14 + $0x240] sm:$0xff]
    %v3560 = vld [vmem:[#allocation14 + $0x248] sm:$0xff]
    %v3561 = vld [vmem:[#allocation14 + $0x250] sm:$0xff]
    %v3562 = vld [vmem:[#allocation14 + $0x258] sm:$0xff]
    %v3563 = vld [vmem:[#allocation14 + $0x260] sm:$0xff]
    %v3564 = vld [vmem:[#allocation14 + $0x268] sm:$0xff]
    %v3565 = vld [vmem:[#allocation14 + $0x270] sm:$0xff]
    %v3566 = vld [vmem:[#allocation14 + $0x278] sm:$0xff]
    %v3567 = vld [vmem:[#allocation14 + $0x280] sm:$0xff]
    %v3568 = vld [vmem:[#allocation14 + $0x288] sm:$0xff]
    %v3569 = vld [vmem:[#allocation14 + $0x290] sm:$0xff]
    %v3570 = vld [vmem:[#allocation14 + $0x298] sm:$0xff]
    %v3571 = vld [vmem:[#allocation14 + $0x2a0] sm:$0xff]
    %v3572 = vld [vmem:[#allocation14 + $0x2a8] sm:$0xff]
    %v3573 = vld [vmem:[#allocation14 + $0x2b0] sm:$0xff]
    %v3574 = vld [vmem:[#allocation14 + $0x2b8] sm:$0xff]
    %v3575 = vld [vmem:[#allocation14 + $0x2c0] sm:$0xff]
    %v3576 = vld [vmem:[#allocation14 + $0x2c8] sm:$0xff]
    %v3577 = vld [vmem:[#allocation14 + $0x2d0] sm:$0xff]
    %v3578 = vld [vmem:[#allocation14 + $0x2d8] sm:$0xff]
    %v3579 = vld [vmem:[#allocation14 + $0x2e0] sm:$0xff]
    %v3580 = vld [vmem:[#allocation14 + $0x2e8] sm:$0xff]
    %v3581 = vld [vmem:[#allocation14 + $0x2f0] sm:$0xff]
    %v3582 = vld [vmem:[#allocation14 + $0x2f8] sm:$0xff]
    %v3583 = vld [vmem:[#allocation14 + $0x300] sm:$0xff]
    %v3584 = vld [vmem:[#allocation14 + $0x308] sm:$0xff]
    %v3585 = vld [vmem:[#allocation14 + $0x310] sm:$0xff]
    %v3586 = vld [vmem:[#allocation14 + $0x318] sm:$0xff]
    %v3587 = vld [vmem:[#allocation14 + $0x320] sm:$0xff]
    %v3588 = vld [vmem:[#allocation14 + $0x328] sm:$0xff]
    %v3589 = vld [vmem:[#allocation14 + $0x330] sm:$0xff]
    %v3590 = vld [vmem:[#allocation14 + $0x338] sm:$0xff]
    %v3591 = vld [vmem:[#allocation14 + $0x340] sm:$0xff]
    %v3592 = vld [vmem:[#allocation14 + $0x348] sm:$0xff]
    %v3593 = vld [vmem:[#allocation14 + $0x350] sm:$0xff]
    %v3594 = vld [vmem:[#allocation14 + $0x358] sm:$0xff]
    %v3595 = vld [vmem:[#allocation14 + $0x360] sm:$0xff]
    %v3596 = vld [vmem:[#allocation14 + $0x368] sm:$0xff]
    %v3597 = vld [vmem:[#allocation14 + $0x370] sm:$0xff]
    %v3598 = vld [vmem:[#allocation14 + $0x378] sm:$0xff]
    %v3599 = vld [vmem:[#allocation14 + $0x380] sm:$0xff]
    %v3600 = vld [vmem:[#allocation14 + $0x388] sm:$0xff]
    %v3601 = vld [vmem:[#allocation14 + $0x390] sm:$0xff]
    %v3602 = vld [vmem:[#allocation14 + $0x398] sm:$0xff]
    %v3603 = vld [vmem:[#allocation14 + $0x3a0] sm:$0xff]
    %v3604 = vld [vmem:[#allocation14 + $0x3a8] sm:$0xff]
    %v3605 = vld [vmem:[#allocation14 + $0x3b0] sm:$0xff]
    %v3606 = vld [vmem:[#allocation14 + $0x3b8] sm:$0xff]
    %v3607 = vld [vmem:[#allocation14 + $0x3c0] sm:$0xff]
    %v3608 = vld [vmem:[#allocation14 + $0x3c8] sm:$0xff]
    %v3609 = vld [vmem:[#allocation14 + $0x3d0] sm:$0xff]
    %v3610 = vld [vmem:[#allocation14 + $0x3d8] sm:$0xff]
    %v3611 = vld [vmem:[#allocation14 + $0x3e0] sm:$0xff]
    %v3612 = vld [vmem:[#allocation14 + $0x3e8] sm:$0xff]
    %v3613 = vld [vmem:[#allocation14 + $0x3f0] sm:$0xff]
    %v3614 = vld [vmem:[#allocation14 + $0x3f8] sm:$0xff]
    %v3615 = vld [vmem:[#allocation14 + $0x400] sm:$0xff]
    %v3616 = vld [vmem:[#allocation14 + $0x408] sm:$0xff]
    %v3617 = vld [vmem:[#allocation14 + $0x410] sm:$0xff]
    %v3618 = vld [vmem:[#allocation14 + $0x418] sm:$0xff]
    %v3619 = vld [vmem:[#allocation14 + $0x420] sm:$0xff]
    %v3620 = vld [vmem:[#allocation14 + $0x428] sm:$0xff]
    %v3621 = vld [vmem:[#allocation14 + $0x430] sm:$0xff]
    %v3622 = vld [vmem:[#allocation14 + $0x438] sm:$0xff]
    %v3623 = vld [vmem:[#allocation14 + $0x440] sm:$0xff]
    %v3624 = vld [vmem:[#allocation14 + $0x448] sm:$0xff]
    %v3625 = vld [vmem:[#allocation14 + $0x450] sm:$0xff]
    %v3626 = vld [vmem:[#allocation14 + $0x458] sm:$0xff]
    %v3627 = vld [vmem:[#allocation14 + $0x460] sm:$0xff]
    %v3628 = vld [vmem:[#allocation14 + $0x468] sm:$0xff]
    %v3629 = vld [vmem:[#allocation14 + $0x470] sm:$0xff]
    %v3630 = vld [vmem:[#allocation14 + $0x478] sm:$0xff]
    %v3631 = vld [vmem:[#allocation14 + $0x480] sm:$0xff]
    %v3632 = vld [vmem:[#allocation14 + $0x488] sm:$0xff]
    %v3633 = vld [vmem:[#allocation14 + $0x490] sm:$0xff]
    %v3634 = vld [vmem:[#allocation14 + $0x498] sm:$0xff]
    %v3635 = vld [vmem:[#allocation14 + $0x4a0] sm:$0xff]
    %v3636 = vld [vmem:[#allocation14 + $0x4a8] sm:$0xff]
    %v3637 = vld [vmem:[#allocation14 + $0x4b0] sm:$0xff]
    %v3638 = vld [vmem:[#allocation14 + $0x4b8] sm:$0xff]
    %v3639 = vld [vmem:[#allocation14 + $0x4c0] sm:$0xff]
    %v3640 = vld [vmem:[#allocation14 + $0x4c8] sm:$0xff]
    %v3641 = vld [vmem:[#allocation14 + $0x4d0] sm:$0xff]
    %v3642 = vld [vmem:[#allocation14 + $0x4d8] sm:$0xff]
    %v3643 = vld [vmem:[#allocation14 + $0x4e0] sm:$0xff]
    %v3644 = vld [vmem:[#allocation14 + $0x4e8] sm:$0xff]
    %v3645 = vld [vmem:[#allocation14 + $0x4f0] sm:$0xff]
    %v3646 = vld [vmem:[#allocation14 + $0x4f8] sm:$0xff]
    %v3647 = vld [vmem:[#allocation20 + $0xd] sm:$0x3]
    %v3651 = vunpack.c.l.b16 %v3484
    %v3652 = vunpack.c.h.b16 %v3484
    %v3653 = vunpack.c.l.b16 %v3485
    %v3654 = vunpack.c.h.b16 %v3485
    %v3655 = vunpack.c.l.b16 %v3486
    %v3656 = vpack.c.b16 %v3651, %v3651
    %v3657 = vpack.c.b16 %v3652, %v3652
    %v3658 = vpack.c.b16 %v3653, %v3653
    %v3659 = vpack.c.b16 %v3654, %v3654
    %v3660 = vpack.c.b16 %v3655, %v3655
    %v3826 = vunpack.c.l.b16 %v3487
    %v3827 = vunpack.c.h.b16 %v3487
    %v3828 = vunpack.c.l.b16 %v3488
    %v3829 = vunpack.c.h.b16 %v3488
    %v3830 = vunpack.c.l.b16 %v3489
    %v3831 = vunpack.c.h.b16 %v3489
    %v3832 = vunpack.c.l.b16 %v3490
    %v3833 = vunpack.c.h.b16 %v3490
    %v3834 = vunpack.c.l.b16 %v3491
    %v3835 = vunpack.c.h.b16 %v3491
    %v3836 = vunpack.c.l.b16 %v3492
    %v3837 = vunpack.c.h.b16 %v3492
    %v3838 = vunpack.c.l.b16 %v3493
    %v3839 = vunpack.c.h.b16 %v3493
    %v3840 = vunpack.c.l.b16 %v3494
    %v3841 = vunpack.c.h.b16 %v3494
    %v3842 = vunpack.c.l.b16 %v3495
    %v3843 = vunpack.c.h.b16 %v3495
    %v3844 = vunpack.c.l.b16 %v3496
    %v3845 = vunpack.c.h.b16 %v3496
    %v3846 = vunpack.c.l.b16 %v3497
    %v3847 = vunpack.c.h.b16 %v3497
    %v3848 = vunpack.c.l.b16 %v3498
    %v3849 = vunpack.c.h.b16 %v3498
    %v3850 = vunpack.c.l.b16 %v3499
    %v3851 = vunpack.c.h.b16 %v3499
    %v3852 = vunpack.c.l.b16 %v3500
    %v3853 = vunpack.c.h.b16 %v3500
    %v3854 = vunpack.c.l.b16 %v3501
    %v3855 = vunpack.c.h.b16 %v3501
    %v3856 = vunpack.c.l.b16 %v3502
    %v3857 = vunpack.c.h.b16 %v3502
    %v3858 = vunpack.c.l.b16 %v3503
    %v3859 = vunpack.c.h.b16 %v3503
    %v3860 = vunpack.c.l.b16 %v3504
    %v3861 = vunpack.c.h.b16 %v3504
    %v3862 = vunpack.c.l.b16 %v3505
    %v3863 = vunpack.c.h.b16 %v3505
    %v3864 = vunpack.c.l.b16 %v3506
    %v3865 = vunpack.c.h.b16 %v3506
    %v3866 = vunpack.c.l.b16 %v3507
    %v3867 = vunpack.c.h.b16 %v3507
    %v3868 = vunpack.c.l.b16 %v3508
    %v3869 = vunpack.c.h.b16 %v3508
    %v3870 = vunpack.c.l.b16 %v3509
    %v3871 = vunpack.c.h.b16 %v3509
    %v3872 = vunpack.c.l.b16 %v3510
    %v3873 = vunpack.c.h.b16 %v3510
    %v3874 = vunpack.c.l.b16 %v3511
    %v3875 = vunpack.c.h.b16 %v3511
    %v3876 = vunpack.c.l.b16 %v3512
    %v3877 = vunpack.c.h.b16 %v3512
    %v3878 = vunpack.c.l.b16 %v3513
    %v3879 = vunpack.c.h.b16 %v3513
    %v3880 = vunpack.c.l.b16 %v3514
    %v3881 = vunpack.c.h.b16 %v3514
    %v3882 = vunpack.c.l.b16 %v3515
    %v3883 = vunpack.c.h.b16 %v3515
    %v3884 = vunpack.c.l.b16 %v3516
    %v3885 = vunpack.c.h.b16 %v3516
    %v3886 = vunpack.c.l.b16 %v3517
    %v3887 = vunpack.c.h.b16 %v3517
    %v3888 = vunpack.c.l.b16 %v3518
    %v3889 = vunpack.c.h.b16 %v3518
    %v3890 = vunpack.c.l.b16 %v3519
    %v3891 = vunpack.c.h.b16 %v3519
    %v3892 = vunpack.c.l.b16 %v3520
    %v3893 = vunpack.c.h.b16 %v3520
    %v3894 = vunpack.c.l.b16 %v3521
    %v3895 = vunpack.c.h.b16 %v3521
    %v3896 = vunpack.c.l.b16 %v3522
    %v3897 = vunpack.c.h.b16 %v3522
    %v3898 = vunpack.c.l.b16 %v3523
    %v3899 = vunpack.c.h.b16 %v3523
    %v3900 = vunpack.c.l.b16 %v3524
    %v3901 = vunpack.c.h.b16 %v3524
    %v3902 = vunpack.c.l.b16 %v3525
    %v3903 = vunpack.c.h.b16 %v3525
    %v3904 = vunpack.c.l.b16 %v3526
    %v3905 = vunpack.c.h.b16 %v3526
    %v3906 = vunpack.c.l.b16 %v3527
    %v3907 = vunpack.c.h.b16 %v3527
    %v3908 = vunpack.c.l.b16 %v3528
    %v3909 = vunpack.c.h.b16 %v3528
    %v3910 = vunpack.c.l.b16 %v3529
    %v3911 = vunpack.c.h.b16 %v3529
    %v3912 = vunpack.c.l.b16 %v3530
    %v3913 = vunpack.c.h.b16 %v3530
    %v3914 = vunpack.c.l.b16 %v3531
    %v3915 = vunpack.c.h.b16 %v3531
    %v3916 = vunpack.c.l.b16 %v3532
    %v3917 = vunpack.c.h.b16 %v3532
    %v3918 = vunpack.c.l.b16 %v3533
    %v3919 = vunpack.c.h.b16 %v3533
    %v3920 = vunpack.c.l.b16 %v3534
    %v3921 = vunpack.c.h.b16 %v3534
    %v3922 = vunpack.c.l.b16 %v3535
    %v3923 = vunpack.c.h.b16 %v3535
    %v3924 = vunpack.c.l.b16 %v3536
    %v3925 = vunpack.c.h.b16 %v3536
    %v3926 = vunpack.c.l.b16 %v3537
    %v3927 = vunpack.c.h.b16 %v3537
    %v3928 = vunpack.c.l.b16 %v3538
    %v3929 = vunpack.c.h.b16 %v3538
    %v3930 = vunpack.c.l.b16 %v3539
    %v3931 = vunpack.c.h.b16 %v3539
    %v3932 = vunpack.c.l.b16 %v3540
    %v3933 = vunpack.c.h.b16 %v3540
    %v3934 = vunpack.c.l.b16 %v3541
    %v3935 = vunpack.c.h.b16 %v3541
    %v3936 = vunpack.c.l.b16 %v3542
    %v3937 = vunpack.c.h.b16 %v3542
    %v3938 = vunpack.c.l.b16 %v3543
    %v3939 = vunpack.c.h.b16 %v3543
    %v3940 = vunpack.c.l.b16 %v3544
    %v3941 = vunpack.c.h.b16 %v3544
    %v3942 = vunpack.c.l.b16 %v3545
    %v3943 = vunpack.c.h.b16 %v3545
    %v3944 = vunpack.c.l.b16 %v3546
    %v3945 = vunpack.c.h.b16 %v3546
    %v3946 = vunpack.c.l.b16 %v3547
    %v3947 = vunpack.c.h.b16 %v3547
    %v3948 = vunpack.c.l.b16 %v3548
    %v3949 = vunpack.c.h.b16 %v3548
    %v3950 = vunpack.c.l.b16 %v3549
    %v3951 = vunpack.c.h.b16 %v3549
    %v3952 = vunpack.c.l.b16 %v3550
    %v3953 = vunpack.c.h.b16 %v3550
    %v3954 = vunpack.c.l.b16 %v3551
    %v3955 = vunpack.c.h.b16 %v3551
    %v3956 = vunpack.c.l.b16 %v3552
    %v3957 = vunpack.c.h.b16 %v3552
    %v3958 = vunpack.c.l.b16 %v3553
    %v3959 = vunpack.c.h.b16 %v3553
    %v3960 = vunpack.c.l.b16 %v3554
    %v3961 = vunpack.c.h.b16 %v3554
    %v3962 = vunpack.c.l.b16 %v3555
    %v3963 = vunpack.c.h.b16 %v3555
    %v3964 = vunpack.c.l.b16 %v3556
    %v3965 = vunpack.c.h.b16 %v3556
    %v3966 = vunpack.c.l.b16 %v3557
    %v3967 = vunpack.c.h.b16 %v3557
    %v3968 = vunpack.c.l.b16 %v3558
    %v3969 = vunpack.c.h.b16 %v3558
    %v3970 = vunpack.c.l.b16 %v3559
    %v3971 = vunpack.c.h.b16 %v3559
    %v3972 = vunpack.c.l.b16 %v3560
    %v3973 = vunpack.c.h.b16 %v3560
    %v3974 = vunpack.c.l.b16 %v3561
    %v3975 = vunpack.c.h.b16 %v3561
    %v3976 = vunpack.c.l.b16 %v3562
    %v3977 = vunpack.c.h.b16 %v3562
    %v3978 = vunpack.c.l.b16 %v3563
    %v3979 = vunpack.c.h.b16 %v3563
    %v3980 = vunpack.c.l.b16 %v3564
    %v3981 = vunpack.c.h.b16 %v3564
    %v3982 = vunpack.c.l.b16 %v3565
    %v3983 = vunpack.c.h.b16 %v3565
    %v3984 = vunpack.c.l.b16 %v3566
    %v3985 = vunpack.c.h.b16 %v3566
    %v3986 = vunpack.c.l.b16 %v3567
    %v3987 = vunpack.c.h.b16 %v3567
    %v3988 = vunpack.c.l.b16 %v3568
    %v3989 = vunpack.c.h.b16 %v3568
    %v3990 = vunpack.c.l.b16 %v3569
    %v3991 = vunpack.c.h.b16 %v3569
    %v3992 = vunpack.c.l.b16 %v3570
    %v3993 = vunpack.c.h.b16 %v3570
    %v3994 = vunpack.c.l.b16 %v3571
    %v3995 = vunpack.c.h.b16 %v3571
    %v3996 = vunpack.c.l.b16 %v3572
    %v3997 = vunpack.c.h.b16 %v3572
    %v3998 = vunpack.c.l.b16 %v3573
    %v3999 = vunpack.c.h.b16 %v3573
    %v4000 = vunpack.c.l.b16 %v3574
    %v4001 = vunpack.c.h.b16 %v3574
    %v4002 = vunpack.c.l.b16 %v3575
    %v4003 = vunpack.c.h.b16 %v3575
    %v4004 = vunpack.c.l.b16 %v3576
    %v4005 = vunpack.c.h.b16 %v3576
    %v4006 = vunpack.c.l.b16 %v3577
    %v4007 = vunpack.c.h.b16 %v3577
    %v4008 = vunpack.c.l.b16 %v3578
    %v4009 = vunpack.c.h.b16 %v3578
    %v4010 = vunpack.c.l.b16 %v3579
    %v4011 = vunpack.c.h.b16 %v3579
    %v4012 = vunpack.c.l.b16 %v3580
    %v4013 = vunpack.c.h.b16 %v3580
    %v4014 = vunpack.c.l.b16 %v3581
    %v4015 = vunpack.c.h.b16 %v3581
    %v4016 = vunpack.c.l.b16 %v3582
    %v4017 = vunpack.c.h.b16 %v3582
    %v4018 = vunpack.c.l.b16 %v3583
    %v4019 = vunpack.c.h.b16 %v3583
    %v4020 = vunpack.c.l.b16 %v3584
    %v4021 = vunpack.c.h.b16 %v3584
    %v4022 = vunpack.c.l.b16 %v3585
    %v4023 = vunpack.c.h.b16 %v3585
    %v4024 = vunpack.c.l.b16 %v3586
    %v4025 = vunpack.c.h.b16 %v3586
    %v4026 = vunpack.c.l.b16 %v3587
    %v4027 = vunpack.c.h.b16 %v3587
    %v4028 = vunpack.c.l.b16 %v3588
    %v4029 = vunpack.c.h.b16 %v3588
    %v4030 = vunpack.c.l.b16 %v3589
    %v4031 = vunpack.c.h.b16 %v3589
    %v4032 = vunpack.c.l.b16 %v3590
    %v4033 = vunpack.c.h.b16 %v3590
    %v4034 = vunpack.c.l.b16 %v3591
    %v4035 = vunpack.c.h.b16 %v3591
    %v4036 = vunpack.c.l.b16 %v3592
    %v4037 = vunpack.c.h.b16 %v3592
    %v4038 = vunpack.c.l.b16 %v3593
    %v4039 = vunpack.c.h.b16 %v3593
    %v4040 = vunpack.c.l.b16 %v3594
    %v4041 = vunpack.c.h.b16 %v3594
    %v4042 = vunpack.c.l.b16 %v3595
    %v4043 = vunpack.c.h.b16 %v3595
    %v4044 = vunpack.c.l.b16 %v3596
    %v4045 = vunpack.c.h.b16 %v3596
    %v4046 = vunpack.c.l.b16 %v3597
    %v4047 = vunpack.c.h.b16 %v3597
    %v4048 = vunpack.c.l.b16 %v3598
    %v4049 = vunpack.c.h.b16 %v3598
    %v4050 = vunpack.c.l.b16 %v3599
    %v4051 = vunpack.c.h.b16 %v3599
    %v4052 = vunpack.c.l.b16 %v3600
    %v4053 = vunpack.c.h.b16 %v3600
    %v4054 = vunpack.c.l.b16 %v3601
    %v4055 = vunpack.c.h.b16 %v3601
    %v4056 = vunpack.c.l.b16 %v3602
    %v4057 = vunpack.c.h.b16 %v3602
    %v4058 = vunpack.c.l.b16 %v3603
    %v4059 = vunpack.c.h.b16 %v3603
    %v4060 = vunpack.c.l.b16 %v3604
    %v4061 = vunpack.c.h.b16 %v3604
    %v4062 = vunpack.c.l.b16 %v3605
    %v4063 = vunpack.c.h.b16 %v3605
    %v4064 = vunpack.c.l.b16 %v3606
    %v4065 = vunpack.c.h.b16 %v3606
    %v4066 = vunpack.c.l.b16 %v3607
    %v4067 = vunpack.c.h.b16 %v3607
    %v4068 = vunpack.c.l.b16 %v3608
    %v4069 = vunpack.c.h.b16 %v3608
    %v4070 = vunpack.c.l.b16 %v3609
    %v4071 = vunpack.c.h.b16 %v3609
    %v4072 = vunpack.c.l.b16 %v3610
    %v4073 = vunpack.c.h.b16 %v3610
    %v4074 = vunpack.c.l.b16 %v3611
    %v4075 = vunpack.c.h.b16 %v3611
    %v4076 = vunpack.c.l.b16 %v3612
    %v4077 = vunpack.c.h.b16 %v3612
    %v4078 = vunpack.c.l.b16 %v3613
    %v4079 = vunpack.c.h.b16 %v3613
    %v4080 = vunpack.c.l.b16 %v3614
    %v4081 = vunpack.c.h.b16 %v3614
    %v4082 = vunpack.c.l.b16 %v3615
    %v4083 = vunpack.c.h.b16 %v3615
    %v4084 = vunpack.c.l.b16 %v3616
    %v4085 = vunpack.c.h.b16 %v3616
    %v4086 = vunpack.c.l.b16 %v3617
    %v4087 = vunpack.c.h.b16 %v3617
    %v4088 = vunpack.c.l.b16 %v3618
    %v4089 = vunpack.c.h.b16 %v3618
    %v4090 = vunpack.c.l.b16 %v3619
    %v4091 = vunpack.c.h.b16 %v3619
    %v4092 = vunpack.c.l.b16 %v3620
    %v4093 = vunpack.c.h.b16 %v3620
    %v4094 = vunpack.c.l.b16 %v3621
    %v4095 = vunpack.c.h.b16 %v3621
    %v4096 = vunpack.c.l.b16 %v3622
    %v4097 = vunpack.c.h.b16 %v3622
    %v4098 = vunpack.c.l.b16 %v3623
    %v4099 = vunpack.c.h.b16 %v3623
    %v4100 = vunpack.c.l.b16 %v3624
    %v4101 = vunpack.c.h.b16 %v3624
    %v4102 = vunpack.c.l.b16 %v3625
    %v4103 = vunpack.c.h.b16 %v3625
    %v4104 = vunpack.c.l.b16 %v3626
    %v4105 = vunpack.c.h.b16 %v3626
    %v4106 = vunpack.c.l.b16 %v3627
    %v4107 = vunpack.c.h.b16 %v3627
    %v4108 = vunpack.c.l.b16 %v3628
    %v4109 = vunpack.c.h.b16 %v3628
    %v4110 = vunpack.c.l.b16 %v3629
    %v4111 = vunpack.c.h.b16 %v3629
    %v4112 = vunpack.c.l.b16 %v3630
    %v4113 = vunpack.c.h.b16 %v3630
    %v4114 = vunpack.c.l.b16 %v3631
    %v4115 = vunpack.c.h.b16 %v3631
    %v4116 = vunpack.c.l.b16 %v3632
    %v4117 = vunpack.c.h.b16 %v3632
    %v4118 = vunpack.c.l.b16 %v3633
    %v4119 = vunpack.c.h.b16 %v3633
    %v4120 = vunpack.c.l.b16 %v3634
    %v4121 = vunpack.c.h.b16 %v3634
    %v4122 = vunpack.c.l.b16 %v3635
    %v4123 = vunpack.c.h.b16 %v3635
    %v4124 = vunpack.c.l.b16 %v3636
    %v4125 = vunpack.c.h.b16 %v3636
    %v4126 = vunpack.c.l.b16 %v3637
    %v4127 = vunpack.c.h.b16 %v3637
    %v4128 = vunpack.c.l.b16 %v3638
    %v4129 = vunpack.c.h.b16 %v3638
    %v4130 = vunpack.c.l.b16 %v3639
    %v4131 = vunpack.c.h.b16 %v3639
    %v4132 = vunpack.c.l.b16 %v3640
    %v4133 = vunpack.c.h.b16 %v3640
    %v4134 = vunpack.c.l.b16 %v3641
    %v4135 = vunpack.c.h.b16 %v3641
    %v4136 = vunpack.c.l.b16 %v3642
    %v4137 = vunpack.c.h.b16 %v3642
    %v4138 = vunpack.c.l.b16 %v3643
    %v4139 = vunpack.c.h.b16 %v3643
    %v4140 = vunpack.c.l.b16 %v3644
    %v4141 = vunpack.c.h.b16 %v3644
    %v4142 = vunpack.c.l.b16 %v3645
    %v4143 = vunpack.c.h.b16 %v3645
    %v4144 = vunpack.c.l.b16 %v3646
    %v4145 = vunpack.c.h.b16 %v3646
    %v4146 = vpack.c.b16 %v3830, %v3826
    %v4147 = vpack.c.b16 %v3831, %v3827
    %v4148 = vpack.c.b16 %v3832, %v3828
    %v4149 = vpack.c.b16 %v3833, %v3829
    %v4150 = vpack.c.b16 %v3838, %v3834
    %v4151 = vpack.c.b16 %v3839, %v3835
    %v4152 = vpack.c.b16 %v3840, %v3836
    %v4153 = vpack.c.b16 %v3841, %v3837
    %v4154 = vpack.c.b16 %v3846, %v3842
    %v4155 = vpack.c.b16 %v3847, %v3843
    %v4156 = vpack.c.b16 %v3848, %v3844
    %v4157 = vpack.c.b16 %v3849, %v3845
    %v4158 = vpack.c.b16 %v3854, %v3850
    %v4159 = vpack.c.b16 %v3855, %v3851
    %v4160 = vpack.c.b16 %v3856, %v3852
    %v4161 = vpack.c.b16 %v3857, %v3853
    %v4162 = vpack.c.b16 %v3862, %v3858
    %v4163 = vpack.c.b16 %v3863, %v3859
    %v4164 = vpack.c.b16 %v3864, %v3860
    %v4165 = vpack.c.b16 %v3865, %v3861
    %v4166 = vpack.c.b16 %v3870, %v3866
    %v4167 = vpack.c.b16 %v3871, %v3867
    %v4168 = vpack.c.b16 %v3872, %v3868
    %v4169 = vpack.c.b16 %v3873, %v3869
    %v4170 = vpack.c.b16 %v3878, %v3874
    %v4171 = vpack.c.b16 %v3879, %v3875
    %v4172 = vpack.c.b16 %v3880, %v3876
    %v4173 = vpack.c.b16 %v3881, %v3877
    %v4174 = vpack.c.b16 %v3886, %v3882
    %v4175 = vpack.c.b16 %v3887, %v3883
    %v4176 = vpack.c.b16 %v3888, %v3884
    %v4177 = vpack.c.b16 %v3889, %v3885
    %v4178 = vpack.c.b16 %v3894, %v3890
    %v4179 = vpack.c.b16 %v3895, %v3891
    %v4180 = vpack.c.b16 %v3896, %v3892
    %v4181 = vpack.c.b16 %v3897, %v3893
    %v4182 = vpack.c.b16 %v3902, %v3898
    %v4183 = vpack.c.b16 %v3903, %v3899
    %v4184 = vpack.c.b16 %v3904, %v3900
    %v4185 = vpack.c.b16 %v3905, %v3901
    %v4186 = vpack.c.b16 %v3910, %v3906
    %v4187 = vpack.c.b16 %v3911, %v3907
    %v4188 = vpack.c.b16 %v3912, %v3908
    %v4189 = vpack.c.b16 %v3913, %v3909
    %v4190 = vpack.c.b16 %v3918, %v3914
    %v4191 = vpack.c.b16 %v3919, %v3915
    %v4192 = vpack.c.b16 %v3920, %v3916
    %v4193 = vpack.c.b16 %v3921, %v3917
    %v4194 = vpack.c.b16 %v3926, %v3922
    %v4195 = vpack.c.b16 %v3927, %v3923
    %v4196 = vpack.c.b16 %v3928, %v3924
    %v4197 = vpack.c.b16 %v3929, %v3925
    %v4198 = vpack.c.b16 %v3934, %v3930
    %v4199 = vpack.c.b16 %v3935, %v3931
    %v4200 = vpack.c.b16 %v3936, %v3932
    %v4201 = vpack.c.b16 %v3937, %v3933
    %v4202 = vpack.c.b16 %v3942, %v3938
    %v4203 = vpack.c.b16 %v3943, %v3939
    %v4204 = vpack.c.b16 %v3944, %v3940
    %v4205 = vpack.c.b16 %v3945, %v3941
    %v4206 = vpack.c.b16 %v3950, %v3946
    %v4207 = vpack.c.b16 %v3951, %v3947
    %v4208 = vpack.c.b16 %v3952, %v3948
    %v4209 = vpack.c.b16 %v3953, %v3949
    %v4210 = vpack.c.b16 %v3958, %v3954
    %v4211 = vpack.c.b16 %v3959, %v3955
    %v4212 = vpack.c.b16 %v3960, %v3956
    %v4213 = vpack.c.b16 %v3961, %v3957
    %v4214 = vpack.c.b16 %v3966, %v3962
    %v4215 = vpack.c.b16 %v3967, %v3963
    %v4216 = vpack.c.b16 %v3968, %v3964
    %v4217 = vpack.c.b16 %v3969, %v3965
    %v4218 = vpack.c.b16 %v3974, %v3970
    %v4219 = vpack.c.b16 %v3975, %v3971
    %v4220 = vpack.c.b16 %v3976, %v3972
    %v4221 = vpack.c.b16 %v3977, %v3973
    %v4222 = vpack.c.b16 %v3982, %v3978
    %v4223 = vpack.c.b16 %v3983, %v3979
    %v4224 = vpack.c.b16 %v3984, %v3980
    %v4225 = vpack.c.b16 %v3985, %v3981
    %v4226 = vpack.c.b16 %v3990, %v3986
    %v4227 = vpack.c.b16 %v3991, %v3987
    %v4228 = vpack.c.b16 %v3992, %v3988
    %v4229 = vpack.c.b16 %v3993, %v3989
    %v4230 = vpack.c.b16 %v3998, %v3994
    %v4231 = vpack.c.b16 %v3999, %v3995
    %v4232 = vpack.c.b16 %v4000, %v3996
    %v4233 = vpack.c.b16 %v4001, %v3997
    %v4234 = vpack.c.b16 %v4006, %v4002
    %v4235 = vpack.c.b16 %v4007, %v4003
    %v4236 = vpack.c.b16 %v4008, %v4004
    %v4237 = vpack.c.b16 %v4009, %v4005
    %v4238 = vpack.c.b16 %v4014, %v4010
    %v4239 = vpack.c.b16 %v4015, %v4011
    %v4240 = vpack.c.b16 %v4016, %v4012
    %v4241 = vpack.c.b16 %v4017, %v4013
    %v4242 = vpack.c.b16 %v4022, %v4018
    %v4243 = vpack.c.b16 %v4023, %v4019
    %v4244 = vpack.c.b16 %v4024, %v4020
    %v4245 = vpack.c.b16 %v4025, %v4021
    %v4246 = vpack.c.b16 %v4030, %v4026
    %v4247 = vpack.c.b16 %v4031, %v4027
    %v4248 = vpack.c.b16 %v4032, %v4028
    %v4249 = vpack.c.b16 %v4033, %v4029
    %v4250 = vpack.c.b16 %v4038, %v4034
    %v4251 = vpack.c.b16 %v4039, %v4035
    %v4252 = vpack.c.b16 %v4040, %v4036
    %v4253 = vpack.c.b16 %v4041, %v4037
    %v4254 = vpack.c.b16 %v4046, %v4042
    %v4255 = vpack.c.b16 %v4047, %v4043
    %v4256 = vpack.c.b16 %v4048, %v4044
    %v4257 = vpack.c.b16 %v4049, %v4045
    %v4258 = vpack.c.b16 %v4054, %v4050
    %v4259 = vpack.c.b16 %v4055, %v4051
    %v4260 = vpack.c.b16 %v4056, %v4052
    %v4261 = vpack.c.b16 %v4057, %v4053
    %v4262 = vpack.c.b16 %v4062, %v4058
    %v4263 = vpack.c.b16 %v4063, %v4059
    %v4264 = vpack.c.b16 %v4064, %v4060
    %v4265 = vpack.c.b16 %v4065, %v4061
    %v4266 = vpack.c.b16 %v4070, %v4066
    %v4267 = vpack.c.b16 %v4071, %v4067
    %v4268 = vpack.c.b16 %v4072, %v4068
    %v4269 = vpack.c.b16 %v4073, %v4069
    %v4270 = vpack.c.b16 %v4078, %v4074
    %v4271 = vpack.c.b16 %v4079, %v4075
    %v4272 = vpack.c.b16 %v4080, %v4076
    %v4273 = vpack.c.b16 %v4081, %v4077
    %v4274 = vpack.c.b16 %v4086, %v4082
    %v4275 = vpack.c.b16 %v4087, %v4083
    %v4276 = vpack.c.b16 %v4088, %v4084
    %v4277 = vpack.c.b16 %v4089, %v4085
    %v4278 = vpack.c.b16 %v4094, %v4090
    %v4279 = vpack.c.b16 %v4095, %v4091
    %v4280 = vpack.c.b16 %v4096, %v4092
    %v4281 = vpack.c.b16 %v4097, %v4093
    %v4282 = vpack.c.b16 %v4102, %v4098
    %v4283 = vpack.c.b16 %v4103, %v4099
    %v4284 = vpack.c.b16 %v4104, %v4100
    %v4285 = vpack.c.b16 %v4105, %v4101
    %v4286 = vpack.c.b16 %v4110, %v4106
    %v4287 = vpack.c.b16 %v4111, %v4107
    %v4288 = vpack.c.b16 %v4112, %v4108
    %v4289 = vpack.c.b16 %v4113, %v4109
    %v4290 = vpack.c.b16 %v4118, %v4114
    %v4291 = vpack.c.b16 %v4119, %v4115
    %v4292 = vpack.c.b16 %v4120, %v4116
    %v4293 = vpack.c.b16 %v4121, %v4117
    %v4294 = vpack.c.b16 %v4126, %v4122
    %v4295 = vpack.c.b16 %v4127, %v4123
    %v4296 = vpack.c.b16 %v4128, %v4124
    %v4297 = vpack.c.b16 %v4129, %v4125
    %v4298 = vpack.c.b16 %v4134, %v4130
    %v4299 = vpack.c.b16 %v4135, %v4131
    %v4300 = vpack.c.b16 %v4136, %v4132
    %v4301 = vpack.c.b16 %v4137, %v4133
    %v4302 = vpack.c.b16 %v4142, %v4138
    %v4303 = vpack.c.b16 %v4143, %v4139
    %v4304 = vpack.c.b16 %v4144, %v4140
    %v4305 = vpack.c.b16 %v4145, %v4141
    %4466 = vmatprep.subr.bf16.mxu0 %v4147
    %4467 = vmatpush1.bf16.msra.mxu0 %v4146
    %4468 = vmatprep.subr.bf16.mxu0 %v4151
    %4469 = vmatpush1.bf16.msra.mxu0 %v4150
    %4470 = vmatprep.subr.bf16.mxu0 %v4155
    %4471 = vmatpush1.bf16.msra.mxu0 %v4154
    %4472 = vmatprep.subr.bf16.mxu0 %v4159
    %4473 = vmatpush1.bf16.msra.mxu0 %v4158
    %4474 = vmatprep.subr.bf16.mxu0 %v4163
    %4475 = vmatpush1.bf16.msra.mxu0 %v4162
    %4476 = vmatprep.subr.bf16.mxu0 %v4167
    %4477 = vmatpush1.bf16.msra.mxu0 %v4166
    %4478 = vmatprep.subr.bf16.mxu0 %v4171
    %4479 = vmatpush1.bf16.msra.mxu0 %v4170
    %4480 = vmatprep.subr.bf16.mxu0 %v4175
    %4481 = vmatpush1.bf16.msra.mxu0 %v4174
    %4482 = vmatprep.subr.bf16.mxu0 %v4179
    %4483 = vmatpush1.bf16.msra.mxu0 %v4178
    %4484 = vmatprep.subr.bf16.mxu0 %v4183
    %4485 = vmatpush1.bf16.msra.mxu0 %v4182
    %4486 = vmatprep.subr.bf16.mxu0 %v4187
    %4487 = vmatpush1.bf16.msra.mxu0 %v4186
    %4488 = vmatprep.subr.bf16.mxu0 %v4191
    %4489 = vmatpush1.bf16.msra.mxu0 %v4190
    %4490 = vmatprep.subr.bf16.mxu0 %v4195
    %4491 = vmatpush1.bf16.msra.mxu0 %v4194
    %4492 = vmatprep.subr.bf16.mxu0 %v4199
    %4493 = vmatpush1.bf16.msra.mxu0 %v4198
    %4494 = vmatprep.subr.bf16.mxu0 %v4203
    %4495 = vmatpush1.bf16.msra.mxu0 %v4202
    %4496 = vmatprep.subr.bf16.mxu0 %v4207
    %4497 = vmatpush1.bf16.msra.mxu0 %v4206
    %4498 = vmatprep.mubr.bf16.mxu0 %v3657
    %4499 = vmatmul.mubr.bf16.gmra.mrb[0].mxu0 %v3656
    %v4500 = vpop.f32.mrb[0].mxu0
    %v4501 = vadd.f32 0.0, %v4500
    %v4502 = vpop.f32.mrb[0].mxu0
    %v4503 = vadd.f32 0.0, %v4502
    %v4504 = vpop.f32.mrb[0].mxu0
    %v4505 = vpop.f32.mrb[0].mxu0
    %4506 = vdwg.mxu0
    %4507 = vmatprep.subr.bf16.mxu0 %v4211
    %4508 = vmatpush1.bf16.msra.mxu0 %v4210
    %4509 = vmatprep.subr.bf16.mxu0 %v4215
    %4510 = vmatpush1.bf16.msra.mxu0 %v4214
    %4511 = vmatprep.subr.bf16.mxu0 %v4219
    %4512 = vmatpush1.bf16.msra.mxu0 %v4218
    %4513 = vmatprep.subr.bf16.mxu0 %v4223
    %4514 = vmatpush1.bf16.msra.mxu0 %v4222
    %4515 = vmatprep.subr.bf16.mxu0 %v4227
    %4516 = vmatpush1.bf16.msra.mxu0 %v4226
    %4517 = vmatprep.subr.bf16.mxu0 %v4231
    %4518 = vmatpush1.bf16.msra.mxu0 %v4230
    %4519 = vmatprep.subr.bf16.mxu0 %v4235
    %4520 = vmatpush1.bf16.msra.mxu0 %v4234
    %4521 = vmatprep.subr.bf16.mxu0 %v4239
    %4522 = vmatpush1.bf16.msra.mxu0 %v4238
    %4523 = vmatprep.subr.bf16.mxu0 %v4243
    %4524 = vmatpush1.bf16.msra.mxu0 %v4242
    %4525 = vmatprep.subr.bf16.mxu0 %v4247
    %4526 = vmatpush1.bf16.msra.mxu0 %v4246
    %4527 = vmatprep.subr.bf16.mxu0 %v4251
    %4528 = vmatpush1.bf16.msra.mxu0 %v4250
    %4529 = vmatprep.subr.bf16.mxu0 %v4255
    %4530 = vmatpush1.bf16.msra.mxu0 %v4254
    %4531 = vmatprep.subr.bf16.mxu0 %v4259
    %4532 = vmatpush1.bf16.msra.mxu0 %v4258
    %4533 = vmatprep.subr.bf16.mxu0 %v4263
    %4534 = vmatpush1.bf16.msra.mxu0 %v4262
    %4535 = vmatprep.subr.bf16.mxu0 %v4267
    %4536 = vmatpush1.bf16.msra.mxu0 %v4266
    %4537 = vmatprep.subr.bf16.mxu0 %v4271
    %4538 = vmatpush1.bf16.msra.mxu0 %v4270
    %4539 = vmatprep.mubr.bf16.mxu0 %v3659
    %4540 = vmatmul.mubr.bf16.gmra.mrb[0].mxu0 %v3658
    %v4541 = vpop.f32.mrb[0].mxu0
    %v4542 = vadd.f32 %v4501, %v4541
    %v4543 = vpop.f32.mrb[0].mxu0
    %v4544 = vadd.f32 %v4503, %v4543
    %v4545 = vpop.f32.mrb[0].mxu0
    %v4546 = vpop.f32.mrb[0].mxu0
    %4547 = vdwg.mxu0
    %4548 = vmatprep.subr.bf16.mxu0 %v4275
    %4549 = vmatpush1.bf16.msra.mxu0 %v4274
    %4550 = vmatprep.subr.bf16.mxu0 %v4279
    %4551 = vmatpush1.bf16.msra.mxu0 %v4278
    %4552 = vmatprep.subr.bf16.mxu0 %v4283
    %4553 = vmatpush1.bf16.msra.mxu0 %v4282
    %4554 = vmatprep.subr.bf16.mxu0 %v4287
    %4555 = vmatpush1.bf16.msra.mxu0 %v4286
    %4556 = vmatprep.subr.bf16.mxu0 %v4291
    %4557 = vmatpush1.bf16.msra.mxu0 %v4290
    %4558 = vmatprep.subr.bf16.mxu0 %v4295
    %4559 = vmatpush1.bf16.msra.mxu0 %v4294
    %4560 = vmatprep.subr.bf16.mxu0 %v4299
    %4561 = vmatpush1.bf16.msra.mxu0 %v4298
    %4562 = vmatprep.subr.bf16.mxu0 %v4303
    %4563 = vmatpush1.bf16.msra.mxu0 %v4302
    %4564 = vmatprep.subr.bf16.mxu0 0
    %4565 = vmatpush1.bf16.msra.mxu0 0
    %4566 = vmatprep.subr.bf16.mxu0 0
    %4567 = vmatpush1.bf16.msra.mxu0 0
    %4568 = vmatprep.subr.bf16.mxu0 0
    %4569 = vmatpush1.bf16.msra.mxu0 0
    %4570 = vmatprep.subr.bf16.mxu0 0
    %4571 = vmatpush1.bf16.msra.mxu0 0
    %4572 = vmatprep.subr.bf16.mxu0 0
    %4573 = vmatpush1.bf16.msra.mxu0 0
    %4574 = vmatprep.subr.bf16.mxu0 0
    %4575 = vmatpush1.bf16.msra.mxu0 0
    %4576 = vmatprep.subr.bf16.mxu0 0
    %4577 = vmatpush1.bf16.msra.mxu0 0
    %4578 = vmatprep.subr.bf16.mxu0 0
    %4579 = vmatpush1.bf16.msra.mxu0 0
    %4580 = vmatprep.mubr.bf16.mxu0 0
    %4581 = vmatmul.mubr.bf16.gmra.mrb[0].mxu0 %v3660
    %v4582 = vpop.f32.mrb[0].mxu0
    %v4583 = vadd.f32 %v4542, %v4582
    %v4584 = vpop.f32.mrb[0].mxu0
    %v4585 = vadd.f32 %v4544, %v4584
    %v4586 = vpop.f32.mrb[0].mxu0
    %v4587 = vpop.f32.mrb[0].mxu0
    %4588 = vdwg.mxu0
    %4589 = vmatprep.subr.bf16.mxu0 %v4149
    %4590 = vmatpush1.bf16.msra.mxu0 %v4148
    %4591 = vmatprep.subr.bf16.mxu0 %v4153
    %4592 = vmatpush1.bf16.msra.mxu0 %v4152
    %4593 = vmatprep.subr.bf16.mxu0 %v4157
    %4594 = vmatpush1.bf16.msra.mxu0 %v4156
    %4595 = vmatprep.subr.bf16.mxu0 %v4161
    %4596 = vmatpush1.bf16.msra.mxu0 %v4160
    %4597 = vmatprep.subr.bf16.mxu0 %v4165
    %4598 = vmatpush1.bf16.msra.mxu0 %v4164
    %4599 = vmatprep.subr.bf16.mxu0 %v4169
    %4600 = vmatpush1.bf16.msra.mxu0 %v4168
    %4601 = vmatprep.subr.bf16.mxu0 %v4173
    %4602 = vmatpush1.bf16.msra.mxu0 %v4172
    %4603 = vmatprep.subr.bf16.mxu0 %v4177
    %4604 = vmatpush1.bf16.msra.mxu0 %v4176
    %4605 = vmatprep.subr.bf16.mxu0 %v4181
    %4606 = vmatpush1.bf16.msra.mxu0 %v4180
    %4607 = vmatprep.subr.bf16.mxu0 %v4185
    %4608 = vmatpush1.bf16.msra.mxu0 %v4184
    %4609 = vmatprep.subr.bf16.mxu0 %v4189
    %4610 = vmatpush1.bf16.msra.mxu0 %v4188
    %4611 = vmatprep.subr.bf16.mxu0 %v4193
    %4612 = vmatpush1.bf16.msra.mxu0 %v4192
    %4613 = vmatprep.subr.bf16.mxu0 %v4197
    %4614 = vmatpush1.bf16.msra.mxu0 %v4196
    %4615 = vmatprep.subr.bf16.mxu0 %v4201
    %4616 = vmatpush1.bf16.msra.mxu0 %v4200
    %4617 = vmatprep.subr.bf16.mxu0 %v4205
    %4618 = vmatpush1.bf16.msra.mxu0 %v4204
    %4619 = vmatprep.subr.bf16.mxu0 %v4209
    %4620 = vmatpush1.bf16.msra.mxu0 %v4208
    %4621 = vmatprep.mubr.bf16.mxu0 %v3657
    %4622 = vmatmul.mubr.bf16.gmra.mrb[0].mxu0 %v3656
    %v4623 = vpop.f32.mrb[0].mxu0
    %v4624 = vadd.f32 0.0, %v4623
    %v4625 = vpop.f32.mrb[0].mxu0
    %v4626 = vadd.f32 0.0, %v4625
    %v4627 = vpop.f32.mrb[0].mxu0
    %v4628 = vpop.f32.mrb[0].mxu0
    %4629 = vdwg.mxu0
    %4630 = vmatprep.subr.bf16.mxu0 %v4213
    %4631 = vmatpush1.bf16.msra.mxu0 %v4212
    %4632 = vmatprep.subr.bf16.mxu0 %v4217
    %4633 = vmatpush1.bf16.msra.mxu0 %v4216
    %4634 = vmatprep.subr.bf16.mxu0 %v4221
    %4635 = vmatpush1.bf16.msra.mxu0 %v4220
    %4636 = vmatprep.subr.bf16.mxu0 %v4225
    %4637 = vmatpush1.bf16.msra.mxu0 %v4224
    %4638 = vmatprep.subr.bf16.mxu0 %v4229
    %4639 = vmatpush1.bf16.msra.mxu0 %v4228
    %4640 = vmatprep.subr.bf16.mxu0 %v4233
    %4641 = vmatpush1.bf16.msra.mxu0 %v4232
    %4642 = vmatprep.subr.bf16.mxu0 %v4237
    %4643 = vmatpush1.bf16.msra.mxu0 %v4236
    %4644 = vmatprep.subr.bf16.mxu0 %v4241
    %4645 = vmatpush1.bf16.msra.mxu0 %v4240
    %4646 = vmatprep.subr.bf16.mxu0 %v4245
    %4647 = vmatpush1.bf16.msra.mxu0 %v4244
    %4648 = vmatprep.subr.bf16.mxu0 %v4249
    %4649 = vmatpush1.bf16.msra.mxu0 %v4248
    %4650 = vmatprep.subr.bf16.mxu0 %v4253
    %4651 = vmatpush1.bf16.msra.mxu0 %v4252
    %4652 = vmatprep.subr.bf16.mxu0 %v4257
    %4653 = vmatpush1.bf16.msra.mxu0 %v4256
    %4654 = vmatprep.subr.bf16.mxu0 %v4261
    %4655 = vmatpush1.bf16.msra.mxu0 %v4260
    %4656 = vmatprep.subr.bf16.mxu0 %v4265
    %4657 = vmatpush1.bf16.msra.mxu0 %v4264
    %4658 = vmatprep.subr.bf16.mxu0 %v4269
    %4659 = vmatpush1.bf16.msra.mxu0 %v4268
    %4660 = vmatprep.subr.bf16.mxu0 %v4273
    %4661 = vmatpush1.bf16.msra.mxu0 %v4272
    %4662 = vmatprep.mubr.bf16.mxu0 %v3659
    %4663 = vmatmul.mubr.bf16.gmra.mrb[0].mxu0 %v3658
    %v4664 = vpop.f32.mrb[0].mxu0
    %v4665 = vadd.f32 %v4624, %v4664
    %v4666 = vpop.f32.mrb[0].mxu0
    %v4667 = vadd.f32 %v4626, %v4666
    %v4668 = vpop.f32.mrb[0].mxu0
    %v4669 = vpop.f32.mrb[0].mxu0
    %4670 = vdwg.mxu0
    %4671 = vmatprep.subr.bf16.mxu0 %v4277
    %4672 = vmatpush1.bf16.msra.mxu0 %v4276
    %4673 = vmatprep.subr.bf16.mxu0 %v4281
    %4674 = vmatpush1.bf16.msra.mxu0 %v4280
    %4675 = vmatprep.subr.bf16.mxu0 %v4285
    %4676 = vmatpush1.bf16.msra.mxu0 %v4284
    %4677 = vmatprep.subr.bf16.mxu0 %v4289
    %4678 = vmatpush1.bf16.msra.mxu0 %v4288
    %4679 = vmatprep.subr.bf16.mxu0 %v4293
    %4680 = vmatpush1.bf16.msra.mxu0 %v4292
    %4681 = vmatprep.subr.bf16.mxu0 %v4297
    %4682 = vmatpush1.bf16.msra.mxu0 %v4296
    %4683 = vmatprep.subr.bf16.mxu0 %v4301
    %4684 = vmatpush1.bf16.msra.mxu0 %v4300
    %4685 = vmatprep.subr.bf16.mxu0 %v4305
    %4686 = vmatpush1.bf16.msra.mxu0 %v4304
    %4687 = vmatprep.subr.bf16.mxu0 0
    %4688 = vmatpush1.bf16.msra.mxu0 0
    %4689 = vmatprep.subr.bf16.mxu0 0
    %4690 = vmatpush1.bf16.msra.mxu0 0
    %4691 = vmatprep.subr.bf16.mxu0 0
    %4692 = vmatpush1.bf16.msra.mxu0 0
    %4693 = vmatprep.subr.bf16.mxu0 0
    %4694 = vmatpush1.bf16.msra.mxu0 0
    %4695 = vmatprep.subr.bf16.mxu0 0
    %4696 = vmatpush1.bf16.msra.mxu0 0
    %4697 = vmatprep.subr.bf16.mxu0 0
    %4698 = vmatpush1.bf16.msra.mxu0 0
    %4699 = vmatprep.subr.bf16.mxu0 0
    %4700 = vmatpush1.bf16.msra.mxu0 0
    %4701 = vmatprep.subr.bf16.mxu0 0
    %4702 = vmatpush1.bf16.msra.mxu0 0
    %4703 = vmatprep.mubr.bf16.mxu0 0
    %4704 = vmatmul.mubr.bf16.gmra.mrb[0].mxu0 %v3660
    %v4705 = vpop.f32.mrb[0].mxu0
    %v4706 = vadd.f32 %v4665, %v4705
    %v4707 = vpop.f32.mrb[0].mxu0
    %v4708 = vadd.f32 %v4667, %v4707
    %v4709 = vpop.f32.mrb[0].mxu0
    %v4710 = vpop.f32.mrb[0].mxu0
    %4711 = vdwg.mxu0
    %v4712 = vrot.slane %v4583, 7
    %v4713 = vrot.slane %v4585, 7
    %v4714 = vsel %vm742, 0.0, %v4712
    %v4715 = vsel %vm742, 0.0, %v4713
    %v4716 = vadd.f32 %v4714, %v4706
    %v4717 = vadd.f32 %v4715, %v4708
    %v4719 = vlaneseq
    %v4720 = vshrl.u32 %v4719, 7
    %v4721 = vsub.s32 0, %v4720
    %v4722 = vrot.slane %v3647, %v4721
    %v4723 = vlaneseq
    %v4724 = vshrl.u32 %v4723, 7
    %v4725 = vsub.s32 1, %v4724
    %v4726 = vrot.slane %v3647, %v4725
    %v4729 = vadd.f32 %v4716, %v4722
    %v4730 = vadd.f32 %v4717, %v4726
    %v4731 = vtanh.pop %v4729
    %v4732 = vxor.u32 %v4730, 2147483648
    %v4733 = vmul.f32 %v4732, 1.442695
    %v4734 = vpow.pop %v4733
    %v4735 = vadd.f32 %v4734, 1.0
    %v4736 = vrcp.pop %v4735
    %v4737 = vmul.f32 1.0, %v4736
    %v4738 = vmul.f32 %v4731, %v4737
    %4739 = vst [vmem:[#allocation21 + $0x28] sm:$0xff] %v4738
    %v4740 = vpack.c.bf16 %v4738, %v4738
    %4741 = vst [vmem:[#allocation2 + $0x14] sm:$0xf] %v4740
    %v4742 = vld [vmem:[#allocation2] sm:$0xff]
    %v4743 = vld [vmem:[#allocation2 + $0x8] sm:$0xff]
    %v4744 = vld [vmem:[#allocation2 + $0x10] sm:$0xff]
    %v4745 = vld [vmem:[#allocation15] sm:$0xff]
    %v4746 = vld [vmem:[#allocation15 + $0x8] sm:$0xff]
    %v4747 = vld [vmem:[#allocation15 + $0x10] sm:$0xff]
    %v4748 = vld [vmem:[#allocation15 + $0x18] sm:$0xff]
    %v4749 = vld [vmem:[#allocation15 + $0x20] sm:$0xff]
    %v4750 = vld [vmem:[#allocation15 + $0x28] sm:$0xff]
    %v4751 = vld [vmem:[#allocation15 + $0x30] sm:$0xff]
    %v4752 = vld [vmem:[#allocation15 + $0x38] sm:$0xff]
    %v4753 = vld [vmem:[#allocation15 + $0x40] sm:$0xff]
    %v4754 = vld [vmem:[#allocation15 + $0x48] sm:$0xff]
    %v4755 = vld [vmem:[#allocation15 + $0x50] sm:$0xff]
    %v4756 = vld [vmem:[#allocation15 + $0x58] sm:$0xff]
    %v4757 = vld [vmem:[#allocation15 + $0x60] sm:$0xff]
    %v4758 = vld [vmem:[#allocation15 + $0x68] sm:$0xff]
    %v4759 = vld [vmem:[#allocation15 + $0x70] sm:$0xff]
    %v4760 = vld [vmem:[#allocation15 + $0x78] sm:$0xff]
    %v4761 = vld [vmem:[#allocation15 + $0x80] sm:$0xff]
    %v4762 = vld [vmem:[#allocation15 + $0x88] sm:$0xff]
    %v4763 = vld [vmem:[#allocation15 + $0x90] sm:$0xff]
    %v4764 = vld [vmem:[#allocation15 + $0x98] sm:$0xff]
    %v4765 = vld [vmem:[#allocation15 + $0xa0] sm:$0xff]
    %v4766 = vld [vmem:[#allocation15 + $0xa8] sm:$0xff]
    %v4767 = vld [vmem:[#allocation15 + $0xb0] sm:$0xff]
    %v4768 = vld [vmem:[#allocation15 + $0xb8] sm:$0xff]
    %v4769 = vld [vmem:[#allocation15 + $0xc0] sm:$0xff]
    %v4770 = vld [vmem:[#allocation15 + $0xc8] sm:$0xff]
    %v4771 = vld [vmem:[#allocation15 + $0xd0] sm:$0xff]
    %v4772 = vld [vmem:[#allocation15 + $0xd8] sm:$0xff]
    %v4773 = vld [vmem:[#allocation15 + $0xe0] sm:$0xff]
    %v4774 = vld [vmem:[#allocation15 + $0xe8] sm:$0xff]
    %v4775 = vld [vmem:[#allocation15 + $0xf0] sm:$0xff]
    %v4776 = vld [vmem:[#allocation15 + $0xf8] sm:$0xff]
    %v4777 = vld [vmem:[#allocation15 + $0x100] sm:$0xff]
    %v4778 = vld [vmem:[#allocation15 + $0x108] sm:$0xff]
    %v4779 = vld [vmem:[#allocation15 + $0x110] sm:$0xff]
    %v4780 = vld [vmem:[#allocation15 + $0x118] sm:$0xff]
    %v4781 = vld [vmem:[#allocation15 + $0x120] sm:$0xff]
    %v4782 = vld [vmem:[#allocation15 + $0x128] sm:$0xff]
    %v4783 = vld [vmem:[#allocation15 + $0x130] sm:$0xff]
    %v4784 = vld [vmem:[#allocation15 + $0x138] sm:$0xff]
    %v4785 = vld [vmem:[#allocation15 + $0x140] sm:$0xff]
    %v4786 = vld [vmem:[#allocation15 + $0x148] sm:$0xff]
    %v4787 = vld [vmem:[#allocation15 + $0x150] sm:$0xff]
    %v4788 = vld [vmem:[#allocation15 + $0x158] sm:$0xff]
    %v4789 = vld [vmem:[#allocation15 + $0x160] sm:$0xff]
    %v4790 = vld [vmem:[#allocation15 + $0x168] sm:$0xff]
    %v4791 = vld [vmem:[#allocation15 + $0x170] sm:$0xff]
    %v4792 = vld [vmem:[#allocation15 + $0x178] sm:$0xff]
    %v4793 = vld [vmem:[#allocation15 + $0x180] sm:$0xff]
    %v4794 = vld [vmem:[#allocation15 + $0x188] sm:$0xff]
    %v4795 = vld [vmem:[#allocation15 + $0x190] sm:$0xff]
    %v4796 = vld [vmem:[#allocation15 + $0x198] sm:$0xff]
    %v4797 = vld [vmem:[#allocation15 + $0x1a0] sm:$0xff]
    %v4798 = vld [vmem:[#allocation15 + $0x1a8] sm:$0xff]
    %v4799 = vld [vmem:[#allocation15 + $0x1b0] sm:$0xff]
    %v4800 = vld [vmem:[#allocation15 + $0x1b8] sm:$0xff]
    %v4801 = vld [vmem:[#allocation15 + $0x1c0] sm:$0xff]
    %v4802 = vld [vmem:[#allocation15 + $0x1c8] sm:$0xff]
    %v4803 = vld [vmem:[#allocation15 + $0x1d0] sm:$0xff]
    %v4804 = vld [vmem:[#allocation15 + $0x1d8] sm:$0xff]
    %v4805 = vld [vmem:[#allocation15 + $0x1e0] sm:$0xff]
    %v4806 = vld [vmem:[#allocation15 + $0x1e8] sm:$0xff]
    %v4807 = vld [vmem:[#allocation15 + $0x1f0] sm:$0xff]
    %v4808 = vld [vmem:[#allocation15 + $0x1f8] sm:$0xff]
    %v4809 = vld [vmem:[#allocation15 + $0x200] sm:$0xff]
    %v4810 = vld [vmem:[#allocation15 + $0x208] sm:$0xff]
    %v4811 = vld [vmem:[#allocation15 + $0x210] sm:$0xff]
    %v4812 = vld [vmem:[#allocation15 + $0x218] sm:$0xff]
    %v4813 = vld [vmem:[#allocation15 + $0x220] sm:$0xff]
    %v4814 = vld [vmem:[#allocation15 + $0x228] sm:$0xff]
    %v4815 = vld [vmem:[#allocation15 + $0x230] sm:$0xff]
    %v4816 = vld [vmem:[#allocation15 + $0x238] sm:$0xff]
    %v4817 = vld [vmem:[#allocation15 + $0x240] sm:$0xff]
    %v4818 = vld [vmem:[#allocation15 + $0x248] sm:$0xff]
    %v4819 = vld [vmem:[#allocation15 + $0x250] sm:$0xff]
    %v4820 = vld [vmem:[#allocation15 + $0x258] sm:$0xff]
    %v4821 = vld [vmem:[#allocation15 + $0x260] sm:$0xff]
    %v4822 = vld [vmem:[#allocation15 + $0x268] sm:$0xff]
    %v4823 = vld [vmem:[#allocation15 + $0x270] sm:$0xff]
    %v4824 = vld [vmem:[#allocation15 + $0x278] sm:$0xff]
    %v4825 = vld [vmem:[#allocation15 + $0x280] sm:$0xff]
    %v4826 = vld [vmem:[#allocation15 + $0x288] sm:$0xff]
    %v4827 = vld [vmem:[#allocation15 + $0x290] sm:$0xff]
    %v4828 = vld [vmem:[#allocation15 + $0x298] sm:$0xff]
    %v4829 = vld [vmem:[#allocation15 + $0x2a0] sm:$0xff]
    %v4830 = vld [vmem:[#allocation15 + $0x2a8] sm:$0xff]
    %v4831 = vld [vmem:[#allocation15 + $0x2b0] sm:$0xff]
    %v4832 = vld [vmem:[#allocation15 + $0x2b8] sm:$0xff]
    %v4833 = vld [vmem:[#allocation15 + $0x2c0] sm:$0xff]
    %v4834 = vld [vmem:[#allocation15 + $0x2c8] sm:$0xff]
    %v4835 = vld [vmem:[#allocation15 + $0x2d0] sm:$0xff]
    %v4836 = vld [vmem:[#allocation15 + $0x2d8] sm:$0xff]
    %v4837 = vld [vmem:[#allocation15 + $0x2e0] sm:$0xff]
    %v4838 = vld [vmem:[#allocation15 + $0x2e8] sm:$0xff]
    %v4839 = vld [vmem:[#allocation15 + $0x2f0] sm:$0xff]
    %v4840 = vld [vmem:[#allocation15 + $0x2f8] sm:$0xff]
    %v4841 = vld [vmem:[#allocation15 + $0x300] sm:$0xff]
    %v4842 = vld [vmem:[#allocation15 + $0x308] sm:$0xff]
    %v4843 = vld [vmem:[#allocation15 + $0x310] sm:$0xff]
    %v4844 = vld [vmem:[#allocation15 + $0x318] sm:$0xff]
    %v4845 = vld [vmem:[#allocation15 + $0x320] sm:$0xff]
    %v4846 = vld [vmem:[#allocation15 + $0x328] sm:$0xff]
    %v4847 = vld [vmem:[#allocation15 + $0x330] sm:$0xff]
    %v4848 = vld [vmem:[#allocation15 + $0x338] sm:$0xff]
    %v4849 = vld [vmem:[#allocation15 + $0x340] sm:$0xff]
    %v4850 = vld [vmem:[#allocation15 + $0x348] sm:$0xff]
    %v4851 = vld [vmem:[#allocation15 + $0x350] sm:$0xff]
    %v4852 = vld [vmem:[#allocation15 + $0x358] sm:$0xff]
    %v4853 = vld [vmem:[#allocation15 + $0x360] sm:$0xff]
    %v4854 = vld [vmem:[#allocation15 + $0x368] sm:$0xff]
    %v4855 = vld [vmem:[#allocation15 + $0x370] sm:$0xff]
    %v4856 = vld [vmem:[#allocation15 + $0x378] sm:$0xff]
    %v4857 = vld [vmem:[#allocation15 + $0x380] sm:$0xff]
    %v4858 = vld [vmem:[#allocation15 + $0x388] sm:$0xff]
    %v4859 = vld [vmem:[#allocation15 + $0x390] sm:$0xff]
    %v4860 = vld [vmem:[#allocation15 + $0x398] sm:$0xff]
    %v4861 = vld [vmem:[#allocation15 + $0x3a0] sm:$0xff]
    %v4862 = vld [vmem:[#allocation15 + $0x3a8] sm:$0xff]
    %v4863 = vld [vmem:[#allocation15 + $0x3b0] sm:$0xff]
    %v4864 = vld [vmem:[#allocation15 + $0x3b8] sm:$0xff]
    %v4865 = vld [vmem:[#allocation15 + $0x3c0] sm:$0xff]
    %v4866 = vld [vmem:[#allocation15 + $0x3c8] sm:$0xff]
    %v4867 = vld [vmem:[#allocation15 + $0x3d0] sm:$0xff]
    %v4868 = vld [vmem:[#allocation15 + $0x3d8] sm:$0xff]
    %v4869 = vld [vmem:[#allocation15 + $0x3e0] sm:$0xff]
    %v4870 = vld [vmem:[#allocation15 + $0x3e8] sm:$0xff]
    %v4871 = vld [vmem:[#allocation15 + $0x3f0] sm:$0xff]
    %v4872 = vld [vmem:[#allocation15 + $0x3f8] sm:$0xff]
    %v4873 = vld [vmem:[#allocation15 + $0x400] sm:$0xff]
    %v4874 = vld [vmem:[#allocation15 + $0x408] sm:$0xff]
    %v4875 = vld [vmem:[#allocation15 + $0x410] sm:$0xff]
    %v4876 = vld [vmem:[#allocation15 + $0x418] sm:$0xff]
    %v4877 = vld [vmem:[#allocation15 + $0x420] sm:$0xff]
    %v4878 = vld [vmem:[#allocation15 + $0x428] sm:$0xff]
    %v4879 = vld [vmem:[#allocation15 + $0x430] sm:$0xff]
    %v4880 = vld [vmem:[#allocation15 + $0x438] sm:$0xff]
    %v4881 = vld [vmem:[#allocation15 + $0x440] sm:$0xff]
    %v4882 = vld [vmem:[#allocation15 + $0x448] sm:$0xff]
    %v4883 = vld [vmem:[#allocation15 + $0x450] sm:$0xff]
    %v4884 = vld [vmem:[#allocation15 + $0x458] sm:$0xff]
    %v4885 = vld [vmem:[#allocation15 + $0x460] sm:$0xff]
    %v4886 = vld [vmem:[#allocation15 + $0x468] sm:$0xff]
    %v4887 = vld [vmem:[#allocation15 + $0x470] sm:$0xff]
    %v4888 = vld [vmem:[#allocation15 + $0x478] sm:$0xff]
    %v4889 = vld [vmem:[#allocation15 + $0x480] sm:$0xff]
    %v4890 = vld [vmem:[#allocation15 + $0x488] sm:$0xff]
    %v4891 = vld [vmem:[#allocation15 + $0x490] sm:$0xff]
    %v4892 = vld [vmem:[#allocation15 + $0x498] sm:$0xff]
    %v4893 = vld [vmem:[#allocation15 + $0x4a0] sm:$0xff]
    %v4894 = vld [vmem:[#allocation15 + $0x4a8] sm:$0xff]
    %v4895 = vld [vmem:[#allocation15 + $0x4b0] sm:$0xff]
    %v4896 = vld [vmem:[#allocation15 + $0x4b8] sm:$0xff]
    %v4897 = vld [vmem:[#allocation15 + $0x4c0] sm:$0xff]
    %v4898 = vld [vmem:[#allocation15 + $0x4c8] sm:$0xff]
    %v4899 = vld [vmem:[#allocation15 + $0x4d0] sm:$0xff]
    %v4900 = vld [vmem:[#allocation15 + $0x4d8] sm:$0xff]
    %v4901 = vld [vmem:[#allocation15 + $0x4e0] sm:$0xff]
    %v4902 = vld [vmem:[#allocation15 + $0x4e8] sm:$0xff]
    %v4903 = vld [vmem:[#allocation15 + $0x4f0] sm:$0xff]
    %v4904 = vld [vmem:[#allocation15 + $0x4f8] sm:$0xff]
    %v4905 = vld [vmem:[#allocation15 + $0x500] sm:$0xff]
    %v4906 = vld [vmem:[#allocation15 + $0x508] sm:$0xff]
    %v4907 = vld [vmem:[#allocation15 + $0x510] sm:$0xff]
    %v4908 = vld [vmem:[#allocation15 + $0x518] sm:$0xff]
    %v4909 = vld [vmem:[#allocation15 + $0x520] sm:$0xff]
    %v4910 = vld [vmem:[#allocation15 + $0x528] sm:$0xff]
    %v4911 = vld [vmem:[#allocation15 + $0x530] sm:$0xff]
    %v4912 = vld [vmem:[#allocation15 + $0x538] sm:$0xff]
    %v4913 = vld [vmem:[#allocation15 + $0x540] sm:$0xff]
    %v4914 = vld [vmem:[#allocation15 + $0x548] sm:$0xff]
    %v4915 = vld [vmem:[#allocation15 + $0x550] sm:$0xff]
    %v4916 = vld [vmem:[#allocation15 + $0x558] sm:$0xff]
    %v4917 = vld [vmem:[#allocation15 + $0x560] sm:$0xff]
    %v4918 = vld [vmem:[#allocation15 + $0x568] sm:$0xff]
    %v4919 = vld [vmem:[#allocation15 + $0x570] sm:$0xff]
    %v4920 = vld [vmem:[#allocation15 + $0x578] sm:$0xff]
    %v4921 = vld [vmem:[#allocation15 + $0x580] sm:$0xff]
    %v4922 = vld [vmem:[#allocation15 + $0x588] sm:$0xff]
    %v4923 = vld [vmem:[#allocation15 + $0x590] sm:$0xff]
    %v4924 = vld [vmem:[#allocation15 + $0x598] sm:$0xff]
    %v4925 = vld [vmem:[#allocation15 + $0x5a0] sm:$0xff]
    %v4926 = vld [vmem:[#allocation15 + $0x5a8] sm:$0xff]
    %v4927 = vld [vmem:[#allocation15 + $0x5b0] sm:$0xff]
    %v4928 = vld [vmem:[#allocation15 + $0x5b8] sm:$0xff]
    %v4929 = vld [vmem:[#allocation15 + $0x5c0] sm:$0xff]
    %v4930 = vld [vmem:[#allocation15 + $0x5c8] sm:$0xff]
    %v4931 = vld [vmem:[#allocation15 + $0x5d0] sm:$0xff]
    %v4932 = vld [vmem:[#allocation15 + $0x5d8] sm:$0xff]
    %v4933 = vld [vmem:[#allocation15 + $0x5e0] sm:$0xff]
    %v4934 = vld [vmem:[#allocation15 + $0x5e8] sm:$0xff]
    %v4935 = vld [vmem:[#allocation15 + $0x5f0] sm:$0xff]
    %v4936 = vld [vmem:[#allocation15 + $0x5f8] sm:$0xff]
    %v4937 = vld [vmem:[#allocation20 + $0xf] sm:$0x3]
    %v4941 = vunpack.c.l.b16 %v4742
    %v4942 = vunpack.c.h.b16 %v4742
    %v4943 = vunpack.c.l.b16 %v4743
    %v4944 = vunpack.c.h.b16 %v4743
    %v4945 = vunpack.c.l.b16 %v4744
    %v4946 = vunpack.c.h.b16 %v4744
    %v4947 = vpack.c.b16 %v4941, %v4941
    %v4948 = vpack.c.b16 %v4942, %v4942
    %v4949 = vpack.c.b16 %v4943, %v4943
    %v4950 = vpack.c.b16 %v4944, %v4944
    %v4951 = vpack.c.b16 %v4945, %v4945
    %v4952 = vpack.c.b16 %v4946, %v4946
    %v5151 = vunpack.c.l.b16 %v4745
    %v5152 = vunpack.c.h.b16 %v4745
    %v5153 = vunpack.c.l.b16 %v4746
    %v5154 = vunpack.c.h.b16 %v4746
    %v5155 = vunpack.c.l.b16 %v4747
    %v5156 = vunpack.c.h.b16 %v4747
    %v5157 = vunpack.c.l.b16 %v4748
    %v5158 = vunpack.c.h.b16 %v4748
    %v5159 = vunpack.c.l.b16 %v4749
    %v5160 = vunpack.c.h.b16 %v4749
    %v5161 = vunpack.c.l.b16 %v4750
    %v5162 = vunpack.c.h.b16 %v4750
    %v5163 = vunpack.c.l.b16 %v4751
    %v5164 = vunpack.c.h.b16 %v4751
    %v5165 = vunpack.c.l.b16 %v4752
    %v5166 = vunpack.c.h.b16 %v4752
    %v5167 = vunpack.c.l.b16 %v4753
    %v5168 = vunpack.c.h.b16 %v4753
    %v5169 = vunpack.c.l.b16 %v4754
    %v5170 = vunpack.c.h.b16 %v4754
    %v5171 = vunpack.c.l.b16 %v4755
    %v5172 = vunpack.c.h.b16 %v4755
    %v5173 = vunpack.c.l.b16 %v4756
    %v5174 = vunpack.c.h.b16 %v4756
    %v5175 = vunpack.c.l.b16 %v4757
    %v5176 = vunpack.c.h.b16 %v4757
    %v5177 = vunpack.c.l.b16 %v4758
    %v5178 = vunpack.c.h.b16 %v4758
    %v5179 = vunpack.c.l.b16 %v4759
    %v5180 = vunpack.c.h.b16 %v4759
    %v5181 = vunpack.c.l.b16 %v4760
    %v5182 = vunpack.c.h.b16 %v4760
    %v5183 = vunpack.c.l.b16 %v4761
    %v5184 = vunpack.c.h.b16 %v4761
    %v5185 = vunpack.c.l.b16 %v4762
    %v5186 = vunpack.c.h.b16 %v4762
    %v5187 = vunpack.c.l.b16 %v4763
    %v5188 = vunpack.c.h.b16 %v4763
    %v5189 = vunpack.c.l.b16 %v4764
    %v5190 = vunpack.c.h.b16 %v4764
    %v5191 = vunpack.c.l.b16 %v4765
    %v5192 = vunpack.c.h.b16 %v4765
    %v5193 = vunpack.c.l.b16 %v4766
    %v5194 = vunpack.c.h.b16 %v4766
    %v5195 = vunpack.c.l.b16 %v4767
    %v5196 = vunpack.c.h.b16 %v4767
    %v5197 = vunpack.c.l.b16 %v4768
    %v5198 = vunpack.c.h.b16 %v4768
    %v5199 = vunpack.c.l.b16 %v4769
    %v5200 = vunpack.c.h.b16 %v4769
    %v5201 = vunpack.c.l.b16 %v4770
    %v5202 = vunpack.c.h.b16 %v4770
    %v5203 = vunpack.c.l.b16 %v4771
    %v5204 = vunpack.c.h.b16 %v4771
    %v5205 = vunpack.c.l.b16 %v4772
    %v5206 = vunpack.c.h.b16 %v4772
    %v5207 = vunpack.c.l.b16 %v4773
    %v5208 = vunpack.c.h.b16 %v4773
    %v5209 = vunpack.c.l.b16 %v4774
    %v5210 = vunpack.c.h.b16 %v4774
    %v5211 = vunpack.c.l.b16 %v4775
    %v5212 = vunpack.c.h.b16 %v4775
    %v5213 = vunpack.c.l.b16 %v4776
    %v5214 = vunpack.c.h.b16 %v4776
    %v5215 = vunpack.c.l.b16 %v4777
    %v5216 = vunpack.c.h.b16 %v4777
    %v5217 = vunpack.c.l.b16 %v4778
    %v5218 = vunpack.c.h.b16 %v4778
    %v5219 = vunpack.c.l.b16 %v4779
    %v5220 = vunpack.c.h.b16 %v4779
    %v5221 = vunpack.c.l.b16 %v4780
    %v5222 = vunpack.c.h.b16 %v4780
    %v5223 = vunpack.c.l.b16 %v4781
    %v5224 = vunpack.c.h.b16 %v4781
    %v5225 = vunpack.c.l.b16 %v4782
    %v5226 = vunpack.c.h.b16 %v4782
    %v5227 = vunpack.c.l.b16 %v4783
    %v5228 = vunpack.c.h.b16 %v4783
    %v5229 = vunpack.c.l.b16 %v4784
    %v5230 = vunpack.c.h.b16 %v4784
    %v5231 = vunpack.c.l.b16 %v4785
    %v5232 = vunpack.c.h.b16 %v4785
    %v5233 = vunpack.c.l.b16 %v4786
    %v5234 = vunpack.c.h.b16 %v4786
    %v5235 = vunpack.c.l.b16 %v4787
    %v5236 = vunpack.c.h.b16 %v4787
    %v5237 = vunpack.c.l.b16 %v4788
    %v5238 = vunpack.c.h.b16 %v4788
    %v5239 = vunpack.c.l.b16 %v4789
    %v5240 = vunpack.c.h.b16 %v4789
    %v5241 = vunpack.c.l.b16 %v4790
    %v5242 = vunpack.c.h.b16 %v4790
    %v5243 = vunpack.c.l.b16 %v4791
    %v5244 = vunpack.c.h.b16 %v4791
    %v5245 = vunpack.c.l.b16 %v4792
    %v5246 = vunpack.c.h.b16 %v4792
    %v5247 = vunpack.c.l.b16 %v4793
    %v5248 = vunpack.c.h.b16 %v4793
    %v5249 = vunpack.c.l.b16 %v4794
    %v5250 = vunpack.c.h.b16 %v4794
    %v5251 = vunpack.c.l.b16 %v4795
    %v5252 = vunpack.c.h.b16 %v4795
    %v5253 = vunpack.c.l.b16 %v4796
    %v5254 = vunpack.c.h.b16 %v4796
    %v5255 = vunpack.c.l.b16 %v4797
    %v5256 = vunpack.c.h.b16 %v4797
    %v5257 = vunpack.c.l.b16 %v4798
    %v5258 = vunpack.c.h.b16 %v4798
    %v5259 = vunpack.c.l.b16 %v4799
    %v5260 = vunpack.c.h.b16 %v4799
    %v5261 = vunpack.c.l.b16 %v4800
    %v5262 = vunpack.c.h.b16 %v4800
    %v5263 = vunpack.c.l.b16 %v4801
    %v5264 = vunpack.c.h.b16 %v4801
    %v5265 = vunpack.c.l.b16 %v4802
    %v5266 = vunpack.c.h.b16 %v4802
    %v5267 = vunpack.c.l.b16 %v4803
    %v5268 = vunpack.c.h.b16 %v4803
    %v5269 = vunpack.c.l.b16 %v4804
    %v5270 = vunpack.c.h.b16 %v4804
    %v5271 = vunpack.c.l.b16 %v4805
    %v5272 = vunpack.c.h.b16 %v4805
    %v5273 = vunpack.c.l.b16 %v4806
    %v5274 = vunpack.c.h.b16 %v4806
    %v5275 = vunpack.c.l.b16 %v4807
    %v5276 = vunpack.c.h.b16 %v4807
    %v5277 = vunpack.c.l.b16 %v4808
    %v5278 = vunpack.c.h.b16 %v4808
    %v5279 = vunpack.c.l.b16 %v4809
    %v5280 = vunpack.c.h.b16 %v4809
    %v5281 = vunpack.c.l.b16 %v4810
    %v5282 = vunpack.c.h.b16 %v4810
    %v5283 = vunpack.c.l.b16 %v4811
    %v5284 = vunpack.c.h.b16 %v4811
    %v5285 = vunpack.c.l.b16 %v4812
    %v5286 = vunpack.c.h.b16 %v4812
    %v5287 = vunpack.c.l.b16 %v4813
    %v5288 = vunpack.c.h.b16 %v4813
    %v5289 = vunpack.c.l.b16 %v4814
    %v5290 = vunpack.c.h.b16 %v4814
    %v5291 = vunpack.c.l.b16 %v4815
    %v5292 = vunpack.c.h.b16 %v4815
    %v5293 = vunpack.c.l.b16 %v4816
    %v5294 = vunpack.c.h.b16 %v4816
    %v5295 = vunpack.c.l.b16 %v4817
    %v5296 = vunpack.c.h.b16 %v4817
    %v5297 = vunpack.c.l.b16 %v4818
    %v5298 = vunpack.c.h.b16 %v4818
    %v5299 = vunpack.c.l.b16 %v4819
    %v5300 = vunpack.c.h.b16 %v4819
    %v5301 = vunpack.c.l.b16 %v4820
    %v5302 = vunpack.c.h.b16 %v4820
    %v5303 = vunpack.c.l.b16 %v4821
    %v5304 = vunpack.c.h.b16 %v4821
    %v5305 = vunpack.c.l.b16 %v4822
    %v5306 = vunpack.c.h.b16 %v4822
    %v5307 = vunpack.c.l.b16 %v4823
    %v5308 = vunpack.c.h.b16 %v4823
    %v5309 = vunpack.c.l.b16 %v4824
    %v5310 = vunpack.c.h.b16 %v4824
    %v5311 = vunpack.c.l.b16 %v4825
    %v5312 = vunpack.c.h.b16 %v4825
    %v5313 = vunpack.c.l.b16 %v4826
    %v5314 = vunpack.c.h.b16 %v4826
    %v5315 = vunpack.c.l.b16 %v4827
    %v5316 = vunpack.c.h.b16 %v4827
    %v5317 = vunpack.c.l.b16 %v4828
    %v5318 = vunpack.c.h.b16 %v4828
    %v5319 = vunpack.c.l.b16 %v4829
    %v5320 = vunpack.c.h.b16 %v4829
    %v5321 = vunpack.c.l.b16 %v4830
    %v5322 = vunpack.c.h.b16 %v4830
    %v5323 = vunpack.c.l.b16 %v4831
    %v5324 = vunpack.c.h.b16 %v4831
    %v5325 = vunpack.c.l.b16 %v4832
    %v5326 = vunpack.c.h.b16 %v4832
    %v5327 = vunpack.c.l.b16 %v4833
    %v5328 = vunpack.c.h.b16 %v4833
    %v5329 = vunpack.c.l.b16 %v4834
    %v5330 = vunpack.c.h.b16 %v4834
    %v5331 = vunpack.c.l.b16 %v4835
    %v5332 = vunpack.c.h.b16 %v4835
    %v5333 = vunpack.c.l.b16 %v4836
    %v5334 = vunpack.c.h.b16 %v4836
    %v5335 = vunpack.c.l.b16 %v4837
    %v5336 = vunpack.c.h.b16 %v4837
    %v5337 = vunpack.c.l.b16 %v4838
    %v5338 = vunpack.c.h.b16 %v4838
    %v5339 = vunpack.c.l.b16 %v4839
    %v5340 = vunpack.c.h.b16 %v4839
    %v5341 = vunpack.c.l.b16 %v4840
    %v5342 = vunpack.c.h.b16 %v4840
    %v5343 = vunpack.c.l.b16 %v4841
    %v5344 = vunpack.c.h.b16 %v4841
    %v5345 = vunpack.c.l.b16 %v4842
    %v5346 = vunpack.c.h.b16 %v4842
    %v5347 = vunpack.c.l.b16 %v4843
    %v5348 = vunpack.c.h.b16 %v4843
    %v5349 = vunpack.c.l.b16 %v4844
    %v5350 = vunpack.c.h.b16 %v4844
    %v5351 = vunpack.c.l.b16 %v4845
    %v5352 = vunpack.c.h.b16 %v4845
    %v5353 = vunpack.c.l.b16 %v4846
    %v5354 = vunpack.c.h.b16 %v4846
    %v5355 = vunpack.c.l.b16 %v4847
    %v5356 = vunpack.c.h.b16 %v4847
    %v5357 = vunpack.c.l.b16 %v4848
    %v5358 = vunpack.c.h.b16 %v4848
    %v5359 = vunpack.c.l.b16 %v4849
    %v5360 = vunpack.c.h.b16 %v4849
    %v5361 = vunpack.c.l.b16 %v4850
    %v5362 = vunpack.c.h.b16 %v4850
    %v5363 = vunpack.c.l.b16 %v4851
    %v5364 = vunpack.c.h.b16 %v4851
    %v5365 = vunpack.c.l.b16 %v4852
    %v5366 = vunpack.c.h.b16 %v4852
    %v5367 = vunpack.c.l.b16 %v4853
    %v5368 = vunpack.c.h.b16 %v4853
    %v5369 = vunpack.c.l.b16 %v4854
    %v5370 = vunpack.c.h.b16 %v4854
    %v5371 = vunpack.c.l.b16 %v4855
    %v5372 = vunpack.c.h.b16 %v4855
    %v5373 = vunpack.c.l.b16 %v4856
    %v5374 = vunpack.c.h.b16 %v4856
    %v5375 = vunpack.c.l.b16 %v4857
    %v5376 = vunpack.c.h.b16 %v4857
    %v5377 = vunpack.c.l.b16 %v4858
    %v5378 = vunpack.c.h.b16 %v4858
    %v5379 = vunpack.c.l.b16 %v4859
    %v5380 = vunpack.c.h.b16 %v4859
    %v5381 = vunpack.c.l.b16 %v4860
    %v5382 = vunpack.c.h.b16 %v4860
    %v5383 = vunpack.c.l.b16 %v4861
    %v5384 = vunpack.c.h.b16 %v4861
    %v5385 = vunpack.c.l.b16 %v4862
    %v5386 = vunpack.c.h.b16 %v4862
    %v5387 = vunpack.c.l.b16 %v4863
    %v5388 = vunpack.c.h.b16 %v4863
    %v5389 = vunpack.c.l.b16 %v4864
    %v5390 = vunpack.c.h.b16 %v4864
    %v5391 = vunpack.c.l.b16 %v4865
    %v5392 = vunpack.c.h.b16 %v4865
    %v5393 = vunpack.c.l.b16 %v4866
    %v5394 = vunpack.c.h.b16 %v4866
    %v5395 = vunpack.c.l.b16 %v4867
    %v5396 = vunpack.c.h.b16 %v4867
    %v5397 = vunpack.c.l.b16 %v4868
    %v5398 = vunpack.c.h.b16 %v4868
    %v5399 = vunpack.c.l.b16 %v4869
    %v5400 = vunpack.c.h.b16 %v4869
    %v5401 = vunpack.c.l.b16 %v4870
    %v5402 = vunpack.c.h.b16 %v4870
    %v5403 = vunpack.c.l.b16 %v4871
    %v5404 = vunpack.c.h.b16 %v4871
    %v5405 = vunpack.c.l.b16 %v4872
    %v5406 = vunpack.c.h.b16 %v4872
    %v5407 = vunpack.c.l.b16 %v4873
    %v5408 = vunpack.c.h.b16 %v4873
    %v5409 = vunpack.c.l.b16 %v4874
    %v5410 = vunpack.c.h.b16 %v4874
    %v5411 = vunpack.c.l.b16 %v4875
    %v5412 = vunpack.c.h.b16 %v4875
    %v5413 = vunpack.c.l.b16 %v4876
    %v5414 = vunpack.c.h.b16 %v4876
    %v5415 = vunpack.c.l.b16 %v4877
    %v5416 = vunpack.c.h.b16 %v4877
    %v5417 = vunpack.c.l.b16 %v4878
    %v5418 = vunpack.c.h.b16 %v4878
    %v5419 = vunpack.c.l.b16 %v4879
    %v5420 = vunpack.c.h.b16 %v4879
    %v5421 = vunpack.c.l.b16 %v4880
    %v5422 = vunpack.c.h.b16 %v4880
    %v5423 = vunpack.c.l.b16 %v4881
    %v5424 = vunpack.c.h.b16 %v4881
    %v5425 = vunpack.c.l.b16 %v4882
    %v5426 = vunpack.c.h.b16 %v4882
    %v5427 = vunpack.c.l.b16 %v4883
    %v5428 = vunpack.c.h.b16 %v4883
    %v5429 = vunpack.c.l.b16 %v4884
    %v5430 = vunpack.c.h.b16 %v4884
    %v5431 = vunpack.c.l.b16 %v4885
    %v5432 = vunpack.c.h.b16 %v4885
    %v5433 = vunpack.c.l.b16 %v4886
    %v5434 = vunpack.c.h.b16 %v4886
    %v5435 = vunpack.c.l.b16 %v4887
    %v5436 = vunpack.c.h.b16 %v4887
    %v5437 = vunpack.c.l.b16 %v4888
    %v5438 = vunpack.c.h.b16 %v4888
    %v5439 = vunpack.c.l.b16 %v4889
    %v5440 = vunpack.c.h.b16 %v4889
    %v5441 = vunpack.c.l.b16 %v4890
    %v5442 = vunpack.c.h.b16 %v4890
    %v5443 = vunpack.c.l.b16 %v4891
    %v5444 = vunpack.c.h.b16 %v4891
    %v5445 = vunpack.c.l.b16 %v4892
    %v5446 = vunpack.c.h.b16 %v4892
    %v5447 = vunpack.c.l.b16 %v4893
    %v5448 = vunpack.c.h.b16 %v4893
    %v5449 = vunpack.c.l.b16 %v4894
    %v5450 = vunpack.c.h.b16 %v4894
    %v5451 = vunpack.c.l.b16 %v4895
    %v5452 = vunpack.c.h.b16 %v4895
    %v5453 = vunpack.c.l.b16 %v4896
    %v5454 = vunpack.c.h.b16 %v4896
    %v5455 = vunpack.c.l.b16 %v4897
    %v5456 = vunpack.c.h.b16 %v4897
    %v5457 = vunpack.c.l.b16 %v4898
    %v5458 = vunpack.c.h.b16 %v4898
    %v5459 = vunpack.c.l.b16 %v4899
    %v5460 = vunpack.c.h.b16 %v4899
    %v5461 = vunpack.c.l.b16 %v4900
    %v5462 = vunpack.c.h.b16 %v4900
    %v5463 = vunpack.c.l.b16 %v4901
    %v5464 = vunpack.c.h.b16 %v4901
    %v5465 = vunpack.c.l.b16 %v4902
    %v5466 = vunpack.c.h.b16 %v4902
    %v5467 = vunpack.c.l.b16 %v4903
    %v5468 = vunpack.c.h.b16 %v4903
    %v5469 = vunpack.c.l.b16 %v4904
    %v5470 = vunpack.c.h.b16 %v4904
    %v5471 = vunpack.c.l.b16 %v4905
    %v5472 = vunpack.c.h.b16 %v4905
    %v5473 = vunpack.c.l.b16 %v4906
    %v5474 = vunpack.c.h.b16 %v4906
    %v5475 = vunpack.c.l.b16 %v4907
    %v5476 = vunpack.c.h.b16 %v4907
    %v5477 = vunpack.c.l.b16 %v4908
    %v5478 = vunpack.c.h.b16 %v4908
    %v5479 = vunpack.c.l.b16 %v4909
    %v5480 = vunpack.c.h.b16 %v4909
    %v5481 = vunpack.c.l.b16 %v4910
    %v5482 = vunpack.c.h.b16 %v4910
    %v5483 = vunpack.c.l.b16 %v4911
    %v5484 = vunpack.c.h.b16 %v4911
    %v5485 = vunpack.c.l.b16 %v4912
    %v5486 = vunpack.c.h.b16 %v4912
    %v5487 = vunpack.c.l.b16 %v4913
    %v5488 = vunpack.c.h.b16 %v4913
    %v5489 = vunpack.c.l.b16 %v4914
    %v5490 = vunpack.c.h.b16 %v4914
    %v5491 = vunpack.c.l.b16 %v4915
    %v5492 = vunpack.c.h.b16 %v4915
    %v5493 = vunpack.c.l.b16 %v4916
    %v5494 = vunpack.c.h.b16 %v4916
    %v5495 = vunpack.c.l.b16 %v4917
    %v5496 = vunpack.c.h.b16 %v4917
    %v5497 = vunpack.c.l.b16 %v4918
    %v5498 = vunpack.c.h.b16 %v4918
    %v5499 = vunpack.c.l.b16 %v4919
    %v5500 = vunpack.c.h.b16 %v4919
    %v5501 = vunpack.c.l.b16 %v4920
    %v5502 = vunpack.c.h.b16 %v4920
    %v5503 = vunpack.c.l.b16 %v4921
    %v5504 = vunpack.c.h.b16 %v4921
    %v5505 = vunpack.c.l.b16 %v4922
    %v5506 = vunpack.c.h.b16 %v4922
    %v5507 = vunpack.c.l.b16 %v4923
    %v5508 = vunpack.c.h.b16 %v4923
    %v5509 = vunpack.c.l.b16 %v4924
    %v5510 = vunpack.c.h.b16 %v4924
    %v5511 = vunpack.c.l.b16 %v4925
    %v5512 = vunpack.c.h.b16 %v4925
    %v5513 = vunpack.c.l.b16 %v4926
    %v5514 = vunpack.c.h.b16 %v4926
    %v5515 = vunpack.c.l.b16 %v4927
    %v5516 = vunpack.c.h.b16 %v4927
    %v5517 = vunpack.c.l.b16 %v4928
    %v5518 = vunpack.c.h.b16 %v4928
    %v5519 = vunpack.c.l.b16 %v4929
    %v5520 = vunpack.c.h.b16 %v4929
    %v5521 = vunpack.c.l.b16 %v4930
    %v5522 = vunpack.c.h.b16 %v4930
    %v5523 = vunpack.c.l.b16 %v4931
    %v5524 = vunpack.c.h.b16 %v4931
    %v5525 = vunpack.c.l.b16 %v4932
    %v5526 = vunpack.c.h.b16 %v4932
    %v5527 = vunpack.c.l.b16 %v4933
    %v5528 = vunpack.c.h.b16 %v4933
    %v5529 = vunpack.c.l.b16 %v4934
    %v5530 = vunpack.c.h.b16 %v4934
    %v5531 = vunpack.c.l.b16 %v4935
    %v5532 = vunpack.c.h.b16 %v4935
    %v5533 = vunpack.c.l.b16 %v4936
    %v5534 = vunpack.c.h.b16 %v4936
    %v5535 = vpack.c.b16 %v5155, %v5151
    %v5536 = vpack.c.b16 %v5156, %v5152
    %v5537 = vpack.c.b16 %v5157, %v5153
    %v5538 = vpack.c.b16 %v5158, %v5154
    %v5539 = vpack.c.b16 %v5163, %v5159
    %v5540 = vpack.c.b16 %v5164, %v5160
    %v5541 = vpack.c.b16 %v5165, %v5161
    %v5542 = vpack.c.b16 %v5166, %v5162
    %v5543 = vpack.c.b16 %v5171, %v5167
    %v5544 = vpack.c.b16 %v5172, %v5168
    %v5545 = vpack.c.b16 %v5173, %v5169
    %v5546 = vpack.c.b16 %v5174, %v5170
    %v5547 = vpack.c.b16 %v5179, %v5175
    %v5548 = vpack.c.b16 %v5180, %v5176
    %v5549 = vpack.c.b16 %v5181, %v5177
    %v5550 = vpack.c.b16 %v5182, %v5178
    %v5551 = vpack.c.b16 %v5187, %v5183
    %v5552 = vpack.c.b16 %v5188, %v5184
    %v5553 = vpack.c.b16 %v5189, %v5185
    %v5554 = vpack.c.b16 %v5190, %v5186
    %v5555 = vpack.c.b16 %v5195, %v5191
    %v5556 = vpack.c.b16 %v5196, %v5192
    %v5557 = vpack.c.b16 %v5197, %v5193
    %v5558 = vpack.c.b16 %v5198, %v5194
    %v5559 = vpack.c.b16 %v5203, %v5199
    %v5560 = vpack.c.b16 %v5204, %v5200
    %v5561 = vpack.c.b16 %v5205, %v5201
    %v5562 = vpack.c.b16 %v5206, %v5202
    %v5563 = vpack.c.b16 %v5211, %v5207
    %v5564 = vpack.c.b16 %v5212, %v5208
    %v5565 = vpack.c.b16 %v5213, %v5209
    %v5566 = vpack.c.b16 %v5214, %v5210
    %v5567 = vpack.c.b16 %v5219, %v5215
    %v5568 = vpack.c.b16 %v5220, %v5216
    %v5569 = vpack.c.b16 %v5221, %v5217
    %v5570 = vpack.c.b16 %v5222, %v5218
    %v5571 = vpack.c.b16 %v5227, %v5223
    %v5572 = vpack.c.b16 %v5228, %v5224
    %v5573 = vpack.c.b16 %v5229, %v5225
    %v5574 = vpack.c.b16 %v5230, %v5226
    %v5575 = vpack.c.b16 %v5235, %v5231
    %v5576 = vpack.c.b16 %v5236, %v5232
    %v5577 = vpack.c.b16 %v5237, %v5233
    %v5578 = vpack.c.b16 %v5238, %v5234
    %v5579 = vpack.c.b16 %v5243, %v5239
    %v5580 = vpack.c.b16 %v5244, %v5240
    %v5581 = vpack.c.b16 %v5245, %v5241
    %v5582 = vpack.c.b16 %v5246, %v5242
    %v5583 = vpack.c.b16 %v5251, %v5247
    %v5584 = vpack.c.b16 %v5252, %v5248
    %v5585 = vpack.c.b16 %v5253, %v5249
    %v5586 = vpack.c.b16 %v5254, %v5250
    %v5587 = vpack.c.b16 %v5259, %v5255
    %v5588 = vpack.c.b16 %v5260, %v5256
    %v5589 = vpack.c.b16 %v5261, %v5257
    %v5590 = vpack.c.b16 %v5262, %v5258
    %v5591 = vpack.c.b16 %v5267, %v5263
    %v5592 = vpack.c.b16 %v5268, %v5264
    %v5593 = vpack.c.b16 %v5269, %v5265
    %v5594 = vpack.c.b16 %v5270, %v5266
    %v5595 = vpack.c.b16 %v5275, %v5271
    %v5596 = vpack.c.b16 %v5276, %v5272
    %v5597 = vpack.c.b16 %v5277, %v5273
    %v5598 = vpack.c.b16 %v5278, %v5274
    %v5599 = vpack.c.b16 %v5283, %v5279
    %v5600 = vpack.c.b16 %v5284, %v5280
    %v5601 = vpack.c.b16 %v5285, %v5281
    %v5602 = vpack.c.b16 %v5286, %v5282
    %v5603 = vpack.c.b16 %v5291, %v5287
    %v5604 = vpack.c.b16 %v5292, %v5288
    %v5605 = vpack.c.b16 %v5293, %v5289
    %v5606 = vpack.c.b16 %v5294, %v5290
    %v5607 = vpack.c.b16 %v5299, %v5295
    %v5608 = vpack.c.b16 %v5300, %v5296
    %v5609 = vpack.c.b16 %v5301, %v5297
    %v5610 = vpack.c.b16 %v5302, %v5298
    %v5611 = vpack.c.b16 %v5307, %v5303
    %v5612 = vpack.c.b16 %v5308, %v5304
    %v5613 = vpack.c.b16 %v5309, %v5305
    %v5614 = vpack.c.b16 %v5310, %v5306
    %v5615 = vpack.c.b16 %v5315, %v5311
    %v5616 = vpack.c.b16 %v5316, %v5312
    %v5617 = vpack.c.b16 %v5317, %v5313
    %v5618 = vpack.c.b16 %v5318, %v5314
    %v5619 = vpack.c.b16 %v5323, %v5319
    %v5620 = vpack.c.b16 %v5324, %v5320
    %v5621 = vpack.c.b16 %v5325, %v5321
    %v5622 = vpack.c.b16 %v5326, %v5322
    %v5623 = vpack.c.b16 %v5331, %v5327
    %v5624 = vpack.c.b16 %v5332, %v5328
    %v5625 = vpack.c.b16 %v5333, %v5329
    %v5626 = vpack.c.b16 %v5334, %v5330
    %v5627 = vpack.c.b16 %v5339, %v5335
    %v5628 = vpack.c.b16 %v5340, %v5336
    %v5629 = vpack.c.b16 %v5341, %v5337
    %v5630 = vpack.c.b16 %v5342, %v5338
    %v5631 = vpack.c.b16 %v5347, %v5343
    %v5632 = vpack.c.b16 %v5348, %v5344
    %v5633 = vpack.c.b16 %v5349, %v5345
    %v5634 = vpack.c.b16 %v5350, %v5346
    %v5635 = vpack.c.b16 %v5355, %v5351
    %v5636 = vpack.c.b16 %v5356, %v5352
    %v5637 = vpack.c.b16 %v5357, %v5353
    %v5638 = vpack.c.b16 %v5358, %v5354
    %v5639 = vpack.c.b16 %v5363, %v5359
    %v5640 = vpack.c.b16 %v5364, %v5360
    %v5641 = vpack.c.b16 %v5365, %v5361
    %v5642 = vpack.c.b16 %v5366, %v5362
    %v5643 = vpack.c.b16 %v5371, %v5367
    %v5644 = vpack.c.b16 %v5372, %v5368
    %v5645 = vpack.c.b16 %v5373, %v5369
    %v5646 = vpack.c.b16 %v5374, %v5370
    %v5647 = vpack.c.b16 %v5379, %v5375
    %v5648 = vpack.c.b16 %v5380, %v5376
    %v5649 = vpack.c.b16 %v5381, %v5377
    %v5650 = vpack.c.b16 %v5382, %v5378
    %v5651 = vpack.c.b16 %v5387, %v5383
    %v5652 = vpack.c.b16 %v5388, %v5384
    %v5653 = vpack.c.b16 %v5389, %v5385
    %v5654 = vpack.c.b16 %v5390, %v5386
    %v5655 = vpack.c.b16 %v5395, %v5391
    %v5656 = vpack.c.b16 %v5396, %v5392
    %v5657 = vpack.c.b16 %v5397, %v5393
    %v5658 = vpack.c.b16 %v5398, %v5394
    %v5659 = vpack.c.b16 %v5403, %v5399
    %v5660 = vpack.c.b16 %v5404, %v5400
    %v5661 = vpack.c.b16 %v5405, %v5401
    %v5662 = vpack.c.b16 %v5406, %v5402
    %v5663 = vpack.c.b16 %v5411, %v5407
    %v5664 = vpack.c.b16 %v5412, %v5408
    %v5665 = vpack.c.b16 %v5413, %v5409
    %v5666 = vpack.c.b16 %v5414, %v5410
    %v5667 = vpack.c.b16 %v5419, %v5415
    %v5668 = vpack.c.b16 %v5420, %v5416
    %v5669 = vpack.c.b16 %v5421, %v5417
    %v5670 = vpack.c.b16 %v5422, %v5418
    %v5671 = vpack.c.b16 %v5427, %v5423
    %v5672 = vpack.c.b16 %v5428, %v5424
    %v5673 = vpack.c.b16 %v5429, %v5425
    %v5674 = vpack.c.b16 %v5430, %v5426
    %v5675 = vpack.c.b16 %v5435, %v5431
    %v5676 = vpack.c.b16 %v5436, %v5432
    %v5677 = vpack.c.b16 %v5437, %v5433
    %v5678 = vpack.c.b16 %v5438, %v5434
    %v5679 = vpack.c.b16 %v5443, %v5439
    %v5680 = vpack.c.b16 %v5444, %v5440
    %v5681 = vpack.c.b16 %v5445, %v5441
    %v5682 = vpack.c.b16 %v5446, %v5442
    %v5683 = vpack.c.b16 %v5451, %v5447
    %v5684 = vpack.c.b16 %v5452, %v5448
    %v5685 = vpack.c.b16 %v5453, %v5449
    %v5686 = vpack.c.b16 %v5454, %v5450
    %v5687 = vpack.c.b16 %v5459, %v5455
    %v5688 = vpack.c.b16 %v5460, %v5456
    %v5689 = vpack.c.b16 %v5461, %v5457
    %v5690 = vpack.c.b16 %v5462, %v5458
    %v5691 = vpack.c.b16 %v5467, %v5463
    %v5692 = vpack.c.b16 %v5468, %v5464
    %v5693 = vpack.c.b16 %v5469, %v5465
    %v5694 = vpack.c.b16 %v5470, %v5466
    %v5695 = vpack.c.b16 %v5475, %v5471
    %v5696 = vpack.c.b16 %v5476, %v5472
    %v5697 = vpack.c.b16 %v5477, %v5473
    %v5698 = vpack.c.b16 %v5478, %v5474
    %v5699 = vpack.c.b16 %v5483, %v5479
    %v5700 = vpack.c.b16 %v5484, %v5480
    %v5701 = vpack.c.b16 %v5485, %v5481
    %v5702 = vpack.c.b16 %v5486, %v5482
    %v5703 = vpack.c.b16 %v5491, %v5487
    %v5704 = vpack.c.b16 %v5492, %v5488
    %v5705 = vpack.c.b16 %v5493, %v5489
    %v5706 = vpack.c.b16 %v5494, %v5490
    %v5707 = vpack.c.b16 %v5499, %v5495
    %v5708 = vpack.c.b16 %v5500, %v5496
    %v5709 = vpack.c.b16 %v5501, %v5497
    %v5710 = vpack.c.b16 %v5502, %v5498
    %v5711 = vpack.c.b16 %v5507, %v5503
    %v5712 = vpack.c.b16 %v5508, %v5504
    %v5713 = vpack.c.b16 %v5509, %v5505
    %v5714 = vpack.c.b16 %v5510, %v5506
    %v5715 = vpack.c.b16 %v5515, %v5511
    %v5716 = vpack.c.b16 %v5516, %v5512
    %v5717 = vpack.c.b16 %v5517, %v5513
    %v5718 = vpack.c.b16 %v5518, %v5514
    %v5719 = vpack.c.b16 %v5523, %v5519
    %v5720 = vpack.c.b16 %v5524, %v5520
    %v5721 = vpack.c.b16 %v5525, %v5521
    %v5722 = vpack.c.b16 %v5526, %v5522
    %v5723 = vpack.c.b16 %v5531, %v5527
    %v5724 = vpack.c.b16 %v5532, %v5528
    %v5725 = vpack.c.b16 %v5533, %v5529
    %v5726 = vpack.c.b16 %v5534, %v5530
    %5919 = vmatprep.subr.bf16.mxu0 %v5536
    %5920 = vmatpush1.bf16.msra.mxu0 %v5535
    %5921 = vmatprep.subr.bf16.mxu0 %v5540
    %5922 = vmatpush1.bf16.msra.mxu0 %v5539
    %5923 = vmatprep.subr.bf16.mxu0 %v5544
    %5924 = vmatpush1.bf16.msra.mxu0 %v5543
    %5925 = vmatprep.subr.bf16.mxu0 %v5548
    %5926 = vmatpush1.bf16.msra.mxu0 %v5547
    %5927 = vmatprep.subr.bf16.mxu0 %v5552
    %5928 = vmatpush1.bf16.msra.mxu0 %v5551
    %5929 = vmatprep.subr.bf16.mxu0 %v5556
    %5930 = vmatpush1.bf16.msra.mxu0 %v5555
    %5931 = vmatprep.subr.bf16.mxu0 %v5560
    %5932 = vmatpush1.bf16.msra.mxu0 %v5559
    %5933 = vmatprep.subr.bf16.mxu0 %v5564
    %5934 = vmatpush1.bf16.msra.mxu0 %v5563
    %5935 = vmatprep.subr.bf16.mxu0 %v5568
    %5936 = vmatpush1.bf16.msra.mxu0 %v5567
    %5937 = vmatprep.subr.bf16.mxu0 %v5572
    %5938 = vmatpush1.bf16.msra.mxu0 %v5571
    %5939 = vmatprep.subr.bf16.mxu0 %v5576
    %5940 = vmatpush1.bf16.msra.mxu0 %v5575
    %5941 = vmatprep.subr.bf16.mxu0 %v5580
    %5942 = vmatpush1.bf16.msra.mxu0 %v5579
    %5943 = vmatprep.subr.bf16.mxu0 %v5584
    %5944 = vmatpush1.bf16.msra.mxu0 %v5583
    %5945 = vmatprep.subr.bf16.mxu0 %v5588
    %5946 = vmatpush1.bf16.msra.mxu0 %v5587
    %5947 = vmatprep.subr.bf16.mxu0 %v5592
    %5948 = vmatpush1.bf16.msra.mxu0 %v5591
    %5949 = vmatprep.subr.bf16.mxu0 %v5596
    %5950 = vmatpush1.bf16.msra.mxu0 %v5595
    %5951 = vmatprep.mubr.bf16.mxu0 %v4948
    %5952 = vmatmul.mubr.bf16.gmra.mrb[0].mxu0 %v4947
    %v5953 = vpop.f32.mrb[0].mxu0
    %v5954 = vadd.f32 0.0, %v5953
    %v5955 = vpop.f32.mrb[0].mxu0
    %v5956 = vadd.f32 0.0, %v5955
    %v5957 = vpop.f32.mrb[0].mxu0
    %v5958 = vpop.f32.mrb[0].mxu0
    %5959 = vdwg.mxu0
    %5960 = vmatprep.subr.bf16.mxu0 %v5600
    %5961 = vmatpush1.bf16.msra.mxu0 %v5599
    %5962 = vmatprep.subr.bf16.mxu0 %v5604
    %5963 = vmatpush1.bf16.msra.mxu0 %v5603
    %5964 = vmatprep.subr.bf16.mxu0 %v5608
    %5965 = vmatpush1.bf16.msra.mxu0 %v5607
    %5966 = vmatprep.subr.bf16.mxu0 %v5612
    %5967 = vmatpush1.bf16.msra.mxu0 %v5611
    %5968 = vmatprep.subr.bf16.mxu0 %v5616
    %5969 = vmatpush1.bf16.msra.mxu0 %v5615
    %5970 = vmatprep.subr.bf16.mxu0 %v5620
    %5971 = vmatpush1.bf16.msra.mxu0 %v5619
    %5972 = vmatprep.subr.bf16.mxu0 %v5624
    %5973 = vmatpush1.bf16.msra.mxu0 %v5623
    %5974 = vmatprep.subr.bf16.mxu0 %v5628
    %5975 = vmatpush1.bf16.msra.mxu0 %v5627
    %5976 = vmatprep.subr.bf16.mxu0 %v5632
    %5977 = vmatpush1.bf16.msra.mxu0 %v5631
    %5978 = vmatprep.subr.bf16.mxu0 %v5636
    %5979 = vmatpush1.bf16.msra.mxu0 %v5635
    %5980 = vmatprep.subr.bf16.mxu0 %v5640
    %5981 = vmatpush1.bf16.msra.mxu0 %v5639
    %5982 = vmatprep.subr.bf16.mxu0 %v5644
    %5983 = vmatpush1.bf16.msra.mxu0 %v5643
    %5984 = vmatprep.subr.bf16.mxu0 %v5648
    %5985 = vmatpush1.bf16.msra.mxu0 %v5647
    %5986 = vmatprep.subr.bf16.mxu0 %v5652
    %5987 = vmatpush1.bf16.msra.mxu0 %v5651
    %5988 = vmatprep.subr.bf16.mxu0 %v5656
    %5989 = vmatpush1.bf16.msra.mxu0 %v5655
    %5990 = vmatprep.subr.bf16.mxu0 %v5660
    %5991 = vmatpush1.bf16.msra.mxu0 %v5659
    %5992 = vmatprep.mubr.bf16.mxu0 %v4950
    %5993 = vmatmul.mubr.bf16.gmra.mrb[0].mxu0 %v4949
    %v5994 = vpop.f32.mrb[0].mxu0
    %v5995 = vadd.f32 %v5954, %v5994
    %v5996 = vpop.f32.mrb[0].mxu0
    %v5997 = vadd.f32 %v5956, %v5996
    %v5998 = vpop.f32.mrb[0].mxu0
    %v5999 = vpop.f32.mrb[0].mxu0
    %6000 = vdwg.mxu0
    %6001 = vmatprep.subr.bf16.mxu0 %v5664
    %6002 = vmatpush1.bf16.msra.mxu0 %v5663
    %6003 = vmatprep.subr.bf16.mxu0 %v5668
    %6004 = vmatpush1.bf16.msra.mxu0 %v5667
    %6005 = vmatprep.subr.bf16.mxu0 %v5672
    %6006 = vmatpush1.bf16.msra.mxu0 %v5671
    %6007 = vmatprep.subr.bf16.mxu0 %v5676
    %6008 = vmatpush1.bf16.msra.mxu0 %v5675
    %6009 = vmatprep.subr.bf16.mxu0 %v5680
    %6010 = vmatpush1.bf16.msra.mxu0 %v5679
    %6011 = vmatprep.subr.bf16.mxu0 %v5684
    %6012 = vmatpush1.bf16.msra.mxu0 %v5683
    %6013 = vmatprep.subr.bf16.mxu0 %v5688
    %6014 = vmatpush1.bf16.msra.mxu0 %v5687
    %6015 = vmatprep.subr.bf16.mxu0 %v5692
    %6016 = vmatpush1.bf16.msra.mxu0 %v5691
    %6017 = vmatprep.subr.bf16.mxu0 %v5696
    %6018 = vmatpush1.bf16.msra.mxu0 %v5695
    %6019 = vmatprep.subr.bf16.mxu0 %v5700
    %6020 = vmatpush1.bf16.msra.mxu0 %v5699
    %6021 = vmatprep.subr.bf16.mxu0 %v5704
    %6022 = vmatpush1.bf16.msra.mxu0 %v5703
    %6023 = vmatprep.subr.bf16.mxu0 %v5708
    %6024 = vmatpush1.bf16.msra.mxu0 %v5707
    %6025 = vmatprep.subr.bf16.mxu0 %v5712
    %6026 = vmatpush1.bf16.msra.mxu0 %v5711
    %6027 = vmatprep.subr.bf16.mxu0 %v5716
    %6028 = vmatpush1.bf16.msra.mxu0 %v5715
    %6029 = vmatprep.subr.bf16.mxu0 %v5720
    %6030 = vmatpush1.bf16.msra.mxu0 %v5719
    %6031 = vmatprep.subr.bf16.mxu0 %v5724
    %6032 = vmatpush1.bf16.msra.mxu0 %v5723
    %6033 = vmatprep.mubr.bf16.mxu0 %v4952
    %6034 = vmatmul.mubr.bf16.gmra.mrb[0].mxu0 %v4951
    %v6035 = vpop.f32.mrb[0].mxu0
    %v6036 = vadd.f32 %v5995, %v6035
    %v6037 = vpop.f32.mrb[0].mxu0
    %v6038 = vadd.f32 %v5997, %v6037
    %v6039 = vpop.f32.mrb[0].mxu0
    %v6040 = vpop.f32.mrb[0].mxu0
    %6041 = vdwg.mxu0
    %6042 = vmatprep.subr.bf16.mxu0 %v5538
    %6043 = vmatpush1.bf16.msra.mxu0 %v5537
    %6044 = vmatprep.subr.bf16.mxu0 %v5542
    %6045 = vmatpush1.bf16.msra.mxu0 %v5541
    %6046 = vmatprep.subr.bf16.mxu0 %v5546
    %6047 = vmatpush1.bf16.msra.mxu0 %v5545
    %6048 = vmatprep.subr.bf16.mxu0 %v5550
    %6049 = vmatpush1.bf16.msra.mxu0 %v5549
    %6050 = vmatprep.subr.bf16.mxu0 %v5554
    %6051 = vmatpush1.bf16.msra.mxu0 %v5553
    %6052 = vmatprep.subr.bf16.mxu0 %v5558
    %6053 = vmatpush1.bf16.msra.mxu0 %v5557
    %6054 = vmatprep.subr.bf16.mxu0 %v5562
    %6055 = vmatpush1.bf16.msra.mxu0 %v5561
    %6056 = vmatprep.subr.bf16.mxu0 %v5566
    %6057 = vmatpush1.bf16.msra.mxu0 %v5565
    %6058 = vmatprep.subr.bf16.mxu0 %v5570
    %6059 = vmatpush1.bf16.msra.mxu0 %v5569
    %6060 = vmatprep.subr.bf16.mxu0 %v5574
    %6061 = vmatpush1.bf16.msra.mxu0 %v5573
    %6062 = vmatprep.subr.bf16.mxu0 %v5578
    %6063 = vmatpush1.bf16.msra.mxu0 %v5577
    %6064 = vmatprep.subr.bf16.mxu0 %v5582
    %6065 = vmatpush1.bf16.msra.mxu0 %v5581
    %6066 = vmatprep.subr.bf16.mxu0 %v5586
    %6067 = vmatpush1.bf16.msra.mxu0 %v5585
    %6068 = vmatprep.subr.bf16.mxu0 %v5590
    %6069 = vmatpush1.bf16.msra.mxu0 %v5589
    %6070 = vmatprep.subr.bf16.mxu0 %v5594
    %6071 = vmatpush1.bf16.msra.mxu0 %v5593
    %6072 = vmatprep.subr.bf16.mxu0 %v5598
    %6073 = vmatpush1.bf16.msra.mxu0 %v5597
    %6074 = vmatprep.mubr.bf16.mxu0 %v4948
    %6075 = vmatmul.mubr.bf16.gmra.mrb[0].mxu0 %v4947
    %v6076 = vpop.f32.mrb[0].mxu0
    %v6077 = vadd.f32 0.0, %v6076
    %v6078 = vpop.f32.mrb[0].mxu0
    %v6079 = vadd.f32 0.0, %v6078
    %v6080 = vpop.f32.mrb[0].mxu0
    %v6081 = vpop.f32.mrb[0].mxu0
    %6082 = vdwg.mxu0
    %6083 = vmatprep.subr.bf16.mxu0 %v5602
    %6084 = vmatpush1.bf16.msra.mxu0 %v5601
    %6085 = vmatprep.subr.bf16.mxu0 %v5606
    %6086 = vmatpush1.bf16.msra.mxu0 %v5605
    %6087 = vmatprep.subr.bf16.mxu0 %v5610
    %6088 = vmatpush1.bf16.msra.mxu0 %v5609
    %6089 = vmatprep.subr.bf16.mxu0 %v5614
    %6090 = vmatpush1.bf16.msra.mxu0 %v5613
    %6091 = vmatprep.subr.bf16.mxu0 %v5618
    %6092 = vmatpush1.bf16.msra.mxu0 %v5617
    %6093 = vmatprep.subr.bf16.mxu0 %v5622
    %6094 = vmatpush1.bf16.msra.mxu0 %v5621
    %6095 = vmatprep.subr.bf16.mxu0 %v5626
    %6096 = vmatpush1.bf16.msra.mxu0 %v5625
    %6097 = vmatprep.subr.bf16.mxu0 %v5630
    %6098 = vmatpush1.bf16.msra.mxu0 %v5629
    %6099 = vmatprep.subr.bf16.mxu0 %v5634
    %6100 = vmatpush1.bf16.msra.mxu0 %v5633
    %6101 = vmatprep.subr.bf16.mxu0 %v5638
    %6102 = vmatpush1.bf16.msra.mxu0 %v5637
    %6103 = vmatprep.subr.bf16.mxu0 %v5642
    %6104 = vmatpush1.bf16.msra.mxu0 %v5641
    %6105 = vmatprep.subr.bf16.mxu0 %v5646
    %6106 = vmatpush1.bf16.msra.mxu0 %v5645
    %6107 = vmatprep.subr.bf16.mxu0 %v5650
    %6108 = vmatpush1.bf16.msra.mxu0 %v5649
    %6109 = vmatprep.subr.bf16.mxu0 %v5654
    %6110 = vmatpush1.bf16.msra.mxu0 %v5653
    %6111 = vmatprep.subr.bf16.mxu0 %v5658
    %6112 = vmatpush1.bf16.msra.mxu0 %v5657
    %6113 = vmatprep.subr.bf16.mxu0 %v5662
    %6114 = vmatpush1.bf16.msra.mxu0 %v5661
    %6115 = vmatprep.mubr.bf16.mxu0 %v4950
    %6116 = vmatmul.mubr.bf16.gmra.mrb[0].mxu0 %v4949
    %v6117 = vpop.f32.mrb[0].mxu0
    %v6118 = vadd.f32 %v6077, %v6117
    %v6119 = vpop.f32.mrb[0].mxu0
    %v6120 = vadd.f32 %v6079, %v6119
    %v6121 = vpop.f32.mrb[0].mxu0
    %v6122 = vpop.f32.mrb[0].mxu0
    %6123 = vdwg.mxu0
    %6124 = vmatprep.subr.bf16.mxu0 %v5666
    %6125 = vmatpush1.bf16.msra.mxu0 %v5665
    %6126 = vmatprep.subr.bf16.mxu0 %v5670
    %6127 = vmatpush1.bf16.msra.mxu0 %v5669
    %6128 = vmatprep.subr.bf16.mxu0 %v5674
    %6129 = vmatpush1.bf16.msra.mxu0 %v5673
    %6130 = vmatprep.subr.bf16.mxu0 %v5678
    %6131 = vmatpush1.bf16.msra.mxu0 %v5677
    %6132 = vmatprep.subr.bf16.mxu0 %v5682
    %6133 = vmatpush1.bf16.msra.mxu0 %v5681
    %6134 = vmatprep.subr.bf16.mxu0 %v5686
    %6135 = vmatpush1.bf16.msra.mxu0 %v5685
    %6136 = vmatprep.subr.bf16.mxu0 %v5690
    %6137 = vmatpush1.bf16.msra.mxu0 %v5689
    %6138 = vmatprep.subr.bf16.mxu0 %v5694
    %6139 = vmatpush1.bf16.msra.mxu0 %v5693
    %6140 = vmatprep.subr.bf16.mxu0 %v5698
    %6141 = vmatpush1.bf16.msra.mxu0 %v5697
    %6142 = vmatprep.subr.bf16.mxu0 %v5702
    %6143 = vmatpush1.bf16.msra.mxu0 %v5701
    %6144 = vmatprep.subr.bf16.mxu0 %v5706
    %6145 = vmatpush1.bf16.msra.mxu0 %v5705
    %6146 = vmatprep.subr.bf16.mxu0 %v5710
    %6147 = vmatpush1.bf16.msra.mxu0 %v5709
    %6148 = vmatprep.subr.bf16.mxu0 %v5714
    %6149 = vmatpush1.bf16.msra.mxu0 %v5713
    %6150 = vmatprep.subr.bf16.mxu0 %v5718
    %6151 = vmatpush1.bf16.msra.mxu0 %v5717
    %6152 = vmatprep.subr.bf16.mxu0 %v5722
    %6153 = vmatpush1.bf16.msra.mxu0 %v5721
    %6154 = vmatprep.subr.bf16.mxu0 %v5726
    %6155 = vmatpush1.bf16.msra.mxu0 %v5725
    %6156 = vmatprep.mubr.bf16.mxu0 %v4952
    %6157 = vmatmul.mubr.bf16.gmra.mrb[0].mxu0 %v4951
    %v6158 = vpop.f32.mrb[0].mxu0
    %v6159 = vadd.f32 %v6118, %v6158
    %v6160 = vpop.f32.mrb[0].mxu0
    %v6161 = vadd.f32 %v6120, %v6160
    %v6162 = vpop.f32.mrb[0].mxu0
    %v6163 = vpop.f32.mrb[0].mxu0
    %6164 = vdwg.mxu0
    %v6165 = vrot.slane %v6036, 6
    %v6166 = vrot.slane %v6038, 6
    %v6167 = vsel %vm1250, 0.0, %v6165
    %v6168 = vsel %vm1250, 0.0, %v6166
    %v6169 = vadd.f32 %v6167, %v6159
    %v6170 = vadd.f32 %v6168, %v6161
    %v6172 = vlaneseq
    %v6173 = vshrl.u32 %v6172, 7
    %v6174 = vsub.s32 0, %v6173
    %v6175 = vrot.slane %v4937, %v6174
    %v6176 = vlaneseq
    %v6177 = vshrl.u32 %v6176, 7
    %v6178 = vsub.s32 1, %v6177
    %v6179 = vrot.slane %v4937, %v6178
    %v6182 = vadd.f32 %v6169, %v6175
    %v6183 = vadd.f32 %v6170, %v6179
    %v6184 = vtanh.pop %v6182
    %v6185 = vxor.u32 %v6183, 2147483648
    %v6186 = vmul.f32 %v6185, 1.442695
    %v6187 = vpow.pop %v6186
    %v6188 = vadd.f32 %v6187, 1.0
    %v6189 = vrcp.pop %v6188
    %v6190 = vmul.f32 1.0, %v6189
    %v6191 = vmul.f32 %v6184, %v6190
    %6192 = vst [vmem:[#allocation21 + $0x30] sm:$0xff] %v6191
    %v6193 = vpack.c.bf16 %v6191, %v6191
    %6194 = vst [vmem:[#allocation2 + $0x18] sm:$0xf] %v6193
    %v6195 = vld [vmem:[#allocation2] sm:$0xff]
    %v6196 = vld [vmem:[#allocation2 + $0x8] sm:$0xff]
    %v6197 = vld [vmem:[#allocation2 + $0x10] sm:$0xff]
    %v6198 = vld [vmem:[#allocation2 + $0x18] sm:$0xf]
    %v6199 = vld [vmem:[#allocation17] sm:$0xff]
    %v6200 = vld [vmem:[#allocation17 + $0x8] sm:$0xff]
    %v6201 = vld [vmem:[#allocation17 + $0x10] sm:$0xff]
    %v6202 = vld [vmem:[#allocation17 + $0x18] sm:$0xff]
    %v6203 = vld [vmem:[#allocation17 + $0x20] sm:$0xff]
    %v6204 = vld [vmem:[#allocation17 + $0x28] sm:$0xff]
    %v6205 = vld [vmem:[#allocation17 + $0x30] sm:$0xff]
    %v6206 = vld [vmem:[#allocation17 + $0x38] sm:$0xff]
    %v6207 = vld [vmem:[#allocation17 + $0x40] sm:$0xff]
    %v6208 = vld [vmem:[#allocation17 + $0x48] sm:$0xff]
    %v6209 = vld [vmem:[#allocation17 + $0x50] sm:$0xff]
    %v6210 = vld [vmem:[#allocation17 + $0x58] sm:$0xff]
    %v6211 = vld [vmem:[#allocation17 + $0x60] sm:$0xff]
    %v6212 = vld [vmem:[#allocation17 + $0x68] sm:$0xff]
    %v6213 = vld [vmem:[#allocation17 + $0x70] sm:$0xff]
    %v6214 = vld [vmem:[#allocation17 + $0x78] sm:$0xff]
    %v6215 = vld [vmem:[#allocation17 + $0x80] sm:$0xff]
    %v6216 = vld [vmem:[#allocation17 + $0x88] sm:$0xff]
    %v6217 = vld [vmem:[#allocation17 + $0x90] sm:$0xff]
    %v6218 = vld [vmem:[#allocation17 + $0x98] sm:$0xff]
    %v6219 = vld [vmem:[#allocation17 + $0xa0] sm:$0xff]
    %v6220 = vld [vmem:[#allocation17 + $0xa8] sm:$0xff]
    %v6221 = vld [vmem:[#allocation17 + $0xb0] sm:$0xff]
    %v6222 = vld [vmem:[#allocation17 + $0xb8] sm:$0xff]
    %v6223 = vld [vmem:[#allocation17 + $0xc0] sm:$0xff]
    %v6224 = vld [vmem:[#allocation17 + $0xc8] sm:$0xff]
    %v6225 = vld [vmem:[#allocation17 + $0xd0] sm:$0xff]
    %v6226 = vld [vmem:[#allocation17 + $0xd8] sm:$0xff]
    %v6227 = vld [vmem:[#allocation17 + $0xe0] sm:$0xff]
    %v6228 = vld [vmem:[#allocation17 + $0xe8] sm:$0xff]
    %v6229 = vld [vmem:[#allocation17 + $0xf0] sm:$0xff]
    %v6230 = vld [vmem:[#allocation17 + $0xf8] sm:$0xff]
    %v6231 = vld [vmem:[#allocation17 + $0x100] sm:$0xff]
    %v6232 = vld [vmem:[#allocation17 + $0x108] sm:$0xff]
    %v6233 = vld [vmem:[#allocation17 + $0x110] sm:$0xff]
    %v6234 = vld [vmem:[#allocation17 + $0x118] sm:$0xff]
    %v6235 = vld [vmem:[#allocation17 + $0x120] sm:$0xff]
    %v6236 = vld [vmem:[#allocation17 + $0x128] sm:$0xff]
    %v6237 = vld [vmem:[#allocation17 + $0x130] sm:$0xff]
    %v6238 = vld [vmem:[#allocation17 + $0x138] sm:$0xff]
    %v6239 = vld [vmem:[#allocation17 + $0x140] sm:$0xff]
    %v6240 = vld [vmem:[#allocation17 + $0x148] sm:$0xff]
    %v6241 = vld [vmem:[#allocation17 + $0x150] sm:$0xff]
    %v6242 = vld [vmem:[#allocation17 + $0x158] sm:$0xff]
    %v6243 = vld [vmem:[#allocation17 + $0x160] sm:$0xff]
    %v6244 = vld [vmem:[#allocation17 + $0x168] sm:$0xff]
    %v6245 = vld [vmem:[#allocation17 + $0x170] sm:$0xff]
    %v6246 = vld [vmem:[#allocation17 + $0x178] sm:$0xff]
    %v6247 = vld [vmem:[#allocation17 + $0x180] sm:$0xff]
    %v6248 = vld [vmem:[#allocation17 + $0x188] sm:$0xff]
    %v6249 = vld [vmem:[#allocation17 + $0x190] sm:$0xff]
    %v6250 = vld [vmem:[#allocation17 + $0x198] sm:$0xff]
    %v6251 = vld [vmem:[#allocation17 + $0x1a0] sm:$0xff]
    %v6252 = vld [vmem:[#allocation17 + $0x1a8] sm:$0xff]
    %v6253 = vld [vmem:[#allocation17 + $0x1b0] sm:$0xff]
    %v6254 = vld [vmem:[#allocation17 + $0x1b8] sm:$0xff]
    %v6255 = vld [vmem:[#allocation17 + $0x1c0] sm:$0xff]
    %v6256 = vld [vmem:[#allocation17 + $0x1c8] sm:$0xff]
    %v6257 = vld [vmem:[#allocation17 + $0x1d0] sm:$0xff]
    %v6258 = vld [vmem:[#allocation17 + $0x1d8] sm:$0xff]
    %v6259 = vld [vmem:[#allocation17 + $0x1e0] sm:$0xff]
    %v6260 = vld [vmem:[#allocation17 + $0x1e8] sm:$0xff]
    %v6261 = vld [vmem:[#allocation17 + $0x1f0] sm:$0xff]
    %v6262 = vld [vmem:[#allocation17 + $0x1f8] sm:$0xff]
    %v6263 = vld [vmem:[#allocation17 + $0x200] sm:$0xff]
    %v6264 = vld [vmem:[#allocation17 + $0x208] sm:$0xff]
    %v6265 = vld [vmem:[#allocation17 + $0x210] sm:$0xff]
    %v6266 = vld [vmem:[#allocation17 + $0x218] sm:$0xff]
    %v6267 = vld [vmem:[#allocation17 + $0x220] sm:$0xff]
    %v6268 = vld [vmem:[#allocation17 + $0x228] sm:$0xff]
    %v6269 = vld [vmem:[#allocation17 + $0x230] sm:$0xff]
    %v6270 = vld [vmem:[#allocation17 + $0x238] sm:$0xff]
    %v6271 = vld [vmem:[#allocation17 + $0x240] sm:$0xff]
    %v6272 = vld [vmem:[#allocation17 + $0x248] sm:$0xff]
    %v6273 = vld [vmem:[#allocation17 + $0x250] sm:$0xff]
    %v6274 = vld [vmem:[#allocation17 + $0x258] sm:$0xff]
    %v6275 = vld [vmem:[#allocation17 + $0x260] sm:$0xff]
    %v6276 = vld [vmem:[#allocation17 + $0x268] sm:$0xff]
    %v6277 = vld [vmem:[#allocation17 + $0x270] sm:$0xff]
    %v6278 = vld [vmem:[#allocation17 + $0x278] sm:$0xff]
    %v6279 = vld [vmem:[#allocation17 + $0x280] sm:$0xff]
    %v6280 = vld [vmem:[#allocation17 + $0x288] sm:$0xff]
    %v6281 = vld [vmem:[#allocation17 + $0x290] sm:$0xff]
    %v6282 = vld [vmem:[#allocation17 + $0x298] sm:$0xff]
    %v6283 = vld [vmem:[#allocation17 + $0x2a0] sm:$0xff]
    %v6284 = vld [vmem:[#allocation17 + $0x2a8] sm:$0xff]
    %v6285 = vld [vmem:[#allocation17 + $0x2b0] sm:$0xff]
    %v6286 = vld [vmem:[#allocation17 + $0x2b8] sm:$0xff]
    %v6287 = vld [vmem:[#allocation17 + $0x2c0] sm:$0xff]
    %v6288 = vld [vmem:[#allocation17 + $0x2c8] sm:$0xff]
    %v6289 = vld [vmem:[#allocation17 + $0x2d0] sm:$0xff]
    %v6290 = vld [vmem:[#allocation17 + $0x2d8] sm:$0xff]
    %v6291 = vld [vmem:[#allocation17 + $0x2e0] sm:$0xff]
    %v6292 = vld [vmem:[#allocation17 + $0x2e8] sm:$0xff]
    %v6293 = vld [vmem:[#allocation17 + $0x2f0] sm:$0xff]
    %v6294 = vld [vmem:[#allocation17 + $0x2f8] sm:$0xff]
    %v6295 = vld [vmem:[#allocation17 + $0x300] sm:$0xff]
    %v6296 = vld [vmem:[#allocation17 + $0x308] sm:$0xff]
    %v6297 = vld [vmem:[#allocation17 + $0x310] sm:$0xff]
    %v6298 = vld [vmem:[#allocation17 + $0x318] sm:$0xff]
    %v6299 = vld [vmem:[#allocation17 + $0x320] sm:$0xff]
    %v6300 = vld [vmem:[#allocation17 + $0x328] sm:$0xff]
    %v6301 = vld [vmem:[#allocation17 + $0x330] sm:$0xff]
    %v6302 = vld [vmem:[#allocation17 + $0x338] sm:$0xff]
    %v6303 = vld [vmem:[#allocation17 + $0x340] sm:$0xff]
    %v6304 = vld [vmem:[#allocation17 + $0x348] sm:$0xff]
    %v6305 = vld [vmem:[#allocation17 + $0x350] sm:$0xff]
    %v6306 = vld [vmem:[#allocation17 + $0x358] sm:$0xff]
    %v6307 = vld [vmem:[#allocation17 + $0x360] sm:$0xff]
    %v6308 = vld [vmem:[#allocation17 + $0x368] sm:$0xff]
    %v6309 = vld [vmem:[#allocation17 + $0x370] sm:$0xff]
    %v6310 = vld [vmem:[#allocation17 + $0x378] sm:$0xff]
    %v6311 = vld [vmem:[#allocation17 + $0x380] sm:$0xff]
    %v6312 = vld [vmem:[#allocation17 + $0x388] sm:$0xff]
    %v6313 = vld [vmem:[#allocation17 + $0x390] sm:$0xff]
    %v6314 = vld [vmem:[#allocation17 + $0x398] sm:$0xff]
    %v6315 = vld [vmem:[#allocation17 + $0x3a0] sm:$0xff]
    %v6316 = vld [vmem:[#allocation17 + $0x3a8] sm:$0xff]
    %v6317 = vld [vmem:[#allocation17 + $0x3b0] sm:$0xff]
    %v6318 = vld [vmem:[#allocation17 + $0x3b8] sm:$0xff]
    %v6319 = vld [vmem:[#allocation17 + $0x3c0] sm:$0xff]
    %v6320 = vld [vmem:[#allocation17 + $0x3c8] sm:$0xff]
    %v6321 = vld [vmem:[#allocation17 + $0x3d0] sm:$0xff]
    %v6322 = vld [vmem:[#allocation17 + $0x3d8] sm:$0xff]
    %v6323 = vld [vmem:[#allocation17 + $0x3e0] sm:$0xff]
    %v6324 = vld [vmem:[#allocation17 + $0x3e8] sm:$0xff]
    %v6325 = vld [vmem:[#allocation17 + $0x3f0] sm:$0xff]
    %v6326 = vld [vmem:[#allocation17 + $0x3f8] sm:$0xff]
    %v6327 = vld [vmem:[#allocation17 + $0x400] sm:$0xff]
    %v6328 = vld [vmem:[#allocation17 + $0x408] sm:$0xff]
    %v6329 = vld [vmem:[#allocation17 + $0x410] sm:$0xff]
    %v6330 = vld [vmem:[#allocation17 + $0x418] sm:$0xff]
    %v6331 = vld [vmem:[#allocation17 + $0x420] sm:$0xff]
    %v6332 = vld [vmem:[#allocation17 + $0x428] sm:$0xff]
    %v6333 = vld [vmem:[#allocation17 + $0x430] sm:$0xff]
    %v6334 = vld [vmem:[#allocation17 + $0x438] sm:$0xff]
    %v6335 = vld [vmem:[#allocation17 + $0x440] sm:$0xff]
    %v6336 = vld [vmem:[#allocation17 + $0x448] sm:$0xff]
    %v6337 = vld [vmem:[#allocation17 + $0x450] sm:$0xff]
    %v6338 = vld [vmem:[#allocation17 + $0x458] sm:$0xff]
    %v6339 = vld [vmem:[#allocation17 + $0x460] sm:$0xff]
    %v6340 = vld [vmem:[#allocation17 + $0x468] sm:$0xff]
    %v6341 = vld [vmem:[#allocation17 + $0x470] sm:$0xff]
    %v6342 = vld [vmem:[#allocation17 + $0x478] sm:$0xff]
    %v6343 = vld [vmem:[#allocation17 + $0x480] sm:$0xff]
    %v6344 = vld [vmem:[#allocation17 + $0x488] sm:$0xff]
    %v6345 = vld [vmem:[#allocation17 + $0x490] sm:$0xff]
    %v6346 = vld [vmem:[#allocation17 + $0x498] sm:$0xff]
    %v6347 = vld [vmem:[#allocation17 + $0x4a0] sm:$0xff]
    %v6348 = vld [vmem:[#allocation17 + $0x4a8] sm:$0xff]
    %v6349 = vld [vmem:[#allocation17 + $0x4b0] sm:$0xff]
    %v6350 = vld [vmem:[#allocation17 + $0x4b8] sm:$0xff]
    %v6351 = vld [vmem:[#allocation17 + $0x4c0] sm:$0xff]
    %v6352 = vld [vmem:[#allocation17 + $0x4c8] sm:$0xff]
    %v6353 = vld [vmem:[#allocation17 + $0x4d0] sm:$0xff]
    %v6354 = vld [vmem:[#allocation17 + $0x4d8] sm:$0xff]
    %v6355 = vld [vmem:[#allocation17 + $0x4e0] sm:$0xff]
    %v6356 = vld [vmem:[#allocation17 + $0x4e8] sm:$0xff]
    %v6357 = vld [vmem:[#allocation17 + $0x4f0] sm:$0xff]
    %v6358 = vld [vmem:[#allocation17 + $0x4f8] sm:$0xff]
    %v6359 = vld [vmem:[#allocation17 + $0x500] sm:$0xff]
    %v6360 = vld [vmem:[#allocation17 + $0x508] sm:$0xff]
    %v6361 = vld [vmem:[#allocation17 + $0x510] sm:$0xff]
    %v6362 = vld [vmem:[#allocation17 + $0x518] sm:$0xff]
    %v6363 = vld [vmem:[#allocation17 + $0x520] sm:$0xff]
    %v6364 = vld [vmem:[#allocation17 + $0x528] sm:$0xff]
    %v6365 = vld [vmem:[#allocation17 + $0x530] sm:$0xff]
    %v6366 = vld [vmem:[#allocation17 + $0x538] sm:$0xff]
    %v6367 = vld [vmem:[#allocation17 + $0x540] sm:$0xff]
    %v6368 = vld [vmem:[#allocation17 + $0x548] sm:$0xff]
    %v6369 = vld [vmem:[#allocation17 + $0x550] sm:$0xff]
    %v6370 = vld [vmem:[#allocation17 + $0x558] sm:$0xff]
    %v6371 = vld [vmem:[#allocation17 + $0x560] sm:$0xff]
    %v6372 = vld [vmem:[#allocation17 + $0x568] sm:$0xff]
    %v6373 = vld [vmem:[#allocation17 + $0x570] sm:$0xff]
    %v6374 = vld [vmem:[#allocation17 + $0x578] sm:$0xff]
    %v6375 = vld [vmem:[#allocation17 + $0x580] sm:$0xff]
    %v6376 = vld [vmem:[#allocation17 + $0x588] sm:$0xff]
    %v6377 = vld [vmem:[#allocation17 + $0x590] sm:$0xff]
    %v6378 = vld [vmem:[#allocation17 + $0x598] sm:$0xff]
    %v6379 = vld [vmem:[#allocation17 + $0x5a0] sm:$0xff]
    %v6380 = vld [vmem:[#allocation17 + $0x5a8] sm:$0xff]
    %v6381 = vld [vmem:[#allocation17 + $0x5b0] sm:$0xff]
    %v6382 = vld [vmem:[#allocation17 + $0x5b8] sm:$0xff]
    %v6383 = vld [vmem:[#allocation17 + $0x5c0] sm:$0xff]
    %v6384 = vld [vmem:[#allocation17 + $0x5c8] sm:$0xff]
    %v6385 = vld [vmem:[#allocation17 + $0x5d0] sm:$0xff]
    %v6386 = vld [vmem:[#allocation17 + $0x5d8] sm:$0xff]
    %v6387 = vld [vmem:[#allocation17 + $0x5e0] sm:$0xff]
    %v6388 = vld [vmem:[#allocation17 + $0x5e8] sm:$0xff]
    %v6389 = vld [vmem:[#allocation17 + $0x5f0] sm:$0xff]
    %v6390 = vld [vmem:[#allocation17 + $0x5f8] sm:$0xff]
    %v6391 = vld [vmem:[#allocation17 + $0x600] sm:$0xff]
    %v6392 = vld [vmem:[#allocation17 + $0x608] sm:$0xff]
    %v6393 = vld [vmem:[#allocation17 + $0x610] sm:$0xff]
    %v6394 = vld [vmem:[#allocation17 + $0x618] sm:$0xff]
    %v6395 = vld [vmem:[#allocation17 + $0x620] sm:$0xff]
    %v6396 = vld [vmem:[#allocation17 + $0x628] sm:$0xff]
    %v6397 = vld [vmem:[#allocation17 + $0x630] sm:$0xff]
    %v6398 = vld [vmem:[#allocation17 + $0x638] sm:$0xff]
    %v6399 = vld [vmem:[#allocation17 + $0x640] sm:$0xff]
    %v6400 = vld [vmem:[#allocation17 + $0x648] sm:$0xff]
    %v6401 = vld [vmem:[#allocation17 + $0x650] sm:$0xff]
    %v6402 = vld [vmem:[#allocation17 + $0x658] sm:$0xff]
    %v6403 = vld [vmem:[#allocation17 + $0x660] sm:$0xff]
    %v6404 = vld [vmem:[#allocation17 + $0x668] sm:$0xff]
    %v6405 = vld [vmem:[#allocation17 + $0x670] sm:$0xff]
    %v6406 = vld [vmem:[#allocation17 + $0x678] sm:$0xff]
    %v6407 = vld [vmem:[#allocation17 + $0x680] sm:$0xff]
    %v6408 = vld [vmem:[#allocation17 + $0x688] sm:$0xff]
    %v6409 = vld [vmem:[#allocation17 + $0x690] sm:$0xff]
    %v6410 = vld [vmem:[#allocation17 + $0x698] sm:$0xff]
    %v6411 = vld [vmem:[#allocation17 + $0x6a0] sm:$0xff]
    %v6412 = vld [vmem:[#allocation17 + $0x6a8] sm:$0xff]
    %v6413 = vld [vmem:[#allocation17 + $0x6b0] sm:$0xff]
    %v6414 = vld [vmem:[#allocation17 + $0x6b8] sm:$0xff]
    %v6415 = vld [vmem:[#allocation17 + $0x6c0] sm:$0xff]
    %v6416 = vld [vmem:[#allocation17 + $0x6c8] sm:$0xff]
    %v6417 = vld [vmem:[#allocation17 + $0x6d0] sm:$0xff]
    %v6418 = vld [vmem:[#allocation17 + $0x6d8] sm:$0xff]
    %v6419 = vld [vmem:[#allocation17 + $0x6e0] sm:$0xff]
    %v6420 = vld [vmem:[#allocation17 + $0x6e8] sm:$0xff]
    %v6421 = vld [vmem:[#allocation17 + $0x6f0] sm:$0xff]
    %v6422 = vld [vmem:[#allocation17 + $0x6f8] sm:$0xff]
    %v6423 = vld [vmem:[#allocation20 + $0x11] sm:$0x3]
    %v6428 = vunpack.c.l.b16 %v6195
    %v6429 = vunpack.c.h.b16 %v6195
    %v6430 = vunpack.c.l.b16 %v6196
    %v6431 = vunpack.c.h.b16 %v6196
    %v6432 = vunpack.c.l.b16 %v6197
    %v6433 = vunpack.c.h.b16 %v6197
    %v6434 = vunpack.c.l.b16 %v6198
    %v6435 = vpack.c.b16 %v6428, %v6428
    %v6436 = vpack.c.b16 %v6429, %v6429
    %v6437 = vpack.c.b16 %v6430, %v6430
    %v6438 = vpack.c.b16 %v6431, %v6431
    %v6439 = vpack.c.b16 %v6432, %v6432
    %v6440 = vpack.c.b16 %v6433, %v6433
    %v6441 = vpack.c.b16 %v6434, %v6434
    %v6673 = vunpack.c.l.b16 %v6199
    %v6674 = vunpack.c.h.b16 %v6199
    %v6675 = vunpack.c.l.b16 %v6200
    %v6676 = vunpack.c.h.b16 %v6200
    %v6677 = vunpack.c.l.b16 %v6201
    %v6678 = vunpack.c.h.b16 %v6201
    %v6679 = vunpack.c.l.b16 %v6202
    %v6680 = vunpack.c.h.b16 %v6202
    %v6681 = vunpack.c.l.b16 %v6203
    %v6682 = vunpack.c.h.b16 %v6203
    %v6683 = vunpack.c.l.b16 %v6204
    %v6684 = vunpack.c.h.b16 %v6204
    %v6685 = vunpack.c.l.b16 %v6205
    %v6686 = vunpack.c.h.b16 %v6205
    %v6687 = vunpack.c.l.b16 %v6206
    %v6688 = vunpack.c.h.b16 %v6206
    %v6689 = vunpack.c.l.b16 %v6207
    %v6690 = vunpack.c.h.b16 %v6207
    %v6691 = vunpack.c.l.b16 %v6208
    %v6692 = vunpack.c.h.b16 %v6208
    %v6693 = vunpack.c.l.b16 %v6209
    %v6694 = vunpack.c.h.b16 %v6209
    %v6695 = vunpack.c.l.b16 %v6210
    %v6696 = vunpack.c.h.b16 %v6210
    %v6697 = vunpack.c.l.b16 %v6211
    %v6698 = vunpack.c.h.b16 %v6211
    %v6699 = vunpack.c.l.b16 %v6212
    %v6700 = vunpack.c.h.b16 %v6212
    %v6701 = vunpack.c.l.b16 %v6213
    %v6702 = vunpack.c.h.b16 %v6213
    %v6703 = vunpack.c.l.b16 %v6214
    %v6704 = vunpack.c.h.b16 %v6214
    %v6705 = vunpack.c.l.b16 %v6215
    %v6706 = vunpack.c.h.b16 %v6215
    %v6707 = vunpack.c.l.b16 %v6216
    %v6708 = vunpack.c.h.b16 %v6216
    %v6709 = vunpack.c.l.b16 %v6217
    %v6710 = vunpack.c.h.b16 %v6217
    %v6711 = vunpack.c.l.b16 %v6218
    %v6712 = vunpack.c.h.b16 %v6218
    %v6713 = vunpack.c.l.b16 %v6219
    %v6714 = vunpack.c.h.b16 %v6219
    %v6715 = vunpack.c.l.b16 %v6220
    %v6716 = vunpack.c.h.b16 %v6220
    %v6717 = vunpack.c.l.b16 %v6221
    %v6718 = vunpack.c.h.b16 %v6221
    %v6719 = vunpack.c.l.b16 %v6222
    %v6720 = vunpack.c.h.b16 %v6222
    %v6721 = vunpack.c.l.b16 %v6223
    %v6722 = vunpack.c.h.b16 %v6223
    %v6723 = vunpack.c.l.b16 %v6224
    %v6724 = vunpack.c.h.b16 %v6224
    %v6725 = vunpack.c.l.b16 %v6225
    %v6726 = vunpack.c.h.b16 %v6225
    %v6727 = vunpack.c.l.b16 %v6226
    %v6728 = vunpack.c.h.b16 %v6226
    %v6729 = vunpack.c.l.b16 %v6227
    %v6730 = vunpack.c.h.b16 %v6227
    %v6731 = vunpack.c.l.b16 %v6228
    %v6732 = vunpack.c.h.b16 %v6228
    %v6733 = vunpack.c.l.b16 %v6229
    %v6734 = vunpack.c.h.b16 %v6229
    %v6735 = vunpack.c.l.b16 %v6230
    %v6736 = vunpack.c.h.b16 %v6230
    %v6737 = vunpack.c.l.b16 %v6231
    %v6738 = vunpack.c.h.b16 %v6231
    %v6739 = vunpack.c.l.b16 %v6232
    %v6740 = vunpack.c.h.b16 %v6232
    %v6741 = vunpack.c.l.b16 %v6233
    %v6742 = vunpack.c.h.b16 %v6233
    %v6743 = vunpack.c.l.b16 %v6234
    %v6744 = vunpack.c.h.b16 %v6234
    %v6745 = vunpack.c.l.b16 %v6235
    %v6746 = vunpack.c.h.b16 %v6235
    %v6747 = vunpack.c.l.b16 %v6236
    %v6748 = vunpack.c.h.b16 %v6236
    %v6749 = vunpack.c.l.b16 %v6237
    %v6750 = vunpack.c.h.b16 %v6237
    %v6751 = vunpack.c.l.b16 %v6238
    %v6752 = vunpack.c.h.b16 %v6238
    %v6753 = vunpack.c.l.b16 %v6239
    %v6754 = vunpack.c.h.b16 %v6239
    %v6755 = vunpack.c.l.b16 %v6240
    %v6756 = vunpack.c.h.b16 %v6240
    %v6757 = vunpack.c.l.b16 %v6241
    %v6758 = vunpack.c.h.b16 %v6241
    %v6759 = vunpack.c.l.b16 %v6242
    %v6760 = vunpack.c.h.b16 %v6242
    %v6761 = vunpack.c.l.b16 %v6243
    %v6762 = vunpack.c.h.b16 %v6243
    %v6763 = vunpack.c.l.b16 %v6244
    %v6764 = vunpack.c.h.b16 %v6244
    %v6765 = vunpack.c.l.b16 %v6245
    %v6766 = vunpack.c.h.b16 %v6245
    %v6767 = vunpack.c.l.b16 %v6246
    %v6768 = vunpack.c.h.b16 %v6246
    %v6769 = vunpack.c.l.b16 %v6247
    %v6770 = vunpack.c.h.b16 %v6247
    %v6771 = vunpack.c.l.b16 %v6248
    %v6772 = vunpack.c.h.b16 %v6248
    %v6773 = vunpack.c.l.b16 %v6249
    %v6774 = vunpack.c.h.b16 %v6249
    %v6775 = vunpack.c.l.b16 %v6250
    %v6776 = vunpack.c.h.b16 %v6250
    %v6777 = vunpack.c.l.b16 %v6251
    %v6778 = vunpack.c.h.b16 %v6251
    %v6779 = vunpack.c.l.b16 %v6252
    %v6780 = vunpack.c.h.b16 %v6252
    %v6781 = vunpack.c.l.b16 %v6253
    %v6782 = vunpack.c.h.b16 %v6253
    %v6783 = vunpack.c.l.b16 %v6254
    %v6784 = vunpack.c.h.b16 %v6254
    %v6785 = vunpack.c.l.b16 %v6255
    %v6786 = vunpack.c.h.b16 %v6255
    %v6787 = vunpack.c.l.b16 %v6256
    %v6788 = vunpack.c.h.b16 %v6256
    %v6789 = vunpack.c.l.b16 %v6257
    %v6790 = vunpack.c.h.b16 %v6257
    %v6791 = vunpack.c.l.b16 %v6258
    %v6792 = vunpack.c.h.b16 %v6258
    %v6793 = vunpack.c.l.b16 %v6259
    %v6794 = vunpack.c.h.b16 %v6259
    %v6795 = vunpack.c.l.b16 %v6260
    %v6796 = vunpack.c.h.b16 %v6260
    %v6797 = vunpack.c.l.b16 %v6261
    %v6798 = vunpack.c.h.b16 %v6261
    %v6799 = vunpack.c.l.b16 %v6262
    %v6800 = vunpack.c.h.b16 %v6262
    %v6801 = vunpack.c.l.b16 %v6263
    %v6802 = vunpack.c.h.b16 %v6263
    %v6803 = vunpack.c.l.b16 %v6264
    %v6804 = vunpack.c.h.b16 %v6264
    %v6805 = vunpack.c.l.b16 %v6265
    %v6806 = vunpack.c.h.b16 %v6265
    %v6807 = vunpack.c.l.b16 %v6266
    %v6808 = vunpack.c.h.b16 %v6266
    %v6809 = vunpack.c.l.b16 %v6267
    %v6810 = vunpack.c.h.b16 %v6267
    %v6811 = vunpack.c.l.b16 %v6268
    %v6812 = vunpack.c.h.b16 %v6268
    %v6813 = vunpack.c.l.b16 %v6269
    %v6814 = vunpack.c.h.b16 %v6269
    %v6815 = vunpack.c.l.b16 %v6270
    %v6816 = vunpack.c.h.b16 %v6270
    %v6817 = vunpack.c.l.b16 %v6271
    %v6818 = vunpack.c.h.b16 %v6271
    %v6819 = vunpack.c.l.b16 %v6272
    %v6820 = vunpack.c.h.b16 %v6272
    %v6821 = vunpack.c.l.b16 %v6273
    %v6822 = vunpack.c.h.b16 %v6273
    %v6823 = vunpack.c.l.b16 %v6274
    %v6824 = vunpack.c.h.b16 %v6274
    %v6825 = vunpack.c.l.b16 %v6275
    %v6826 = vunpack.c.h.b16 %v6275
    %v6827 = vunpack.c.l.b16 %v6276
    %v6828 = vunpack.c.h.b16 %v6276
    %v6829 = vunpack.c.l.b16 %v6277
    %v6830 = vunpack.c.h.b16 %v6277
    %v6831 = vunpack.c.l.b16 %v6278
    %v6832 = vunpack.c.h.b16 %v6278
    %v6833 = vunpack.c.l.b16 %v6279
    %v6834 = vunpack.c.h.b16 %v6279
    %v6835 = vunpack.c.l.b16 %v6280
    %v6836 = vunpack.c.h.b16 %v6280
    %v6837 = vunpack.c.l.b16 %v6281
    %v6838 = vunpack.c.h.b16 %v6281
    %v6839 = vunpack.c.l.b16 %v6282
    %v6840 = vunpack.c.h.b16 %v6282
    %v6841 = vunpack.c.l.b16 %v6283
    %v6842 = vunpack.c.h.b16 %v6283
    %v6843 = vunpack.c.l.b16 %v6284
    %v6844 = vunpack.c.h.b16 %v6284
    %v6845 = vunpack.c.l.b16 %v6285
    %v6846 = vunpack.c.h.b16 %v6285
    %v6847 = vunpack.c.l.b16 %v6286
    %v6848 = vunpack.c.h.b16 %v6286
    %v6849 = vunpack.c.l.b16 %v6287
    %v6850 = vunpack.c.h.b16 %v6287
    %v6851 = vunpack.c.l.b16 %v6288
    %v6852 = vunpack.c.h.b16 %v6288
    %v6853 = vunpack.c.l.b16 %v6289
    %v6854 = vunpack.c.h.b16 %v6289
    %v6855 = vunpack.c.l.b16 %v6290
    %v6856 = vunpack.c.h.b16 %v6290
    %v6857 = vunpack.c.l.b16 %v6291
    %v6858 = vunpack.c.h.b16 %v6291
    %v6859 = vunpack.c.l.b16 %v6292
    %v6860 = vunpack.c.h.b16 %v6292
    %v6861 = vunpack.c.l.b16 %v6293
    %v6862 = vunpack.c.h.b16 %v6293
    %v6863 = vunpack.c.l.b16 %v6294
    %v6864 = vunpack.c.h.b16 %v6294
    %v6865 = vunpack.c.l.b16 %v6295
    %v6866 = vunpack.c.h.b16 %v6295
    %v6867 = vunpack.c.l.b16 %v6296
    %v6868 = vunpack.c.h.b16 %v6296
    %v6869 = vunpack.c.l.b16 %v6297
    %v6870 = vunpack.c.h.b16 %v6297
    %v6871 = vunpack.c.l.b16 %v6298
    %v6872 = vunpack.c.h.b16 %v6298
    %v6873 = vunpack.c.l.b16 %v6299
    %v6874 = vunpack.c.h.b16 %v6299
    %v6875 = vunpack.c.l.b16 %v6300
    %v6876 = vunpack.c.h.b16 %v6300
    %v6877 = vunpack.c.l.b16 %v6301
    %v6878 = vunpack.c.h.b16 %v6301
    %v6879 = vunpack.c.l.b16 %v6302
    %v6880 = vunpack.c.h.b16 %v6302
    %v6881 = vunpack.c.l.b16 %v6303
    %v6882 = vunpack.c.h.b16 %v6303
    %v6883 = vunpack.c.l.b16 %v6304
    %v6884 = vunpack.c.h.b16 %v6304
    %v6885 = vunpack.c.l.b16 %v6305
    %v6886 = vunpack.c.h.b16 %v6305
    %v6887 = vunpack.c.l.b16 %v6306
    %v6888 = vunpack.c.h.b16 %v6306
    %v6889 = vunpack.c.l.b16 %v6307
    %v6890 = vunpack.c.h.b16 %v6307
    %v6891 = vunpack.c.l.b16 %v6308
    %v6892 = vunpack.c.h.b16 %v6308
    %v6893 = vunpack.c.l.b16 %v6309
    %v6894 = vunpack.c.h.b16 %v6309
    %v6895 = vunpack.c.l.b16 %v6310
    %v6896 = vunpack.c.h.b16 %v6310
    %v6897 = vunpack.c.l.b16 %v6311
    %v6898 = vunpack.c.h.b16 %v6311
    %v6899 = vunpack.c.l.b16 %v6312
    %v6900 = vunpack.c.h.b16 %v6312
    %v6901 = vunpack.c.l.b16 %v6313
    %v6902 = vunpack.c.h.b16 %v6313
    %v6903 = vunpack.c.l.b16 %v6314
    %v6904 = vunpack.c.h.b16 %v6314
    %v6905 = vunpack.c.l.b16 %v6315
    %v6906 = vunpack.c.h.b16 %v6315
    %v6907 = vunpack.c.l.b16 %v6316
    %v6908 = vunpack.c.h.b16 %v6316
    %v6909 = vunpack.c.l.b16 %v6317
    %v6910 = vunpack.c.h.b16 %v6317
    %v6911 = vunpack.c.l.b16 %v6318
    %v6912 = vunpack.c.h.b16 %v6318
    %v6913 = vunpack.c.l.b16 %v6319
    %v6914 = vunpack.c.h.b16 %v6319
    %v6915 = vunpack.c.l.b16 %v6320
    %v6916 = vunpack.c.h.b16 %v6320
    %v6917 = vunpack.c.l.b16 %v6321
    %v6918 = vunpack.c.h.b16 %v6321
    %v6919 = vunpack.c.l.b16 %v6322
    %v6920 = vunpack.c.h.b16 %v6322
    %v6921 = vunpack.c.l.b16 %v6323
    %v6922 = vunpack.c.h.b16 %v6323
    %v6923 = vunpack.c.l.b16 %v6324
    %v6924 = vunpack.c.h.b16 %v6324
    %v6925 = vunpack.c.l.b16 %v6325
    %v6926 = vunpack.c.h.b16 %v6325
    %v6927 = vunpack.c.l.b16 %v6326
    %v6928 = vunpack.c.h.b16 %v6326
    %v6929 = vunpack.c.l.b16 %v6327
    %v6930 = vunpack.c.h.b16 %v6327
    %v6931 = vunpack.c.l.b16 %v6328
    %v6932 = vunpack.c.h.b16 %v6328
    %v6933 = vunpack.c.l.b16 %v6329
    %v6934 = vunpack.c.h.b16 %v6329
    %v6935 = vunpack.c.l.b16 %v6330
    %v6936 = vunpack.c.h.b16 %v6330
    %v6937 = vunpack.c.l.b16 %v6331
    %v6938 = vunpack.c.h.b16 %v6331
    %v6939 = vunpack.c.l.b16 %v6332
    %v6940 = vunpack.c.h.b16 %v6332
    %v6941 = vunpack.c.l.b16 %v6333
    %v6942 = vunpack.c.h.b16 %v6333
    %v6943 = vunpack.c.l.b16 %v6334
    %v6944 = vunpack.c.h.b16 %v6334
    %v6945 = vunpack.c.l.b16 %v6335
    %v6946 = vunpack.c.h.b16 %v6335
    %v6947 = vunpack.c.l.b16 %v6336
    %v6948 = vunpack.c.h.b16 %v6336
    %v6949 = vunpack.c.l.b16 %v6337
    %v6950 = vunpack.c.h.b16 %v6337
    %v6951 = vunpack.c.l.b16 %v6338
    %v6952 = vunpack.c.h.b16 %v6338
    %v6953 = vunpack.c.l.b16 %v6339
    %v6954 = vunpack.c.h.b16 %v6339
    %v6955 = vunpack.c.l.b16 %v6340
    %v6956 = vunpack.c.h.b16 %v6340
    %v6957 = vunpack.c.l.b16 %v6341
    %v6958 = vunpack.c.h.b16 %v6341
    %v6959 = vunpack.c.l.b16 %v6342
    %v6960 = vunpack.c.h.b16 %v6342
    %v6961 = vunpack.c.l.b16 %v6343
    %v6962 = vunpack.c.h.b16 %v6343
    %v6963 = vunpack.c.l.b16 %v6344
    %v6964 = vunpack.c.h.b16 %v6344
    %v6965 = vunpack.c.l.b16 %v6345
    %v6966 = vunpack.c.h.b16 %v6345
    %v6967 = vunpack.c.l.b16 %v6346
    %v6968 = vunpack.c.h.b16 %v6346
    %v6969 = vunpack.c.l.b16 %v6347
    %v6970 = vunpack.c.h.b16 %v6347
    %v6971 = vunpack.c.l.b16 %v6348
    %v6972 = vunpack.c.h.b16 %v6348
    %v6973 = vunpack.c.l.b16 %v6349
    %v6974 = vunpack.c.h.b16 %v6349
    %v6975 = vunpack.c.l.b16 %v6350
    %v6976 = vunpack.c.h.b16 %v6350
    %v6977 = vunpack.c.l.b16 %v6351
    %v6978 = vunpack.c.h.b16 %v6351
    %v6979 = vunpack.c.l.b16 %v6352
    %v6980 = vunpack.c.h.b16 %v6352
    %v6981 = vunpack.c.l.b16 %v6353
    %v6982 = vunpack.c.h.b16 %v6353
    %v6983 = vunpack.c.l.b16 %v6354
    %v6984 = vunpack.c.h.b16 %v6354
    %v6985 = vunpack.c.l.b16 %v6355
    %v6986 = vunpack.c.h.b16 %v6355
    %v6987 = vunpack.c.l.b16 %v6356
    %v6988 = vunpack.c.h.b16 %v6356
    %v6989 = vunpack.c.l.b16 %v6357
    %v6990 = vunpack.c.h.b16 %v6357
    %v6991 = vunpack.c.l.b16 %v6358
    %v6992 = vunpack.c.h.b16 %v6358
    %v6993 = vunpack.c.l.b16 %v6359
    %v6994 = vunpack.c.h.b16 %v6359
    %v6995 = vunpack.c.l.b16 %v6360
    %v6996 = vunpack.c.h.b16 %v6360
    %v6997 = vunpack.c.l.b16 %v6361
    %v6998 = vunpack.c.h.b16 %v6361
    %v6999 = vunpack.c.l.b16 %v6362
    %v7000 = vunpack.c.h.b16 %v6362
    %v7001 = vunpack.c.l.b16 %v6363
    %v7002 = vunpack.c.h.b16 %v6363
    %v7003 = vunpack.c.l.b16 %v6364
    %v7004 = vunpack.c.h.b16 %v6364
    %v7005 = vunpack.c.l.b16 %v6365
    %v7006 = vunpack.c.h.b16 %v6365
    %v7007 = vunpack.c.l.b16 %v6366
    %v7008 = vunpack.c.h.b16 %v6366
    %v7009 = vunpack.c.l.b16 %v6367
    %v7010 = vunpack.c.h.b16 %v6367
    %v7011 = vunpack.c.l.b16 %v6368
    %v7012 = vunpack.c.h.b16 %v6368
    %v7013 = vunpack.c.l.b16 %v6369
    %v7014 = vunpack.c.h.b16 %v6369
    %v7015 = vunpack.c.l.b16 %v6370
    %v7016 = vunpack.c.h.b16 %v6370
    %v7017 = vunpack.c.l.b16 %v6371
    %v7018 = vunpack.c.h.b16 %v6371
    %v7019 = vunpack.c.l.b16 %v6372
    %v7020 = vunpack.c.h.b16 %v6372
    %v7021 = vunpack.c.l.b16 %v6373
    %v7022 = vunpack.c.h.b16 %v6373
    %v7023 = vunpack.c.l.b16 %v6374
    %v7024 = vunpack.c.h.b16 %v6374
    %v7025 = vunpack.c.l.b16 %v6375
    %v7026 = vunpack.c.h.b16 %v6375
    %v7027 = vunpack.c.l.b16 %v6376
    %v7028 = vunpack.c.h.b16 %v6376
    %v7029 = vunpack.c.l.b16 %v6377
    %v7030 = vunpack.c.h.b16 %v6377
    %v7031 = vunpack.c.l.b16 %v6378
    %v7032 = vunpack.c.h.b16 %v6378
    %v7033 = vunpack.c.l.b16 %v6379
    %v7034 = vunpack.c.h.b16 %v6379
    %v7035 = vunpack.c.l.b16 %v6380
    %v7036 = vunpack.c.h.b16 %v6380
    %v7037 = vunpack.c.l.b16 %v6381
    %v7038 = vunpack.c.h.b16 %v6381
    %v7039 = vunpack.c.l.b16 %v6382
    %v7040 = vunpack.c.h.b16 %v6382
    %v7041 = vunpack.c.l.b16 %v6383
    %v7042 = vunpack.c.h.b16 %v6383
    %v7043 = vunpack.c.l.b16 %v6384
    %v7044 = vunpack.c.h.b16 %v6384
    %v7045 = vunpack.c.l.b16 %v6385
    %v7046 = vunpack.c.h.b16 %v6385
    %v7047 = vunpack.c.l.b16 %v6386
    %v7048 = vunpack.c.h.b16 %v6386
    %v7049 = vunpack.c.l.b16 %v6387
    %v7050 = vunpack.c.h.b16 %v6387
    %v7051 = vunpack.c.l.b16 %v6388
    %v7052 = vunpack.c.h.b16 %v6388
    %v7053 = vunpack.c.l.b16 %v6389
    %v7054 = vunpack.c.h.b16 %v6389
    %v7055 = vunpack.c.l.b16 %v6390
    %v7056 = vunpack.c.h.b16 %v6390
    %v7057 = vunpack.c.l.b16 %v6391
    %v7058 = vunpack.c.h.b16 %v6391
    %v7059 = vunpack.c.l.b16 %v6392
    %v7060 = vunpack.c.h.b16 %v6392
    %v7061 = vunpack.c.l.b16 %v6393
    %v7062 = vunpack.c.h.b16 %v6393
    %v7063 = vunpack.c.l.b16 %v6394
    %v7064 = vunpack.c.h.b16 %v6394
    %v7065 = vunpack.c.l.b16 %v6395
    %v7066 = vunpack.c.h.b16 %v6395
    %v7067 = vunpack.c.l.b16 %v6396
    %v7068 = vunpack.c.h.b16 %v6396
    %v7069 = vunpack.c.l.b16 %v6397
    %v7070 = vunpack.c.h.b16 %v6397
    %v7071 = vunpack.c.l.b16 %v6398
    %v7072 = vunpack.c.h.b16 %v6398
    %v7073 = vunpack.c.l.b16 %v6399
    %v7074 = vunpack.c.h.b16 %v6399
    %v7075 = vunpack.c.l.b16 %v6400
    %v7076 = vunpack.c.h.b16 %v6400
    %v7077 = vunpack.c.l.b16 %v6401
    %v7078 = vunpack.c.h.b16 %v6401
    %v7079 = vunpack.c.l.b16 %v6402
    %v7080 = vunpack.c.h.b16 %v6402
    %v7081 = vunpack.c.l.b16 %v6403
    %v7082 = vunpack.c.h.b16 %v6403
    %v7083 = vunpack.c.l.b16 %v6404
    %v7084 = vunpack.c.h.b16 %v6404
    %v7085 = vunpack.c.l.b16 %v6405
    %v7086 = vunpack.c.h.b16 %v6405
    %v7087 = vunpack.c.l.b16 %v6406
    %v7088 = vunpack.c.h.b16 %v6406
    %v7089 = vunpack.c.l.b16 %v6407
    %v7090 = vunpack.c.h.b16 %v6407
    %v7091 = vunpack.c.l.b16 %v6408
    %v7092 = vunpack.c.h.b16 %v6408
    %v7093 = vunpack.c.l.b16 %v6409
    %v7094 = vunpack.c.h.b16 %v6409
    %v7095 = vunpack.c.l.b16 %v6410
    %v7096 = vunpack.c.h.b16 %v6410
    %v7097 = vunpack.c.l.b16 %v6411
    %v7098 = vunpack.c.h.b16 %v6411
    %v7099 = vunpack.c.l.b16 %v6412
    %v7100 = vunpack.c.h.b16 %v6412
    %v7101 = vunpack.c.l.b16 %v6413
    %v7102 = vunpack.c.h.b16 %v6413
    %v7103 = vunpack.c.l.b16 %v6414
    %v7104 = vunpack.c.h.b16 %v6414
    %v7105 = vunpack.c.l.b16 %v6415
    %v7106 = vunpack.c.h.b16 %v6415
    %v7107 = vunpack.c.l.b16 %v6416
    %v7108 = vunpack.c.h.b16 %v6416
    %v7109 = vunpack.c.l.b16 %v6417
    %v7110 = vunpack.c.h.b16 %v6417
    %v7111 = vunpack.c.l.b16 %v6418
    %v7112 = vunpack.c.h.b16 %v6418
    %v7113 = vunpack.c.l.b16 %v6419
    %v7114 = vunpack.c.h.b16 %v6419
    %v7115 = vunpack.c.l.b16 %v6420
    %v7116 = vunpack.c.h.b16 %v6420
    %v7117 = vunpack.c.l.b16 %v6421
    %v7118 = vunpack.c.h.b16 %v6421
    %v7119 = vunpack.c.l.b16 %v6422
    %v7120 = vunpack.c.h.b16 %v6422
    %v7121 = vpack.c.b16 %v6677, %v6673
    %v7122 = vpack.c.b16 %v6678, %v6674
    %v7123 = vpack.c.b16 %v6679, %v6675
    %v7124 = vpack.c.b16 %v6680, %v6676
    %v7125 = vpack.c.b16 %v6685, %v6681
    %v7126 = vpack.c.b16 %v6686, %v6682
    %v7127 = vpack.c.b16 %v6687, %v6683
    %v7128 = vpack.c.b16 %v6688, %v6684
    %v7129 = vpack.c.b16 %v6693, %v6689
    %v7130 = vpack.c.b16 %v6694, %v6690
    %v7131 = vpack.c.b16 %v6695, %v6691
    %v7132 = vpack.c.b16 %v6696, %v6692
    %v7133 = vpack.c.b16 %v6701, %v6697
    %v7134 = vpack.c.b16 %v6702, %v6698
    %v7135 = vpack.c.b16 %v6703, %v6699
    %v7136 = vpack.c.b16 %v6704, %v6700
    %v7137 = vpack.c.b16 %v6709, %v6705
    %v7138 = vpack.c.b16 %v6710, %v6706
    %v7139 = vpack.c.b16 %v6711, %v6707
    %v7140 = vpack.c.b16 %v6712, %v6708
    %v7141 = vpack.c.b16 %v6717, %v6713
    %v7142 = vpack.c.b16 %v6718, %v6714
    %v7143 = vpack.c.b16 %v6719, %v6715
    %v7144 = vpack.c.b16 %v6720, %v6716
    %v7145 = vpack.c.b16 %v6725, %v6721
    %v7146 = vpack.c.b16 %v6726, %v6722
    %v7147 = vpack.c.b16 %v6727, %v6723
    %v7148 = vpack.c.b16 %v6728, %v6724
    %v7149 = vpack.c.b16 %v6733, %v6729
    %v7150 = vpack.c.b16 %v6734, %v6730
    %v7151 = vpack.c.b16 %v6735, %v6731
    %v7152 = vpack.c.b16 %v6736, %v6732
    %v7153 = vpack.c.b16 %v6741, %v6737
    %v7154 = vpack.c.b16 %v6742, %v6738
    %v7155 = vpack.c.b16 %v6743, %v6739
    %v7156 = vpack.c.b16 %v6744, %v6740
    %v7157 = vpack.c.b16 %v6749, %v6745
    %v7158 = vpack.c.b16 %v6750, %v6746
    %v7159 = vpack.c.b16 %v6751, %v6747
    %v7160 = vpack.c.b16 %v6752, %v6748
    %v7161 = vpack.c.b16 %v6757, %v6753
    %v7162 = vpack.c.b16 %v6758, %v6754
    %v7163 = vpack.c.b16 %v6759, %v6755
    %v7164 = vpack.c.b16 %v6760, %v6756
    %v7165 = vpack.c.b16 %v6765, %v6761
    %v7166 = vpack.c.b16 %v6766, %v6762
    %v7167 = vpack.c.b16 %v6767, %v6763
    %v7168 = vpack.c.b16 %v6768, %v6764
    %v7169 = vpack.c.b16 %v6773, %v6769
    %v7170 = vpack.c.b16 %v6774, %v6770
    %v7171 = vpack.c.b16 %v6775, %v6771
    %v7172 = vpack.c.b16 %v6776, %v6772
    %v7173 = vpack.c.b16 %v6781, %v6777
    %v7174 = vpack.c.b16 %v6782, %v6778
    %v7175 = vpack.c.b16 %v6783, %v6779
    %v7176 = vpack.c.b16 %v6784, %v6780
    %v7177 = vpack.c.b16 %v6789, %v6785
    %v7178 = vpack.c.b16 %v6790, %v6786
    %v7179 = vpack.c.b16 %v6791, %v6787
    %v7180 = vpack.c.b16 %v6792, %v6788
    %v7181 = vpack.c.b16 %v6797, %v6793
    %v7182 = vpack.c.b16 %v6798, %v6794
    %v7183 = vpack.c.b16 %v6799, %v6795
    %v7184 = vpack.c.b16 %v6800, %v6796
    %v7185 = vpack.c.b16 %v6805, %v6801
    %v7186 = vpack.c.b16 %v6806, %v6802
    %v7187 = vpack.c.b16 %v6807, %v6803
    %v7188 = vpack.c.b16 %v6808, %v6804
    %v7189 = vpack.c.b16 %v6813, %v6809
    %v7190 = vpack.c.b16 %v6814, %v6810
    %v7191 = vpack.c.b16 %v6815, %v6811
    %v7192 = vpack.c.b16 %v6816, %v6812
    %v7193 = vpack.c.b16 %v6821, %v6817
    %v7194 = vpack.c.b16 %v6822, %v6818
    %v7195 = vpack.c.b16 %v6823, %v6819
    %v7196 = vpack.c.b16 %v6824, %v6820
    %v7197 = vpack.c.b16 %v6829, %v6825
    %v7198 = vpack.c.b16 %v6830, %v6826
    %v7199 = vpack.c.b16 %v6831, %v6827
    %v7200 = vpack.c.b16 %v6832, %v6828
    %v7201 = vpack.c.b16 %v6837, %v6833
    %v7202 = vpack.c.b16 %v6838, %v6834
    %v7203 = vpack.c.b16 %v6839, %v6835
    %v7204 = vpack.c.b16 %v6840, %v6836
    %v7205 = vpack.c.b16 %v6845, %v6841
    %v7206 = vpack.c.b16 %v6846, %v6842
    %v7207 = vpack.c.b16 %v6847, %v6843
    %v7208 = vpack.c.b16 %v6848, %v6844
    %v7209 = vpack.c.b16 %v6853, %v6849
    %v7210 = vpack.c.b16 %v6854, %v6850
    %v7211 = vpack.c.b16 %v6855, %v6851
    %v7212 = vpack.c.b16 %v6856, %v6852
    %v7213 = vpack.c.b16 %v6861, %v6857
    %v7214 = vpack.c.b16 %v6862, %v6858
    %v7215 = vpack.c.b16 %v6863, %v6859
    %v7216 = vpack.c.b16 %v6864, %v6860
    %v7217 = vpack.c.b16 %v6869, %v6865
    %v7218 = vpack.c.b16 %v6870, %v6866
    %v7219 = vpack.c.b16 %v6871, %v6867
    %v7220 = vpack.c.b16 %v6872, %v6868
    %v7221 = vpack.c.b16 %v6877, %v6873
    %v7222 = vpack.c.b16 %v6878, %v6874
    %v7223 = vpack.c.b16 %v6879, %v6875
    %v7224 = vpack.c.b16 %v6880, %v6876
    %v7225 = vpack.c.b16 %v6885, %v6881
    %v7226 = vpack.c.b16 %v6886, %v6882
    %v7227 = vpack.c.b16 %v6887, %v6883
    %v7228 = vpack.c.b16 %v6888, %v6884
    %v7229 = vpack.c.b16 %v6893, %v6889
    %v7230 = vpack.c.b16 %v6894, %v6890
    %v7231 = vpack.c.b16 %v6895, %v6891
    %v7232 = vpack.c.b16 %v6896, %v6892
    %v7233 = vpack.c.b16 %v6901, %v6897
    %v7234 = vpack.c.b16 %v6902, %v6898
    %v7235 = vpack.c.b16 %v6903, %v6899
    %v7236 = vpack.c.b16 %v6904, %v6900
    %v7237 = vpack.c.b16 %v6909, %v6905
    %v7238 = vpack.c.b16 %v6910, %v6906
    %v7239 = vpack.c.b16 %v6911, %v6907
    %v7240 = vpack.c.b16 %v6912, %v6908
    %v7241 = vpack.c.b16 %v6917, %v6913
    %v7242 = vpack.c.b16 %v6918, %v6914
    %v7243 = vpack.c.b16 %v6919, %v6915
    %v7244 = vpack.c.b16 %v6920, %v6916
    %v7245 = vpack.c.b16 %v6925, %v6921
    %v7246 = vpack.c.b16 %v6926, %v6922
    %v7247 = vpack.c.b16 %v6927, %v6923
    %v7248 = vpack.c.b16 %v6928, %v6924
    %v7249 = vpack.c.b16 %v6933, %v6929
    %v7250 = vpack.c.b16 %v6934, %v6930
    %v7251 = vpack.c.b16 %v6935, %v6931
    %v7252 = vpack.c.b16 %v6936, %v6932
    %v7253 = vpack.c.b16 %v6941, %v6937
    %v7254 = vpack.c.b16 %v6942, %v6938
    %v7255 = vpack.c.b16 %v6943, %v6939
    %v7256 = vpack.c.b16 %v6944, %v6940
    %v7257 = vpack.c.b16 %v6949, %v6945
    %v7258 = vpack.c.b16 %v6950, %v6946
    %v7259 = vpack.c.b16 %v6951, %v6947
    %v7260 = vpack.c.b16 %v6952, %v6948
    %v7261 = vpack.c.b16 %v6957, %v6953
    %v7262 = vpack.c.b16 %v6958, %v6954
    %v7263 = vpack.c.b16 %v6959, %v6955
    %v7264 = vpack.c.b16 %v6960, %v6956
    %v7265 = vpack.c.b16 %v6965, %v6961
    %v7266 = vpack.c.b16 %v6966, %v6962
    %v7267 = vpack.c.b16 %v6967, %v6963
    %v7268 = vpack.c.b16 %v6968, %v6964
    %v7269 = vpack.c.b16 %v6973, %v6969
    %v7270 = vpack.c.b16 %v6974, %v6970
    %v7271 = vpack.c.b16 %v6975, %v6971
    %v7272 = vpack.c.b16 %v6976, %v6972
    %v7273 = vpack.c.b16 %v6981, %v6977
    %v7274 = vpack.c.b16 %v6982, %v6978
    %v7275 = vpack.c.b16 %v6983, %v6979
    %v7276 = vpack.c.b16 %v6984, %v6980
    %v7277 = vpack.c.b16 %v6989, %v6985
    %v7278 = vpack.c.b16 %v6990, %v6986
    %v7279 = vpack.c.b16 %v6991, %v6987
    %v7280 = vpack.c.b16 %v6992, %v6988
    %v7281 = vpack.c.b16 %v6997, %v6993
    %v7282 = vpack.c.b16 %v6998, %v6994
    %v7283 = vpack.c.b16 %v6999, %v6995
    %v7284 = vpack.c.b16 %v7000, %v6996
    %v7285 = vpack.c.b16 %v7005, %v7001
    %v7286 = vpack.c.b16 %v7006, %v7002
    %v7287 = vpack.c.b16 %v7007, %v7003
    %v7288 = vpack.c.b16 %v7008, %v7004
    %v7289 = vpack.c.b16 %v7013, %v7009
    %v7290 = vpack.c.b16 %v7014, %v7010
    %v7291 = vpack.c.b16 %v7015, %v7011
    %v7292 = vpack.c.b16 %v7016, %v7012
    %v7293 = vpack.c.b16 %v7021, %v7017
    %v7294 = vpack.c.b16 %v7022, %v7018
    %v7295 = vpack.c.b16 %v7023, %v7019
    %v7296 = vpack.c.b16 %v7024, %v7020
    %v7297 = vpack.c.b16 %v7029, %v7025
    %v7298 = vpack.c.b16 %v7030, %v7026
    %v7299 = vpack.c.b16 %v7031, %v7027
    %v7300 = vpack.c.b16 %v7032, %v7028
    %v7301 = vpack.c.b16 %v7037, %v7033
    %v7302 = vpack.c.b16 %v7038, %v7034
    %v7303 = vpack.c.b16 %v7039, %v7035
    %v7304 = vpack.c.b16 %v7040, %v7036
    %v7305 = vpack.c.b16 %v7045, %v7041
    %v7306 = vpack.c.b16 %v7046, %v7042
    %v7307 = vpack.c.b16 %v7047, %v7043
    %v7308 = vpack.c.b16 %v7048, %v7044
    %v7309 = vpack.c.b16 %v7053, %v7049
    %v7310 = vpack.c.b16 %v7054, %v7050
    %v7311 = vpack.c.b16 %v7055, %v7051
    %v7312 = vpack.c.b16 %v7056, %v7052
    %v7313 = vpack.c.b16 %v7061, %v7057
    %v7314 = vpack.c.b16 %v7062, %v7058
    %v7315 = vpack.c.b16 %v7063, %v7059
    %v7316 = vpack.c.b16 %v7064, %v7060
    %v7317 = vpack.c.b16 %v7069, %v7065
    %v7318 = vpack.c.b16 %v7070, %v7066
    %v7319 = vpack.c.b16 %v7071, %v7067
    %v7320 = vpack.c.b16 %v7072, %v7068
    %v7321 = vpack.c.b16 %v7077, %v7073
    %v7322 = vpack.c.b16 %v7078, %v7074
    %v7323 = vpack.c.b16 %v7079, %v7075
    %v7324 = vpack.c.b16 %v7080, %v7076
    %v7325 = vpack.c.b16 %v7085, %v7081
    %v7326 = vpack.c.b16 %v7086, %v7082
    %v7327 = vpack.c.b16 %v7087, %v7083
    %v7328 = vpack.c.b16 %v7088, %v7084
    %v7329 = vpack.c.b16 %v7093, %v7089
    %v7330 = vpack.c.b16 %v7094, %v7090
    %v7331 = vpack.c.b16 %v7095, %v7091
    %v7332 = vpack.c.b16 %v7096, %v7092
    %v7333 = vpack.c.b16 %v7101, %v7097
    %v7334 = vpack.c.b16 %v7102, %v7098
    %v7335 = vpack.c.b16 %v7103, %v7099
    %v7336 = vpack.c.b16 %v7104, %v7100
    %v7337 = vpack.c.b16 %v7109, %v7105
    %v7338 = vpack.c.b16 %v7110, %v7106
    %v7339 = vpack.c.b16 %v7111, %v7107
    %v7340 = vpack.c.b16 %v7112, %v7108
    %v7341 = vpack.c.b16 %v7117, %v7113
    %v7342 = vpack.c.b16 %v7118, %v7114
    %v7343 = vpack.c.b16 %v7119, %v7115
    %v7344 = vpack.c.b16 %v7120, %v7116
    %7569 = vmatprep.subr.bf16.mxu0 %v7122
    %7570 = vmatpush1.bf16.msra.mxu0 %v7121
    %7571 = vmatprep.subr.bf16.mxu0 %v7126
    %7572 = vmatpush1.bf16.msra.mxu0 %v7125
    %7573 = vmatprep.subr.bf16.mxu0 %v7130
    %7574 = vmatpush1.bf16.msra.mxu0 %v7129
    %7575 = vmatprep.subr.bf16.mxu0 %v7134
    %7576 = vmatpush1.bf16.msra.mxu0 %v7133
    %7577 = vmatprep.subr.bf16.mxu0 %v7138
    %7578 = vmatpush1.bf16.msra.mxu0 %v7137
    %7579 = vmatprep.subr.bf16.mxu0 %v7142
    %7580 = vmatpush1.bf16.msra.mxu0 %v7141
    %7581 = vmatprep.subr.bf16.mxu0 %v7146
    %7582 = vmatpush1.bf16.msra.mxu0 %v7145
    %7583 = vmatprep.subr.bf16.mxu0 %v7150
    %7584 = vmatpush1.bf16.msra.mxu0 %v7149
    %7585 = vmatprep.subr.bf16.mxu0 %v7154
    %7586 = vmatpush1.bf16.msra.mxu0 %v7153
    %7587 = vmatprep.subr.bf16.mxu0 %v7158
    %7588 = vmatpush1.bf16.msra.mxu0 %v7157
    %7589 = vmatprep.subr.bf16.mxu0 %v7162
    %7590 = vmatpush1.bf16.msra.mxu0 %v7161
    %7591 = vmatprep.subr.bf16.mxu0 %v7166
    %7592 = vmatpush1.bf16.msra.mxu0 %v7165
    %7593 = vmatprep.subr.bf16.mxu0 %v7170
    %7594 = vmatpush1.bf16.msra.mxu0 %v7169
    %7595 = vmatprep.subr.bf16.mxu0 %v7174
    %7596 = vmatpush1.bf16.msra.mxu0 %v7173
    %7597 = vmatprep.subr.bf16.mxu0 %v7178
    %7598 = vmatpush1.bf16.msra.mxu0 %v7177
    %7599 = vmatprep.subr.bf16.mxu0 %v7182
    %7600 = vmatpush1.bf16.msra.mxu0 %v7181
    %7601 = vmatprep.mubr.bf16.mxu0 %v6436
    %7602 = vmatmul.mubr.bf16.gmra.mrb[0].mxu0 %v6435
    %v7603 = vpop.f32.mrb[0].mxu0
    %v7604 = vadd.f32 0.0, %v7603
    %v7605 = vpop.f32.mrb[0].mxu0
    %v7606 = vadd.f32 0.0, %v7605
    %v7607 = vpop.f32.mrb[0].mxu0
    %v7608 = vpop.f32.mrb[0].mxu0
    %7609 = vdwg.mxu0
    %7610 = vmatprep.subr.bf16.mxu0 %v7186
    %7611 = vmatpush1.bf16.msra.mxu0 %v7185
    %7612 = vmatprep.subr.bf16.mxu0 %v7190
    %7613 = vmatpush1.bf16.msra.mxu0 %v7189
    %7614 = vmatprep.subr.bf16.mxu0 %v7194
    %7615 = vmatpush1.bf16.msra.mxu0 %v7193
    %7616 = vmatprep.subr.bf16.mxu0 %v7198
    %7617 = vmatpush1.bf16.msra.mxu0 %v7197
    %7618 = vmatprep.subr.bf16.mxu0 %v7202
    %7619 = vmatpush1.bf16.msra.mxu0 %v7201
    %7620 = vmatprep.subr.bf16.mxu0 %v7206
    %7621 = vmatpush1.bf16.msra.mxu0 %v7205
    %7622 = vmatprep.subr.bf16.mxu0 %v7210
    %7623 = vmatpush1.bf16.msra.mxu0 %v7209
    %7624 = vmatprep.subr.bf16.mxu0 %v7214
    %7625 = vmatpush1.bf16.msra.mxu0 %v7213
    %7626 = vmatprep.subr.bf16.mxu0 %v7218
    %7627 = vmatpush1.bf16.msra.mxu0 %v7217
    %7628 = vmatprep.subr.bf16.mxu0 %v7222
    %7629 = vmatpush1.bf16.msra.mxu0 %v7221
    %7630 = vmatprep.subr.bf16.mxu0 %v7226
    %7631 = vmatpush1.bf16.msra.mxu0 %v7225
    %7632 = vmatprep.subr.bf16.mxu0 %v7230
    %7633 = vmatpush1.bf16.msra.mxu0 %v7229
    %7634 = vmatprep.subr.bf16.mxu0 %v7234
    %7635 = vmatpush1.bf16.msra.mxu0 %v7233
    %7636 = vmatprep.subr.bf16.mxu0 %v7238
    %7637 = vmatpush1.bf16.msra.mxu0 %v7237
    %7638 = vmatprep.subr.bf16.mxu0 %v7242
    %7639 = vmatpush1.bf16.msra.mxu0 %v7241
    %7640 = vmatprep.subr.bf16.mxu0 %v7246
    %7641 = vmatpush1.bf16.msra.mxu0 %v7245
    %7642 = vmatprep.mubr.bf16.mxu0 %v6438
    %7643 = vmatmul.mubr.bf16.gmra.mrb[0].mxu0 %v6437
    %v7644 = vpop.f32.mrb[0].mxu0
    %v7645 = vadd.f32 %v7604, %v7644
    %v7646 = vpop.f32.mrb[0].mxu0
    %v7647 = vadd.f32 %v7606, %v7646
    %v7648 = vpop.f32.mrb[0].mxu0
    %v7649 = vpop.f32.mrb[0].mxu0
    %7650 = vdwg.mxu0
    %7651 = vmatprep.subr.bf16.mxu0 %v7250
    %7652 = vmatpush1.bf16.msra.mxu0 %v7249
    %7653 = vmatprep.subr.bf16.mxu0 %v7254
    %7654 = vmatpush1.bf16.msra.mxu0 %v7253
    %7655 = vmatprep.subr.bf16.mxu0 %v7258
    %7656 = vmatpush1.bf16.msra.mxu0 %v7257
    %7657 = vmatprep.subr.bf16.mxu0 %v7262
    %7658 = vmatpush1.bf16.msra.mxu0 %v7261
    %7659 = vmatprep.subr.bf16.mxu0 %v7266
    %7660 = vmatpush1.bf16.msra.mxu0 %v7265
    %7661 = vmatprep.subr.bf16.mxu0 %v7270
    %7662 = vmatpush1.bf16.msra.mxu0 %v7269
    %7663 = vmatprep.subr.bf16.mxu0 %v7274
    %7664 = vmatpush1.bf16.msra.mxu0 %v7273
    %7665 = vmatprep.subr.bf16.mxu0 %v7278
    %7666 = vmatpush1.bf16.msra.mxu0 %v7277
    %7667 = vmatprep.subr.bf16.mxu0 %v7282
    %7668 = vmatpush1.bf16.msra.mxu0 %v7281
    %7669 = vmatprep.subr.bf16.mxu0 %v7286
    %7670 = vmatpush1.bf16.msra.mxu0 %v7285
    %7671 = vmatprep.subr.bf16.mxu0 %v7290
    %7672 = vmatpush1.bf16.msra.mxu0 %v7289
    %7673 = vmatprep.subr.bf16.mxu0 %v7294
    %7674 = vmatpush1.bf16.msra.mxu0 %v7293
    %7675 = vmatprep.subr.bf16.mxu0 %v7298
    %7676 = vmatpush1.bf16.msra.mxu0 %v7297
    %7677 = vmatprep.subr.bf16.mxu0 %v7302
    %7678 = vmatpush1.bf16.msra.mxu0 %v7301
    %7679 = vmatprep.subr.bf16.mxu0 %v7306
    %7680 = vmatpush1.bf16.msra.mxu0 %v7305
    %7681 = vmatprep.subr.bf16.mxu0 %v7310
    %7682 = vmatpush1.bf16.msra.mxu0 %v7309
    %7683 = vmatprep.mubr.bf16.mxu0 %v6440
    %7684 = vmatmul.mubr.bf16.gmra.mrb[0].mxu0 %v6439
    %v7685 = vpop.f32.mrb[0].mxu0
    %v7686 = vadd.f32 %v7645, %v7685
    %v7687 = vpop.f32.mrb[0].mxu0
    %v7688 = vadd.f32 %v7647, %v7687
    %v7689 = vpop.f32.mrb[0].mxu0
    %v7690 = vpop.f32.mrb[0].mxu0
    %7691 = vdwg.mxu0
    %7692 = vmatprep.subr.bf16.mxu0 %v7314
    %7693 = vmatpush1.bf16.msra.mxu0 %v7313
    %7694 = vmatprep.subr.bf16.mxu0 %v7318
    %7695 = vmatpush1.bf16.msra.mxu0 %v7317
    %7696 = vmatprep.subr.bf16.mxu0 %v7322
    %7697 = vmatpush1.bf16.msra.mxu0 %v7321
    %7698 = vmatprep.subr.bf16.mxu0 %v7326
    %7699 = vmatpush1.bf16.msra.mxu0 %v7325
    %7700 = vmatprep.subr.bf16.mxu0 %v7330
    %7701 = vmatpush1.bf16.msra.mxu0 %v7329
    %7702 = vmatprep.subr.bf16.mxu0 %v7334
    %7703 = vmatpush1.bf16.msra.mxu0 %v7333
    %7704 = vmatprep.subr.bf16.mxu0 %v7338
    %7705 = vmatpush1.bf16.msra.mxu0 %v7337
    %7706 = vmatprep.subr.bf16.mxu0 %v7342
    %7707 = vmatpush1.bf16.msra.mxu0 %v7341
    %7708 = vmatprep.subr.bf16.mxu0 0
    %7709 = vmatpush1.bf16.msra.mxu0 0
    %7710 = vmatprep.subr.bf16.mxu0 0
    %7711 = vmatpush1.bf16.msra.mxu0 0
    %7712 = vmatprep.subr.bf16.mxu0 0
    %7713 = vmatpush1.bf16.msra.mxu0 0
    %7714 = vmatprep.subr.bf16.mxu0 0
    %7715 = vmatpush1.bf16.msra.mxu0 0
    %7716 = vmatprep.subr.bf16.mxu0 0
    %7717 = vmatpush1.bf16.msra.mxu0 0
    %7718 = vmatprep.subr.bf16.mxu0 0
    %7719 = vmatpush1.bf16.msra.mxu0 0
    %7720 = vmatprep.subr.bf16.mxu0 0
    %7721 = vmatpush1.bf16.msra.mxu0 0
    %7722 = vmatprep.subr.bf16.mxu0 0
    %7723 = vmatpush1.bf16.msra.mxu0 0
    %7724 = vmatprep.mubr.bf16.mxu0 0
    %7725 = vmatmul.mubr.bf16.gmra.mrb[0].mxu0 %v6441
    %v7726 = vpop.f32.mrb[0].mxu0
    %v7727 = vadd.f32 %v7686, %v7726
    %v7728 = vpop.f32.mrb[0].mxu0
    %v7729 = vadd.f32 %v7688, %v7728
    %v7730 = vpop.f32.mrb[0].mxu0
    %v7731 = vpop.f32.mrb[0].mxu0
    %7732 = vdwg.mxu0
    %7733 = vmatprep.subr.bf16.mxu0 %v7124
    %7734 = vmatpush1.bf16.msra.mxu0 %v7123
    %7735 = vmatprep.subr.bf16.mxu0 %v7128
    %7736 = vmatpush1.bf16.msra.mxu0 %v7127
    %7737 = vmatprep.subr.bf16.mxu0 %v7132
    %7738 = vmatpush1.bf16.msra.mxu0 %v7131
    %7739 = vmatprep.subr.bf16.mxu0 %v7136
    %7740 = vmatpush1.bf16.msra.mxu0 %v7135
    %7741 = vmatprep.subr.bf16.mxu0 %v7140
    %7742 = vmatpush1.bf16.msra.mxu0 %v7139
    %7743 = vmatprep.subr.bf16.mxu0 %v7144
    %7744 = vmatpush1.bf16.msra.mxu0 %v7143
    %7745 = vmatprep.subr.bf16.mxu0 %v7148
    %7746 = vmatpush1.bf16.msra.mxu0 %v7147
    %7747 = vmatprep.subr.bf16.mxu0 %v7152
    %7748 = vmatpush1.bf16.msra.mxu0 %v7151
    %7749 = vmatprep.subr.bf16.mxu0 %v7156
    %7750 = vmatpush1.bf16.msra.mxu0 %v7155
    %7751 = vmatprep.subr.bf16.mxu0 %v7160
    %7752 = vmatpush1.bf16.msra.mxu0 %v7159
    %7753 = vmatprep.subr.bf16.mxu0 %v7164
    %7754 = vmatpush1.bf16.msra.mxu0 %v7163
    %7755 = vmatprep.subr.bf16.mxu0 %v7168
    %7756 = vmatpush1.bf16.msra.mxu0 %v7167
    %7757 = vmatprep.subr.bf16.mxu0 %v7172
    %7758 = vmatpush1.bf16.msra.mxu0 %v7171
    %7759 = vmatprep.subr.bf16.mxu0 %v7176
    %7760 = vmatpush1.bf16.msra.mxu0 %v7175
    %7761 = vmatprep.subr.bf16.mxu0 %v7180
    %7762 = vmatpush1.bf16.msra.mxu0 %v7179
    %7763 = vmatprep.subr.bf16.mxu0 %v7184
    %7764 = vmatpush1.bf16.msra.mxu0 %v7183
    %7765 = vmatprep.mubr.bf16.mxu0 %v6436
    %7766 = vmatmul.mubr.bf16.gmra.mrb[0].mxu0 %v6435
    %v7767 = vpop.f32.mrb[0].mxu0
    %v7768 = vadd.f32 0.0, %v7767
    %v7769 = vpop.f32.mrb[0].mxu0
    %v7770 = vadd.f32 0.0, %v7769
    %v7771 = vpop.f32.mrb[0].mxu0
    %v7772 = vpop.f32.mrb[0].mxu0
    %7773 = vdwg.mxu0
    %7774 = vmatprep.subr.bf16.mxu0 %v7188
    %7775 = vmatpush1.bf16.msra.mxu0 %v7187
    %7776 = vmatprep.subr.bf16.mxu0 %v7192
    %7777 = vmatpush1.bf16.msra.mxu0 %v7191
    %7778 = vmatprep.subr.bf16.mxu0 %v7196
    %7779 = vmatpush1.bf16.msra.mxu0 %v7195
    %7780 = vmatprep.subr.bf16.mxu0 %v7200
    %7781 = vmatpush1.bf16.msra.mxu0 %v7199
    %7782 = vmatprep.subr.bf16.mxu0 %v7204
    %7783 = vmatpush1.bf16.msra.mxu0 %v7203
    %7784 = vmatprep.subr.bf16.mxu0 %v7208
    %7785 = vmatpush1.bf16.msra.mxu0 %v7207
    %7786 = vmatprep.subr.bf16.mxu0 %v7212
    %7787 = vmatpush1.bf16.msra.mxu0 %v7211
    %7788 = vmatprep.subr.bf16.mxu0 %v7216
    %7789 = vmatpush1.bf16.msra.mxu0 %v7215
    %7790 = vmatprep.subr.bf16.mxu0 %v7220
    %7791 = vmatpush1.bf16.msra.mxu0 %v7219
    %7792 = vmatprep.subr.bf16.mxu0 %v7224
    %7793 = vmatpush1.bf16.msra.mxu0 %v7223
    %7794 = vmatprep.subr.bf16.mxu0 %v7228
    %7795 = vmatpush1.bf16.msra.mxu0 %v7227
    %7796 = vmatprep.subr.bf16.mxu0 %v7232
    %7797 = vmatpush1.bf16.msra.mxu0 %v7231
    %7798 = vmatprep.subr.bf16.mxu0 %v7236
    %7799 = vmatpush1.bf16.msra.mxu0 %v7235
    %7800 = vmatprep.subr.bf16.mxu0 %v7240
    %7801 = vmatpush1.bf16.msra.mxu0 %v7239
    %7802 = vmatprep.subr.bf16.mxu0 %v7244
    %7803 = vmatpush1.bf16.msra.mxu0 %v7243
    %7804 = vmatprep.subr.bf16.mxu0 %v7248
    %7805 = vmatpush1.bf16.msra.mxu0 %v7247
    %7806 = vmatprep.mubr.bf16.mxu0 %v6438
    %7807 = vmatmul.mubr.bf16.gmra.mrb[0].mxu0 %v6437
    %v7808 = vpop.f32.mrb[0].mxu0
    %v7809 = vadd.f32 %v7768, %v7808
    %v7810 = vpop.f32.mrb[0].mxu0
    %v7811 = vadd.f32 %v7770, %v7810
    %v7812 = vpop.f32.mrb[0].mxu0
    %v7813 = vpop.f32.mrb[0].mxu0
    %7814 = vdwg.mxu0
    %7815 = vmatprep.subr.bf16.mxu0 %v7252
    %7816 = vmatpush1.bf16.msra.mxu0 %v7251
    %7817 = vmatprep.subr.bf16.mxu0 %v7256
    %7818 = vmatpush1.bf16.msra.mxu0 %v7255
    %7819 = vmatprep.subr.bf16.mxu0 %v7260
    %7820 = vmatpush1.bf16.msra.mxu0 %v7259
    %7821 = vmatprep.subr.bf16.mxu0 %v7264
    %7822 = vmatpush1.bf16.msra.mxu0 %v7263
    %7823 = vmatprep.subr.bf16.mxu0 %v7268
    %7824 = vmatpush1.bf16.msra.mxu0 %v7267
    %7825 = vmatprep.subr.bf16.mxu0 %v7272
    %7826 = vmatpush1.bf16.msra.mxu0 %v7271
    %7827 = vmatprep.subr.bf16.mxu0 %v7276
    %7828 = vmatpush1.bf16.msra.mxu0 %v7275
    %7829 = vmatprep.subr.bf16.mxu0 %v7280
    %7830 = vmatpush1.bf16.msra.mxu0 %v7279
    %7831 = vmatprep.subr.bf16.mxu0 %v7284
    %7832 = vmatpush1.bf16.msra.mxu0 %v7283
    %7833 = vmatprep.subr.bf16.mxu0 %v7288
    %7834 = vmatpush1.bf16.msra.mxu0 %v7287
    %7835 = vmatprep.subr.bf16.mxu0 %v7292
    %7836 = vmatpush1.bf16.msra.mxu0 %v7291
    %7837 = vmatprep.subr.bf16.mxu0 %v7296
    %7838 = vmatpush1.bf16.msra.mxu0 %v7295
    %7839 = vmatprep.subr.bf16.mxu0 %v7300
    %7840 = vmatpush1.bf16.msra.mxu0 %v7299
    %7841 = vmatprep.subr.bf16.mxu0 %v7304
    %7842 = vmatpush1.bf16.msra.mxu0 %v7303
    %7843 = vmatprep.subr.bf16.mxu0 %v7308
    %7844 = vmatpush1.bf16.msra.mxu0 %v7307
    %7845 = vmatprep.subr.bf16.mxu0 %v7312
    %7846 = vmatpush1.bf16.msra.mxu0 %v7311
    %7847 = vmatprep.mubr.bf16.mxu0 %v6440
    %7848 = vmatmul.mubr.bf16.gmra.mrb[0].mxu0 %v6439
    %v7849 = vpop.f32.mrb[0].mxu0
    %v7850 = vadd.f32 %v7809, %v7849
    %v7851 = vpop.f32.mrb[0].mxu0
    %v7852 = vadd.f32 %v7811, %v7851
    %v7853 = vpop.f32.mrb[0].mxu0
    %v7854 = vpop.f32.mrb[0].mxu0
    %7855 = vdwg.mxu0
    %7856 = vmatprep.subr.bf16.mxu0 %v7316
    %7857 = vmatpush1.bf16.msra.mxu0 %v7315
    %7858 = vmatprep.subr.bf16.mxu0 %v7320
    %7859 = vmatpush1.bf16.msra.mxu0 %v7319
    %7860 = vmatprep.subr.bf16.mxu0 %v7324
    %7861 = vmatpush1.bf16.msra.mxu0 %v7323
    %7862 = vmatprep.subr.bf16.mxu0 %v7328
    %7863 = vmatpush1.bf16.msra.mxu0 %v7327
    %7864 = vmatprep.subr.bf16.mxu0 %v7332
    %7865 = vmatpush1.bf16.msra.mxu0 %v7331
    %7866 = vmatprep.subr.bf16.mxu0 %v7336
    %7867 = vmatpush1.bf16.msra.mxu0 %v7335
    %7868 = vmatprep.subr.bf16.mxu0 %v7340
    %7869 = vmatpush1.bf16.msra.mxu0 %v7339
    %7870 = vmatprep.subr.bf16.mxu0 %v7344
    %7871 = vmatpush1.bf16.msra.mxu0 %v7343
    %7872 = vmatprep.subr.bf16.mxu0 0
    %7873 = vmatpush1.bf16.msra.mxu0 0
    %7874 = vmatprep.subr.bf16.mxu0 0
    %7875 = vmatpush1.bf16.msra.mxu0 0
    %7876 = vmatprep.subr.bf16.mxu0 0
    %7877 = vmatpush1.bf16.msra.mxu0 0
    %7878 = vmatprep.subr.bf16.mxu0 0
    %7879 = vmatpush1.bf16.msra.mxu0 0
    %7880 = vmatprep.subr.bf16.mxu0 0
    %7881 = vmatpush1.bf16.msra.mxu0 0
    %7882 = vmatprep.subr.bf16.mxu0 0
    %7883 = vmatpush1.bf16.msra.mxu0 0
    %7884 = vmatprep.subr.bf16.mxu0 0
    %7885 = vmatpush1.bf16.msra.mxu0 0
    %7886 = vmatprep.subr.bf16.mxu0 0
    %7887 = vmatpush1.bf16.msra.mxu0 0
    %7888 = vmatprep.mubr.bf16.mxu0 0
    %7889 = vmatmul.mubr.bf16.gmra.mrb[0].mxu0 %v6441
    %v7890 = vpop.f32.mrb[0].mxu0
    %v7891 = vadd.f32 %v7850, %v7890
    %v7892 = vpop.f32.mrb[0].mxu0
    %v7893 = vadd.f32 %v7852, %v7892
    %v7894 = vpop.f32.mrb[0].mxu0
    %v7895 = vpop.f32.mrb[0].mxu0
    %7896 = vdwg.mxu0
    %v7897 = vrot.slane %v7727, 4
    %v7898 = vrot.slane %v7729, 4
    %v7899 = vsel %vm2037, 0.0, %v7897
    %v7900 = vsel %vm2037, 0.0, %v7898
    %v7901 = vadd.f32 %v7899, %v7891
    %v7902 = vadd.f32 %v7900, %v7893
    %v7904 = vlaneseq
    %v7905 = vshrl.u32 %v7904, 7
    %v7906 = vsub.s32 0, %v7905
    %v7907 = vrot.slane %v6423, %v7906
    %v7908 = vlaneseq
    %v7909 = vshrl.u32 %v7908, 7
    %v7910 = vsub.s32 1, %v7909
    %v7911 = vrot.slane %v6423, %v7910
    %v7914 = vadd.f32 %v7901, %v7907
    %v7915 = vadd.f32 %v7902, %v7911
    %v7916 = vtanh.pop %v7914
    %v7917 = vxor.u32 %v7915, 2147483648
    %v7918 = vmul.f32 %v7917, 1.442695
    %v7919 = vpow.pop %v7918
    %v7920 = vadd.f32 %v7919, 1.0
    %v7921 = vrcp.pop %v7920
    %v7922 = vmul.f32 1.0, %v7921
    %v7923 = vmul.f32 %v7916, %v7922
    %7924 = vst [vmem:[#allocation21 + $0x38] sm:$0xff] %v7923
    %v7925 = vpack.c.bf16 %v7923, %v7923
    %7926 = vst [vmem:[#allocation2 + $0x1c] sm:$0xf] %v7925
    %v7927 = vld [vmem:[#allocation2] sm:$0xff]
    %v7928 = vld [vmem:[#allocation2 + $0x8] sm:$0xff]
    %v7929 = vld [vmem:[#allocation2 + $0x10] sm:$0xff]
    %v7930 = vld [vmem:[#allocation2 + $0x18] sm:$0xff]
    %v7931 = vld [vmem:[#allocation18] sm:$0xff]
    %v7932 = vld [vmem:[#allocation18 + $0x8] sm:$0xff]
    %v7933 = vld [vmem:[#allocation18 + $0x10] sm:$0xff]
    %v7934 = vld [vmem:[#allocation18 + $0x18] sm:$0xff]
    %v7935 = vld [vmem:[#allocation18 + $0x20] sm:$0xff]
    %v7936 = vld [vmem:[#allocation18 + $0x28] sm:$0xff]
    %v7937 = vld [vmem:[#allocation18 + $0x30] sm:$0xff]
    %v7938 = vld [vmem:[#allocation18 + $0x38] sm:$0xff]
    %v7939 = vld [vmem:[#allocation18 + $0x40] sm:$0xff]
    %v7940 = vld [vmem:[#allocation18 + $0x48] sm:$0xff]
    %v7941 = vld [vmem:[#allocation18 + $0x50] sm:$0xff]
    %v7942 = vld [vmem:[#allocation18 + $0x58] sm:$0xff]
    %v7943 = vld [vmem:[#allocation18 + $0x60] sm:$0xff]
    %v7944 = vld [vmem:[#allocation18 + $0x68] sm:$0xff]
    %v7945 = vld [vmem:[#allocation18 + $0x70] sm:$0xff]
    %v7946 = vld [vmem:[#allocation18 + $0x78] sm:$0xff]
    %v7947 = vld [vmem:[#allocation18 + $0x80] sm:$0xff]
    %v7948 = vld [vmem:[#allocation18 + $0x88] sm:$0xff]
    %v7949 = vld [vmem:[#allocation18 + $0x90] sm:$0xff]
    %v7950 = vld [vmem:[#allocation18 + $0x98] sm:$0xff]
    %v7951 = vld [vmem:[#allocation18 + $0xa0] sm:$0xff]
    %v7952 = vld [vmem:[#allocation18 + $0xa8] sm:$0xff]
    %v7953 = vld [vmem:[#allocation18 + $0xb0] sm:$0xff]
    %v7954 = vld [vmem:[#allocation18 + $0xb8] sm:$0xff]
    %v7955 = vld [vmem:[#allocation18 + $0xc0] sm:$0xff]
    %v7956 = vld [vmem:[#allocation18 + $0xc8] sm:$0xff]
    %v7957 = vld [vmem:[#allocation18 + $0xd0] sm:$0xff]
    %v7958 = vld [vmem:[#allocation18 + $0xd8] sm:$0xff]
    %v7959 = vld [vmem:[#allocation18 + $0xe0] sm:$0xff]
    %v7960 = vld [vmem:[#allocation18 + $0xe8] sm:$0xff]
    %v7961 = vld [vmem:[#allocation18 + $0xf0] sm:$0xff]
    %v7962 = vld [vmem:[#allocation18 + $0xf8] sm:$0xff]
    %v7963 = vld [vmem:[#allocation18 + $0x100] sm:$0xff]
    %v7964 = vld [vmem:[#allocation18 + $0x108] sm:$0xff]
    %v7965 = vld [vmem:[#allocation18 + $0x110] sm:$0xff]
    %v7966 = vld [vmem:[#allocation18 + $0x118] sm:$0xff]
    %v7967 = vld [vmem:[#allocation18 + $0x120] sm:$0xff]
    %v7968 = vld [vmem:[#allocation18 + $0x128] sm:$0xff]
    %v7969 = vld [vmem:[#allocation18 + $0x130] sm:$0xff]
    %v7970 = vld [vmem:[#allocation18 + $0x138] sm:$0xff]
    %v7971 = vld [vmem:[#allocation18 + $0x140] sm:$0xff]
    %v7972 = vld [vmem:[#allocation18 + $0x148] sm:$0xff]
    %v7973 = vld [vmem:[#allocation18 + $0x150] sm:$0xff]
    %v7974 = vld [vmem:[#allocation18 + $0x158] sm:$0xff]
    %v7975 = vld [vmem:[#allocation18 + $0x160] sm:$0xff]
    %v7976 = vld [vmem:[#allocation18 + $0x168] sm:$0xff]
    %v7977 = vld [vmem:[#allocation18 + $0x170] sm:$0xff]
    %v7978 = vld [vmem:[#allocation18 + $0x178] sm:$0xff]
    %v7979 = vld [vmem:[#allocation18 + $0x180] sm:$0xff]
    %v7980 = vld [vmem:[#allocation18 + $0x188] sm:$0xff]
    %v7981 = vld [vmem:[#allocation18 + $0x190] sm:$0xff]
    %v7982 = vld [vmem:[#allocation18 + $0x198] sm:$0xff]
    %v7983 = vld [vmem:[#allocation18 + $0x1a0] sm:$0xff]
    %v7984 = vld [vmem:[#allocation18 + $0x1a8] sm:$0xff]
    %v7985 = vld [vmem:[#allocation18 + $0x1b0] sm:$0xff]
    %v7986 = vld [vmem:[#allocation18 + $0x1b8] sm:$0xff]
    %v7987 = vld [vmem:[#allocation18 + $0x1c0] sm:$0xff]
    %v7988 = vld [vmem:[#allocation18 + $0x1c8] sm:$0xff]
    %v7989 = vld [vmem:[#allocation18 + $0x1d0] sm:$0xff]
    %v7990 = vld [vmem:[#allocation18 + $0x1d8] sm:$0xff]
    %v7991 = vld [vmem:[#allocation18 + $0x1e0] sm:$0xff]
    %v7992 = vld [vmem:[#allocation18 + $0x1e8] sm:$0xff]
    %v7993 = vld [vmem:[#allocation18 + $0x1f0] sm:$0xff]
    %v7994 = vld [vmem:[#allocation18 + $0x1f8] sm:$0xff]
    %v7995 = vld [vmem:[#allocation18 + $0x200] sm:$0xff]
    %v7996 = vld [vmem:[#allocation18 + $0x208] sm:$0xff]
    %v7997 = vld [vmem:[#allocation18 + $0x210] sm:$0xff]
    %v7998 = vld [vmem:[#allocation18 + $0x218] sm:$0xff]
    %v7999 = vld [vmem:[#allocation18 + $0x220] sm:$0xff]
    %v8000 = vld [vmem:[#allocation18 + $0x228] sm:$0xff]
    %v8001 = vld [vmem:[#allocation18 + $0x230] sm:$0xff]
    %v8002 = vld [vmem:[#allocation18 + $0x238] sm:$0xff]
    %v8003 = vld [vmem:[#allocation18 + $0x240] sm:$0xff]
    %v8004 = vld [vmem:[#allocation18 + $0x248] sm:$0xff]
    %v8005 = vld [vmem:[#allocation18 + $0x250] sm:$0xff]
    %v8006 = vld [vmem:[#allocation18 + $0x258] sm:$0xff]
    %v8007 = vld [vmem:[#allocation18 + $0x260] sm:$0xff]
    %v8008 = vld [vmem:[#allocation18 + $0x268] sm:$0xff]
    %v8009 = vld [vmem:[#allocation18 + $0x270] sm:$0xff]
    %v8010 = vld [vmem:[#allocation18 + $0x278] sm:$0xff]
    %v8011 = vld [vmem:[#allocation18 + $0x280] sm:$0xff]
    %v8012 = vld [vmem:[#allocation18 + $0x288] sm:$0xff]
    %v8013 = vld [vmem:[#allocation18 + $0x290] sm:$0xff]
    %v8014 = vld [vmem:[#allocation18 + $0x298] sm:$0xff]
    %v8015 = vld [vmem:[#allocation18 + $0x2a0] sm:$0xff]
    %v8016 = vld [vmem:[#allocation18 + $0x2a8] sm:$0xff]
    %v8017 = vld [vmem:[#allocation18 + $0x2b0] sm:$0xff]
    %v8018 = vld [vmem:[#allocation18 + $0x2b8] sm:$0xff]
    %v8019 = vld [vmem:[#allocation18 + $0x2c0] sm:$0xff]
    %v8020 = vld [vmem:[#allocation18 + $0x2c8] sm:$0xff]
    %v8021 = vld [vmem:[#allocation18 + $0x2d0] sm:$0xff]
    %v8022 = vld [vmem:[#allocation18 + $0x2d8] sm:$0xff]
    %v8023 = vld [vmem:[#allocation18 + $0x2e0] sm:$0xff]
    %v8024 = vld [vmem:[#allocation18 + $0x2e8] sm:$0xff]
    %v8025 = vld [vmem:[#allocation18 + $0x2f0] sm:$0xff]
    %v8026 = vld [vmem:[#allocation18 + $0x2f8] sm:$0xff]
    %v8027 = vld [vmem:[#allocation18 + $0x300] sm:$0xff]
    %v8028 = vld [vmem:[#allocation18 + $0x308] sm:$0xff]
    %v8029 = vld [vmem:[#allocation18 + $0x310] sm:$0xff]
    %v8030 = vld [vmem:[#allocation18 + $0x318] sm:$0xff]
    %v8031 = vld [vmem:[#allocation18 + $0x320] sm:$0xff]
    %v8032 = vld [vmem:[#allocation18 + $0x328] sm:$0xff]
    %v8033 = vld [vmem:[#allocation18 + $0x330] sm:$0xff]
    %v8034 = vld [vmem:[#allocation18 + $0x338] sm:$0xff]
    %v8035 = vld [vmem:[#allocation18 + $0x340] sm:$0xff]
    %v8036 = vld [vmem:[#allocation18 + $0x348] sm:$0xff]
    %v8037 = vld [vmem:[#allocation18 + $0x350] sm:$0xff]
    %v8038 = vld [vmem:[#allocation18 + $0x358] sm:$0xff]
    %v8039 = vld [vmem:[#allocation18 + $0x360] sm:$0xff]
    %v8040 = vld [vmem:[#allocation18 + $0x368] sm:$0xff]
    %v8041 = vld [vmem:[#allocation18 + $0x370] sm:$0xff]
    %v8042 = vld [vmem:[#allocation18 + $0x378] sm:$0xff]
    %v8043 = vld [vmem:[#allocation18 + $0x380] sm:$0xff]
    %v8044 = vld [vmem:[#allocation18 + $0x388] sm:$0xff]
    %v8045 = vld [vmem:[#allocation18 + $0x390] sm:$0xff]
    %v8046 = vld [vmem:[#allocation18 + $0x398] sm:$0xff]
    %v8047 = vld [vmem:[#allocation18 + $0x3a0] sm:$0xff]
    %v8048 = vld [vmem:[#allocation18 + $0x3a8] sm:$0xff]
    %v8049 = vld [vmem:[#allocation18 + $0x3b0] sm:$0xff]
    %v8050 = vld [vmem:[#allocation18 + $0x3b8] sm:$0xff]
    %v8051 = vld [vmem:[#allocation18 + $0x3c0] sm:$0xff]
    %v8052 = vld [vmem:[#allocation18 + $0x3c8] sm:$0xff]
    %v8053 = vld [vmem:[#allocation18 + $0x3d0] sm:$0xff]
    %v8054 = vld [vmem:[#allocation18 + $0x3d8] sm:$0xff]
    %v8055 = vld [vmem:[#allocation18 + $0x3e0] sm:$0xff]
    %v8056 = vld [vmem:[#allocation18 + $0x3e8] sm:$0xff]
    %v8057 = vld [vmem:[#allocation18 + $0x3f0] sm:$0xff]
    %v8058 = vld [vmem:[#allocation18 + $0x3f8] sm:$0xff]
    %v8059 = vld [vmem:[#allocation18 + $0x400] sm:$0xff]
    %v8060 = vld [vmem:[#allocation18 + $0x408] sm:$0xff]
    %v8061 = vld [vmem:[#allocation18 + $0x410] sm:$0xff]
    %v8062 = vld [vmem:[#allocation18 + $0x418] sm:$0xff]
    %v8063 = vld [vmem:[#allocation18 + $0x420] sm:$0xff]
    %v8064 = vld [vmem:[#allocation18 + $0x428] sm:$0xff]
    %v8065 = vld [vmem:[#allocation18 + $0x430] sm:$0xff]
    %v8066 = vld [vmem:[#allocation18 + $0x438] sm:$0xff]
    %v8067 = vld [vmem:[#allocation18 + $0x440] sm:$0xff]
    %v8068 = vld [vmem:[#allocation18 + $0x448] sm:$0xff]
    %v8069 = vld [vmem:[#allocation18 + $0x450] sm:$0xff]
    %v8070 = vld [vmem:[#allocation18 + $0x458] sm:$0xff]
    %v8071 = vld [vmem:[#allocation18 + $0x460] sm:$0xff]
    %v8072 = vld [vmem:[#allocation18 + $0x468] sm:$0xff]
    %v8073 = vld [vmem:[#allocation18 + $0x470] sm:$0xff]
    %v8074 = vld [vmem:[#allocation18 + $0x478] sm:$0xff]
    %v8075 = vld [vmem:[#allocation18 + $0x480] sm:$0xff]
    %v8076 = vld [vmem:[#allocation18 + $0x488] sm:$0xff]
    %v8077 = vld [vmem:[#allocation18 + $0x490] sm:$0xff]
    %v8078 = vld [vmem:[#allocation18 + $0x498] sm:$0xff]
    %v8079 = vld [vmem:[#allocation18 + $0x4a0] sm:$0xff]
    %v8080 = vld [vmem:[#allocation18 + $0x4a8] sm:$0xff]
    %v8081 = vld [vmem:[#allocation18 + $0x4b0] sm:$0xff]
    %v8082 = vld [vmem:[#allocation18 + $0x4b8] sm:$0xff]
    %v8083 = vld [vmem:[#allocation18 + $0x4c0] sm:$0xff]
    %v8084 = vld [vmem:[#allocation18 + $0x4c8] sm:$0xff]
    %v8085 = vld [vmem:[#allocation18 + $0x4d0] sm:$0xff]
    %v8086 = vld [vmem:[#allocation18 + $0x4d8] sm:$0xff]
    %v8087 = vld [vmem:[#allocation18 + $0x4e0] sm:$0xff]
    %v8088 = vld [vmem:[#allocation18 + $0x4e8] sm:$0xff]
    %v8089 = vld [vmem:[#allocation18 + $0x4f0] sm:$0xff]
    %v8090 = vld [vmem:[#allocation18 + $0x4f8] sm:$0xff]
    %v8091 = vld [vmem:[#allocation18 + $0x500] sm:$0xff]
    %v8092 = vld [vmem:[#allocation18 + $0x508] sm:$0xff]
    %v8093 = vld [vmem:[#allocation18 + $0x510] sm:$0xff]
    %v8094 = vld [vmem:[#allocation18 + $0x518] sm:$0xff]
    %v8095 = vld [vmem:[#allocation18 + $0x520] sm:$0xff]
    %v8096 = vld [vmem:[#allocation18 + $0x528] sm:$0xff]
    %v8097 = vld [vmem:[#allocation18 + $0x530] sm:$0xff]
    %v8098 = vld [vmem:[#allocation18 + $0x538] sm:$0xff]
    %v8099 = vld [vmem:[#allocation18 + $0x540] sm:$0xff]
    %v8100 = vld [vmem:[#allocation18 + $0x548] sm:$0xff]
    %v8101 = vld [vmem:[#allocation18 + $0x550] sm:$0xff]
    %v8102 = vld [vmem:[#allocation18 + $0x558] sm:$0xff]
    %v8103 = vld [vmem:[#allocation18 + $0x560] sm:$0xff]
    %v8104 = vld [vmem:[#allocation18 + $0x568] sm:$0xff]
    %v8105 = vld [vmem:[#allocation18 + $0x570] sm:$0xff]
    %v8106 = vld [vmem:[#allocation18 + $0x578] sm:$0xff]
    %v8107 = vld [vmem:[#allocation18 + $0x580] sm:$0xff]
    %v8108 = vld [vmem:[#allocation18 + $0x588] sm:$0xff]
    %v8109 = vld [vmem:[#allocation18 + $0x590] sm:$0xff]
    %v8110 = vld [vmem:[#allocation18 + $0x598] sm:$0xff]
    %v8111 = vld [vmem:[#allocation18 + $0x5a0] sm:$0xff]
    %v8112 = vld [vmem:[#allocation18 + $0x5a8] sm:$0xff]
    %v8113 = vld [vmem:[#allocation18 + $0x5b0] sm:$0xff]
    %v8114 = vld [vmem:[#allocation18 + $0x5b8] sm:$0xff]
    %v8115 = vld [vmem:[#allocation18 + $0x5c0] sm:$0xff]
    %v8116 = vld [vmem:[#allocation18 + $0x5c8] sm:$0xff]
    %v8117 = vld [vmem:[#allocation18 + $0x5d0] sm:$0xff]
    %v8118 = vld [vmem:[#allocation18 + $0x5d8] sm:$0xff]
    %v8119 = vld [vmem:[#allocation18 + $0x5e0] sm:$0xff]
    %v8120 = vld [vmem:[#allocation18 + $0x5e8] sm:$0xff]
    %v8121 = vld [vmem:[#allocation18 + $0x5f0] sm:$0xff]
    %v8122 = vld [vmem:[#allocation18 + $0x5f8] sm:$0xff]
    %v8123 = vld [vmem:[#allocation18 + $0x600] sm:$0xff]
    %v8124 = vld [vmem:[#allocation18 + $0x608] sm:$0xff]
    %v8125 = vld [vmem:[#allocation18 + $0x610] sm:$0xff]
    %v8126 = vld [vmem:[#allocation18 + $0x618] sm:$0xff]
    %v8127 = vld [vmem:[#allocation18 + $0x620] sm:$0xff]
    %v8128 = vld [vmem:[#allocation18 + $0x628] sm:$0xff]
    %v8129 = vld [vmem:[#allocation18 + $0x630] sm:$0xff]
    %v8130 = vld [vmem:[#allocation18 + $0x638] sm:$0xff]
    %v8131 = vld [vmem:[#allocation18 + $0x640] sm:$0xff]
    %v8132 = vld [vmem:[#allocation18 + $0x648] sm:$0xff]
    %v8133 = vld [vmem:[#allocation18 + $0x650] sm:$0xff]
    %v8134 = vld [vmem:[#allocation18 + $0x658] sm:$0xff]
    %v8135 = vld [vmem:[#allocation18 + $0x660] sm:$0xff]
    %v8136 = vld [vmem:[#allocation18 + $0x668] sm:$0xff]
    %v8137 = vld [vmem:[#allocation18 + $0x670] sm:$0xff]
    %v8138 = vld [vmem:[#allocation18 + $0x678] sm:$0xff]
    %v8139 = vld [vmem:[#allocation18 + $0x680] sm:$0xff]
    %v8140 = vld [vmem:[#allocation18 + $0x688] sm:$0xff]
    %v8141 = vld [vmem:[#allocation18 + $0x690] sm:$0xff]
    %v8142 = vld [vmem:[#allocation18 + $0x698] sm:$0xff]
    %v8143 = vld [vmem:[#allocation18 + $0x6a0] sm:$0xff]
    %v8144 = vld [vmem:[#allocation18 + $0x6a8] sm:$0xff]
    %v8145 = vld [vmem:[#allocation18 + $0x6b0] sm:$0xff]
    %v8146 = vld [vmem:[#allocation18 + $0x6b8] sm:$0xff]
    %v8147 = vld [vmem:[#allocation18 + $0x6c0] sm:$0xff]
    %v8148 = vld [vmem:[#allocation18 + $0x6c8] sm:$0xff]
    %v8149 = vld [vmem:[#allocation18 + $0x6d0] sm:$0xff]
    %v8150 = vld [vmem:[#allocation18 + $0x6d8] sm:$0xff]
    %v8151 = vld [vmem:[#allocation18 + $0x6e0] sm:$0xff]
    %v8152 = vld [vmem:[#allocation18 + $0x6e8] sm:$0xff]
    %v8153 = vld [vmem:[#allocation18 + $0x6f0] sm:$0xff]
    %v8154 = vld [vmem:[#allocation18 + $0x6f8] sm:$0xff]
    %v8155 = vld [vmem:[#allocation18 + $0x700] sm:$0xff]
    %v8156 = vld [vmem:[#allocation18 + $0x708] sm:$0xff]
    %v8157 = vld [vmem:[#allocation18 + $0x710] sm:$0xff]
    %v8158 = vld [vmem:[#allocation18 + $0x718] sm:$0xff]
    %v8159 = vld [vmem:[#allocation18 + $0x720] sm:$0xff]
    %v8160 = vld [vmem:[#allocation18 + $0x728] sm:$0xff]
    %v8161 = vld [vmem:[#allocation18 + $0x730] sm:$0xff]
    %v8162 = vld [vmem:[#allocation18 + $0x738] sm:$0xff]
    %v8163 = vld [vmem:[#allocation18 + $0x740] sm:$0xff]
    %v8164 = vld [vmem:[#allocation18 + $0x748] sm:$0xff]
    %v8165 = vld [vmem:[#allocation18 + $0x750] sm:$0xff]
    %v8166 = vld [vmem:[#allocation18 + $0x758] sm:$0xff]
    %v8167 = vld [vmem:[#allocation18 + $0x760] sm:$0xff]
    %v8168 = vld [vmem:[#allocation18 + $0x768] sm:$0xff]
    %v8169 = vld [vmem:[#allocation18 + $0x770] sm:$0xff]
    %v8170 = vld [vmem:[#allocation18 + $0x778] sm:$0xff]
    %v8171 = vld [vmem:[#allocation18 + $0x780] sm:$0xff]
    %v8172 = vld [vmem:[#allocation18 + $0x788] sm:$0xff]
    %v8173 = vld [vmem:[#allocation18 + $0x790] sm:$0xff]
    %v8174 = vld [vmem:[#allocation18 + $0x798] sm:$0xff]
    %v8175 = vld [vmem:[#allocation18 + $0x7a0] sm:$0xff]
    %v8176 = vld [vmem:[#allocation18 + $0x7a8] sm:$0xff]
    %v8177 = vld [vmem:[#allocation18 + $0x7b0] sm:$0xff]
    %v8178 = vld [vmem:[#allocation18 + $0x7b8] sm:$0xff]
    %v8179 = vld [vmem:[#allocation18 + $0x7c0] sm:$0xff]
    %v8180 = vld [vmem:[#allocation18 + $0x7c8] sm:$0xff]
    %v8181 = vld [vmem:[#allocation18 + $0x7d0] sm:$0xff]
    %v8182 = vld [vmem:[#allocation18 + $0x7d8] sm:$0xff]
    %v8183 = vld [vmem:[#allocation18 + $0x7e0] sm:$0xff]
    %v8184 = vld [vmem:[#allocation18 + $0x7e8] sm:$0xff]
    %v8185 = vld [vmem:[#allocation18 + $0x7f0] sm:$0xff]
    %v8186 = vld [vmem:[#allocation18 + $0x7f8] sm:$0xff]
    %v8187 = vld [vmem:[#allocation18 + $0x800] sm:$0xff]
    %v8188 = vld [vmem:[#allocation18 + $0x808] sm:$0xff]
    %v8189 = vld [vmem:[#allocation18 + $0x810] sm:$0xff]
    %v8190 = vld [vmem:[#allocation18 + $0x818] sm:$0xff]
    %v8191 = vld [vmem:[#allocation18 + $0x820] sm:$0xff]
    %v8192 = vld [vmem:[#allocation18 + $0x828] sm:$0xff]
    %v8193 = vld [vmem:[#allocation18 + $0x830] sm:$0xff]
    %v8194 = vld [vmem:[#allocation18 + $0x838] sm:$0xff]
    %v8195 = vld [vmem:[#allocation18 + $0x840] sm:$0xff]
    %v8196 = vld [vmem:[#allocation18 + $0x848] sm:$0xff]
    %v8197 = vld [vmem:[#allocation18 + $0x850] sm:$0xff]
    %v8198 = vld [vmem:[#allocation18 + $0x858] sm:$0xff]
    %v8199 = vld [vmem:[#allocation18 + $0x860] sm:$0xff]
    %v8200 = vld [vmem:[#allocation18 + $0x868] sm:$0xff]
    %v8201 = vld [vmem:[#allocation18 + $0x870] sm:$0xff]
    %v8202 = vld [vmem:[#allocation18 + $0x878] sm:$0xff]
    %v8203 = vld [vmem:[#allocation18 + $0x880] sm:$0xff]
    %v8204 = vld [vmem:[#allocation18 + $0x888] sm:$0xff]
    %v8205 = vld [vmem:[#allocation18 + $0x890] sm:$0xff]
    %v8206 = vld [vmem:[#allocation18 + $0x898] sm:$0xff]
    %v8207 = vld [vmem:[#allocation18 + $0x8a0] sm:$0xff]
    %v8208 = vld [vmem:[#allocation18 + $0x8a8] sm:$0xff]
    %v8209 = vld [vmem:[#allocation18 + $0x8b0] sm:$0xff]
    %v8210 = vld [vmem:[#allocation18 + $0x8b8] sm:$0xff]
    %v8211 = vld [vmem:[#allocation18 + $0x8c0] sm:$0xff]
    %v8212 = vld [vmem:[#allocation18 + $0x8c8] sm:$0xff]
    %v8213 = vld [vmem:[#allocation18 + $0x8d0] sm:$0xff]
    %v8214 = vld [vmem:[#allocation18 + $0x8d8] sm:$0xff]
    %v8215 = vld [vmem:[#allocation18 + $0x8e0] sm:$0xff]
    %v8216 = vld [vmem:[#allocation18 + $0x8e8] sm:$0xff]
    %v8217 = vld [vmem:[#allocation18 + $0x8f0] sm:$0xff]
    %v8218 = vld [vmem:[#allocation18 + $0x8f8] sm:$0xff]
    %v8219 = vld [vmem:[#allocation18 + $0x900] sm:$0xff]
    %v8220 = vld [vmem:[#allocation18 + $0x908] sm:$0xff]
    %v8221 = vld [vmem:[#allocation18 + $0x910] sm:$0xff]
    %v8222 = vld [vmem:[#allocation18 + $0x918] sm:$0xff]
    %v8223 = vld [vmem:[#allocation18 + $0x920] sm:$0xff]
    %v8224 = vld [vmem:[#allocation18 + $0x928] sm:$0xff]
    %v8225 = vld [vmem:[#allocation18 + $0x930] sm:$0xff]
    %v8226 = vld [vmem:[#allocation18 + $0x938] sm:$0xff]
    %v8227 = vld [vmem:[#allocation18 + $0x940] sm:$0xff]
    %v8228 = vld [vmem:[#allocation18 + $0x948] sm:$0xff]
    %v8229 = vld [vmem:[#allocation18 + $0x950] sm:$0xff]
    %v8230 = vld [vmem:[#allocation18 + $0x958] sm:$0xff]
    %v8231 = vld [vmem:[#allocation18 + $0x960] sm:$0xff]
    %v8232 = vld [vmem:[#allocation18 + $0x968] sm:$0xff]
    %v8233 = vld [vmem:[#allocation18 + $0x970] sm:$0xff]
    %v8234 = vld [vmem:[#allocation18 + $0x978] sm:$0xff]
    %v8235 = vld [vmem:[#allocation18 + $0x980] sm:$0xff]
    %v8236 = vld [vmem:[#allocation18 + $0x988] sm:$0xff]
    %v8237 = vld [vmem:[#allocation18 + $0x990] sm:$0xff]
    %v8238 = vld [vmem:[#allocation18 + $0x998] sm:$0xff]
    %v8239 = vld [vmem:[#allocation18 + $0x9a0] sm:$0xff]
    %v8240 = vld [vmem:[#allocation18 + $0x9a8] sm:$0xff]
    %v8241 = vld [vmem:[#allocation18 + $0x9b0] sm:$0xff]
    %v8242 = vld [vmem:[#allocation18 + $0x9b8] sm:$0xff]
    %v8243 = vld [vmem:[#allocation18 + $0x9c0] sm:$0xff]
    %v8244 = vld [vmem:[#allocation18 + $0x9c8] sm:$0xff]
    %v8245 = vld [vmem:[#allocation18 + $0x9d0] sm:$0xff]
    %v8246 = vld [vmem:[#allocation18 + $0x9d8] sm:$0xff]
    %v8247 = vld [vmem:[#allocation18 + $0x9e0] sm:$0xff]
    %v8248 = vld [vmem:[#allocation18 + $0x9e8] sm:$0xff]
    %v8249 = vld [vmem:[#allocation18 + $0x9f0] sm:$0xff]
    %v8250 = vld [vmem:[#allocation18 + $0x9f8] sm:$0xff]
    %v8251 = vld [vmem:[#allocation18 + $0xa00] sm:$0xff]
    %v8252 = vld [vmem:[#allocation18 + $0xa08] sm:$0xff]
    %v8253 = vld [vmem:[#allocation18 + $0xa10] sm:$0xff]
    %v8254 = vld [vmem:[#allocation18 + $0xa18] sm:$0xff]
    %v8255 = vld [vmem:[#allocation18 + $0xa20] sm:$0xff]
    %v8256 = vld [vmem:[#allocation18 + $0xa28] sm:$0xff]
    %v8257 = vld [vmem:[#allocation18 + $0xa30] sm:$0xff]
    %v8258 = vld [vmem:[#allocation18 + $0xa38] sm:$0xff]
    %v8259 = vld [vmem:[#allocation18 + $0xa40] sm:$0xff]
    %v8260 = vld [vmem:[#allocation18 + $0xa48] sm:$0xff]
    %v8261 = vld [vmem:[#allocation18 + $0xa50] sm:$0xff]
    %v8262 = vld [vmem:[#allocation18 + $0xa58] sm:$0xff]
    %v8263 = vld [vmem:[#allocation18 + $0xa60] sm:$0xff]
    %v8264 = vld [vmem:[#allocation18 + $0xa68] sm:$0xff]
    %v8265 = vld [vmem:[#allocation18 + $0xa70] sm:$0xff]
    %v8266 = vld [vmem:[#allocation18 + $0xa78] sm:$0xff]
    %v8267 = vld [vmem:[#allocation18 + $0xa80] sm:$0xff]
    %v8268 = vld [vmem:[#allocation18 + $0xa88] sm:$0xff]
    %v8269 = vld [vmem:[#allocation18 + $0xa90] sm:$0xff]
    %v8270 = vld [vmem:[#allocation18 + $0xa98] sm:$0xff]
    %v8271 = vld [vmem:[#allocation18 + $0xaa0] sm:$0xff]
    %v8272 = vld [vmem:[#allocation18 + $0xaa8] sm:$0xff]
    %v8273 = vld [vmem:[#allocation18 + $0xab0] sm:$0xff]
    %v8274 = vld [vmem:[#allocation18 + $0xab8] sm:$0xff]
    %v8275 = vld [vmem:[#allocation18 + $0xac0] sm:$0xff]
    %v8276 = vld [vmem:[#allocation18 + $0xac8] sm:$0xff]
    %v8277 = vld [vmem:[#allocation18 + $0xad0] sm:$0xff]
    %v8278 = vld [vmem:[#allocation18 + $0xad8] sm:$0xff]
    %v8279 = vld [vmem:[#allocation18 + $0xae0] sm:$0xff]
    %v8280 = vld [vmem:[#allocation18 + $0xae8] sm:$0xff]
    %v8281 = vld [vmem:[#allocation18 + $0xaf0] sm:$0xff]
    %v8282 = vld [vmem:[#allocation18 + $0xaf8] sm:$0xff]
    %v8283 = vld [vmem:[#allocation18 + $0xb00] sm:$0xff]
    %v8284 = vld [vmem:[#allocation18 + $0xb08] sm:$0xff]
    %v8285 = vld [vmem:[#allocation18 + $0xb10] sm:$0xff]
    %v8286 = vld [vmem:[#allocation18 + $0xb18] sm:$0xff]
    %v8287 = vld [vmem:[#allocation18 + $0xb20] sm:$0xff]
    %v8288 = vld [vmem:[#allocation18 + $0xb28] sm:$0xff]
    %v8289 = vld [vmem:[#allocation18 + $0xb30] sm:$0xff]
    %v8290 = vld [vmem:[#allocation18 + $0xb38] sm:$0xff]
    %v8291 = vld [vmem:[#allocation18 + $0xb40] sm:$0xff]
    %v8292 = vld [vmem:[#allocation18 + $0xb48] sm:$0xff]
    %v8293 = vld [vmem:[#allocation18 + $0xb50] sm:$0xff]
    %v8294 = vld [vmem:[#allocation18 + $0xb58] sm:$0xff]
    %v8295 = vld [vmem:[#allocation18 + $0xb60] sm:$0xff]
    %v8296 = vld [vmem:[#allocation18 + $0xb68] sm:$0xff]
    %v8297 = vld [vmem:[#allocation18 + $0xb70] sm:$0xff]
    %v8298 = vld [vmem:[#allocation18 + $0xb78] sm:$0xff]
    %v8299 = vld [vmem:[#allocation18 + $0xb80] sm:$0xff]
    %v8300 = vld [vmem:[#allocation18 + $0xb88] sm:$0xff]
    %v8301 = vld [vmem:[#allocation18 + $0xb90] sm:$0xff]
    %v8302 = vld [vmem:[#allocation18 + $0xb98] sm:$0xff]
    %v8303 = vld [vmem:[#allocation18 + $0xba0] sm:$0xff]
    %v8304 = vld [vmem:[#allocation18 + $0xba8] sm:$0xff]
    %v8305 = vld [vmem:[#allocation18 + $0xbb0] sm:$0xff]
    %v8306 = vld [vmem:[#allocation18 + $0xbb8] sm:$0xff]
    %v8307 = vld [vmem:[#allocation18 + $0xbc0] sm:$0xff]
    %v8308 = vld [vmem:[#allocation18 + $0xbc8] sm:$0xff]
    %v8309 = vld [vmem:[#allocation18 + $0xbd0] sm:$0xff]
    %v8310 = vld [vmem:[#allocation18 + $0xbd8] sm:$0xff]
    %v8311 = vld [vmem:[#allocation18 + $0xbe0] sm:$0xff]
    %v8312 = vld [vmem:[#allocation18 + $0xbe8] sm:$0xff]
    %v8313 = vld [vmem:[#allocation18 + $0xbf0] sm:$0xff]
    %v8314 = vld [vmem:[#allocation18 + $0xbf8] sm:$0xff]
    %v8315 = vld [vmem:[#allocation18 + $0xc00] sm:$0xff]
    %v8316 = vld [vmem:[#allocation18 + $0xc08] sm:$0xff]
    %v8317 = vld [vmem:[#allocation18 + $0xc10] sm:$0xff]
    %v8318 = vld [vmem:[#allocation18 + $0xc18] sm:$0xff]
    %v8319 = vld [vmem:[#allocation18 + $0xc20] sm:$0xff]
    %v8320 = vld [vmem:[#allocation18 + $0xc28] sm:$0xff]
    %v8321 = vld [vmem:[#allocation18 + $0xc30] sm:$0xff]
    %v8322 = vld [vmem:[#allocation18 + $0xc38] sm:$0xff]
    %v8323 = vld [vmem:[#allocation18 + $0xc40] sm:$0xff]
    %v8324 = vld [vmem:[#allocation18 + $0xc48] sm:$0xff]
    %v8325 = vld [vmem:[#allocation18 + $0xc50] sm:$0xff]
    %v8326 = vld [vmem:[#allocation18 + $0xc58] sm:$0xff]
    %v8327 = vld [vmem:[#allocation18 + $0xc60] sm:$0xff]
    %v8328 = vld [vmem:[#allocation18 + $0xc68] sm:$0xff]
    %v8329 = vld [vmem:[#allocation18 + $0xc70] sm:$0xff]
    %v8330 = vld [vmem:[#allocation18 + $0xc78] sm:$0xff]
    %v8331 = vld [vmem:[#allocation18 + $0xc80] sm:$0xff]
    %v8332 = vld [vmem:[#allocation18 + $0xc88] sm:$0xff]
    %v8333 = vld [vmem:[#allocation18 + $0xc90] sm:$0xff]
    %v8334 = vld [vmem:[#allocation18 + $0xc98] sm:$0xff]
    %v8335 = vld [vmem:[#allocation18 + $0xca0] sm:$0xff]
    %v8336 = vld [vmem:[#allocation18 + $0xca8] sm:$0xff]
    %v8337 = vld [vmem:[#allocation18 + $0xcb0] sm:$0xff]
    %v8338 = vld [vmem:[#allocation18 + $0xcb8] sm:$0xff]
    %v8339 = vld [vmem:[#allocation18 + $0xcc0] sm:$0xff]
    %v8340 = vld [vmem:[#allocation18 + $0xcc8] sm:$0xff]
    %v8341 = vld [vmem:[#allocation18 + $0xcd0] sm:$0xff]
    %v8342 = vld [vmem:[#allocation18 + $0xcd8] sm:$0xff]
    %v8343 = vld [vmem:[#allocation18 + $0xce0] sm:$0xff]
    %v8344 = vld [vmem:[#allocation18 + $0xce8] sm:$0xff]
    %v8345 = vld [vmem:[#allocation18 + $0xcf0] sm:$0xff]
    %v8346 = vld [vmem:[#allocation18 + $0xcf8] sm:$0xff]
    %v8347 = vld [vmem:[#allocation18 + $0xd00] sm:$0xff]
    %v8348 = vld [vmem:[#allocation18 + $0xd08] sm:$0xff]
    %v8349 = vld [vmem:[#allocation18 + $0xd10] sm:$0xff]
    %v8350 = vld [vmem:[#allocation18 + $0xd18] sm:$0xff]
    %v8351 = vld [vmem:[#allocation18 + $0xd20] sm:$0xff]
    %v8352 = vld [vmem:[#allocation18 + $0xd28] sm:$0xff]
    %v8353 = vld [vmem:[#allocation18 + $0xd30] sm:$0xff]
    %v8354 = vld [vmem:[#allocation18 + $0xd38] sm:$0xff]
    %v8355 = vld [vmem:[#allocation18 + $0xd40] sm:$0xff]
    %v8356 = vld [vmem:[#allocation18 + $0xd48] sm:$0xff]
    %v8357 = vld [vmem:[#allocation18 + $0xd50] sm:$0xff]
    %v8358 = vld [vmem:[#allocation18 + $0xd58] sm:$0xff]
    %v8359 = vld [vmem:[#allocation18 + $0xd60] sm:$0xff]
    %v8360 = vld [vmem:[#allocation18 + $0xd68] sm:$0xff]
    %v8361 = vld [vmem:[#allocation18 + $0xd70] sm:$0xff]
    %v8362 = vld [vmem:[#allocation18 + $0xd78] sm:$0xff]
    %v8363 = vld [vmem:[#allocation18 + $0xd80] sm:$0xff]
    %v8364 = vld [vmem:[#allocation18 + $0xd88] sm:$0xff]
    %v8365 = vld [vmem:[#allocation18 + $0xd90] sm:$0xff]
    %v8366 = vld [vmem:[#allocation18 + $0xd98] sm:$0xff]
    %v8367 = vld [vmem:[#allocation18 + $0xda0] sm:$0xff]
    %v8368 = vld [vmem:[#allocation18 + $0xda8] sm:$0xff]
    %v8369 = vld [vmem:[#allocation18 + $0xdb0] sm:$0xff]
    %v8370 = vld [vmem:[#allocation18 + $0xdb8] sm:$0xff]
    %v8371 = vld [vmem:[#allocation18 + $0xdc0] sm:$0xff]
    %v8372 = vld [vmem:[#allocation18 + $0xdc8] sm:$0xff]
    %v8373 = vld [vmem:[#allocation18 + $0xdd0] sm:$0xff]
    %v8374 = vld [vmem:[#allocation18 + $0xdd8] sm:$0xff]
    %v8375 = vld [vmem:[#allocation18 + $0xde0] sm:$0xff]
    %v8376 = vld [vmem:[#allocation18 + $0xde8] sm:$0xff]
    %v8377 = vld [vmem:[#allocation18 + $0xdf0] sm:$0xff]
    %v8378 = vld [vmem:[#allocation18 + $0xdf8] sm:$0xff]
    %v8379 = vld [vmem:[#allocation18 + $0xe00] sm:$0xff]
    %v8380 = vld [vmem:[#allocation18 + $0xe08] sm:$0xff]
    %v8381 = vld [vmem:[#allocation18 + $0xe10] sm:$0xff]
    %v8382 = vld [vmem:[#allocation18 + $0xe18] sm:$0xff]
    %v8383 = vld [vmem:[#allocation18 + $0xe20] sm:$0xff]
    %v8384 = vld [vmem:[#allocation18 + $0xe28] sm:$0xff]
    %v8385 = vld [vmem:[#allocation18 + $0xe30] sm:$0xff]
    %v8386 = vld [vmem:[#allocation18 + $0xe38] sm:$0xff]
    %v8387 = vld [vmem:[#allocation18 + $0xe40] sm:$0xff]
    %v8388 = vld [vmem:[#allocation18 + $0xe48] sm:$0xff]
    %v8389 = vld [vmem:[#allocation18 + $0xe50] sm:$0xff]
    %v8390 = vld [vmem:[#allocation18 + $0xe58] sm:$0xff]
    %v8391 = vld [vmem:[#allocation18 + $0xe60] sm:$0xff]
    %v8392 = vld [vmem:[#allocation18 + $0xe68] sm:$0xff]
    %v8393 = vld [vmem:[#allocation18 + $0xe70] sm:$0xff]
    %v8394 = vld [vmem:[#allocation18 + $0xe78] sm:$0xff]
    %v8395 = vld [vmem:[#allocation18 + $0xe80] sm:$0xff]
    %v8396 = vld [vmem:[#allocation18 + $0xe88] sm:$0xff]
    %v8397 = vld [vmem:[#allocation18 + $0xe90] sm:$0xff]
    %v8398 = vld [vmem:[#allocation18 + $0xe98] sm:$0xff]
    %v8399 = vld [vmem:[#allocation18 + $0xea0] sm:$0xff]
    %v8400 = vld [vmem:[#allocation18 + $0xea8] sm:$0xff]
    %v8401 = vld [vmem:[#allocation18 + $0xeb0] sm:$0xff]
    %v8402 = vld [vmem:[#allocation18 + $0xeb8] sm:$0xff]
    %v8403 = vld [vmem:[#allocation18 + $0xec0] sm:$0xff]
    %v8404 = vld [vmem:[#allocation18 + $0xec8] sm:$0xff]
    %v8405 = vld [vmem:[#allocation18 + $0xed0] sm:$0xff]
    %v8406 = vld [vmem:[#allocation18 + $0xed8] sm:$0xff]
    %v8407 = vld [vmem:[#allocation18 + $0xee0] sm:$0xff]
    %v8408 = vld [vmem:[#allocation18 + $0xee8] sm:$0xff]
    %v8409 = vld [vmem:[#allocation18 + $0xef0] sm:$0xff]
    %v8410 = vld [vmem:[#allocation18 + $0xef8] sm:$0xff]
    %v8411 = vld [vmem:[#allocation18 + $0xf00] sm:$0xff]
    %v8412 = vld [vmem:[#allocation18 + $0xf08] sm:$0xff]
    %v8413 = vld [vmem:[#allocation18 + $0xf10] sm:$0xff]
    %v8414 = vld [vmem:[#allocation18 + $0xf18] sm:$0xff]
    %v8415 = vld [vmem:[#allocation18 + $0xf20] sm:$0xff]
    %v8416 = vld [vmem:[#allocation18 + $0xf28] sm:$0xff]
    %v8417 = vld [vmem:[#allocation18 + $0xf30] sm:$0xff]
    %v8418 = vld [vmem:[#allocation18 + $0xf38] sm:$0xff]
    %v8419 = vld [vmem:[#allocation18 + $0xf40] sm:$0xff]
    %v8420 = vld [vmem:[#allocation18 + $0xf48] sm:$0xff]
    %v8421 = vld [vmem:[#allocation18 + $0xf50] sm:$0xff]
    %v8422 = vld [vmem:[#allocation18 + $0xf58] sm:$0xff]
    %v8423 = vld [vmem:[#allocation18 + $0xf60] sm:$0xff]
    %v8424 = vld [vmem:[#allocation18 + $0xf68] sm:$0xff]
    %v8425 = vld [vmem:[#allocation18 + $0xf70] sm:$0xff]
    %v8426 = vld [vmem:[#allocation18 + $0xf78] sm:$0xff]
    %v8427 = vld [vmem:[#allocation18 + $0xf80] sm:$0xff]
    %v8428 = vld [vmem:[#allocation18 + $0xf88] sm:$0xff]
    %v8429 = vld [vmem:[#allocation18 + $0xf90] sm:$0xff]
    %v8430 = vld [vmem:[#allocation18 + $0xf98] sm:$0xff]
    %v8431 = vld [vmem:[#allocation18 + $0xfa0] sm:$0xff]
    %v8432 = vld [vmem:[#allocation18 + $0xfa8] sm:$0xff]
    %v8433 = vld [vmem:[#allocation18 + $0xfb0] sm:$0xff]
    %v8434 = vld [vmem:[#allocation18 + $0xfb8] sm:$0xff]
    %v8435 = vld [vmem:[#allocation18 + $0xfc0] sm:$0xff]
    %v8436 = vld [vmem:[#allocation18 + $0xfc8] sm:$0xff]
    %v8437 = vld [vmem:[#allocation18 + $0xfd0] sm:$0xff]
    %v8438 = vld [vmem:[#allocation18 + $0xfd8] sm:$0xff]
    %v8439 = vld [vmem:[#allocation18 + $0xfe0] sm:$0xff]
    %v8440 = vld [vmem:[#allocation18 + $0xfe8] sm:$0xff]
    %v8441 = vld [vmem:[#allocation18 + $0xff0] sm:$0xff]
    %v8442 = vld [vmem:[#allocation18 + $0xff8] sm:$0xff]
    %v8443 = vld [vmem:[#allocation18 + $0x1000] sm:$0xff]
    %v8444 = vld [vmem:[#allocation18 + $0x1008] sm:$0xff]
    %v8445 = vld [vmem:[#allocation18 + $0x1010] sm:$0xff]
    %v8446 = vld [vmem:[#allocation18 + $0x1018] sm:$0xff]
    %v8447 = vld [vmem:[#allocation18 + $0x1020] sm:$0xff]
    %v8448 = vld [vmem:[#allocation18 + $0x1028] sm:$0xff]
    %v8449 = vld [vmem:[#allocation18 + $0x1030] sm:$0xff]
    %v8450 = vld [vmem:[#allocation18 + $0x1038] sm:$0xff]
    %v8451 = vld [vmem:[#allocation18 + $0x1040] sm:$0xff]
    %v8452 = vld [vmem:[#allocation18 + $0x1048] sm:$0xff]
    %v8453 = vld [vmem:[#allocation18 + $0x1050] sm:$0xff]
    %v8454 = vld [vmem:[#allocation18 + $0x1058] sm:$0xff]
    %v8455 = vld [vmem:[#allocation18 + $0x1060] sm:$0xff]
    %v8456 = vld [vmem:[#allocation18 + $0x1068] sm:$0xff]
    %v8457 = vld [vmem:[#allocation18 + $0x1070] sm:$0xff]
    %v8458 = vld [vmem:[#allocation18 + $0x1078] sm:$0xff]
    %v8459 = vld [vmem:[#allocation18 + $0x1080] sm:$0xff]
    %v8460 = vld [vmem:[#allocation18 + $0x1088] sm:$0xff]
    %v8461 = vld [vmem:[#allocation18 + $0x1090] sm:$0xff]
    %v8462 = vld [vmem:[#allocation18 + $0x1098] sm:$0xff]
    %v8463 = vld [vmem:[#allocation18 + $0x10a0] sm:$0xff]
    %v8464 = vld [vmem:[#allocation18 + $0x10a8] sm:$0xff]
    %v8465 = vld [vmem:[#allocation18 + $0x10b0] sm:$0xff]
    %v8466 = vld [vmem:[#allocation18 + $0x10b8] sm:$0xff]
    %v8467 = vld [vmem:[#allocation18 + $0x10c0] sm:$0xff]
    %v8468 = vld [vmem:[#allocation18 + $0x10c8] sm:$0xff]
    %v8469 = vld [vmem:[#allocation18 + $0x10d0] sm:$0xff]
    %v8470 = vld [vmem:[#allocation18 + $0x10d8] sm:$0xff]
    %v8471 = vld [vmem:[#allocation18 + $0x10e0] sm:$0xff]
    %v8472 = vld [vmem:[#allocation18 + $0x10e8] sm:$0xff]
    %v8473 = vld [vmem:[#allocation18 + $0x10f0] sm:$0xff]
    %v8474 = vld [vmem:[#allocation18 + $0x10f8] sm:$0xff]
    %v8475 = vld [vmem:[#allocation18 + $0x1100] sm:$0xff]
    %v8476 = vld [vmem:[#allocation18 + $0x1108] sm:$0xff]
    %v8477 = vld [vmem:[#allocation18 + $0x1110] sm:$0xff]
    %v8478 = vld [vmem:[#allocation18 + $0x1118] sm:$0xff]
    %v8479 = vld [vmem:[#allocation18 + $0x1120] sm:$0xff]
    %v8480 = vld [vmem:[#allocation18 + $0x1128] sm:$0xff]
    %v8481 = vld [vmem:[#allocation18 + $0x1130] sm:$0xff]
    %v8482 = vld [vmem:[#allocation18 + $0x1138] sm:$0xff]
    %v8483 = vld [vmem:[#allocation18 + $0x1140] sm:$0xff]
    %v8484 = vld [vmem:[#allocation18 + $0x1148] sm:$0xff]
    %v8485 = vld [vmem:[#allocation18 + $0x1150] sm:$0xff]
    %v8486 = vld [vmem:[#allocation18 + $0x1158] sm:$0xff]
    %v8487 = vld [vmem:[#allocation18 + $0x1160] sm:$0xff]
    %v8488 = vld [vmem:[#allocation18 + $0x1168] sm:$0xff]
    %v8489 = vld [vmem:[#allocation18 + $0x1170] sm:$0xff]
    %v8490 = vld [vmem:[#allocation18 + $0x1178] sm:$0xff]
    %v8491 = vld [vmem:[#allocation18 + $0x1180] sm:$0xff]
    %v8492 = vld [vmem:[#allocation18 + $0x1188] sm:$0xff]
    %v8493 = vld [vmem:[#allocation18 + $0x1190] sm:$0xff]
    %v8494 = vld [vmem:[#allocation18 + $0x1198] sm:$0xff]
    %v8495 = vld [vmem:[#allocation18 + $0x11a0] sm:$0xff]
    %v8496 = vld [vmem:[#allocation18 + $0x11a8] sm:$0xff]
    %v8497 = vld [vmem:[#allocation18 + $0x11b0] sm:$0xff]
    %v8498 = vld [vmem:[#allocation18 + $0x11b8] sm:$0xff]
    %v8499 = vld [vmem:[#allocation18 + $0x11c0] sm:$0xff]
    %v8500 = vld [vmem:[#allocation18 + $0x11c8] sm:$0xff]
    %v8501 = vld [vmem:[#allocation18 + $0x11d0] sm:$0xff]
    %v8502 = vld [vmem:[#allocation18 + $0x11d8] sm:$0xff]
    %v8503 = vld [vmem:[#allocation18 + $0x11e0] sm:$0xff]
    %v8504 = vld [vmem:[#allocation18 + $0x11e8] sm:$0xff]
    %v8505 = vld [vmem:[#allocation18 + $0x11f0] sm:$0xff]
    %v8506 = vld [vmem:[#allocation18 + $0x11f8] sm:$0xff]
    %v8507 = vld [vmem:[#allocation18 + $0x1200] sm:$0xff]
    %v8508 = vld [vmem:[#allocation18 + $0x1208] sm:$0xff]
    %v8509 = vld [vmem:[#allocation18 + $0x1210] sm:$0xff]
    %v8510 = vld [vmem:[#allocation18 + $0x1218] sm:$0xff]
    %v8511 = vld [vmem:[#allocation18 + $0x1220] sm:$0xff]
    %v8512 = vld [vmem:[#allocation18 + $0x1228] sm:$0xff]
    %v8513 = vld [vmem:[#allocation18 + $0x1230] sm:$0xff]
    %v8514 = vld [vmem:[#allocation18 + $0x1238] sm:$0xff]
    %v8515 = vld [vmem:[#allocation18 + $0x1240] sm:$0xff]
    %v8516 = vld [vmem:[#allocation18 + $0x1248] sm:$0xff]
    %v8517 = vld [vmem:[#allocation18 + $0x1250] sm:$0xff]
    %v8518 = vld [vmem:[#allocation18 + $0x1258] sm:$0xff]
    %v8519 = vld [vmem:[#allocation18 + $0x1260] sm:$0xff]
    %v8520 = vld [vmem:[#allocation18 + $0x1268] sm:$0xff]
    %v8521 = vld [vmem:[#allocation18 + $0x1270] sm:$0xff]
    %v8522 = vld [vmem:[#allocation18 + $0x1278] sm:$0xff]
    %v8523 = vld [vmem:[#allocation18 + $0x1280] sm:$0xff]
    %v8524 = vld [vmem:[#allocation18 + $0x1288] sm:$0xff]
    %v8525 = vld [vmem:[#allocation18 + $0x1290] sm:$0xff]
    %v8526 = vld [vmem:[#allocation18 + $0x1298] sm:$0xff]
    %v8527 = vld [vmem:[#allocation18 + $0x12a0] sm:$0xff]
    %v8528 = vld [vmem:[#allocation18 + $0x12a8] sm:$0xff]
    %v8529 = vld [vmem:[#allocation18 + $0x12b0] sm:$0xff]
    %v8530 = vld [vmem:[#allocation18 + $0x12b8] sm:$0xff]
    %v8531 = vld [vmem:[#allocation18 + $0x12c0] sm:$0xff]
    %v8532 = vld [vmem:[#allocation18 + $0x12c8] sm:$0xff]
    %v8533 = vld [vmem:[#allocation18 + $0x12d0] sm:$0xff]
    %v8534 = vld [vmem:[#allocation18 + $0x12d8] sm:$0xff]
    %v8535 = vld [vmem:[#allocation18 + $0x12e0] sm:$0xff]
    %v8536 = vld [vmem:[#allocation18 + $0x12e8] sm:$0xff]
    %v8537 = vld [vmem:[#allocation18 + $0x12f0] sm:$0xff]
    %v8538 = vld [vmem:[#allocation18 + $0x12f8] sm:$0xff]
    %v8539 = vld [vmem:[#allocation18 + $0x1300] sm:$0xff]
    %v8540 = vld [vmem:[#allocation18 + $0x1308] sm:$0xff]
    %v8541 = vld [vmem:[#allocation18 + $0x1310] sm:$0xff]
    %v8542 = vld [vmem:[#allocation18 + $0x1318] sm:$0xff]
    %v8543 = vld [vmem:[#allocation18 + $0x1320] sm:$0xff]
    %v8544 = vld [vmem:[#allocation18 + $0x1328] sm:$0xff]
    %v8545 = vld [vmem:[#allocation18 + $0x1330] sm:$0xff]
    %v8546 = vld [vmem:[#allocation18 + $0x1338] sm:$0xff]
    %v8547 = vld [vmem:[#allocation18 + $0x1340] sm:$0xff]
    %v8548 = vld [vmem:[#allocation18 + $0x1348] sm:$0xff]
    %v8549 = vld [vmem:[#allocation18 + $0x1350] sm:$0xff]
    %v8550 = vld [vmem:[#allocation18 + $0x1358] sm:$0xff]
    %v8551 = vld [vmem:[#allocation18 + $0x1360] sm:$0xff]
    %v8552 = vld [vmem:[#allocation18 + $0x1368] sm:$0xff]
    %v8553 = vld [vmem:[#allocation18 + $0x1370] sm:$0xff]
    %v8554 = vld [vmem:[#allocation18 + $0x1378] sm:$0xff]
    %v8555 = vld [vmem:[#allocation18 + $0x1380] sm:$0xff]
    %v8556 = vld [vmem:[#allocation18 + $0x1388] sm:$0xff]
    %v8557 = vld [vmem:[#allocation18 + $0x1390] sm:$0xff]
    %v8558 = vld [vmem:[#allocation18 + $0x1398] sm:$0xff]
    %v8559 = vld [vmem:[#allocation18 + $0x13a0] sm:$0xff]
    %v8560 = vld [vmem:[#allocation18 + $0x13a8] sm:$0xff]
    %v8561 = vld [vmem:[#allocation18 + $0x13b0] sm:$0xff]
    %v8562 = vld [vmem:[#allocation18 + $0x13b8] sm:$0xff]
    %v8563 = vld [vmem:[#allocation18 + $0x13c0] sm:$0xff]
    %v8564 = vld [vmem:[#allocation18 + $0x13c8] sm:$0xff]
    %v8565 = vld [vmem:[#allocation18 + $0x13d0] sm:$0xff]
    %v8566 = vld [vmem:[#allocation18 + $0x13d8] sm:$0xff]
    %v8567 = vld [vmem:[#allocation18 + $0x13e0] sm:$0xff]
    %v8568 = vld [vmem:[#allocation18 + $0x13e8] sm:$0xff]
    %v8569 = vld [vmem:[#allocation18 + $0x13f0] sm:$0xff]
    %v8570 = vld [vmem:[#allocation18 + $0x13f8] sm:$0xff]
    %v8571 = vld [vmem:[#allocation20 + $0x13] sm:$0xff]
    %v8572 = vld [vmem:[#allocation20 + $0x1b] sm:$0x3]
    %v8575 = vlaneseq
    %v8576 = vshrl.u32 %v8575, 7
    %v8577 = vsub.s32 0, %v8576
    %v8578 = vrot.slane %v8571, %v8577
    %v8579 = vlaneseq
    %v8580 = vshrl.u32 %v8579, 7
    %v8581 = vsub.s32 1, %v8580
    %v8582 = vrot.slane %v8571, %v8581
    %v8583 = vlaneseq
    %v8584 = vshrl.u32 %v8583, 7
    %v8585 = vsub.s32 2, %v8584
    %v8586 = vrot.slane %v8571, %v8585
    %v8587 = vlaneseq
    %v8588 = vshrl.u32 %v8587, 7
    %v8589 = vsub.s32 3, %v8588
    %v8590 = vrot.slane %v8571, %v8589
    %v8591 = vlaneseq
    %v8592 = vshrl.u32 %v8591, 7
    %v8593 = vsub.s32 4, %v8592
    %v8594 = vrot.slane %v8571, %v8593
    %v8595 = vlaneseq
    %v8596 = vshrl.u32 %v8595, 7
    %v8597 = vsub.s32 5, %v8596
    %v8598 = vrot.slane %v8571, %v8597
    %v8599 = vlaneseq
    %v8600 = vshrl.u32 %v8599, 7
    %v8601 = vsub.s32 6, %v8600
    %v8602 = vrot.slane %v8571, %v8601
    %v8603 = vlaneseq
    %v8604 = vshrl.u32 %v8603, 7
    %v8605 = vsub.s32 7, %v8604
    %v8606 = vrot.slane %v8571, %v8605
    %v8607 = vlaneseq
    %v8608 = vshrl.u32 %v8607, 7
    %v8609 = vsub.s32 0, %v8608
    %v8610 = vrot.slane %v8572, %v8609
    %v8611 = vlaneseq
    %v8612 = vshrl.u32 %v8611, 7
    %v8613 = vsub.s32 1, %v8612
    %v8614 = vrot.slane %v8572, %v8613
    %v8629 = vunpack.c.l.b16 %v7927
    %v8630 = vunpack.c.h.b16 %v7927
    %v8631 = vunpack.c.l.b16 %v7928
    %v8632 = vunpack.c.h.b16 %v7928
    %v8633 = vunpack.c.l.b16 %v7929
    %v8634 = vunpack.c.h.b16 %v7929
    %v8635 = vunpack.c.l.b16 %v7930
    %v8636 = vunpack.c.h.b16 %v7930
    %v8637 = vpack.c.b16 %v8629, %v8629
    %v8638 = vpack.c.b16 %v8630, %v8630
    %v8639 = vpack.c.b16 %v8631, %v8631
    %v8640 = vpack.c.b16 %v8632, %v8632
    %v8641 = vpack.c.b16 %v8633, %v8633
    %v8642 = vpack.c.b16 %v8634, %v8634
    %v8643 = vpack.c.b16 %v8635, %v8635
    %v8644 = vpack.c.b16 %v8636, %v8636
    %v9293 = vunpack.c.l.b16 %v7931
    %v9294 = vunpack.c.h.b16 %v7931
    %v9295 = vunpack.c.l.b16 %v7932
    %v9296 = vunpack.c.h.b16 %v7932
    %v9297 = vunpack.c.l.b16 %v7933
    %v9298 = vunpack.c.h.b16 %v7933
    %v9299 = vunpack.c.l.b16 %v7934
    %v9300 = vunpack.c.h.b16 %v7934
    %v9301 = vunpack.c.l.b16 %v7935
    %v9302 = vunpack.c.h.b16 %v7935
    %v9303 = vunpack.c.l.b16 %v7936
    %v9304 = vunpack.c.h.b16 %v7936
    %v9305 = vunpack.c.l.b16 %v7937
    %v9306 = vunpack.c.h.b16 %v7937
    %v9307 = vunpack.c.l.b16 %v7938
    %v9308 = vunpack.c.h.b16 %v7938
    %v9309 = vunpack.c.l.b16 %v7939
    %v9310 = vunpack.c.h.b16 %v7939
    %v9311 = vunpack.c.l.b16 %v7940
    %v9312 = vunpack.c.h.b16 %v7940
    %v9313 = vunpack.c.l.b16 %v7941
    %v9314 = vunpack.c.h.b16 %v7941
    %v9315 = vunpack.c.l.b16 %v7942
    %v9316 = vunpack.c.h.b16 %v7942
    %v9317 = vunpack.c.l.b16 %v7943
    %v9318 = vunpack.c.h.b16 %v7943
    %v9319 = vunpack.c.l.b16 %v7944
    %v9320 = vunpack.c.h.b16 %v7944
    %v9321 = vunpack.c.l.b16 %v7945
    %v9322 = vunpack.c.h.b16 %v7945
    %v9323 = vunpack.c.l.b16 %v7946
    %v9324 = vunpack.c.h.b16 %v7946
    %v9325 = vunpack.c.l.b16 %v7947
    %v9326 = vunpack.c.h.b16 %v7947
    %v9327 = vunpack.c.l.b16 %v7948
    %v9328 = vunpack.c.h.b16 %v7948
    %v9329 = vunpack.c.l.b16 %v7949
    %v9330 = vunpack.c.h.b16 %v7949
    %v9331 = vunpack.c.l.b16 %v7950
    %v9332 = vunpack.c.h.b16 %v7950
    %v9333 = vunpack.c.l.b16 %v7951
    %v9334 = vunpack.c.h.b16 %v7951
    %v9335 = vunpack.c.l.b16 %v7952
    %v9336 = vunpack.c.h.b16 %v7952
    %v9337 = vunpack.c.l.b16 %v7953
    %v9338 = vunpack.c.h.b16 %v7953
    %v9339 = vunpack.c.l.b16 %v7954
    %v9340 = vunpack.c.h.b16 %v7954
    %v9341 = vunpack.c.l.b16 %v7955
    %v9342 = vunpack.c.h.b16 %v7955
    %v9343 = vunpack.c.l.b16 %v7956
    %v9344 = vunpack.c.h.b16 %v7956
    %v9345 = vunpack.c.l.b16 %v7957
    %v9346 = vunpack.c.h.b16 %v7957
    %v9347 = vunpack.c.l.b16 %v7958
    %v9348 = vunpack.c.h.b16 %v7958
    %v9349 = vunpack.c.l.b16 %v7959
    %v9350 = vunpack.c.h.b16 %v7959
    %v9351 = vunpack.c.l.b16 %v7960
    %v9352 = vunpack.c.h.b16 %v7960
    %v9353 = vunpack.c.l.b16 %v7961
    %v9354 = vunpack.c.h.b16 %v7961
    %v9355 = vunpack.c.l.b16 %v7962
    %v9356 = vunpack.c.h.b16 %v7962
    %v9357 = vunpack.c.l.b16 %v7963
    %v9358 = vunpack.c.h.b16 %v7963
    %v9359 = vunpack.c.l.b16 %v7964
    %v9360 = vunpack.c.h.b16 %v7964
    %v9361 = vunpack.c.l.b16 %v7965
    %v9362 = vunpack.c.h.b16 %v7965
    %v9363 = vunpack.c.l.b16 %v7966
    %v9364 = vunpack.c.h.b16 %v7966
    %v9365 = vunpack.c.l.b16 %v7967
    %v9366 = vunpack.c.h.b16 %v7967
    %v9367 = vunpack.c.l.b16 %v7968
    %v9368 = vunpack.c.h.b16 %v7968
    %v9369 = vunpack.c.l.b16 %v7969
    %v9370 = vunpack.c.h.b16 %v7969
    %v9371 = vunpack.c.l.b16 %v7970
    %v9372 = vunpack.c.h.b16 %v7970
    %v9373 = vunpack.c.l.b16 %v7971
    %v9374 = vunpack.c.h.b16 %v7971
    %v9375 = vunpack.c.l.b16 %v7972
    %v9376 = vunpack.c.h.b16 %v7972
    %v9377 = vunpack.c.l.b16 %v7973
    %v9378 = vunpack.c.h.b16 %v7973
    %v9379 = vunpack.c.l.b16 %v7974
    %v9380 = vunpack.c.h.b16 %v7974
    %v9381 = vunpack.c.l.b16 %v7975
    %v9382 = vunpack.c.h.b16 %v7975
    %v9383 = vunpack.c.l.b16 %v7976
    %v9384 = vunpack.c.h.b16 %v7976
    %v9385 = vunpack.c.l.b16 %v7977
    %v9386 = vunpack.c.h.b16 %v7977
    %v9387 = vunpack.c.l.b16 %v7978
    %v9388 = vunpack.c.h.b16 %v7978
    %v9389 = vunpack.c.l.b16 %v7979
    %v9390 = vunpack.c.h.b16 %v7979
    %v9391 = vunpack.c.l.b16 %v7980
    %v9392 = vunpack.c.h.b16 %v7980
    %v9393 = vunpack.c.l.b16 %v7981
    %v9394 = vunpack.c.h.b16 %v7981
    %v9395 = vunpack.c.l.b16 %v7982
    %v9396 = vunpack.c.h.b16 %v7982
    %v9397 = vunpack.c.l.b16 %v7983
    %v9398 = vunpack.c.h.b16 %v7983
    %v9399 = vunpack.c.l.b16 %v7984
    %v9400 = vunpack.c.h.b16 %v7984
    %v9401 = vunpack.c.l.b16 %v7985
    %v9402 = vunpack.c.h.b16 %v7985
    %v9403 = vunpack.c.l.b16 %v7986
    %v9404 = vunpack.c.h.b16 %v7986
    %v9405 = vunpack.c.l.b16 %v7987
    %v9406 = vunpack.c.h.b16 %v7987
    %v9407 = vunpack.c.l.b16 %v7988
    %v9408 = vunpack.c.h.b16 %v7988
    %v9409 = vunpack.c.l.b16 %v7989
    %v9410 = vunpack.c.h.b16 %v7989
    %v9411 = vunpack.c.l.b16 %v7990
    %v9412 = vunpack.c.h.b16 %v7990
    %v9413 = vunpack.c.l.b16 %v7991
    %v9414 = vunpack.c.h.b16 %v7991
    %v9415 = vunpack.c.l.b16 %v7992
    %v9416 = vunpack.c.h.b16 %v7992
    %v9417 = vunpack.c.l.b16 %v7993
    %v9418 = vunpack.c.h.b16 %v7993
    %v9419 = vunpack.c.l.b16 %v7994
    %v9420 = vunpack.c.h.b16 %v7994
    %v9421 = vunpack.c.l.b16 %v7995
    %v9422 = vunpack.c.h.b16 %v7995
    %v9423 = vunpack.c.l.b16 %v7996
    %v9424 = vunpack.c.h.b16 %v7996
    %v9425 = vunpack.c.l.b16 %v7997
    %v9426 = vunpack.c.h.b16 %v7997
    %v9427 = vunpack.c.l.b16 %v7998
    %v9428 = vunpack.c.h.b16 %v7998
    %v9429 = vunpack.c.l.b16 %v7999
    %v9430 = vunpack.c.h.b16 %v7999
    %v9431 = vunpack.c.l.b16 %v8000
    %v9432 = vunpack.c.h.b16 %v8000
    %v9433 = vunpack.c.l.b16 %v8001
    %v9434 = vunpack.c.h.b16 %v8001
    %v9435 = vunpack.c.l.b16 %v8002
    %v9436 = vunpack.c.h.b16 %v8002
    %v9437 = vunpack.c.l.b16 %v8003
    %v9438 = vunpack.c.h.b16 %v8003
    %v9439 = vunpack.c.l.b16 %v8004
    %v9440 = vunpack.c.h.b16 %v8004
    %v9441 = vunpack.c.l.b16 %v8005
    %v9442 = vunpack.c.h.b16 %v8005
    %v9443 = vunpack.c.l.b16 %v8006
    %v9444 = vunpack.c.h.b16 %v8006
    %v9445 = vunpack.c.l.b16 %v8007
    %v9446 = vunpack.c.h.b16 %v8007
    %v9447 = vunpack.c.l.b16 %v8008
    %v9448 = vunpack.c.h.b16 %v8008
    %v9449 = vunpack.c.l.b16 %v8009
    %v9450 = vunpack.c.h.b16 %v8009
    %v9451 = vunpack.c.l.b16 %v8010
    %v9452 = vunpack.c.h.b16 %v8010
    %v9453 = vunpack.c.l.b16 %v8011
    %v9454 = vunpack.c.h.b16 %v8011
    %v9455 = vunpack.c.l.b16 %v8012
    %v9456 = vunpack.c.h.b16 %v8012
    %v9457 = vunpack.c.l.b16 %v8013
    %v9458 = vunpack.c.h.b16 %v8013
    %v9459 = vunpack.c.l.b16 %v8014
    %v9460 = vunpack.c.h.b16 %v8014
    %v9461 = vunpack.c.l.b16 %v8015
    %v9462 = vunpack.c.h.b16 %v8015
    %v9463 = vunpack.c.l.b16 %v8016
    %v9464 = vunpack.c.h.b16 %v8016
    %v9465 = vunpack.c.l.b16 %v8017
    %v9466 = vunpack.c.h.b16 %v8017
    %v9467 = vunpack.c.l.b16 %v8018
    %v9468 = vunpack.c.h.b16 %v8018
    %v9469 = vunpack.c.l.b16 %v8019
    %v9470 = vunpack.c.h.b16 %v8019
    %v9471 = vunpack.c.l.b16 %v8020
    %v9472 = vunpack.c.h.b16 %v8020
    %v9473 = vunpack.c.l.b16 %v8021
    %v9474 = vunpack.c.h.b16 %v8021
    %v9475 = vunpack.c.l.b16 %v8022
    %v9476 = vunpack.c.h.b16 %v8022
    %v9477 = vunpack.c.l.b16 %v8023
    %v9478 = vunpack.c.h.b16 %v8023
    %v9479 = vunpack.c.l.b16 %v8024
    %v9480 = vunpack.c.h.b16 %v8024
    %v9481 = vunpack.c.l.b16 %v8025
    %v9482 = vunpack.c.h.b16 %v8025
    %v9483 = vunpack.c.l.b16 %v8026
    %v9484 = vunpack.c.h.b16 %v8026
    %v9485 = vunpack.c.l.b16 %v8027
    %v9486 = vunpack.c.h.b16 %v8027
    %v9487 = vunpack.c.l.b16 %v8028
    %v9488 = vunpack.c.h.b16 %v8028
    %v9489 = vunpack.c.l.b16 %v8029
    %v9490 = vunpack.c.h.b16 %v8029
    %v9491 = vunpack.c.l.b16 %v8030
    %v9492 = vunpack.c.h.b16 %v8030
    %v9493 = vunpack.c.l.b16 %v8031
    %v9494 = vunpack.c.h.b16 %v8031
    %v9495 = vunpack.c.l.b16 %v8032
    %v9496 = vunpack.c.h.b16 %v8032
    %v9497 = vunpack.c.l.b16 %v8033
    %v9498 = vunpack.c.h.b16 %v8033
    %v9499 = vunpack.c.l.b16 %v8034
    %v9500 = vunpack.c.h.b16 %v8034
    %v9501 = vunpack.c.l.b16 %v8035
    %v9502 = vunpack.c.h.b16 %v8035
    %v9503 = vunpack.c.l.b16 %v8036
    %v9504 = vunpack.c.h.b16 %v8036
    %v9505 = vunpack.c.l.b16 %v8037
    %v9506 = vunpack.c.h.b16 %v8037
    %v9507 = vunpack.c.l.b16 %v8038
    %v9508 = vunpack.c.h.b16 %v8038
    %v9509 = vunpack.c.l.b16 %v8039
    %v9510 = vunpack.c.h.b16 %v8039
    %v9511 = vunpack.c.l.b16 %v8040
    %v9512 = vunpack.c.h.b16 %v8040
    %v9513 = vunpack.c.l.b16 %v8041
    %v9514 = vunpack.c.h.b16 %v8041
    %v9515 = vunpack.c.l.b16 %v8042
    %v9516 = vunpack.c.h.b16 %v8042
    %v9517 = vunpack.c.l.b16 %v8043
    %v9518 = vunpack.c.h.b16 %v8043
    %v9519 = vunpack.c.l.b16 %v8044
    %v9520 = vunpack.c.h.b16 %v8044
    %v9521 = vunpack.c.l.b16 %v8045
    %v9522 = vunpack.c.h.b16 %v8045
    %v9523 = vunpack.c.l.b16 %v8046
    %v9524 = vunpack.c.h.b16 %v8046
    %v9525 = vunpack.c.l.b16 %v8047
    %v9526 = vunpack.c.h.b16 %v8047
    %v9527 = vunpack.c.l.b16 %v8048
    %v9528 = vunpack.c.h.b16 %v8048
    %v9529 = vunpack.c.l.b16 %v8049
    %v9530 = vunpack.c.h.b16 %v8049
    %v9531 = vunpack.c.l.b16 %v8050
    %v9532 = vunpack.c.h.b16 %v8050
    %v9533 = vunpack.c.l.b16 %v8051
    %v9534 = vunpack.c.h.b16 %v8051
    %v9535 = vunpack.c.l.b16 %v8052
    %v9536 = vunpack.c.h.b16 %v8052
    %v9537 = vunpack.c.l.b16 %v8053
    %v9538 = vunpack.c.h.b16 %v8053
    %v9539 = vunpack.c.l.b16 %v8054
    %v9540 = vunpack.c.h.b16 %v8054
    %v9541 = vunpack.c.l.b16 %v8055
    %v9542 = vunpack.c.h.b16 %v8055
    %v9543 = vunpack.c.l.b16 %v8056
    %v9544 = vunpack.c.h.b16 %v8056
    %v9545 = vunpack.c.l.b16 %v8057
    %v9546 = vunpack.c.h.b16 %v8057
    %v9547 = vunpack.c.l.b16 %v8058
    %v9548 = vunpack.c.h.b16 %v8058
    %v9549 = vunpack.c.l.b16 %v8059
    %v9550 = vunpack.c.h.b16 %v8059
    %v9551 = vunpack.c.l.b16 %v8060
    %v9552 = vunpack.c.h.b16 %v8060
    %v9553 = vunpack.c.l.b16 %v8061
    %v9554 = vunpack.c.h.b16 %v8061
    %v9555 = vunpack.c.l.b16 %v8062
    %v9556 = vunpack.c.h.b16 %v8062
    %v9557 = vunpack.c.l.b16 %v8063
    %v9558 = vunpack.c.h.b16 %v8063
    %v9559 = vunpack.c.l.b16 %v8064
    %v9560 = vunpack.c.h.b16 %v8064
    %v9561 = vunpack.c.l.b16 %v8065
    %v9562 = vunpack.c.h.b16 %v8065
    %v9563 = vunpack.c.l.b16 %v8066
    %v9564 = vunpack.c.h.b16 %v8066
    %v9565 = vunpack.c.l.b16 %v8067
    %v9566 = vunpack.c.h.b16 %v8067
    %v9567 = vunpack.c.l.b16 %v8068
    %v9568 = vunpack.c.h.b16 %v8068
    %v9569 = vunpack.c.l.b16 %v8069
    %v9570 = vunpack.c.h.b16 %v8069
    %v9571 = vunpack.c.l.b16 %v8070
    %v9572 = vunpack.c.h.b16 %v8070
    %v9573 = vunpack.c.l.b16 %v8071
    %v9574 = vunpack.c.h.b16 %v8071
    %v9575 = vunpack.c.l.b16 %v8072
    %v9576 = vunpack.c.h.b16 %v8072
    %v9577 = vunpack.c.l.b16 %v8073
    %v9578 = vunpack.c.h.b16 %v8073
    %v9579 = vunpack.c.l.b16 %v8074
    %v9580 = vunpack.c.h.b16 %v8074
    %v9581 = vunpack.c.l.b16 %v8075
    %v9582 = vunpack.c.h.b16 %v8075
    %v9583 = vunpack.c.l.b16 %v8076
    %v9584 = vunpack.c.h.b16 %v8076
    %v9585 = vunpack.c.l.b16 %v8077
    %v9586 = vunpack.c.h.b16 %v8077
    %v9587 = vunpack.c.l.b16 %v8078
    %v9588 = vunpack.c.h.b16 %v8078
    %v9589 = vunpack.c.l.b16 %v8079
    %v9590 = vunpack.c.h.b16 %v8079
    %v9591 = vunpack.c.l.b16 %v8080
    %v9592 = vunpack.c.h.b16 %v8080
    %v9593 = vunpack.c.l.b16 %v8081
    %v9594 = vunpack.c.h.b16 %v8081
    %v9595 = vunpack.c.l.b16 %v8082
    %v9596 = vunpack.c.h.b16 %v8082
    %v9597 = vunpack.c.l.b16 %v8083
    %v9598 = vunpack.c.h.b16 %v8083
    %v9599 = vunpack.c.l.b16 %v8084
    %v9600 = vunpack.c.h.b16 %v8084
    %v9601 = vunpack.c.l.b16 %v8085
    %v9602 = vunpack.c.h.b16 %v8085
    %v9603 = vunpack.c.l.b16 %v8086
    %v9604 = vunpack.c.h.b16 %v8086
    %v9605 = vunpack.c.l.b16 %v8087
    %v9606 = vunpack.c.h.b16 %v8087
    %v9607 = vunpack.c.l.b16 %v8088
    %v9608 = vunpack.c.h.b16 %v8088
    %v9609 = vunpack.c.l.b16 %v8089
    %v9610 = vunpack.c.h.b16 %v8089
    %v9611 = vunpack.c.l.b16 %v8090
    %v9612 = vunpack.c.h.b16 %v8090
    %v9613 = vunpack.c.l.b16 %v8091
    %v9614 = vunpack.c.h.b16 %v8091
    %v9615 = vunpack.c.l.b16 %v8092
    %v9616 = vunpack.c.h.b16 %v8092
    %v9617 = vunpack.c.l.b16 %v8093
    %v9618 = vunpack.c.h.b16 %v8093
    %v9619 = vunpack.c.l.b16 %v8094
    %v9620 = vunpack.c.h.b16 %v8094
    %v9621 = vunpack.c.l.b16 %v8095
    %v9622 = vunpack.c.h.b16 %v8095
    %v9623 = vunpack.c.l.b16 %v8096
    %v9624 = vunpack.c.h.b16 %v8096
    %v9625 = vunpack.c.l.b16 %v8097
    %v9626 = vunpack.c.h.b16 %v8097
    %v9627 = vunpack.c.l.b16 %v8098
    %v9628 = vunpack.c.h.b16 %v8098
    %v9629 = vunpack.c.l.b16 %v8099
    %v9630 = vunpack.c.h.b16 %v8099
    %v9631 = vunpack.c.l.b16 %v8100
    %v9632 = vunpack.c.h.b16 %v8100
    %v9633 = vunpack.c.l.b16 %v8101
    %v9634 = vunpack.c.h.b16 %v8101
    %v9635 = vunpack.c.l.b16 %v8102
    %v9636 = vunpack.c.h.b16 %v8102
    %v9637 = vunpack.c.l.b16 %v8103
    %v9638 = vunpack.c.h.b16 %v8103
    %v9639 = vunpack.c.l.b16 %v8104
    %v9640 = vunpack.c.h.b16 %v8104
    %v9641 = vunpack.c.l.b16 %v8105
    %v9642 = vunpack.c.h.b16 %v8105
    %v9643 = vunpack.c.l.b16 %v8106
    %v9644 = vunpack.c.h.b16 %v8106
    %v9645 = vunpack.c.l.b16 %v8107
    %v9646 = vunpack.c.h.b16 %v8107
    %v9647 = vunpack.c.l.b16 %v8108
    %v9648 = vunpack.c.h.b16 %v8108
    %v9649 = vunpack.c.l.b16 %v8109
    %v9650 = vunpack.c.h.b16 %v8109
    %v9651 = vunpack.c.l.b16 %v8110
    %v9652 = vunpack.c.h.b16 %v8110
    %v9653 = vunpack.c.l.b16 %v8111
    %v9654 = vunpack.c.h.b16 %v8111
    %v9655 = vunpack.c.l.b16 %v8112
    %v9656 = vunpack.c.h.b16 %v8112
    %v9657 = vunpack.c.l.b16 %v8113
    %v9658 = vunpack.c.h.b16 %v8113
    %v9659 = vunpack.c.l.b16 %v8114
    %v9660 = vunpack.c.h.b16 %v8114
    %v9661 = vunpack.c.l.b16 %v8115
    %v9662 = vunpack.c.h.b16 %v8115
    %v9663 = vunpack.c.l.b16 %v8116
    %v9664 = vunpack.c.h.b16 %v8116
    %v9665 = vunpack.c.l.b16 %v8117
    %v9666 = vunpack.c.h.b16 %v8117
    %v9667 = vunpack.c.l.b16 %v8118
    %v9668 = vunpack.c.h.b16 %v8118
    %v9669 = vunpack.c.l.b16 %v8119
    %v9670 = vunpack.c.h.b16 %v8119
    %v9671 = vunpack.c.l.b16 %v8120
    %v9672 = vunpack.c.h.b16 %v8120
    %v9673 = vunpack.c.l.b16 %v8121
    %v9674 = vunpack.c.h.b16 %v8121
    %v9675 = vunpack.c.l.b16 %v8122
    %v9676 = vunpack.c.h.b16 %v8122
    %v9677 = vunpack.c.l.b16 %v8123
    %v9678 = vunpack.c.h.b16 %v8123
    %v9679 = vunpack.c.l.b16 %v8124
    %v9680 = vunpack.c.h.b16 %v8124
    %v9681 = vunpack.c.l.b16 %v8125
    %v9682 = vunpack.c.h.b16 %v8125
    %v9683 = vunpack.c.l.b16 %v8126
    %v9684 = vunpack.c.h.b16 %v8126
    %v9685 = vunpack.c.l.b16 %v8127
    %v9686 = vunpack.c.h.b16 %v8127
    %v9687 = vunpack.c.l.b16 %v8128
    %v9688 = vunpack.c.h.b16 %v8128
    %v9689 = vunpack.c.l.b16 %v8129
    %v9690 = vunpack.c.h.b16 %v8129
    %v9691 = vunpack.c.l.b16 %v8130
    %v9692 = vunpack.c.h.b16 %v8130
    %v9693 = vunpack.c.l.b16 %v8131
    %v9694 = vunpack.c.h.b16 %v8131
    %v9695 = vunpack.c.l.b16 %v8132
    %v9696 = vunpack.c.h.b16 %v8132
    %v9697 = vunpack.c.l.b16 %v8133
    %v9698 = vunpack.c.h.b16 %v8133
    %v9699 = vunpack.c.l.b16 %v8134
    %v9700 = vunpack.c.h.b16 %v8134
    %v9701 = vunpack.c.l.b16 %v8135
    %v9702 = vunpack.c.h.b16 %v8135
    %v9703 = vunpack.c.l.b16 %v8136
    %v9704 = vunpack.c.h.b16 %v8136
    %v9705 = vunpack.c.l.b16 %v8137
    %v9706 = vunpack.c.h.b16 %v8137
    %v9707 = vunpack.c.l.b16 %v8138
    %v9708 = vunpack.c.h.b16 %v8138
    %v9709 = vunpack.c.l.b16 %v8139
    %v9710 = vunpack.c.h.b16 %v8139
    %v9711 = vunpack.c.l.b16 %v8140
    %v9712 = vunpack.c.h.b16 %v8140
    %v9713 = vunpack.c.l.b16 %v8141
    %v9714 = vunpack.c.h.b16 %v8141
    %v9715 = vunpack.c.l.b16 %v8142
    %v9716 = vunpack.c.h.b16 %v8142
    %v9717 = vunpack.c.l.b16 %v8143
    %v9718 = vunpack.c.h.b16 %v8143
    %v9719 = vunpack.c.l.b16 %v8144
    %v9720 = vunpack.c.h.b16 %v8144
    %v9721 = vunpack.c.l.b16 %v8145
    %v9722 = vunpack.c.h.b16 %v8145
    %v9723 = vunpack.c.l.b16 %v8146
    %v9724 = vunpack.c.h.b16 %v8146
    %v9725 = vunpack.c.l.b16 %v8147
    %v9726 = vunpack.c.h.b16 %v8147
    %v9727 = vunpack.c.l.b16 %v8148
    %v9728 = vunpack.c.h.b16 %v8148
    %v9729 = vunpack.c.l.b16 %v8149
    %v9730 = vunpack.c.h.b16 %v8149
    %v9731 = vunpack.c.l.b16 %v8150
    %v9732 = vunpack.c.h.b16 %v8150
    %v9733 = vunpack.c.l.b16 %v8151
    %v9734 = vunpack.c.h.b16 %v8151
    %v9735 = vunpack.c.l.b16 %v8152
    %v9736 = vunpack.c.h.b16 %v8152
    %v9737 = vunpack.c.l.b16 %v8153
    %v9738 = vunpack.c.h.b16 %v8153
    %v9739 = vunpack.c.l.b16 %v8154
    %v9740 = vunpack.c.h.b16 %v8154
    %v9741 = vunpack.c.l.b16 %v8155
    %v9742 = vunpack.c.h.b16 %v8155
    %v9743 = vunpack.c.l.b16 %v8156
    %v9744 = vunpack.c.h.b16 %v8156
    %v9745 = vunpack.c.l.b16 %v8157
    %v9746 = vunpack.c.h.b16 %v8157
    %v9747 = vunpack.c.l.b16 %v8158
    %v9748 = vunpack.c.h.b16 %v8158
    %v9749 = vunpack.c.l.b16 %v8159
    %v9750 = vunpack.c.h.b16 %v8159
    %v9751 = vunpack.c.l.b16 %v8160
    %v9752 = vunpack.c.h.b16 %v8160
    %v9753 = vunpack.c.l.b16 %v8161
    %v9754 = vunpack.c.h.b16 %v8161
    %v9755 = vunpack.c.l.b16 %v8162
    %v9756 = vunpack.c.h.b16 %v8162
    %v9757 = vunpack.c.l.b16 %v8163
    %v9758 = vunpack.c.h.b16 %v8163
    %v9759 = vunpack.c.l.b16 %v8164
    %v9760 = vunpack.c.h.b16 %v8164
    %v9761 = vunpack.c.l.b16 %v8165
    %v9762 = vunpack.c.h.b16 %v8165
    %v9763 = vunpack.c.l.b16 %v8166
    %v9764 = vunpack.c.h.b16 %v8166
    %v9765 = vunpack.c.l.b16 %v8167
    %v9766 = vunpack.c.h.b16 %v8167
    %v9767 = vunpack.c.l.b16 %v8168
    %v9768 = vunpack.c.h.b16 %v8168
    %v9769 = vunpack.c.l.b16 %v8169
    %v9770 = vunpack.c.h.b16 %v8169
    %v9771 = vunpack.c.l.b16 %v8170
    %v9772 = vunpack.c.h.b16 %v8170
    %v9773 = vunpack.c.l.b16 %v8171
    %v9774 = vunpack.c.h.b16 %v8171
    %v9775 = vunpack.c.l.b16 %v8172
    %v9776 = vunpack.c.h.b16 %v8172
    %v9777 = vunpack.c.l.b16 %v8173
    %v9778 = vunpack.c.h.b16 %v8173
    %v9779 = vunpack.c.l.b16 %v8174
    %v9780 = vunpack.c.h.b16 %v8174
    %v9781 = vunpack.c.l.b16 %v8175
    %v9782 = vunpack.c.h.b16 %v8175
    %v9783 = vunpack.c.l.b16 %v8176
    %v9784 = vunpack.c.h.b16 %v8176
    %v9785 = vunpack.c.l.b16 %v8177
    %v9786 = vunpack.c.h.b16 %v8177
    %v9787 = vunpack.c.l.b16 %v8178
    %v9788 = vunpack.c.h.b16 %v8178
    %v9789 = vunpack.c.l.b16 %v8179
    %v9790 = vunpack.c.h.b16 %v8179
    %v9791 = vunpack.c.l.b16 %v8180
    %v9792 = vunpack.c.h.b16 %v8180
    %v9793 = vunpack.c.l.b16 %v8181
    %v9794 = vunpack.c.h.b16 %v8181
    %v9795 = vunpack.c.l.b16 %v8182
    %v9796 = vunpack.c.h.b16 %v8182
    %v9797 = vunpack.c.l.b16 %v8183
    %v9798 = vunpack.c.h.b16 %v8183
    %v9799 = vunpack.c.l.b16 %v8184
    %v9800 = vunpack.c.h.b16 %v8184
    %v9801 = vunpack.c.l.b16 %v8185
    %v9802 = vunpack.c.h.b16 %v8185
    %v9803 = vunpack.c.l.b16 %v8186
    %v9804 = vunpack.c.h.b16 %v8186
    %v9805 = vunpack.c.l.b16 %v8187
    %v9806 = vunpack.c.h.b16 %v8187
    %v9807 = vunpack.c.l.b16 %v8188
    %v9808 = vunpack.c.h.b16 %v8188
    %v9809 = vunpack.c.l.b16 %v8189
    %v9810 = vunpack.c.h.b16 %v8189
    %v9811 = vunpack.c.l.b16 %v8190
    %v9812 = vunpack.c.h.b16 %v8190
    %v9813 = vunpack.c.l.b16 %v8191
    %v9814 = vunpack.c.h.b16 %v8191
    %v9815 = vunpack.c.l.b16 %v8192
    %v9816 = vunpack.c.h.b16 %v8192
    %v9817 = vunpack.c.l.b16 %v8193
    %v9818 = vunpack.c.h.b16 %v8193
    %v9819 = vunpack.c.l.b16 %v8194
    %v9820 = vunpack.c.h.b16 %v8194
    %v9821 = vunpack.c.l.b16 %v8195
    %v9822 = vunpack.c.h.b16 %v8195
    %v9823 = vunpack.c.l.b16 %v8196
    %v9824 = vunpack.c.h.b16 %v8196
    %v9825 = vunpack.c.l.b16 %v8197
    %v9826 = vunpack.c.h.b16 %v8197
    %v9827 = vunpack.c.l.b16 %v8198
    %v9828 = vunpack.c.h.b16 %v8198
    %v9829 = vunpack.c.l.b16 %v8199
    %v9830 = vunpack.c.h.b16 %v8199
    %v9831 = vunpack.c.l.b16 %v8200
    %v9832 = vunpack.c.h.b16 %v8200
    %v9833 = vunpack.c.l.b16 %v8201
    %v9834 = vunpack.c.h.b16 %v8201
    %v9835 = vunpack.c.l.b16 %v8202
    %v9836 = vunpack.c.h.b16 %v8202
    %v9837 = vunpack.c.l.b16 %v8203
    %v9838 = vunpack.c.h.b16 %v8203
    %v9839 = vunpack.c.l.b16 %v8204
    %v9840 = vunpack.c.h.b16 %v8204
    %v9841 = vunpack.c.l.b16 %v8205
    %v9842 = vunpack.c.h.b16 %v8205
    %v9843 = vunpack.c.l.b16 %v8206
    %v9844 = vunpack.c.h.b16 %v8206
    %v9845 = vunpack.c.l.b16 %v8207
    %v9846 = vunpack.c.h.b16 %v8207
    %v9847 = vunpack.c.l.b16 %v8208
    %v9848 = vunpack.c.h.b16 %v8208
    %v9849 = vunpack.c.l.b16 %v8209
    %v9850 = vunpack.c.h.b16 %v8209
    %v9851 = vunpack.c.l.b16 %v8210
    %v9852 = vunpack.c.h.b16 %v8210
    %v9853 = vunpack.c.l.b16 %v8211
    %v9854 = vunpack.c.h.b16 %v8211
    %v9855 = vunpack.c.l.b16 %v8212
    %v9856 = vunpack.c.h.b16 %v8212
    %v9857 = vunpack.c.l.b16 %v8213
    %v9858 = vunpack.c.h.b16 %v8213
    %v9859 = vunpack.c.l.b16 %v8214
    %v9860 = vunpack.c.h.b16 %v8214
    %v9861 = vunpack.c.l.b16 %v8215
    %v9862 = vunpack.c.h.b16 %v8215
    %v9863 = vunpack.c.l.b16 %v8216
    %v9864 = vunpack.c.h.b16 %v8216
    %v9865 = vunpack.c.l.b16 %v8217
    %v9866 = vunpack.c.h.b16 %v8217
    %v9867 = vunpack.c.l.b16 %v8218
    %v9868 = vunpack.c.h.b16 %v8218
    %v9869 = vunpack.c.l.b16 %v8219
    %v9870 = vunpack.c.h.b16 %v8219
    %v9871 = vunpack.c.l.b16 %v8220
    %v9872 = vunpack.c.h.b16 %v8220
    %v9873 = vunpack.c.l.b16 %v8221
    %v9874 = vunpack.c.h.b16 %v8221
    %v9875 = vunpack.c.l.b16 %v8222
    %v9876 = vunpack.c.h.b16 %v8222
    %v9877 = vunpack.c.l.b16 %v8223
    %v9878 = vunpack.c.h.b16 %v8223
    %v9879 = vunpack.c.l.b16 %v8224
    %v9880 = vunpack.c.h.b16 %v8224
    %v9881 = vunpack.c.l.b16 %v8225
    %v9882 = vunpack.c.h.b16 %v8225
    %v9883 = vunpack.c.l.b16 %v8226
    %v9884 = vunpack.c.h.b16 %v8226
    %v9885 = vunpack.c.l.b16 %v8227
    %v9886 = vunpack.c.h.b16 %v8227
    %v9887 = vunpack.c.l.b16 %v8228
    %v9888 = vunpack.c.h.b16 %v8228
    %v9889 = vunpack.c.l.b16 %v8229
    %v9890 = vunpack.c.h.b16 %v8229
    %v9891 = vunpack.c.l.b16 %v8230
    %v9892 = vunpack.c.h.b16 %v8230
    %v9893 = vunpack.c.l.b16 %v8231
    %v9894 = vunpack.c.h.b16 %v8231
    %v9895 = vunpack.c.l.b16 %v8232
    %v9896 = vunpack.c.h.b16 %v8232
    %v9897 = vunpack.c.l.b16 %v8233
    %v9898 = vunpack.c.h.b16 %v8233
    %v9899 = vunpack.c.l.b16 %v8234
    %v9900 = vunpack.c.h.b16 %v8234
    %v9901 = vunpack.c.l.b16 %v8235
    %v9902 = vunpack.c.h.b16 %v8235
    %v9903 = vunpack.c.l.b16 %v8236
    %v9904 = vunpack.c.h.b16 %v8236
    %v9905 = vunpack.c.l.b16 %v8237
    %v9906 = vunpack.c.h.b16 %v8237
    %v9907 = vunpack.c.l.b16 %v8238
    %v9908 = vunpack.c.h.b16 %v8238
    %v9909 = vunpack.c.l.b16 %v8239
    %v9910 = vunpack.c.h.b16 %v8239
    %v9911 = vunpack.c.l.b16 %v8240
    %v9912 = vunpack.c.h.b16 %v8240
    %v9913 = vunpack.c.l.b16 %v8241
    %v9914 = vunpack.c.h.b16 %v8241
    %v9915 = vunpack.c.l.b16 %v8242
    %v9916 = vunpack.c.h.b16 %v8242
    %v9917 = vunpack.c.l.b16 %v8243
    %v9918 = vunpack.c.h.b16 %v8243
    %v9919 = vunpack.c.l.b16 %v8244
    %v9920 = vunpack.c.h.b16 %v8244
    %v9921 = vunpack.c.l.b16 %v8245
    %v9922 = vunpack.c.h.b16 %v8245
    %v9923 = vunpack.c.l.b16 %v8246
    %v9924 = vunpack.c.h.b16 %v8246
    %v9925 = vunpack.c.l.b16 %v8247
    %v9926 = vunpack.c.h.b16 %v8247
    %v9927 = vunpack.c.l.b16 %v8248
    %v9928 = vunpack.c.h.b16 %v8248
    %v9929 = vunpack.c.l.b16 %v8249
    %v9930 = vunpack.c.h.b16 %v8249
    %v9931 = vunpack.c.l.b16 %v8250
    %v9932 = vunpack.c.h.b16 %v8250
    %v9933 = vunpack.c.l.b16 %v8251
    %v9934 = vunpack.c.h.b16 %v8251
    %v9935 = vunpack.c.l.b16 %v8252
    %v9936 = vunpack.c.h.b16 %v8252
    %v9937 = vunpack.c.l.b16 %v8253
    %v9938 = vunpack.c.h.b16 %v8253
    %v9939 = vunpack.c.l.b16 %v8254
    %v9940 = vunpack.c.h.b16 %v8254
    %v9941 = vunpack.c.l.b16 %v8255
    %v9942 = vunpack.c.h.b16 %v8255
    %v9943 = vunpack.c.l.b16 %v8256
    %v9944 = vunpack.c.h.b16 %v8256
    %v9945 = vunpack.c.l.b16 %v8257
    %v9946 = vunpack.c.h.b16 %v8257
    %v9947 = vunpack.c.l.b16 %v8258
    %v9948 = vunpack.c.h.b16 %v8258
    %v9949 = vunpack.c.l.b16 %v8259
    %v9950 = vunpack.c.h.b16 %v8259
    %v9951 = vunpack.c.l.b16 %v8260
    %v9952 = vunpack.c.h.b16 %v8260
    %v9953 = vunpack.c.l.b16 %v8261
    %v9954 = vunpack.c.h.b16 %v8261
    %v9955 = vunpack.c.l.b16 %v8262
    %v9956 = vunpack.c.h.b16 %v8262
    %v9957 = vunpack.c.l.b16 %v8263
    %v9958 = vunpack.c.h.b16 %v8263
    %v9959 = vunpack.c.l.b16 %v8264
    %v9960 = vunpack.c.h.b16 %v8264
    %v9961 = vunpack.c.l.b16 %v8265
    %v9962 = vunpack.c.h.b16 %v8265
    %v9963 = vunpack.c.l.b16 %v8266
    %v9964 = vunpack.c.h.b16 %v8266
    %v9965 = vunpack.c.l.b16 %v8267
    %v9966 = vunpack.c.h.b16 %v8267
    %v9967 = vunpack.c.l.b16 %v8268
    %v9968 = vunpack.c.h.b16 %v8268
    %v9969 = vunpack.c.l.b16 %v8269
    %v9970 = vunpack.c.h.b16 %v8269
    %v9971 = vunpack.c.l.b16 %v8270
    %v9972 = vunpack.c.h.b16 %v8270
    %v9973 = vunpack.c.l.b16 %v8271
    %v9974 = vunpack.c.h.b16 %v8271
    %v9975 = vunpack.c.l.b16 %v8272
    %v9976 = vunpack.c.h.b16 %v8272
    %v9977 = vunpack.c.l.b16 %v8273
    %v9978 = vunpack.c.h.b16 %v8273
    %v9979 = vunpack.c.l.b16 %v8274
    %v9980 = vunpack.c.h.b16 %v8274
    %v9981 = vunpack.c.l.b16 %v8275
    %v9982 = vunpack.c.h.b16 %v8275
    %v9983 = vunpack.c.l.b16 %v8276
    %v9984 = vunpack.c.h.b16 %v8276
    %v9985 = vunpack.c.l.b16 %v8277
    %v9986 = vunpack.c.h.b16 %v8277
    %v9987 = vunpack.c.l.b16 %v8278
    %v9988 = vunpack.c.h.b16 %v8278
    %v9989 = vunpack.c.l.b16 %v8279
    %v9990 = vunpack.c.h.b16 %v8279
    %v9991 = vunpack.c.l.b16 %v8280
    %v9992 = vunpack.c.h.b16 %v8280
    %v9993 = vunpack.c.l.b16 %v8281
    %v9994 = vunpack.c.h.b16 %v8281
    %v9995 = vunpack.c.l.b16 %v8282
    %v9996 = vunpack.c.h.b16 %v8282
    %v9997 = vunpack.c.l.b16 %v8283
    %v9998 = vunpack.c.h.b16 %v8283
    %v9999 = vunpack.c.l.b16 %v8284
    %v10000 = vunpack.c.h.b16 %v8284
    %v10001 = vunpack.c.l.b16 %v8285
    %v10002 = vunpack.c.h.b16 %v8285
    %v10003 = vunpack.c.l.b16 %v8286
    %v10004 = vunpack.c.h.b16 %v8286
    %v10005 = vunpack.c.l.b16 %v8287
    %v10006 = vunpack.c.h.b16 %v8287
    %v10007 = vunpack.c.l.b16 %v8288
    %v10008 = vunpack.c.h.b16 %v8288
    %v10009 = vunpack.c.l.b16 %v8289
    %v10010 = vunpack.c.h.b16 %v8289
    %v10011 = vunpack.c.l.b16 %v8290
    %v10012 = vunpack.c.h.b16 %v8290
    %v10013 = vunpack.c.l.b16 %v8291
    %v10014 = vunpack.c.h.b16 %v8291
    %v10015 = vunpack.c.l.b16 %v8292
    %v10016 = vunpack.c.h.b16 %v8292
    %v10017 = vunpack.c.l.b16 %v8293
    %v10018 = vunpack.c.h.b16 %v8293
    %v10019 = vunpack.c.l.b16 %v8294
    %v10020 = vunpack.c.h.b16 %v8294
    %v10021 = vunpack.c.l.b16 %v8295
    %v10022 = vunpack.c.h.b16 %v8295
    %v10023 = vunpack.c.l.b16 %v8296
    %v10024 = vunpack.c.h.b16 %v8296
    %v10025 = vunpack.c.l.b16 %v8297
    %v10026 = vunpack.c.h.b16 %v8297
    %v10027 = vunpack.c.l.b16 %v8298
    %v10028 = vunpack.c.h.b16 %v8298
    %v10029 = vunpack.c.l.b16 %v8299
    %v10030 = vunpack.c.h.b16 %v8299
    %v10031 = vunpack.c.l.b16 %v8300
    %v10032 = vunpack.c.h.b16 %v8300
    %v10033 = vunpack.c.l.b16 %v8301
    %v10034 = vunpack.c.h.b16 %v8301
    %v10035 = vunpack.c.l.b16 %v8302
    %v10036 = vunpack.c.h.b16 %v8302
    %v10037 = vunpack.c.l.b16 %v8303
    %v10038 = vunpack.c.h.b16 %v8303
    %v10039 = vunpack.c.l.b16 %v8304
    %v10040 = vunpack.c.h.b16 %v8304
    %v10041 = vunpack.c.l.b16 %v8305
    %v10042 = vunpack.c.h.b16 %v8305
    %v10043 = vunpack.c.l.b16 %v8306
    %v10044 = vunpack.c.h.b16 %v8306
    %v10045 = vunpack.c.l.b16 %v8307
    %v10046 = vunpack.c.h.b16 %v8307
    %v10047 = vunpack.c.l.b16 %v8308
    %v10048 = vunpack.c.h.b16 %v8308
    %v10049 = vunpack.c.l.b16 %v8309
    %v10050 = vunpack.c.h.b16 %v8309
    %v10051 = vunpack.c.l.b16 %v8310
    %v10052 = vunpack.c.h.b16 %v8310
    %v10053 = vunpack.c.l.b16 %v8311
    %v10054 = vunpack.c.h.b16 %v8311
    %v10055 = vunpack.c.l.b16 %v8312
    %v10056 = vunpack.c.h.b16 %v8312
    %v10057 = vunpack.c.l.b16 %v8313
    %v10058 = vunpack.c.h.b16 %v8313
    %v10059 = vunpack.c.l.b16 %v8314
    %v10060 = vunpack.c.h.b16 %v8314
    %v10061 = vunpack.c.l.b16 %v8315
    %v10062 = vunpack.c.h.b16 %v8315
    %v10063 = vunpack.c.l.b16 %v8316
    %v10064 = vunpack.c.h.b16 %v8316
    %v10065 = vunpack.c.l.b16 %v8317
    %v10066 = vunpack.c.h.b16 %v8317
    %v10067 = vunpack.c.l.b16 %v8318
    %v10068 = vunpack.c.h.b16 %v8318
    %v10069 = vunpack.c.l.b16 %v8319
    %v10070 = vunpack.c.h.b16 %v8319
    %v10071 = vunpack.c.l.b16 %v8320
    %v10072 = vunpack.c.h.b16 %v8320
    %v10073 = vunpack.c.l.b16 %v8321
    %v10074 = vunpack.c.h.b16 %v8321
    %v10075 = vunpack.c.l.b16 %v8322
    %v10076 = vunpack.c.h.b16 %v8322
    %v10077 = vunpack.c.l.b16 %v8323
    %v10078 = vunpack.c.h.b16 %v8323
    %v10079 = vunpack.c.l.b16 %v8324
    %v10080 = vunpack.c.h.b16 %v8324
    %v10081 = vunpack.c.l.b16 %v8325
    %v10082 = vunpack.c.h.b16 %v8325
    %v10083 = vunpack.c.l.b16 %v8326
    %v10084 = vunpack.c.h.b16 %v8326
    %v10085 = vunpack.c.l.b16 %v8327
    %v10086 = vunpack.c.h.b16 %v8327
    %v10087 = vunpack.c.l.b16 %v8328
    %v10088 = vunpack.c.h.b16 %v8328
    %v10089 = vunpack.c.l.b16 %v8329
    %v10090 = vunpack.c.h.b16 %v8329
    %v10091 = vunpack.c.l.b16 %v8330
    %v10092 = vunpack.c.h.b16 %v8330
    %v10093 = vunpack.c.l.b16 %v8331
    %v10094 = vunpack.c.h.b16 %v8331
    %v10095 = vunpack.c.l.b16 %v8332
    %v10096 = vunpack.c.h.b16 %v8332
    %v10097 = vunpack.c.l.b16 %v8333
    %v10098 = vunpack.c.h.b16 %v8333
    %v10099 = vunpack.c.l.b16 %v8334
    %v10100 = vunpack.c.h.b16 %v8334
    %v10101 = vunpack.c.l.b16 %v8335
    %v10102 = vunpack.c.h.b16 %v8335
    %v10103 = vunpack.c.l.b16 %v8336
    %v10104 = vunpack.c.h.b16 %v8336
    %v10105 = vunpack.c.l.b16 %v8337
    %v10106 = vunpack.c.h.b16 %v8337
    %v10107 = vunpack.c.l.b16 %v8338
    %v10108 = vunpack.c.h.b16 %v8338
    %v10109 = vunpack.c.l.b16 %v8339
    %v10110 = vunpack.c.h.b16 %v8339
    %v10111 = vunpack.c.l.b16 %v8340
    %v10112 = vunpack.c.h.b16 %v8340
    %v10113 = vunpack.c.l.b16 %v8341
    %v10114 = vunpack.c.h.b16 %v8341
    %v10115 = vunpack.c.l.b16 %v8342
    %v10116 = vunpack.c.h.b16 %v8342
    %v10117 = vunpack.c.l.b16 %v8343
    %v10118 = vunpack.c.h.b16 %v8343
    %v10119 = vunpack.c.l.b16 %v8344
    %v10120 = vunpack.c.h.b16 %v8344
    %v10121 = vunpack.c.l.b16 %v8345
    %v10122 = vunpack.c.h.b16 %v8345
    %v10123 = vunpack.c.l.b16 %v8346
    %v10124 = vunpack.c.h.b16 %v8346
    %v10125 = vunpack.c.l.b16 %v8347
    %v10126 = vunpack.c.h.b16 %v8347
    %v10127 = vunpack.c.l.b16 %v8348
    %v10128 = vunpack.c.h.b16 %v8348
    %v10129 = vunpack.c.l.b16 %v8349
    %v10130 = vunpack.c.h.b16 %v8349
    %v10131 = vunpack.c.l.b16 %v8350
    %v10132 = vunpack.c.h.b16 %v8350
    %v10133 = vunpack.c.l.b16 %v8351
    %v10134 = vunpack.c.h.b16 %v8351
    %v10135 = vunpack.c.l.b16 %v8352
    %v10136 = vunpack.c.h.b16 %v8352
    %v10137 = vunpack.c.l.b16 %v8353
    %v10138 = vunpack.c.h.b16 %v8353
    %v10139 = vunpack.c.l.b16 %v8354
    %v10140 = vunpack.c.h.b16 %v8354
    %v10141 = vunpack.c.l.b16 %v8355
    %v10142 = vunpack.c.h.b16 %v8355
    %v10143 = vunpack.c.l.b16 %v8356
    %v10144 = vunpack.c.h.b16 %v8356
    %v10145 = vunpack.c.l.b16 %v8357
    %v10146 = vunpack.c.h.b16 %v8357
    %v10147 = vunpack.c.l.b16 %v8358
    %v10148 = vunpack.c.h.b16 %v8358
    %v10149 = vunpack.c.l.b16 %v8359
    %v10150 = vunpack.c.h.b16 %v8359
    %v10151 = vunpack.c.l.b16 %v8360
    %v10152 = vunpack.c.h.b16 %v8360
    %v10153 = vunpack.c.l.b16 %v8361
    %v10154 = vunpack.c.h.b16 %v8361
    %v10155 = vunpack.c.l.b16 %v8362
    %v10156 = vunpack.c.h.b16 %v8362
    %v10157 = vunpack.c.l.b16 %v8363
    %v10158 = vunpack.c.h.b16 %v8363
    %v10159 = vunpack.c.l.b16 %v8364
    %v10160 = vunpack.c.h.b16 %v8364
    %v10161 = vunpack.c.l.b16 %v8365
    %v10162 = vunpack.c.h.b16 %v8365
    %v10163 = vunpack.c.l.b16 %v8366
    %v10164 = vunpack.c.h.b16 %v8366
    %v10165 = vunpack.c.l.b16 %v8367
    %v10166 = vunpack.c.h.b16 %v8367
    %v10167 = vunpack.c.l.b16 %v8368
    %v10168 = vunpack.c.h.b16 %v8368
    %v10169 = vunpack.c.l.b16 %v8369
    %v10170 = vunpack.c.h.b16 %v8369
    %v10171 = vunpack.c.l.b16 %v8370
    %v10172 = vunpack.c.h.b16 %v8370
    %v10173 = vunpack.c.l.b16 %v8371
    %v10174 = vunpack.c.h.b16 %v8371
    %v10175 = vunpack.c.l.b16 %v8372
    %v10176 = vunpack.c.h.b16 %v8372
    %v10177 = vunpack.c.l.b16 %v8373
    %v10178 = vunpack.c.h.b16 %v8373
    %v10179 = vunpack.c.l.b16 %v8374
    %v10180 = vunpack.c.h.b16 %v8374
    %v10181 = vunpack.c.l.b16 %v8375
    %v10182 = vunpack.c.h.b16 %v8375
    %v10183 = vunpack.c.l.b16 %v8376
    %v10184 = vunpack.c.h.b16 %v8376
    %v10185 = vunpack.c.l.b16 %v8377
    %v10186 = vunpack.c.h.b16 %v8377
    %v10187 = vunpack.c.l.b16 %v8378
    %v10188 = vunpack.c.h.b16 %v8378
    %v10189 = vunpack.c.l.b16 %v8379
    %v10190 = vunpack.c.h.b16 %v8379
    %v10191 = vunpack.c.l.b16 %v8380
    %v10192 = vunpack.c.h.b16 %v8380
    %v10193 = vunpack.c.l.b16 %v8381
    %v10194 = vunpack.c.h.b16 %v8381
    %v10195 = vunpack.c.l.b16 %v8382
    %v10196 = vunpack.c.h.b16 %v8382
    %v10197 = vunpack.c.l.b16 %v8383
    %v10198 = vunpack.c.h.b16 %v8383
    %v10199 = vunpack.c.l.b16 %v8384
    %v10200 = vunpack.c.h.b16 %v8384
    %v10201 = vunpack.c.l.b16 %v8385
    %v10202 = vunpack.c.h.b16 %v8385
    %v10203 = vunpack.c.l.b16 %v8386
    %v10204 = vunpack.c.h.b16 %v8386
    %v10205 = vunpack.c.l.b16 %v8387
    %v10206 = vunpack.c.h.b16 %v8387
    %v10207 = vunpack.c.l.b16 %v8388
    %v10208 = vunpack.c.h.b16 %v8388
    %v10209 = vunpack.c.l.b16 %v8389
    %v10210 = vunpack.c.h.b16 %v8389
    %v10211 = vunpack.c.l.b16 %v8390
    %v10212 = vunpack.c.h.b16 %v8390
    %v10213 = vunpack.c.l.b16 %v8391
    %v10214 = vunpack.c.h.b16 %v8391
    %v10215 = vunpack.c.l.b16 %v8392
    %v10216 = vunpack.c.h.b16 %v8392
    %v10217 = vunpack.c.l.b16 %v8393
    %v10218 = vunpack.c.h.b16 %v8393
    %v10219 = vunpack.c.l.b16 %v8394
    %v10220 = vunpack.c.h.b16 %v8394
    %v10221 = vunpack.c.l.b16 %v8395
    %v10222 = vunpack.c.h.b16 %v8395
    %v10223 = vunpack.c.l.b16 %v8396
    %v10224 = vunpack.c.h.b16 %v8396
    %v10225 = vunpack.c.l.b16 %v8397
    %v10226 = vunpack.c.h.b16 %v8397
    %v10227 = vunpack.c.l.b16 %v8398
    %v10228 = vunpack.c.h.b16 %v8398
    %v10229 = vunpack.c.l.b16 %v8399
    %v10230 = vunpack.c.h.b16 %v8399
    %v10231 = vunpack.c.l.b16 %v8400
    %v10232 = vunpack.c.h.b16 %v8400
    %v10233 = vunpack.c.l.b16 %v8401
    %v10234 = vunpack.c.h.b16 %v8401
    %v10235 = vunpack.c.l.b16 %v8402
    %v10236 = vunpack.c.h.b16 %v8402
    %v10237 = vunpack.c.l.b16 %v8403
    %v10238 = vunpack.c.h.b16 %v8403
    %v10239 = vunpack.c.l.b16 %v8404
    %v10240 = vunpack.c.h.b16 %v8404
    %v10241 = vunpack.c.l.b16 %v8405
    %v10242 = vunpack.c.h.b16 %v8405
    %v10243 = vunpack.c.l.b16 %v8406
    %v10244 = vunpack.c.h.b16 %v8406
    %v10245 = vunpack.c.l.b16 %v8407
    %v10246 = vunpack.c.h.b16 %v8407
    %v10247 = vunpack.c.l.b16 %v8408
    %v10248 = vunpack.c.h.b16 %v8408
    %v10249 = vunpack.c.l.b16 %v8409
    %v10250 = vunpack.c.h.b16 %v8409
    %v10251 = vunpack.c.l.b16 %v8410
    %v10252 = vunpack.c.h.b16 %v8410
    %v10253 = vunpack.c.l.b16 %v8411
    %v10254 = vunpack.c.h.b16 %v8411
    %v10255 = vunpack.c.l.b16 %v8412
    %v10256 = vunpack.c.h.b16 %v8412
    %v10257 = vunpack.c.l.b16 %v8413
    %v10258 = vunpack.c.h.b16 %v8413
    %v10259 = vunpack.c.l.b16 %v8414
    %v10260 = vunpack.c.h.b16 %v8414
    %v10261 = vunpack.c.l.b16 %v8415
    %v10262 = vunpack.c.h.b16 %v8415
    %v10263 = vunpack.c.l.b16 %v8416
    %v10264 = vunpack.c.h.b16 %v8416
    %v10265 = vunpack.c.l.b16 %v8417
    %v10266 = vunpack.c.h.b16 %v8417
    %v10267 = vunpack.c.l.b16 %v8418
    %v10268 = vunpack.c.h.b16 %v8418
    %v10269 = vunpack.c.l.b16 %v8419
    %v10270 = vunpack.c.h.b16 %v8419
    %v10271 = vunpack.c.l.b16 %v8420
    %v10272 = vunpack.c.h.b16 %v8420
    %v10273 = vunpack.c.l.b16 %v8421
    %v10274 = vunpack.c.h.b16 %v8421
    %v10275 = vunpack.c.l.b16 %v8422
    %v10276 = vunpack.c.h.b16 %v8422
    %v10277 = vunpack.c.l.b16 %v8423
    %v10278 = vunpack.c.h.b16 %v8423
    %v10279 = vunpack.c.l.b16 %v8424
    %v10280 = vunpack.c.h.b16 %v8424
    %v10281 = vunpack.c.l.b16 %v8425
    %v10282 = vunpack.c.h.b16 %v8425
    %v10283 = vunpack.c.l.b16 %v8426
    %v10284 = vunpack.c.h.b16 %v8426
    %v10285 = vunpack.c.l.b16 %v8427
    %v10286 = vunpack.c.h.b16 %v8427
    %v10287 = vunpack.c.l.b16 %v8428
    %v10288 = vunpack.c.h.b16 %v8428
    %v10289 = vunpack.c.l.b16 %v8429
    %v10290 = vunpack.c.h.b16 %v8429
    %v10291 = vunpack.c.l.b16 %v8430
    %v10292 = vunpack.c.h.b16 %v8430
    %v10293 = vunpack.c.l.b16 %v8431
    %v10294 = vunpack.c.h.b16 %v8431
    %v10295 = vunpack.c.l.b16 %v8432
    %v10296 = vunpack.c.h.b16 %v8432
    %v10297 = vunpack.c.l.b16 %v8433
    %v10298 = vunpack.c.h.b16 %v8433
    %v10299 = vunpack.c.l.b16 %v8434
    %v10300 = vunpack.c.h.b16 %v8434
    %v10301 = vunpack.c.l.b16 %v8435
    %v10302 = vunpack.c.h.b16 %v8435
    %v10303 = vunpack.c.l.b16 %v8436
    %v10304 = vunpack.c.h.b16 %v8436
    %v10305 = vunpack.c.l.b16 %v8437
    %v10306 = vunpack.c.h.b16 %v8437
    %v10307 = vunpack.c.l.b16 %v8438
    %v10308 = vunpack.c.h.b16 %v8438
    %v10309 = vunpack.c.l.b16 %v8439
    %v10310 = vunpack.c.h.b16 %v8439
    %v10311 = vunpack.c.l.b16 %v8440
    %v10312 = vunpack.c.h.b16 %v8440
    %v10313 = vunpack.c.l.b16 %v8441
    %v10314 = vunpack.c.h.b16 %v8441
    %v10315 = vunpack.c.l.b16 %v8442
    %v10316 = vunpack.c.h.b16 %v8442
    %v10317 = vunpack.c.l.b16 %v8443
    %v10318 = vunpack.c.h.b16 %v8443
    %v10319 = vunpack.c.l.b16 %v8444
    %v10320 = vunpack.c.h.b16 %v8444
    %v10321 = vunpack.c.l.b16 %v8445
    %v10322 = vunpack.c.h.b16 %v8445
    %v10323 = vunpack.c.l.b16 %v8446
    %v10324 = vunpack.c.h.b16 %v8446
    %v10325 = vunpack.c.l.b16 %v8447
    %v10326 = vunpack.c.h.b16 %v8447
    %v10327 = vunpack.c.l.b16 %v8448
    %v10328 = vunpack.c.h.b16 %v8448
    %v10329 = vunpack.c.l.b16 %v8449
    %v10330 = vunpack.c.h.b16 %v8449
    %v10331 = vunpack.c.l.b16 %v8450
    %v10332 = vunpack.c.h.b16 %v8450
    %v10333 = vunpack.c.l.b16 %v8451
    %v10334 = vunpack.c.h.b16 %v8451
    %v10335 = vunpack.c.l.b16 %v8452
    %v10336 = vunpack.c.h.b16 %v8452
    %v10337 = vunpack.c.l.b16 %v8453
    %v10338 = vunpack.c.h.b16 %v8453
    %v10339 = vunpack.c.l.b16 %v8454
    %v10340 = vunpack.c.h.b16 %v8454
    %v10341 = vunpack.c.l.b16 %v8455
    %v10342 = vunpack.c.h.b16 %v8455
    %v10343 = vunpack.c.l.b16 %v8456
    %v10344 = vunpack.c.h.b16 %v8456
    %v10345 = vunpack.c.l.b16 %v8457
    %v10346 = vunpack.c.h.b16 %v8457
    %v10347 = vunpack.c.l.b16 %v8458
    %v10348 = vunpack.c.h.b16 %v8458
    %v10349 = vunpack.c.l.b16 %v8459
    %v10350 = vunpack.c.h.b16 %v8459
    %v10351 = vunpack.c.l.b16 %v8460
    %v10352 = vunpack.c.h.b16 %v8460
    %v10353 = vunpack.c.l.b16 %v8461
    %v10354 = vunpack.c.h.b16 %v8461
    %v10355 = vunpack.c.l.b16 %v8462
    %v10356 = vunpack.c.h.b16 %v8462
    %v10357 = vunpack.c.l.b16 %v8463
    %v10358 = vunpack.c.h.b16 %v8463
    %v10359 = vunpack.c.l.b16 %v8464
    %v10360 = vunpack.c.h.b16 %v8464
    %v10361 = vunpack.c.l.b16 %v8465
    %v10362 = vunpack.c.h.b16 %v8465
    %v10363 = vunpack.c.l.b16 %v8466
    %v10364 = vunpack.c.h.b16 %v8466
    %v10365 = vunpack.c.l.b16 %v8467
    %v10366 = vunpack.c.h.b16 %v8467
    %v10367 = vunpack.c.l.b16 %v8468
    %v10368 = vunpack.c.h.b16 %v8468
    %v10369 = vunpack.c.l.b16 %v8469
    %v10370 = vunpack.c.h.b16 %v8469
    %v10371 = vunpack.c.l.b16 %v8470
    %v10372 = vunpack.c.h.b16 %v8470
    %v10373 = vunpack.c.l.b16 %v8471
    %v10374 = vunpack.c.h.b16 %v8471
    %v10375 = vunpack.c.l.b16 %v8472
    %v10376 = vunpack.c.h.b16 %v8472
    %v10377 = vunpack.c.l.b16 %v8473
    %v10378 = vunpack.c.h.b16 %v8473
    %v10379 = vunpack.c.l.b16 %v8474
    %v10380 = vunpack.c.h.b16 %v8474
    %v10381 = vunpack.c.l.b16 %v8475
    %v10382 = vunpack.c.h.b16 %v8475
    %v10383 = vunpack.c.l.b16 %v8476
    %v10384 = vunpack.c.h.b16 %v8476
    %v10385 = vunpack.c.l.b16 %v8477
    %v10386 = vunpack.c.h.b16 %v8477
    %v10387 = vunpack.c.l.b16 %v8478
    %v10388 = vunpack.c.h.b16 %v8478
    %v10389 = vunpack.c.l.b16 %v8479
    %v10390 = vunpack.c.h.b16 %v8479
    %v10391 = vunpack.c.l.b16 %v8480
    %v10392 = vunpack.c.h.b16 %v8480
    %v10393 = vunpack.c.l.b16 %v8481
    %v10394 = vunpack.c.h.b16 %v8481
    %v10395 = vunpack.c.l.b16 %v8482
    %v10396 = vunpack.c.h.b16 %v8482
    %v10397 = vunpack.c.l.b16 %v8483
    %v10398 = vunpack.c.h.b16 %v8483
    %v10399 = vunpack.c.l.b16 %v8484
    %v10400 = vunpack.c.h.b16 %v8484
    %v10401 = vunpack.c.l.b16 %v8485
    %v10402 = vunpack.c.h.b16 %v8485
    %v10403 = vunpack.c.l.b16 %v8486
    %v10404 = vunpack.c.h.b16 %v8486
    %v10405 = vunpack.c.l.b16 %v8487
    %v10406 = vunpack.c.h.b16 %v8487
    %v10407 = vunpack.c.l.b16 %v8488
    %v10408 = vunpack.c.h.b16 %v8488
    %v10409 = vunpack.c.l.b16 %v8489
    %v10410 = vunpack.c.h.b16 %v8489
    %v10411 = vunpack.c.l.b16 %v8490
    %v10412 = vunpack.c.h.b16 %v8490
    %v10413 = vunpack.c.l.b16 %v8491
    %v10414 = vunpack.c.h.b16 %v8491
    %v10415 = vunpack.c.l.b16 %v8492
    %v10416 = vunpack.c.h.b16 %v8492
    %v10417 = vunpack.c.l.b16 %v8493
    %v10418 = vunpack.c.h.b16 %v8493
    %v10419 = vunpack.c.l.b16 %v8494
    %v10420 = vunpack.c.h.b16 %v8494
    %v10421 = vunpack.c.l.b16 %v8495
    %v10422 = vunpack.c.h.b16 %v8495
    %v10423 = vunpack.c.l.b16 %v8496
    %v10424 = vunpack.c.h.b16 %v8496
    %v10425 = vunpack.c.l.b16 %v8497
    %v10426 = vunpack.c.h.b16 %v8497
    %v10427 = vunpack.c.l.b16 %v8498
    %v10428 = vunpack.c.h.b16 %v8498
    %v10429 = vunpack.c.l.b16 %v8499
    %v10430 = vunpack.c.h.b16 %v8499
    %v10431 = vunpack.c.l.b16 %v8500
    %v10432 = vunpack.c.h.b16 %v8500
    %v10433 = vunpack.c.l.b16 %v8501
    %v10434 = vunpack.c.h.b16 %v8501
    %v10435 = vunpack.c.l.b16 %v8502
    %v10436 = vunpack.c.h.b16 %v8502
    %v10437 = vunpack.c.l.b16 %v8503
    %v10438 = vunpack.c.h.b16 %v8503
    %v10439 = vunpack.c.l.b16 %v8504
    %v10440 = vunpack.c.h.b16 %v8504
    %v10441 = vunpack.c.l.b16 %v8505
    %v10442 = vunpack.c.h.b16 %v8505
    %v10443 = vunpack.c.l.b16 %v8506
    %v10444 = vunpack.c.h.b16 %v8506
    %v10445 = vunpack.c.l.b16 %v8507
    %v10446 = vunpack.c.h.b16 %v8507
    %v10447 = vunpack.c.l.b16 %v8508
    %v10448 = vunpack.c.h.b16 %v8508
    %v10449 = vunpack.c.l.b16 %v8509
    %v10450 = vunpack.c.h.b16 %v8509
    %v10451 = vunpack.c.l.b16 %v8510
    %v10452 = vunpack.c.h.b16 %v8510
    %v10453 = vunpack.c.l.b16 %v8511
    %v10454 = vunpack.c.h.b16 %v8511
    %v10455 = vunpack.c.l.b16 %v8512
    %v10456 = vunpack.c.h.b16 %v8512
    %v10457 = vunpack.c.l.b16 %v8513
    %v10458 = vunpack.c.h.b16 %v8513
    %v10459 = vunpack.c.l.b16 %v8514
    %v10460 = vunpack.c.h.b16 %v8514
    %v10461 = vunpack.c.l.b16 %v8515
    %v10462 = vunpack.c.h.b16 %v8515
    %v10463 = vunpack.c.l.b16 %v8516
    %v10464 = vunpack.c.h.b16 %v8516
    %v10465 = vunpack.c.l.b16 %v8517
    %v10466 = vunpack.c.h.b16 %v8517
    %v10467 = vunpack.c.l.b16 %v8518
    %v10468 = vunpack.c.h.b16 %v8518
    %v10469 = vunpack.c.l.b16 %v8519
    %v10470 = vunpack.c.h.b16 %v8519
    %v10471 = vunpack.c.l.b16 %v8520
    %v10472 = vunpack.c.h.b16 %v8520
    %v10473 = vunpack.c.l.b16 %v8521
    %v10474 = vunpack.c.h.b16 %v8521
    %v10475 = vunpack.c.l.b16 %v8522
    %v10476 = vunpack.c.h.b16 %v8522
    %v10477 = vunpack.c.l.b16 %v8523
    %v10478 = vunpack.c.h.b16 %v8523
    %v10479 = vunpack.c.l.b16 %v8524
    %v10480 = vunpack.c.h.b16 %v8524
    %v10481 = vunpack.c.l.b16 %v8525
    %v10482 = vunpack.c.h.b16 %v8525
    %v10483 = vunpack.c.l.b16 %v8526
    %v10484 = vunpack.c.h.b16 %v8526
    %v10485 = vunpack.c.l.b16 %v8527
    %v10486 = vunpack.c.h.b16 %v8527
    %v10487 = vunpack.c.l.b16 %v8528
    %v10488 = vunpack.c.h.b16 %v8528
    %v10489 = vunpack.c.l.b16 %v8529
    %v10490 = vunpack.c.h.b16 %v8529
    %v10491 = vunpack.c.l.b16 %v8530
    %v10492 = vunpack.c.h.b16 %v8530
    %v10493 = vunpack.c.l.b16 %v8531
    %v10494 = vunpack.c.h.b16 %v8531
    %v10495 = vunpack.c.l.b16 %v8532
    %v10496 = vunpack.c.h.b16 %v8532
    %v10497 = vunpack.c.l.b16 %v8533
    %v10498 = vunpack.c.h.b16 %v8533
    %v10499 = vunpack.c.l.b16 %v8534
    %v10500 = vunpack.c.h.b16 %v8534
    %v10501 = vunpack.c.l.b16 %v8535
    %v10502 = vunpack.c.h.b16 %v8535
    %v10503 = vunpack.c.l.b16 %v8536
    %v10504 = vunpack.c.h.b16 %v8536
    %v10505 = vunpack.c.l.b16 %v8537
    %v10506 = vunpack.c.h.b16 %v8537
    %v10507 = vunpack.c.l.b16 %v8538
    %v10508 = vunpack.c.h.b16 %v8538
    %v10509 = vunpack.c.l.b16 %v8539
    %v10510 = vunpack.c.h.b16 %v8539
    %v10511 = vunpack.c.l.b16 %v8540
    %v10512 = vunpack.c.h.b16 %v8540
    %v10513 = vunpack.c.l.b16 %v8541
    %v10514 = vunpack.c.h.b16 %v8541
    %v10515 = vunpack.c.l.b16 %v8542
    %v10516 = vunpack.c.h.b16 %v8542
    %v10517 = vunpack.c.l.b16 %v8543
    %v10518 = vunpack.c.h.b16 %v8543
    %v10519 = vunpack.c.l.b16 %v8544
    %v10520 = vunpack.c.h.b16 %v8544
    %v10521 = vunpack.c.l.b16 %v8545
    %v10522 = vunpack.c.h.b16 %v8545
    %v10523 = vunpack.c.l.b16 %v8546
    %v10524 = vunpack.c.h.b16 %v8546
    %v10525 = vunpack.c.l.b16 %v8547
    %v10526 = vunpack.c.h.b16 %v8547
    %v10527 = vunpack.c.l.b16 %v8548
    %v10528 = vunpack.c.h.b16 %v8548
    %v10529 = vunpack.c.l.b16 %v8549
    %v10530 = vunpack.c.h.b16 %v8549
    %v10531 = vunpack.c.l.b16 %v8550
    %v10532 = vunpack.c.h.b16 %v8550
    %v10533 = vunpack.c.l.b16 %v8551
    %v10534 = vunpack.c.h.b16 %v8551
    %v10535 = vunpack.c.l.b16 %v8552
    %v10536 = vunpack.c.h.b16 %v8552
    %v10537 = vunpack.c.l.b16 %v8553
    %v10538 = vunpack.c.h.b16 %v8553
    %v10539 = vunpack.c.l.b16 %v8554
    %v10540 = vunpack.c.h.b16 %v8554
    %v10541 = vunpack.c.l.b16 %v8555
    %v10542 = vunpack.c.h.b16 %v8555
    %v10543 = vunpack.c.l.b16 %v8556
    %v10544 = vunpack.c.h.b16 %v8556
    %v10545 = vunpack.c.l.b16 %v8557
    %v10546 = vunpack.c.h.b16 %v8557
    %v10547 = vunpack.c.l.b16 %v8558
    %v10548 = vunpack.c.h.b16 %v8558
    %v10549 = vunpack.c.l.b16 %v8559
    %v10550 = vunpack.c.h.b16 %v8559
    %v10551 = vunpack.c.l.b16 %v8560
    %v10552 = vunpack.c.h.b16 %v8560
    %v10553 = vunpack.c.l.b16 %v8561
    %v10554 = vunpack.c.h.b16 %v8561
    %v10555 = vunpack.c.l.b16 %v8562
    %v10556 = vunpack.c.h.b16 %v8562
    %v10557 = vunpack.c.l.b16 %v8563
    %v10558 = vunpack.c.h.b16 %v8563
    %v10559 = vunpack.c.l.b16 %v8564
    %v10560 = vunpack.c.h.b16 %v8564
    %v10561 = vunpack.c.l.b16 %v8565
    %v10562 = vunpack.c.h.b16 %v8565
    %v10563 = vunpack.c.l.b16 %v8566
    %v10564 = vunpack.c.h.b16 %v8566
    %v10565 = vunpack.c.l.b16 %v8567
    %v10566 = vunpack.c.h.b16 %v8567
    %v10567 = vunpack.c.l.b16 %v8568
    %v10568 = vunpack.c.h.b16 %v8568
    %v10569 = vunpack.c.l.b16 %v8569
    %v10570 = vunpack.c.h.b16 %v8569
    %v10571 = vunpack.c.l.b16 %v8570
    %v10572 = vunpack.c.h.b16 %v8570
    %v10573 = vpack.c.b16 %v9303, %v9293
    %v10574 = vpack.c.b16 %v9304, %v9294
    %v10575 = vpack.c.b16 %v9305, %v9295
    %v10576 = vpack.c.b16 %v9306, %v9296
    %v10577 = vpack.c.b16 %v9307, %v9297
    %v10578 = vpack.c.b16 %v9308, %v9298
    %v10579 = vpack.c.b16 %v9309, %v9299
    %v10580 = vpack.c.b16 %v9310, %v9300
    %v10581 = vpack.c.b16 %v9311, %v9301
    %v10582 = vpack.c.b16 %v9312, %v9302
    %v10583 = vpack.c.b16 %v9323, %v9313
    %v10584 = vpack.c.b16 %v9324, %v9314
    %v10585 = vpack.c.b16 %v9325, %v9315
    %v10586 = vpack.c.b16 %v9326, %v9316
    %v10587 = vpack.c.b16 %v9327, %v9317
    %v10588 = vpack.c.b16 %v9328, %v9318
    %v10589 = vpack.c.b16 %v9329, %v9319
    %v10590 = vpack.c.b16 %v9330, %v9320
    %v10591 = vpack.c.b16 %v9331, %v9321
    %v10592 = vpack.c.b16 %v9332, %v9322
    %v10593 = vpack.c.b16 %v9343, %v9333
    %v10594 = vpack.c.b16 %v9344, %v9334
    %v10595 = vpack.c.b16 %v9345, %v9335
    %v10596 = vpack.c.b16 %v9346, %v9336
    %v10597 = vpack.c.b16 %v9347, %v9337
    %v10598 = vpack.c.b16 %v9348, %v9338
    %v10599 = vpack.c.b16 %v9349, %v9339
    %v10600 = vpack.c.b16 %v9350, %v9340
    %v10601 = vpack.c.b16 %v9351, %v9341
    %v10602 = vpack.c.b16 %v9352, %v9342
    %v10603 = vpack.c.b16 %v9363, %v9353
    %v10604 = vpack.c.b16 %v9364, %v9354
    %v10605 = vpack.c.b16 %v9365, %v9355
    %v10606 = vpack.c.b16 %v9366, %v9356
    %v10607 = vpack.c.b16 %v9367, %v9357
    %v10608 = vpack.c.b16 %v9368, %v9358
    %v10609 = vpack.c.b16 %v9369, %v9359
    %v10610 = vpack.c.b16 %v9370, %v9360
    %v10611 = vpack.c.b16 %v9371, %v9361
    %v10612 = vpack.c.b16 %v9372, %v9362
    %v10613 = vpack.c.b16 %v9383, %v9373
    %v10614 = vpack.c.b16 %v9384, %v9374
    %v10615 = vpack.c.b16 %v9385, %v9375
    %v10616 = vpack.c.b16 %v9386, %v9376
    %v10617 = vpack.c.b16 %v9387, %v9377
    %v10618 = vpack.c.b16 %v9388, %v9378
    %v10619 = vpack.c.b16 %v9389, %v9379
    %v10620 = vpack.c.b16 %v9390, %v9380
    %v10621 = vpack.c.b16 %v9391, %v9381
    %v10622 = vpack.c.b16 %v9392, %v9382
    %v10623 = vpack.c.b16 %v9403, %v9393
    %v10624 = vpack.c.b16 %v9404, %v9394
    %v10625 = vpack.c.b16 %v9405, %v9395
    %v10626 = vpack.c.b16 %v9406, %v9396
    %v10627 = vpack.c.b16 %v9407, %v9397
    %v10628 = vpack.c.b16 %v9408, %v9398
    %v10629 = vpack.c.b16 %v9409, %v9399
    %v10630 = vpack.c.b16 %v9410, %v9400
    %v10631 = vpack.c.b16 %v9411, %v9401
    %v10632 = vpack.c.b16 %v9412, %v9402
    %v10633 = vpack.c.b16 %v9423, %v9413
    %v10634 = vpack.c.b16 %v9424, %v9414
    %v10635 = vpack.c.b16 %v9425, %v9415
    %v10636 = vpack.c.b16 %v9426, %v9416
    %v10637 = vpack.c.b16 %v9427, %v9417
    %v10638 = vpack.c.b16 %v9428, %v9418
    %v10639 = vpack.c.b16 %v9429, %v9419
    %v10640 = vpack.c.b16 %v9430, %v9420
    %v10641 = vpack.c.b16 %v9431, %v9421
    %v10642 = vpack.c.b16 %v9432, %v9422
    %v10643 = vpack.c.b16 %v9443, %v9433
    %v10644 = vpack.c.b16 %v9444, %v9434
    %v10645 = vpack.c.b16 %v9445, %v9435
    %v10646 = vpack.c.b16 %v9446, %v9436
    %v10647 = vpack.c.b16 %v9447, %v9437
    %v10648 = vpack.c.b16 %v9448, %v9438
    %v10649 = vpack.c.b16 %v9449, %v9439
    %v10650 = vpack.c.b16 %v9450, %v9440
    %v10651 = vpack.c.b16 %v9451, %v9441
    %v10652 = vpack.c.b16 %v9452, %v9442
    %v10653 = vpack.c.b16 %v9463, %v9453
    %v10654 = vpack.c.b16 %v9464, %v9454
    %v10655 = vpack.c.b16 %v9465, %v9455
    %v10656 = vpack.c.b16 %v9466, %v9456
    %v10657 = vpack.c.b16 %v9467, %v9457
    %v10658 = vpack.c.b16 %v9468, %v9458
    %v10659 = vpack.c.b16 %v9469, %v9459
    %v10660 = vpack.c.b16 %v9470, %v9460
    %v10661 = vpack.c.b16 %v9471, %v9461
    %v10662 = vpack.c.b16 %v9472, %v9462
    %v10663 = vpack.c.b16 %v9483, %v9473
    %v10664 = vpack.c.b16 %v9484, %v9474
    %v10665 = vpack.c.b16 %v9485, %v9475
    %v10666 = vpack.c.b16 %v9486, %v9476
    %v10667 = vpack.c.b16 %v9487, %v9477
    %v10668 = vpack.c.b16 %v9488, %v9478
    %v10669 = vpack.c.b16 %v9489, %v9479
    %v10670 = vpack.c.b16 %v9490, %v9480
    %v10671 = vpack.c.b16 %v9491, %v9481
    %v10672 = vpack.c.b16 %v9492, %v9482
    %v10673 = vpack.c.b16 %v9503, %v9493
    %v10674 = vpack.c.b16 %v9504, %v9494
    %v10675 = vpack.c.b16 %v9505, %v9495
    %v10676 = vpack.c.b16 %v9506, %v9496
    %v10677 = vpack.c.b16 %v9507, %v9497
    %v10678 = vpack.c.b16 %v9508, %v9498
    %v10679 = vpack.c.b16 %v9509, %v9499
    %v10680 = vpack.c.b16 %v9510, %v9500
    %v10681 = vpack.c.b16 %v9511, %v9501
    %v10682 = vpack.c.b16 %v9512, %v9502
    %v10683 = vpack.c.b16 %v9523, %v9513
    %v10684 = vpack.c.b16 %v9524, %v9514
    %v10685 = vpack.c.b16 %v9525, %v9515
    %v10686 = vpack.c.b16 %v9526, %v9516
    %v10687 = vpack.c.b16 %v9527, %v9517
    %v10688 = vpack.c.b16 %v9528, %v9518
    %v10689 = vpack.c.b16 %v9529, %v9519
    %v10690 = vpack.c.b16 %v9530, %v9520
    %v10691 = vpack.c.b16 %v9531, %v9521
    %v10692 = vpack.c.b16 %v9532, %v9522
    %v10693 = vpack.c.b16 %v9543, %v9533
    %v10694 = vpack.c.b16 %v9544, %v9534
    %v10695 = vpack.c.b16 %v9545, %v9535
    %v10696 = vpack.c.b16 %v9546, %v9536
    %v10697 = vpack.c.b16 %v9547, %v9537
    %v10698 = vpack.c.b16 %v9548, %v9538
    %v10699 = vpack.c.b16 %v9549, %v9539
    %v10700 = vpack.c.b16 %v9550, %v9540
    %v10701 = vpack.c.b16 %v9551, %v9541
    %v10702 = vpack.c.b16 %v9552, %v9542
    %v10703 = vpack.c.b16 %v9563, %v9553
    %v10704 = vpack.c.b16 %v9564, %v9554
    %v10705 = vpack.c.b16 %v9565, %v9555
    %v10706 = vpack.c.b16 %v9566, %v9556
    %v10707 = vpack.c.b16 %v9567, %v9557
    %v10708 = vpack.c.b16 %v9568, %v9558
    %v10709 = vpack.c.b16 %v9569, %v9559
    %v10710 = vpack.c.b16 %v9570, %v9560
    %v10711 = vpack.c.b16 %v9571, %v9561
    %v10712 = vpack.c.b16 %v9572, %v9562
    %v10713 = vpack.c.b16 %v9583, %v9573
    %v10714 = vpack.c.b16 %v9584, %v9574
    %v10715 = vpack.c.b16 %v9585, %v9575
    %v10716 = vpack.c.b16 %v9586, %v9576
    %v10717 = vpack.c.b16 %v9587, %v9577
    %v10718 = vpack.c.b16 %v9588, %v9578
    %v10719 = vpack.c.b16 %v9589, %v9579
    %v10720 = vpack.c.b16 %v9590, %v9580
    %v10721 = vpack.c.b16 %v9591, %v9581
    %v10722 = vpack.c.b16 %v9592, %v9582
    %v10723 = vpack.c.b16 %v9603, %v9593
    %v10724 = vpack.c.b16 %v9604, %v9594
    %v10725 = vpack.c.b16 %v9605, %v9595
    %v10726 = vpack.c.b16 %v9606, %v9596
    %v10727 = vpack.c.b16 %v9607, %v9597
    %v10728 = vpack.c.b16 %v9608, %v9598
    %v10729 = vpack.c.b16 %v9609, %v9599
    %v10730 = vpack.c.b16 %v9610, %v9600
    %v10731 = vpack.c.b16 %v9611, %v9601
    %v10732 = vpack.c.b16 %v9612, %v9602
    %v10733 = vpack.c.b16 %v9623, %v9613
    %v10734 = vpack.c.b16 %v9624, %v9614
    %v10735 = vpack.c.b16 %v9625, %v9615
    %v10736 = vpack.c.b16 %v9626, %v9616
    %v10737 = vpack.c.b16 %v9627, %v9617
    %v10738 = vpack.c.b16 %v9628, %v9618
    %v10739 = vpack.c.b16 %v9629, %v9619
    %v10740 = vpack.c.b16 %v9630, %v9620
    %v10741 = vpack.c.b16 %v9631, %v9621
    %v10742 = vpack.c.b16 %v9632, %v9622
    %v10743 = vpack.c.b16 %v9643, %v9633
    %v10744 = vpack.c.b16 %v9644, %v9634
    %v10745 = vpack.c.b16 %v9645, %v9635
    %v10746 = vpack.c.b16 %v9646, %v9636
    %v10747 = vpack.c.b16 %v9647, %v9637
    %v10748 = vpack.c.b16 %v9648, %v9638
    %v10749 = vpack.c.b16 %v9649, %v9639
    %v10750 = vpack.c.b16 %v9650, %v9640
    %v10751 = vpack.c.b16 %v9651, %v9641
    %v10752 = vpack.c.b16 %v9652, %v9642
    %v10753 = vpack.c.b16 %v9663, %v9653
    %v10754 = vpack.c.b16 %v9664, %v9654
    %v10755 = vpack.c.b16 %v9665, %v9655
    %v10756 = vpack.c.b16 %v9666, %v9656
    %v10757 = vpack.c.b16 %v9667, %v9657
    %v10758 = vpack.c.b16 %v9668, %v9658
    %v10759 = vpack.c.b16 %v9669, %v9659
    %v10760 = vpack.c.b16 %v9670, %v9660
    %v10761 = vpack.c.b16 %v9671, %v9661
    %v10762 = vpack.c.b16 %v9672, %v9662
    %v10763 = vpack.c.b16 %v9683, %v9673
    %v10764 = vpack.c.b16 %v9684, %v9674
    %v10765 = vpack.c.b16 %v9685, %v9675
    %v10766 = vpack.c.b16 %v9686, %v9676
    %v10767 = vpack.c.b16 %v9687, %v9677
    %v10768 = vpack.c.b16 %v9688, %v9678
    %v10769 = vpack.c.b16 %v9689, %v9679
    %v10770 = vpack.c.b16 %v9690, %v9680
    %v10771 = vpack.c.b16 %v9691, %v9681
    %v10772 = vpack.c.b16 %v9692, %v9682
    %v10773 = vpack.c.b16 %v9703, %v9693
    %v10774 = vpack.c.b16 %v9704, %v9694
    %v10775 = vpack.c.b16 %v9705, %v9695
    %v10776 = vpack.c.b16 %v9706, %v9696
    %v10777 = vpack.c.b16 %v9707, %v9697
    %v10778 = vpack.c.b16 %v9708, %v9698
    %v10779 = vpack.c.b16 %v9709, %v9699
    %v10780 = vpack.c.b16 %v9710, %v9700
    %v10781 = vpack.c.b16 %v9711, %v9701
    %v10782 = vpack.c.b16 %v9712, %v9702
    %v10783 = vpack.c.b16 %v9723, %v9713
    %v10784 = vpack.c.b16 %v9724, %v9714
    %v10785 = vpack.c.b16 %v9725, %v9715
    %v10786 = vpack.c.b16 %v9726, %v9716
    %v10787 = vpack.c.b16 %v9727, %v9717
    %v10788 = vpack.c.b16 %v9728, %v9718
    %v10789 = vpack.c.b16 %v9729, %v9719
    %v10790 = vpack.c.b16 %v9730, %v9720
    %v10791 = vpack.c.b16 %v9731, %v9721
    %v10792 = vpack.c.b16 %v9732, %v9722
    %v10793 = vpack.c.b16 %v9743, %v9733
    %v10794 = vpack.c.b16 %v9744, %v9734
    %v10795 = vpack.c.b16 %v9745, %v9735
    %v10796 = vpack.c.b16 %v9746, %v9736
    %v10797 = vpack.c.b16 %v9747, %v9737
    %v10798 = vpack.c.b16 %v9748, %v9738
    %v10799 = vpack.c.b16 %v9749, %v9739
    %v10800 = vpack.c.b16 %v9750, %v9740
    %v10801 = vpack.c.b16 %v9751, %v9741
    %v10802 = vpack.c.b16 %v9752, %v9742
    %v10803 = vpack.c.b16 %v9763, %v9753
    %v10804 = vpack.c.b16 %v9764, %v9754
    %v10805 = vpack.c.b16 %v9765, %v9755
    %v10806 = vpack.c.b16 %v9766, %v9756
    %v10807 = vpack.c.b16 %v9767, %v9757
    %v10808 = vpack.c.b16 %v9768, %v9758
    %v10809 = vpack.c.b16 %v9769, %v9759
    %v10810 = vpack.c.b16 %v9770, %v9760
    %v10811 = vpack.c.b16 %v9771, %v9761
    %v10812 = vpack.c.b16 %v9772, %v9762
    %v10813 = vpack.c.b16 %v9783, %v9773
    %v10814 = vpack.c.b16 %v9784, %v9774
    %v10815 = vpack.c.b16 %v9785, %v9775
    %v10816 = vpack.c.b16 %v9786, %v9776
    %v10817 = vpack.c.b16 %v9787, %v9777
    %v10818 = vpack.c.b16 %v9788, %v9778
    %v10819 = vpack.c.b16 %v9789, %v9779
    %v10820 = vpack.c.b16 %v9790, %v9780
    %v10821 = vpack.c.b16 %v9791, %v9781
    %v10822 = vpack.c.b16 %v9792, %v9782
    %v10823 = vpack.c.b16 %v9803, %v9793
    %v10824 = vpack.c.b16 %v9804, %v9794
    %v10825 = vpack.c.b16 %v9805, %v9795
    %v10826 = vpack.c.b16 %v9806, %v9796
    %v10827 = vpack.c.b16 %v9807, %v9797
    %v10828 = vpack.c.b16 %v9808, %v9798
    %v10829 = vpack.c.b16 %v9809, %v9799
    %v10830 = vpack.c.b16 %v9810, %v9800
    %v10831 = vpack.c.b16 %v9811, %v9801
    %v10832 = vpack.c.b16 %v9812, %v9802
    %v10833 = vpack.c.b16 %v9823, %v9813
    %v10834 = vpack.c.b16 %v9824, %v9814
    %v10835 = vpack.c.b16 %v9825, %v9815
    %v10836 = vpack.c.b16 %v9826, %v9816
    %v10837 = vpack.c.b16 %v9827, %v9817
    %v10838 = vpack.c.b16 %v9828, %v9818
    %v10839 = vpack.c.b16 %v9829, %v9819
    %v10840 = vpack.c.b16 %v9830, %v9820
    %v10841 = vpack.c.b16 %v9831, %v9821
    %v10842 = vpack.c.b16 %v9832, %v9822
    %v10843 = vpack.c.b16 %v9843, %v9833
    %v10844 = vpack.c.b16 %v9844, %v9834
    %v10845 = vpack.c.b16 %v9845, %v9835
    %v10846 = vpack.c.b16 %v9846, %v9836
    %v10847 = vpack.c.b16 %v9847, %v9837
    %v10848 = vpack.c.b16 %v9848, %v9838
    %v10849 = vpack.c.b16 %v9849, %v9839
    %v10850 = vpack.c.b16 %v9850, %v9840
    %v10851 = vpack.c.b16 %v9851, %v9841
    %v10852 = vpack.c.b16 %v9852, %v9842
    %v10853 = vpack.c.b16 %v9863, %v9853
    %v10854 = vpack.c.b16 %v9864, %v9854
    %v10855 = vpack.c.b16 %v9865, %v9855
    %v10856 = vpack.c.b16 %v9866, %v9856
    %v10857 = vpack.c.b16 %v9867, %v9857
    %v10858 = vpack.c.b16 %v9868, %v9858
    %v10859 = vpack.c.b16 %v9869, %v9859
    %v10860 = vpack.c.b16 %v9870, %v9860
    %v10861 = vpack.c.b16 %v9871, %v9861
    %v10862 = vpack.c.b16 %v9872, %v9862
    %v10863 = vpack.c.b16 %v9883, %v9873
    %v10864 = vpack.c.b16 %v9884, %v9874
    %v10865 = vpack.c.b16 %v9885, %v9875
    %v10866 = vpack.c.b16 %v9886, %v9876
    %v10867 = vpack.c.b16 %v9887, %v9877
    %v10868 = vpack.c.b16 %v9888, %v9878
    %v10869 = vpack.c.b16 %v9889, %v9879
    %v10870 = vpack.c.b16 %v9890, %v9880
    %v10871 = vpack.c.b16 %v9891, %v9881
    %v10872 = vpack.c.b16 %v9892, %v9882
    %v10873 = vpack.c.b16 %v9903, %v9893
    %v10874 = vpack.c.b16 %v9904, %v9894
    %v10875 = vpack.c.b16 %v9905, %v9895
    %v10876 = vpack.c.b16 %v9906, %v9896
    %v10877 = vpack.c.b16 %v9907, %v9897
    %v10878 = vpack.c.b16 %v9908, %v9898
    %v10879 = vpack.c.b16 %v9909, %v9899
    %v10880 = vpack.c.b16 %v9910, %v9900
    %v10881 = vpack.c.b16 %v9911, %v9901
    %v10882 = vpack.c.b16 %v9912, %v9902
    %v10883 = vpack.c.b16 %v9923, %v9913
    %v10884 = vpack.c.b16 %v9924, %v9914
    %v10885 = vpack.c.b16 %v9925, %v9915
    %v10886 = vpack.c.b16 %v9926, %v9916
    %v10887 = vpack.c.b16 %v9927, %v9917
    %v10888 = vpack.c.b16 %v9928, %v9918
    %v10889 = vpack.c.b16 %v9929, %v9919
    %v10890 = vpack.c.b16 %v9930, %v9920
    %v10891 = vpack.c.b16 %v9931, %v9921
    %v10892 = vpack.c.b16 %v9932, %v9922
    %v10893 = vpack.c.b16 %v9943, %v9933
    %v10894 = vpack.c.b16 %v9944, %v9934
    %v10895 = vpack.c.b16 %v9945, %v9935
    %v10896 = vpack.c.b16 %v9946, %v9936
    %v10897 = vpack.c.b16 %v9947, %v9937
    %v10898 = vpack.c.b16 %v9948, %v9938
    %v10899 = vpack.c.b16 %v9949, %v9939
    %v10900 = vpack.c.b16 %v9950, %v9940
    %v10901 = vpack.c.b16 %v9951, %v9941
    %v10902 = vpack.c.b16 %v9952, %v9942
    %v10903 = vpack.c.b16 %v9963, %v9953
    %v10904 = vpack.c.b16 %v9964, %v9954
    %v10905 = vpack.c.b16 %v9965, %v9955
    %v10906 = vpack.c.b16 %v9966, %v9956
    %v10907 = vpack.c.b16 %v9967, %v9957
    %v10908 = vpack.c.b16 %v9968, %v9958
    %v10909 = vpack.c.b16 %v9969, %v9959
    %v10910 = vpack.c.b16 %v9970, %v9960
    %v10911 = vpack.c.b16 %v9971, %v9961
    %v10912 = vpack.c.b16 %v9972, %v9962
    %v10913 = vpack.c.b16 %v9983, %v9973
    %v10914 = vpack.c.b16 %v9984, %v9974
    %v10915 = vpack.c.b16 %v9985, %v9975
    %v10916 = vpack.c.b16 %v9986, %v9976
    %v10917 = vpack.c.b16 %v9987, %v9977
    %v10918 = vpack.c.b16 %v9988, %v9978
    %v10919 = vpack.c.b16 %v9989, %v9979
    %v10920 = vpack.c.b16 %v9990, %v9980
    %v10921 = vpack.c.b16 %v9991, %v9981
    %v10922 = vpack.c.b16 %v9992, %v9982
    %v10923 = vpack.c.b16 %v10003, %v9993
    %v10924 = vpack.c.b16 %v10004, %v9994
    %v10925 = vpack.c.b16 %v10005, %v9995
    %v10926 = vpack.c.b16 %v10006, %v9996
    %v10927 = vpack.c.b16 %v10007, %v9997
    %v10928 = vpack.c.b16 %v10008, %v9998
    %v10929 = vpack.c.b16 %v10009, %v9999
    %v10930 = vpack.c.b16 %v10010, %v10000
    %v10931 = vpack.c.b16 %v10011, %v10001
    %v10932 = vpack.c.b16 %v10012, %v10002
    %v10933 = vpack.c.b16 %v10023, %v10013
    %v10934 = vpack.c.b16 %v10024, %v10014
    %v10935 = vpack.c.b16 %v10025, %v10015
    %v10936 = vpack.c.b16 %v10026, %v10016
    %v10937 = vpack.c.b16 %v10027, %v10017
    %v10938 = vpack.c.b16 %v10028, %v10018
    %v10939 = vpack.c.b16 %v10029, %v10019
    %v10940 = vpack.c.b16 %v10030, %v10020
    %v10941 = vpack.c.b16 %v10031, %v10021
    %v10942 = vpack.c.b16 %v10032, %v10022
    %v10943 = vpack.c.b16 %v10043, %v10033
    %v10944 = vpack.c.b16 %v10044, %v10034
    %v10945 = vpack.c.b16 %v10045, %v10035
    %v10946 = vpack.c.b16 %v10046, %v10036
    %v10947 = vpack.c.b16 %v10047, %v10037
    %v10948 = vpack.c.b16 %v10048, %v10038
    %v10949 = vpack.c.b16 %v10049, %v10039
    %v10950 = vpack.c.b16 %v10050, %v10040
    %v10951 = vpack.c.b16 %v10051, %v10041
    %v10952 = vpack.c.b16 %v10052, %v10042
    %v10953 = vpack.c.b16 %v10063, %v10053
    %v10954 = vpack.c.b16 %v10064, %v10054
    %v10955 = vpack.c.b16 %v10065, %v10055
    %v10956 = vpack.c.b16 %v10066, %v10056
    %v10957 = vpack.c.b16 %v10067, %v10057
    %v10958 = vpack.c.b16 %v10068, %v10058
    %v10959 = vpack.c.b16 %v10069, %v10059
    %v10960 = vpack.c.b16 %v10070, %v10060
    %v10961 = vpack.c.b16 %v10071, %v10061
    %v10962 = vpack.c.b16 %v10072, %v10062
    %v10963 = vpack.c.b16 %v10083, %v10073
    %v10964 = vpack.c.b16 %v10084, %v10074
    %v10965 = vpack.c.b16 %v10085, %v10075
    %v10966 = vpack.c.b16 %v10086, %v10076
    %v10967 = vpack.c.b16 %v10087, %v10077
    %v10968 = vpack.c.b16 %v10088, %v10078
    %v10969 = vpack.c.b16 %v10089, %v10079
    %v10970 = vpack.c.b16 %v10090, %v10080
    %v10971 = vpack.c.b16 %v10091, %v10081
    %v10972 = vpack.c.b16 %v10092, %v10082
    %v10973 = vpack.c.b16 %v10103, %v10093
    %v10974 = vpack.c.b16 %v10104, %v10094
    %v10975 = vpack.c.b16 %v10105, %v10095
    %v10976 = vpack.c.b16 %v10106, %v10096
    %v10977 = vpack.c.b16 %v10107, %v10097
    %v10978 = vpack.c.b16 %v10108, %v10098
    %v10979 = vpack.c.b16 %v10109, %v10099
    %v10980 = vpack.c.b16 %v10110, %v10100
    %v10981 = vpack.c.b16 %v10111, %v10101
    %v10982 = vpack.c.b16 %v10112, %v10102
    %v10983 = vpack.c.b16 %v10123, %v10113
    %v10984 = vpack.c.b16 %v10124, %v10114
    %v10985 = vpack.c.b16 %v10125, %v10115
    %v10986 = vpack.c.b16 %v10126, %v10116
    %v10987 = vpack.c.b16 %v10127, %v10117
    %v10988 = vpack.c.b16 %v10128, %v10118
    %v10989 = vpack.c.b16 %v10129, %v10119
    %v10990 = vpack.c.b16 %v10130, %v10120
    %v10991 = vpack.c.b16 %v10131, %v10121
    %v10992 = vpack.c.b16 %v10132, %v10122
    %v10993 = vpack.c.b16 %v10143, %v10133
    %v10994 = vpack.c.b16 %v10144, %v10134
    %v10995 = vpack.c.b16 %v10145, %v10135
    %v10996 = vpack.c.b16 %v10146, %v10136
    %v10997 = vpack.c.b16 %v10147, %v10137
    %v10998 = vpack.c.b16 %v10148, %v10138
    %v10999 = vpack.c.b16 %v10149, %v10139
    %v11000 = vpack.c.b16 %v10150, %v10140
    %v11001 = vpack.c.b16 %v10151, %v10141
    %v11002 = vpack.c.b16 %v10152, %v10142
    %v11003 = vpack.c.b16 %v10163, %v10153
    %v11004 = vpack.c.b16 %v10164, %v10154
    %v11005 = vpack.c.b16 %v10165, %v10155
    %v11006 = vpack.c.b16 %v10166, %v10156
    %v11007 = vpack.c.b16 %v10167, %v10157
    %v11008 = vpack.c.b16 %v10168, %v10158
    %v11009 = vpack.c.b16 %v10169, %v10159
    %v11010 = vpack.c.b16 %v10170, %v10160
    %v11011 = vpack.c.b16 %v10171, %v10161
    %v11012 = vpack.c.b16 %v10172, %v10162
    %v11013 = vpack.c.b16 %v10183, %v10173
    %v11014 = vpack.c.b16 %v10184, %v10174
    %v11015 = vpack.c.b16 %v10185, %v10175
    %v11016 = vpack.c.b16 %v10186, %v10176
    %v11017 = vpack.c.b16 %v10187, %v10177
    %v11018 = vpack.c.b16 %v10188, %v10178
    %v11019 = vpack.c.b16 %v10189, %v10179
    %v11020 = vpack.c.b16 %v10190, %v10180
    %v11021 = vpack.c.b16 %v10191, %v10181
    %v11022 = vpack.c.b16 %v10192, %v10182
    %v11023 = vpack.c.b16 %v10203, %v10193
    %v11024 = vpack.c.b16 %v10204, %v10194
    %v11025 = vpack.c.b16 %v10205, %v10195
    %v11026 = vpack.c.b16 %v10206, %v10196
    %v11027 = vpack.c.b16 %v10207, %v10197
    %v11028 = vpack.c.b16 %v10208, %v10198
    %v11029 = vpack.c.b16 %v10209, %v10199
    %v11030 = vpack.c.b16 %v10210, %v10200
    %v11031 = vpack.c.b16 %v10211, %v10201
    %v11032 = vpack.c.b16 %v10212, %v10202
    %v11033 = vpack.c.b16 %v10223, %v10213
    %v11034 = vpack.c.b16 %v10224, %v10214
    %v11035 = vpack.c.b16 %v10225, %v10215
    %v11036 = vpack.c.b16 %v10226, %v10216
    %v11037 = vpack.c.b16 %v10227, %v10217
    %v11038 = vpack.c.b16 %v10228, %v10218
    %v11039 = vpack.c.b16 %v10229, %v10219
    %v11040 = vpack.c.b16 %v10230, %v10220
    %v11041 = vpack.c.b16 %v10231, %v10221
    %v11042 = vpack.c.b16 %v10232, %v10222
    %v11043 = vpack.c.b16 %v10243, %v10233
    %v11044 = vpack.c.b16 %v10244, %v10234
    %v11045 = vpack.c.b16 %v10245, %v10235
    %v11046 = vpack.c.b16 %v10246, %v10236
    %v11047 = vpack.c.b16 %v10247, %v10237
    %v11048 = vpack.c.b16 %v10248, %v10238
    %v11049 = vpack.c.b16 %v10249, %v10239
    %v11050 = vpack.c.b16 %v10250, %v10240
    %v11051 = vpack.c.b16 %v10251, %v10241
    %v11052 = vpack.c.b16 %v10252, %v10242
    %v11053 = vpack.c.b16 %v10263, %v10253
    %v11054 = vpack.c.b16 %v10264, %v10254
    %v11055 = vpack.c.b16 %v10265, %v10255
    %v11056 = vpack.c.b16 %v10266, %v10256
    %v11057 = vpack.c.b16 %v10267, %v10257
    %v11058 = vpack.c.b16 %v10268, %v10258
    %v11059 = vpack.c.b16 %v10269, %v10259
    %v11060 = vpack.c.b16 %v10270, %v10260
    %v11061 = vpack.c.b16 %v10271, %v10261
    %v11062 = vpack.c.b16 %v10272, %v10262
    %v11063 = vpack.c.b16 %v10283, %v10273
    %v11064 = vpack.c.b16 %v10284, %v10274
    %v11065 = vpack.c.b16 %v10285, %v10275
    %v11066 = vpack.c.b16 %v10286, %v10276
    %v11067 = vpack.c.b16 %v10287, %v10277
    %v11068 = vpack.c.b16 %v10288, %v10278
    %v11069 = vpack.c.b16 %v10289, %v10279
    %v11070 = vpack.c.b16 %v10290, %v10280
    %v11071 = vpack.c.b16 %v10291, %v10281
    %v11072 = vpack.c.b16 %v10292, %v10282
    %v11073 = vpack.c.b16 %v10303, %v10293
    %v11074 = vpack.c.b16 %v10304, %v10294
    %v11075 = vpack.c.b16 %v10305, %v10295
    %v11076 = vpack.c.b16 %v10306, %v10296
    %v11077 = vpack.c.b16 %v10307, %v10297
    %v11078 = vpack.c.b16 %v10308, %v10298
    %v11079 = vpack.c.b16 %v10309, %v10299
    %v11080 = vpack.c.b16 %v10310, %v10300
    %v11081 = vpack.c.b16 %v10311, %v10301
    %v11082 = vpack.c.b16 %v10312, %v10302
    %v11083 = vpack.c.b16 %v10323, %v10313
    %v11084 = vpack.c.b16 %v10324, %v10314
    %v11085 = vpack.c.b16 %v10325, %v10315
    %v11086 = vpack.c.b16 %v10326, %v10316
    %v11087 = vpack.c.b16 %v10327, %v10317
    %v11088 = vpack.c.b16 %v10328, %v10318
    %v11089 = vpack.c.b16 %v10329, %v10319
    %v11090 = vpack.c.b16 %v10330, %v10320
    %v11091 = vpack.c.b16 %v10331, %v10321
    %v11092 = vpack.c.b16 %v10332, %v10322
    %v11093 = vpack.c.b16 %v10343, %v10333
    %v11094 = vpack.c.b16 %v10344, %v10334
    %v11095 = vpack.c.b16 %v10345, %v10335
    %v11096 = vpack.c.b16 %v10346, %v10336
    %v11097 = vpack.c.b16 %v10347, %v10337
    %v11098 = vpack.c.b16 %v10348, %v10338
    %v11099 = vpack.c.b16 %v10349, %v10339
    %v11100 = vpack.c.b16 %v10350, %v10340
    %v11101 = vpack.c.b16 %v10351, %v10341
    %v11102 = vpack.c.b16 %v10352, %v10342
    %v11103 = vpack.c.b16 %v10363, %v10353
    %v11104 = vpack.c.b16 %v10364, %v10354
    %v11105 = vpack.c.b16 %v10365, %v10355
    %v11106 = vpack.c.b16 %v10366, %v10356
    %v11107 = vpack.c.b16 %v10367, %v10357
    %v11108 = vpack.c.b16 %v10368, %v10358
    %v11109 = vpack.c.b16 %v10369, %v10359
    %v11110 = vpack.c.b16 %v10370, %v10360
    %v11111 = vpack.c.b16 %v10371, %v10361
    %v11112 = vpack.c.b16 %v10372, %v10362
    %v11113 = vpack.c.b16 %v10383, %v10373
    %v11114 = vpack.c.b16 %v10384, %v10374
    %v11115 = vpack.c.b16 %v10385, %v10375
    %v11116 = vpack.c.b16 %v10386, %v10376
    %v11117 = vpack.c.b16 %v10387, %v10377
    %v11118 = vpack.c.b16 %v10388, %v10378
    %v11119 = vpack.c.b16 %v10389, %v10379
    %v11120 = vpack.c.b16 %v10390, %v10380
    %v11121 = vpack.c.b16 %v10391, %v10381
    %v11122 = vpack.c.b16 %v10392, %v10382
    %v11123 = vpack.c.b16 %v10403, %v10393
    %v11124 = vpack.c.b16 %v10404, %v10394
    %v11125 = vpack.c.b16 %v10405, %v10395
    %v11126 = vpack.c.b16 %v10406, %v10396
    %v11127 = vpack.c.b16 %v10407, %v10397
    %v11128 = vpack.c.b16 %v10408, %v10398
    %v11129 = vpack.c.b16 %v10409, %v10399
    %v11130 = vpack.c.b16 %v10410, %v10400
    %v11131 = vpack.c.b16 %v10411, %v10401
    %v11132 = vpack.c.b16 %v10412, %v10402
    %v11133 = vpack.c.b16 %v10423, %v10413
    %v11134 = vpack.c.b16 %v10424, %v10414
    %v11135 = vpack.c.b16 %v10425, %v10415
    %v11136 = vpack.c.b16 %v10426, %v10416
    %v11137 = vpack.c.b16 %v10427, %v10417
    %v11138 = vpack.c.b16 %v10428, %v10418
    %v11139 = vpack.c.b16 %v10429, %v10419
    %v11140 = vpack.c.b16 %v10430, %v10420
    %v11141 = vpack.c.b16 %v10431, %v10421
    %v11142 = vpack.c.b16 %v10432, %v10422
    %v11143 = vpack.c.b16 %v10443, %v10433
    %v11144 = vpack.c.b16 %v10444, %v10434
    %v11145 = vpack.c.b16 %v10445, %v10435
    %v11146 = vpack.c.b16 %v10446, %v10436
    %v11147 = vpack.c.b16 %v10447, %v10437
    %v11148 = vpack.c.b16 %v10448, %v10438
    %v11149 = vpack.c.b16 %v10449, %v10439
    %v11150 = vpack.c.b16 %v10450, %v10440
    %v11151 = vpack.c.b16 %v10451, %v10441
    %v11152 = vpack.c.b16 %v10452, %v10442
    %v11153 = vpack.c.b16 %v10463, %v10453
    %v11154 = vpack.c.b16 %v10464, %v10454
    %v11155 = vpack.c.b16 %v10465, %v10455
    %v11156 = vpack.c.b16 %v10466, %v10456
    %v11157 = vpack.c.b16 %v10467, %v10457
    %v11158 = vpack.c.b16 %v10468, %v10458
    %v11159 = vpack.c.b16 %v10469, %v10459
    %v11160 = vpack.c.b16 %v10470, %v10460
    %v11161 = vpack.c.b16 %v10471, %v10461
    %v11162 = vpack.c.b16 %v10472, %v10462
    %v11163 = vpack.c.b16 %v10483, %v10473
    %v11164 = vpack.c.b16 %v10484, %v10474
    %v11165 = vpack.c.b16 %v10485, %v10475
    %v11166 = vpack.c.b16 %v10486, %v10476
    %v11167 = vpack.c.b16 %v10487, %v10477
    %v11168 = vpack.c.b16 %v10488, %v10478
    %v11169 = vpack.c.b16 %v10489, %v10479
    %v11170 = vpack.c.b16 %v10490, %v10480
    %v11171 = vpack.c.b16 %v10491, %v10481
    %v11172 = vpack.c.b16 %v10492, %v10482
    %v11173 = vpack.c.b16 %v10503, %v10493
    %v11174 = vpack.c.b16 %v10504, %v10494
    %v11175 = vpack.c.b16 %v10505, %v10495
    %v11176 = vpack.c.b16 %v10506, %v10496
    %v11177 = vpack.c.b16 %v10507, %v10497
    %v11178 = vpack.c.b16 %v10508, %v10498
    %v11179 = vpack.c.b16 %v10509, %v10499
    %v11180 = vpack.c.b16 %v10510, %v10500
    %v11181 = vpack.c.b16 %v10511, %v10501
    %v11182 = vpack.c.b16 %v10512, %v10502
    %v11183 = vpack.c.b16 %v10523, %v10513
    %v11184 = vpack.c.b16 %v10524, %v10514
    %v11185 = vpack.c.b16 %v10525, %v10515
    %v11186 = vpack.c.b16 %v10526, %v10516
    %v11187 = vpack.c.b16 %v10527, %v10517
    %v11188 = vpack.c.b16 %v10528, %v10518
    %v11189 = vpack.c.b16 %v10529, %v10519
    %v11190 = vpack.c.b16 %v10530, %v10520
    %v11191 = vpack.c.b16 %v10531, %v10521
    %v11192 = vpack.c.b16 %v10532, %v10522
    %v11193 = vpack.c.b16 %v10543, %v10533
    %v11194 = vpack.c.b16 %v10544, %v10534
    %v11195 = vpack.c.b16 %v10545, %v10535
    %v11196 = vpack.c.b16 %v10546, %v10536
    %v11197 = vpack.c.b16 %v10547, %v10537
    %v11198 = vpack.c.b16 %v10548, %v10538
    %v11199 = vpack.c.b16 %v10549, %v10539
    %v11200 = vpack.c.b16 %v10550, %v10540
    %v11201 = vpack.c.b16 %v10551, %v10541
    %v11202 = vpack.c.b16 %v10552, %v10542
    %v11203 = vpack.c.b16 %v10563, %v10553
    %v11204 = vpack.c.b16 %v10564, %v10554
    %v11205 = vpack.c.b16 %v10565, %v10555
    %v11206 = vpack.c.b16 %v10566, %v10556
    %v11207 = vpack.c.b16 %v10567, %v10557
    %v11208 = vpack.c.b16 %v10568, %v10558
    %v11209 = vpack.c.b16 %v10569, %v10559
    %v11210 = vpack.c.b16 %v10570, %v10560
    %v11211 = vpack.c.b16 %v10571, %v10561
    %v11212 = vpack.c.b16 %v10572, %v10562
    %11853 = vmatprep.subr.bf16.mxu0 %v10574
    %11854 = vmatpush1.bf16.msra.mxu0 %v10573
    %11855 = vmatprep.subr.bf16.mxu0 %v10584
    %11856 = vmatpush1.bf16.msra.mxu0 %v10583
    %11857 = vmatprep.subr.bf16.mxu0 %v10594
    %11858 = vmatpush1.bf16.msra.mxu0 %v10593
    %11859 = vmatprep.subr.bf16.mxu0 %v10604
    %11860 = vmatpush1.bf16.msra.mxu0 %v10603
    %11861 = vmatprep.subr.bf16.mxu0 %v10614
    %11862 = vmatpush1.bf16.msra.mxu0 %v10613
    %11863 = vmatprep.subr.bf16.mxu0 %v10624
    %11864 = vmatpush1.bf16.msra.mxu0 %v10623
    %11865 = vmatprep.subr.bf16.mxu0 %v10634
    %11866 = vmatpush1.bf16.msra.mxu0 %v10633
    %11867 = vmatprep.subr.bf16.mxu0 %v10644
    %11868 = vmatpush1.bf16.msra.mxu0 %v10643
    %11869 = vmatprep.subr.bf16.mxu0 %v10654
    %11870 = vmatpush1.bf16.msra.mxu0 %v10653
    %11871 = vmatprep.subr.bf16.mxu0 %v10664
    %11872 = vmatpush1.bf16.msra.mxu0 %v10663
    %11873 = vmatprep.subr.bf16.mxu0 %v10674
    %11874 = vmatpush1.bf16.msra.mxu0 %v10673
    %11875 = vmatprep.subr.bf16.mxu0 %v10684
    %11876 = vmatpush1.bf16.msra.mxu0 %v10683
    %11877 = vmatprep.subr.bf16.mxu0 %v10694
    %11878 = vmatpush1.bf16.msra.mxu0 %v10693
    %11879 = vmatprep.subr.bf16.mxu0 %v10704
    %11880 = vmatpush1.bf16.msra.mxu0 %v10703
    %11881 = vmatprep.subr.bf16.mxu0 %v10714
    %11882 = vmatpush1.bf16.msra.mxu0 %v10713
    %11883 = vmatprep.subr.bf16.mxu0 %v10724
    %11884 = vmatpush1.bf16.msra.mxu0 %v10723
    %11885 = vmatprep.mubr.bf16.mxu0 %v8638
    %11886 = vmatmul.mubr.bf16.gmra.mrb[0].mxu0 %v8637
    %v11887 = vpop.f32.mrb[0].mxu0
    %v11888 = vadd.f32 %v8578, %v11887
    %v11889 = vpop.f32.mrb[0].mxu0
    %v11890 = vadd.f32 %v8582, %v11889
    %v11891 = vpop.f32.mrb[0].mxu0
    %v11892 = vpop.f32.mrb[0].mxu0
    %11893 = vdwg.mxu0
    %11894 = vmatprep.subr.bf16.mxu0 %v10734
    %11895 = vmatpush1.bf16.msra.mxu0 %v10733
    %11896 = vmatprep.subr.bf16.mxu0 %v10744
    %11897 = vmatpush1.bf16.msra.mxu0 %v10743
    %11898 = vmatprep.subr.bf16.mxu0 %v10754
    %11899 = vmatpush1.bf16.msra.mxu0 %v10753
    %11900 = vmatprep.subr.bf16.mxu0 %v10764
    %11901 = vmatpush1.bf16.msra.mxu0 %v10763
    %11902 = vmatprep.subr.bf16.mxu0 %v10774
    %11903 = vmatpush1.bf16.msra.mxu0 %v10773
    %11904 = vmatprep.subr.bf16.mxu0 %v10784
    %11905 = vmatpush1.bf16.msra.mxu0 %v10783
    %11906 = vmatprep.subr.bf16.mxu0 %v10794
    %11907 = vmatpush1.bf16.msra.mxu0 %v10793
    %11908 = vmatprep.subr.bf16.mxu0 %v10804
    %11909 = vmatpush1.bf16.msra.mxu0 %v10803
    %11910 = vmatprep.subr.bf16.mxu0 %v10814
    %11911 = vmatpush1.bf16.msra.mxu0 %v10813
    %11912 = vmatprep.subr.bf16.mxu0 %v10824
    %11913 = vmatpush1.bf16.msra.mxu0 %v10823
    %11914 = vmatprep.subr.bf16.mxu0 %v10834
    %11915 = vmatpush1.bf16.msra.mxu0 %v10833
    %11916 = vmatprep.subr.bf16.mxu0 %v10844
    %11917 = vmatpush1.bf16.msra.mxu0 %v10843
    %11918 = vmatprep.subr.bf16.mxu0 %v10854
    %11919 = vmatpush1.bf16.msra.mxu0 %v10853
    %11920 = vmatprep.subr.bf16.mxu0 %v10864
    %11921 = vmatpush1.bf16.msra.mxu0 %v10863
    %11922 = vmatprep.subr.bf16.mxu0 %v10874
    %11923 = vmatpush1.bf16.msra.mxu0 %v10873
    %11924 = vmatprep.subr.bf16.mxu0 %v10884
    %11925 = vmatpush1.bf16.msra.mxu0 %v10883
    %11926 = vmatprep.mubr.bf16.mxu0 %v8640
    %11927 = vmatmul.mubr.bf16.gmra.mrb[0].mxu0 %v8639
    %v11928 = vpop.f32.mrb[0].mxu0
    %v11929 = vadd.f32 %v11888, %v11928
    %v11930 = vpop.f32.mrb[0].mxu0
    %v11931 = vadd.f32 %v11890, %v11930
    %v11932 = vpop.f32.mrb[0].mxu0
    %v11933 = vpop.f32.mrb[0].mxu0
    %11934 = vdwg.mxu0
    %11935 = vmatprep.subr.bf16.mxu0 %v10894
    %11936 = vmatpush1.bf16.msra.mxu0 %v10893
    %11937 = vmatprep.subr.bf16.mxu0 %v10904
    %11938 = vmatpush1.bf16.msra.mxu0 %v10903
    %11939 = vmatprep.subr.bf16.mxu0 %v10914
    %11940 = vmatpush1.bf16.msra.mxu0 %v10913
    %11941 = vmatprep.subr.bf16.mxu0 %v10924
    %11942 = vmatpush1.bf16.msra.mxu0 %v10923
    %11943 = vmatprep.subr.bf16.mxu0 %v10934
    %11944 = vmatpush1.bf16.msra.mxu0 %v10933
    %11945 = vmatprep.subr.bf16.mxu0 %v10944
    %11946 = vmatpush1.bf16.msra.mxu0 %v10943
    %11947 = vmatprep.subr.bf16.mxu0 %v10954
    %11948 = vmatpush1.bf16.msra.mxu0 %v10953
    %11949 = vmatprep.subr.bf16.mxu0 %v10964
    %11950 = vmatpush1.bf16.msra.mxu0 %v10963
    %11951 = vmatprep.subr.bf16.mxu0 %v10974
    %11952 = vmatpush1.bf16.msra.mxu0 %v10973
    %11953 = vmatprep.subr.bf16.mxu0 %v10984
    %11954 = vmatpush1.bf16.msra.mxu0 %v10983
    %11955 = vmatprep.subr.bf16.mxu0 %v10994
    %11956 = vmatpush1.bf16.msra.mxu0 %v10993
    %11957 = vmatprep.subr.bf16.mxu0 %v11004
    %11958 = vmatpush1.bf16.msra.mxu0 %v11003
    %11959 = vmatprep.subr.bf16.mxu0 %v11014
    %11960 = vmatpush1.bf16.msra.mxu0 %v11013
    %11961 = vmatprep.subr.bf16.mxu0 %v11024
    %11962 = vmatpush1.bf16.msra.mxu0 %v11023
    %11963 = vmatprep.subr.bf16.mxu0 %v11034
    %11964 = vmatpush1.bf16.msra.mxu0 %v11033
    %11965 = vmatprep.subr.bf16.mxu0 %v11044
    %11966 = vmatpush1.bf16.msra.mxu0 %v11043
    %11967 = vmatprep.mubr.bf16.mxu0 %v8642
    %11968 = vmatmul.mubr.bf16.gmra.mrb[0].mxu0 %v8641
    %v11969 = vpop.f32.mrb[0].mxu0
    %v11970 = vadd.f32 %v11929, %v11969
    %v11971 = vpop.f32.mrb[0].mxu0
    %v11972 = vadd.f32 %v11931, %v11971
    %v11973 = vpop.f32.mrb[0].mxu0
    %v11974 = vpop.f32.mrb[0].mxu0
    %11975 = vdwg.mxu0
    %11976 = vmatprep.subr.bf16.mxu0 %v11054
    %11977 = vmatpush1.bf16.msra.mxu0 %v11053
    %11978 = vmatprep.subr.bf16.mxu0 %v11064
    %11979 = vmatpush1.bf16.msra.mxu0 %v11063
    %11980 = vmatprep.subr.bf16.mxu0 %v11074
    %11981 = vmatpush1.bf16.msra.mxu0 %v11073
    %11982 = vmatprep.subr.bf16.mxu0 %v11084
    %11983 = vmatpush1.bf16.msra.mxu0 %v11083
    %11984 = vmatprep.subr.bf16.mxu0 %v11094
    %11985 = vmatpush1.bf16.msra.mxu0 %v11093
    %11986 = vmatprep.subr.bf16.mxu0 %v11104
    %11987 = vmatpush1.bf16.msra.mxu0 %v11103
    %11988 = vmatprep.subr.bf16.mxu0 %v11114
    %11989 = vmatpush1.bf16.msra.mxu0 %v11113
    %11990 = vmatprep.subr.bf16.mxu0 %v11124
    %11991 = vmatpush1.bf16.msra.mxu0 %v11123
    %11992 = vmatprep.subr.bf16.mxu0 %v11134
    %11993 = vmatpush1.bf16.msra.mxu0 %v11133
    %11994 = vmatprep.subr.bf16.mxu0 %v11144
    %11995 = vmatpush1.bf16.msra.mxu0 %v11143
    %11996 = vmatprep.subr.bf16.mxu0 %v11154
    %11997 = vmatpush1.bf16.msra.mxu0 %v11153
    %11998 = vmatprep.subr.bf16.mxu0 %v11164
    %11999 = vmatpush1.bf16.msra.mxu0 %v11163
    %12000 = vmatprep.subr.bf16.mxu0 %v11174
    %12001 = vmatpush1.bf16.msra.mxu0 %v11173
    %12002 = vmatprep.subr.bf16.mxu0 %v11184
    %12003 = vmatpush1.bf16.msra.mxu0 %v11183
    %12004 = vmatprep.subr.bf16.mxu0 %v11194
    %12005 = vmatpush1.bf16.msra.mxu0 %v11193
    %12006 = vmatprep.subr.bf16.mxu0 %v11204
    %12007 = vmatpush1.bf16.msra.mxu0 %v11203
    %12008 = vmatprep.mubr.bf16.mxu0 %v8644
    %12009 = vmatmul.mubr.bf16.gmra.mrb[0].mxu0 %v8643
    %v12010 = vpop.f32.mrb[0].mxu0
    %v12011 = vadd.f32 %v11970, %v12010
    %v12012 = vpop.f32.mrb[0].mxu0
    %v12013 = vadd.f32 %v11972, %v12012
    %v12014 = vpop.f32.mrb[0].mxu0
    %v12015 = vpop.f32.mrb[0].mxu0
    %12016 = vdwg.mxu0
    %12017 = vmatprep.subr.bf16.mxu0 %v10576
    %12018 = vmatpush1.bf16.msra.mxu0 %v10575
    %12019 = vmatprep.subr.bf16.mxu0 %v10586
    %12020 = vmatpush1.bf16.msra.mxu0 %v10585
    %12021 = vmatprep.subr.bf16.mxu0 %v10596
    %12022 = vmatpush1.bf16.msra.mxu0 %v10595
    %12023 = vmatprep.subr.bf16.mxu0 %v10606
    %12024 = vmatpush1.bf16.msra.mxu0 %v10605
    %12025 = vmatprep.subr.bf16.mxu0 %v10616
    %12026 = vmatpush1.bf16.msra.mxu0 %v10615
    %12027 = vmatprep.subr.bf16.mxu0 %v10626
    %12028 = vmatpush1.bf16.msra.mxu0 %v10625
    %12029 = vmatprep.subr.bf16.mxu0 %v10636
    %12030 = vmatpush1.bf16.msra.mxu0 %v10635
    %12031 = vmatprep.subr.bf16.mxu0 %v10646
    %12032 = vmatpush1.bf16.msra.mxu0 %v10645
    %12033 = vmatprep.subr.bf16.mxu0 %v10656
    %12034 = vmatpush1.bf16.msra.mxu0 %v10655
    %12035 = vmatprep.subr.bf16.mxu0 %v10666
    %12036 = vmatpush1.bf16.msra.mxu0 %v10665
    %12037 = vmatprep.subr.bf16.mxu0 %v10676
    %12038 = vmatpush1.bf16.msra.mxu0 %v10675
    %12039 = vmatprep.subr.bf16.mxu0 %v10686
    %12040 = vmatpush1.bf16.msra.mxu0 %v10685
    %12041 = vmatprep.subr.bf16.mxu0 %v10696
    %12042 = vmatpush1.bf16.msra.mxu0 %v10695
    %12043 = vmatprep.subr.bf16.mxu0 %v10706
    %12044 = vmatpush1.bf16.msra.mxu0 %v10705
    %12045 = vmatprep.subr.bf16.mxu0 %v10716
    %12046 = vmatpush1.bf16.msra.mxu0 %v10715
    %12047 = vmatprep.subr.bf16.mxu0 %v10726
    %12048 = vmatpush1.bf16.msra.mxu0 %v10725
    %12049 = vmatprep.mubr.bf16.mxu0 %v8638
    %12050 = vmatmul.mubr.bf16.gmra.mrb[0].mxu0 %v8637
    %v12051 = vpop.f32.mrb[0].mxu0
    %v12052 = vadd.f32 %v8586, %v12051
    %v12053 = vpop.f32.mrb[0].mxu0
    %v12054 = vadd.f32 %v8590, %v12053
    %v12055 = vpop.f32.mrb[0].mxu0
    %v12056 = vpop.f32.mrb[0].mxu0
    %12057 = vdwg.mxu0
    %12058 = vmatprep.subr.bf16.mxu0 %v10736
    %12059 = vmatpush1.bf16.msra.mxu0 %v10735
    %12060 = vmatprep.subr.bf16.mxu0 %v10746
    %12061 = vmatpush1.bf16.msra.mxu0 %v10745
    %12062 = vmatprep.subr.bf16.mxu0 %v10756
    %12063 = vmatpush1.bf16.msra.mxu0 %v10755
    %12064 = vmatprep.subr.bf16.mxu0 %v10766
    %12065 = vmatpush1.bf16.msra.mxu0 %v10765
    %12066 = vmatprep.subr.bf16.mxu0 %v10776
    %12067 = vmatpush1.bf16.msra.mxu0 %v10775
    %12068 = vmatprep.subr.bf16.mxu0 %v10786
    %12069 = vmatpush1.bf16.msra.mxu0 %v10785
    %12070 = vmatprep.subr.bf16.mxu0 %v10796
    %12071 = vmatpush1.bf16.msra.mxu0 %v10795
    %12072 = vmatprep.subr.bf16.mxu0 %v10806
    %12073 = vmatpush1.bf16.msra.mxu0 %v10805
    %12074 = vmatprep.subr.bf16.mxu0 %v10816
    %12075 = vmatpush1.bf16.msra.mxu0 %v10815
    %12076 = vmatprep.subr.bf16.mxu0 %v10826
    %12077 = vmatpush1.bf16.msra.mxu0 %v10825
    %12078 = vmatprep.subr.bf16.mxu0 %v10836
    %12079 = vmatpush1.bf16.msra.mxu0 %v10835
    %12080 = vmatprep.subr.bf16.mxu0 %v10846
    %12081 = vmatpush1.bf16.msra.mxu0 %v10845
    %12082 = vmatprep.subr.bf16.mxu0 %v10856
    %12083 = vmatpush1.bf16.msra.mxu0 %v10855
    %12084 = vmatprep.subr.bf16.mxu0 %v10866
    %12085 = vmatpush1.bf16.msra.mxu0 %v10865
    %12086 = vmatprep.subr.bf16.mxu0 %v10876
    %12087 = vmatpush1.bf16.msra.mxu0 %v10875
    %12088 = vmatprep.subr.bf16.mxu0 %v10886
    %12089 = vmatpush1.bf16.msra.mxu0 %v10885
    %12090 = vmatprep.mubr.bf16.mxu0 %v8640
    %12091 = vmatmul.mubr.bf16.gmra.mrb[0].mxu0 %v8639
    %v12092 = vpop.f32.mrb[0].mxu0
    %v12093 = vadd.f32 %v12052, %v12092
    %v12094 = vpop.f32.mrb[0].mxu0
    %v12095 = vadd.f32 %v12054, %v12094
    %v12096 = vpop.f32.mrb[0].mxu0
    %v12097 = vpop.f32.mrb[0].mxu0
    %12098 = vdwg.mxu0
    %12099 = vmatprep.subr.bf16.mxu0 %v10896
    %12100 = vmatpush1.bf16.msra.mxu0 %v10895
    %12101 = vmatprep.subr.bf16.mxu0 %v10906
    %12102 = vmatpush1.bf16.msra.mxu0 %v10905
    %12103 = vmatprep.subr.bf16.mxu0 %v10916
    %12104 = vmatpush1.bf16.msra.mxu0 %v10915
    %12105 = vmatprep.subr.bf16.mxu0 %v10926
    %12106 = vmatpush1.bf16.msra.mxu0 %v10925
    %12107 = vmatprep.subr.bf16.mxu0 %v10936
    %12108 = vmatpush1.bf16.msra.mxu0 %v10935
    %12109 = vmatprep.subr.bf16.mxu0 %v10946
    %12110 = vmatpush1.bf16.msra.mxu0 %v10945
    %12111 = vmatprep.subr.bf16.mxu0 %v10956
    %12112 = vmatpush1.bf16.msra.mxu0 %v10955
    %12113 = vmatprep.subr.bf16.mxu0 %v10966
    %12114 = vmatpush1.bf16.msra.mxu0 %v10965
    %12115 = vmatprep.subr.bf16.mxu0 %v10976
    %12116 = vmatpush1.bf16.msra.mxu0 %v10975
    %12117 = vmatprep.subr.bf16.mxu0 %v10986
    %12118 = vmatpush1.bf16.msra.mxu0 %v10985
    %12119 = vmatprep.subr.bf16.mxu0 %v10996
    %12120 = vmatpush1.bf16.msra.mxu0 %v10995
    %12121 = vmatprep.subr.bf16.mxu0 %v11006
    %12122 = vmatpush1.bf16.msra.mxu0 %v11005
    %12123 = vmatprep.subr.bf16.mxu0 %v11016
    %12124 = vmatpush1.bf16.msra.mxu0 %v11015
    %12125 = vmatprep.subr.bf16.mxu0 %v11026
    %12126 = vmatpush1.bf16.msra.mxu0 %v11025
    %12127 = vmatprep.subr.bf16.mxu0 %v11036
    %12128 = vmatpush1.bf16.msra.mxu0 %v11035
    %12129 = vmatprep.subr.bf16.mxu0 %v11046
    %12130 = vmatpush1.bf16.msra.mxu0 %v11045
    %12131 = vmatprep.mubr.bf16.mxu0 %v8642
    %12132 = vmatmul.mubr.bf16.gmra.mrb[0].mxu0 %v8641
    %v12133 = vpop.f32.mrb[0].mxu0
    %v12134 = vadd.f32 %v12093, %v12133
    %v12135 = vpop.f32.mrb[0].mxu0
    %v12136 = vadd.f32 %v12095, %v12135
    %v12137 = vpop.f32.mrb[0].mxu0
    %v12138 = vpop.f32.mrb[0].mxu0
    %12139 = vdwg.mxu0
    %12140 = vmatprep.subr.bf16.mxu0 %v11056
    %12141 = vmatpush1.bf16.msra.mxu0 %v11055
    %12142 = vmatprep.subr.bf16.mxu0 %v11066
    %12143 = vmatpush1.bf16.msra.mxu0 %v11065
    %12144 = vmatprep.subr.bf16.mxu0 %v11076
    %12145 = vmatpush1.bf16.msra.mxu0 %v11075
    %12146 = vmatprep.subr.bf16.mxu0 %v11086
    %12147 = vmatpush1.bf16.msra.mxu0 %v11085
    %12148 = vmatprep.subr.bf16.mxu0 %v11096
    %12149 = vmatpush1.bf16.msra.mxu0 %v11095
    %12150 = vmatprep.subr.bf16.mxu0 %v11106
    %12151 = vmatpush1.bf16.msra.mxu0 %v11105
    %12152 = vmatprep.subr.bf16.mxu0 %v11116
    %12153 = vmatpush1.bf16.msra.mxu0 %v11115
    %12154 = vmatprep.subr.bf16.mxu0 %v11126
    %12155 = vmatpush1.bf16.msra.mxu0 %v11125
    %12156 = vmatprep.subr.bf16.mxu0 %v11136
    %12157 = vmatpush1.bf16.msra.mxu0 %v11135
    %12158 = vmatprep.subr.bf16.mxu0 %v11146
    %12159 = vmatpush1.bf16.msra.mxu0 %v11145
    %12160 = vmatprep.subr.bf16.mxu0 %v11156
    %12161 = vmatpush1.bf16.msra.mxu0 %v11155
    %12162 = vmatprep.subr.bf16.mxu0 %v11166
    %12163 = vmatpush1.bf16.msra.mxu0 %v11165
    %12164 = vmatprep.subr.bf16.mxu0 %v11176
    %12165 = vmatpush1.bf16.msra.mxu0 %v11175
    %12166 = vmatprep.subr.bf16.mxu0 %v11186
    %12167 = vmatpush1.bf16.msra.mxu0 %v11185
    %12168 = vmatprep.subr.bf16.mxu0 %v11196
    %12169 = vmatpush1.bf16.msra.mxu0 %v11195
    %12170 = vmatprep.subr.bf16.mxu0 %v11206
    %12171 = vmatpush1.bf16.msra.mxu0 %v11205
    %12172 = vmatprep.mubr.bf16.mxu0 %v8644
    %12173 = vmatmul.mubr.bf16.gmra.mrb[0].mxu0 %v8643
    %v12174 = vpop.f32.mrb[0].mxu0
    %v12175 = vadd.f32 %v12134, %v12174
    %v12176 = vpop.f32.mrb[0].mxu0
    %v12177 = vadd.f32 %v12136, %v12176
    %v12178 = vpop.f32.mrb[0].mxu0
    %v12179 = vpop.f32.mrb[0].mxu0
    %12180 = vdwg.mxu0
    %12181 = vmatprep.subr.bf16.mxu0 %v10578
    %12182 = vmatpush1.bf16.msra.mxu0 %v10577
    %12183 = vmatprep.subr.bf16.mxu0 %v10588
    %12184 = vmatpush1.bf16.msra.mxu0 %v10587
    %12185 = vmatprep.subr.bf16.mxu0 %v10598
    %12186 = vmatpush1.bf16.msra.mxu0 %v10597
    %12187 = vmatprep.subr.bf16.mxu0 %v10608
    %12188 = vmatpush1.bf16.msra.mxu0 %v10607
    %12189 = vmatprep.subr.bf16.mxu0 %v10618
    %12190 = vmatpush1.bf16.msra.mxu0 %v10617
    %12191 = vmatprep.subr.bf16.mxu0 %v10628
    %12192 = vmatpush1.bf16.msra.mxu0 %v10627
    %12193 = vmatprep.subr.bf16.mxu0 %v10638
    %12194 = vmatpush1.bf16.msra.mxu0 %v10637
    %12195 = vmatprep.subr.bf16.mxu0 %v10648
    %12196 = vmatpush1.bf16.msra.mxu0 %v10647
    %12197 = vmatprep.subr.bf16.mxu0 %v10658
    %12198 = vmatpush1.bf16.msra.mxu0 %v10657
    %12199 = vmatprep.subr.bf16.mxu0 %v10668
    %12200 = vmatpush1.bf16.msra.mxu0 %v10667
    %12201 = vmatprep.subr.bf16.mxu0 %v10678
    %12202 = vmatpush1.bf16.msra.mxu0 %v10677
    %12203 = vmatprep.subr.bf16.mxu0 %v10688
    %12204 = vmatpush1.bf16.msra.mxu0 %v10687
    %12205 = vmatprep.subr.bf16.mxu0 %v10698
    %12206 = vmatpush1.bf16.msra.mxu0 %v10697
    %12207 = vmatprep.subr.bf16.mxu0 %v10708
    %12208 = vmatpush1.bf16.msra.mxu0 %v10707
    %12209 = vmatprep.subr.bf16.mxu0 %v10718
    %12210 = vmatpush1.bf16.msra.mxu0 %v10717
    %12211 = vmatprep.subr.bf16.mxu0 %v10728
    %12212 = vmatpush1.bf16.msra.mxu0 %v10727
    %12213 = vmatprep.mubr.bf16.mxu0 %v8638
    %12214 = vmatmul.mubr.bf16.gmra.mrb[0].mxu0 %v8637
    %v12215 = vpop.f32.mrb[0].mxu0
    %v12216 = vadd.f32 %v8594, %v12215
    %v12217 = vpop.f32.mrb[0].mxu0
    %v12218 = vadd.f32 %v8598, %v12217
    %v12219 = vpop.f32.mrb[0].mxu0
    %v12220 = vpop.f32.mrb[0].mxu0
    %12221 = vdwg.mxu0
    %12222 = vmatprep.subr.bf16.mxu0 %v10738
    %12223 = vmatpush1.bf16.msra.mxu0 %v10737
    %12224 = vmatprep.subr.bf16.mxu0 %v10748
    %12225 = vmatpush1.bf16.msra.mxu0 %v10747
    %12226 = vmatprep.subr.bf16.mxu0 %v10758
    %12227 = vmatpush1.bf16.msra.mxu0 %v10757
    %12228 = vmatprep.subr.bf16.mxu0 %v10768
    %12229 = vmatpush1.bf16.msra.mxu0 %v10767
    %12230 = vmatprep.subr.bf16.mxu0 %v10778
    %12231 = vmatpush1.bf16.msra.mxu0 %v10777
    %12232 = vmatprep.subr.bf16.mxu0 %v10788
    %12233 = vmatpush1.bf16.msra.mxu0 %v10787
    %12234 = vmatprep.subr.bf16.mxu0 %v10798
    %12235 = vmatpush1.bf16.msra.mxu0 %v10797
    %12236 = vmatprep.subr.bf16.mxu0 %v10808
    %12237 = vmatpush1.bf16.msra.mxu0 %v10807
    %12238 = vmatprep.subr.bf16.mxu0 %v10818
    %12239 = vmatpush1.bf16.msra.mxu0 %v10817
    %12240 = vmatprep.subr.bf16.mxu0 %v10828
    %12241 = vmatpush1.bf16.msra.mxu0 %v10827
    %12242 = vmatprep.subr.bf16.mxu0 %v10838
    %12243 = vmatpush1.bf16.msra.mxu0 %v10837
    %12244 = vmatprep.subr.bf16.mxu0 %v10848
    %12245 = vmatpush1.bf16.msra.mxu0 %v10847
    %12246 = vmatprep.subr.bf16.mxu0 %v10858
    %12247 = vmatpush1.bf16.msra.mxu0 %v10857
    %12248 = vmatprep.subr.bf16.mxu0 %v10868
    %12249 = vmatpush1.bf16.msra.mxu0 %v10867
    %12250 = vmatprep.subr.bf16.mxu0 %v10878
    %12251 = vmatpush1.bf16.msra.mxu0 %v10877
    %12252 = vmatprep.subr.bf16.mxu0 %v10888
    %12253 = vmatpush1.bf16.msra.mxu0 %v10887
    %12254 = vmatprep.mubr.bf16.mxu0 %v8640
    %12255 = vmatmul.mubr.bf16.gmra.mrb[0].mxu0 %v8639
    %v12256 = vpop.f32.mrb[0].mxu0
    %v12257 = vadd.f32 %v12216, %v12256
    %v12258 = vpop.f32.mrb[0].mxu0
    %v12259 = vadd.f32 %v12218, %v12258
    %v12260 = vpop.f32.mrb[0].mxu0
    %v12261 = vpop.f32.mrb[0].mxu0
    %12262 = vdwg.mxu0
    %12263 = vmatprep.subr.bf16.mxu0 %v10898
    %12264 = vmatpush1.bf16.msra.mxu0 %v10897
    %12265 = vmatprep.subr.bf16.mxu0 %v10908
    %12266 = vmatpush1.bf16.msra.mxu0 %v10907
    %12267 = vmatprep.subr.bf16.mxu0 %v10918
    %12268 = vmatpush1.bf16.msra.mxu0 %v10917
    %12269 = vmatprep.subr.bf16.mxu0 %v10928
    %12270 = vmatpush1.bf16.msra.mxu0 %v10927
    %12271 = vmatprep.subr.bf16.mxu0 %v10938
    %12272 = vmatpush1.bf16.msra.mxu0 %v10937
    %12273 = vmatprep.subr.bf16.mxu0 %v10948
    %12274 = vmatpush1.bf16.msra.mxu0 %v10947
    %12275 = vmatprep.subr.bf16.mxu0 %v10958
    %12276 = vmatpush1.bf16.msra.mxu0 %v10957
    %12277 = vmatprep.subr.bf16.mxu0 %v10968
    %12278 = vmatpush1.bf16.msra.mxu0 %v10967
    %12279 = vmatprep.subr.bf16.mxu0 %v10978
    %12280 = vmatpush1.bf16.msra.mxu0 %v10977
    %12281 = vmatprep.subr.bf16.mxu0 %v10988
    %12282 = vmatpush1.bf16.msra.mxu0 %v10987
    %12283 = vmatprep.subr.bf16.mxu0 %v10998
    %12284 = vmatpush1.bf16.msra.mxu0 %v10997
    %12285 = vmatprep.subr.bf16.mxu0 %v11008
    %12286 = vmatpush1.bf16.msra.mxu0 %v11007
    %12287 = vmatprep.subr.bf16.mxu0 %v11018
    %12288 = vmatpush1.bf16.msra.mxu0 %v11017
    %12289 = vmatprep.subr.bf16.mxu0 %v11028
    %12290 = vmatpush1.bf16.msra.mxu0 %v11027
    %12291 = vmatprep.subr.bf16.mxu0 %v11038
    %12292 = vmatpush1.bf16.msra.mxu0 %v11037
    %12293 = vmatprep.subr.bf16.mxu0 %v11048
    %12294 = vmatpush1.bf16.msra.mxu0 %v11047
    %12295 = vmatprep.mubr.bf16.mxu0 %v8642
    %12296 = vmatmul.mubr.bf16.gmra.mrb[0].mxu0 %v8641
    %v12297 = vpop.f32.mrb[0].mxu0
    %v12298 = vadd.f32 %v12257, %v12297
    %v12299 = vpop.f32.mrb[0].mxu0
    %v12300 = vadd.f32 %v12259, %v12299
    %v12301 = vpop.f32.mrb[0].mxu0
    %v12302 = vpop.f32.mrb[0].mxu0
    %12303 = vdwg.mxu0
    %12304 = vmatprep.subr.bf16.mxu0 %v11058
    %12305 = vmatpush1.bf16.msra.mxu0 %v11057
    %12306 = vmatprep.subr.bf16.mxu0 %v11068
    %12307 = vmatpush1.bf16.msra.mxu0 %v11067
    %12308 = vmatprep.subr.bf16.mxu0 %v11078
    %12309 = vmatpush1.bf16.msra.mxu0 %v11077
    %12310 = vmatprep.subr.bf16.mxu0 %v11088
    %12311 = vmatpush1.bf16.msra.mxu0 %v11087
    %12312 = vmatprep.subr.bf16.mxu0 %v11098
    %12313 = vmatpush1.bf16.msra.mxu0 %v11097
    %12314 = vmatprep.subr.bf16.mxu0 %v11108
    %12315 = vmatpush1.bf16.msra.mxu0 %v11107
    %12316 = vmatprep.subr.bf16.mxu0 %v11118
    %12317 = vmatpush1.bf16.msra.mxu0 %v11117
    %12318 = vmatprep.subr.bf16.mxu0 %v11128
    %12319 = vmatpush1.bf16.msra.mxu0 %v11127
    %12320 = vmatprep.subr.bf16.mxu0 %v11138
    %12321 = vmatpush1.bf16.msra.mxu0 %v11137
    %12322 = vmatprep.subr.bf16.mxu0 %v11148
    %12323 = vmatpush1.bf16.msra.mxu0 %v11147
    %12324 = vmatprep.subr.bf16.mxu0 %v11158
    %12325 = vmatpush1.bf16.msra.mxu0 %v11157
    %12326 = vmatprep.subr.bf16.mxu0 %v11168
    %12327 = vmatpush1.bf16.msra.mxu0 %v11167
    %12328 = vmatprep.subr.bf16.mxu0 %v11178
    %12329 = vmatpush1.bf16.msra.mxu0 %v11177
    %12330 = vmatprep.subr.bf16.mxu0 %v11188
    %12331 = vmatpush1.bf16.msra.mxu0 %v11187
    %12332 = vmatprep.subr.bf16.mxu0 %v11198
    %12333 = vmatpush1.bf16.msra.mxu0 %v11197
    %12334 = vmatprep.subr.bf16.mxu0 %v11208
    %12335 = vmatpush1.bf16.msra.mxu0 %v11207
    %12336 = vmatprep.mubr.bf16.mxu0 %v8644
    %12337 = vmatmul.mubr.bf16.gmra.mrb[0].mxu0 %v8643
    %v12338 = vpop.f32.mrb[0].mxu0
    %v12339 = vadd.f32 %v12298, %v12338
    %v12340 = vpop.f32.mrb[0].mxu0
    %v12341 = vadd.f32 %v12300, %v12340
    %v12342 = vpop.f32.mrb[0].mxu0
    %v12343 = vpop.f32.mrb[0].mxu0
    %12344 = vdwg.mxu0
    %12345 = vmatprep.subr.bf16.mxu0 %v10580
    %12346 = vmatpush1.bf16.msra.mxu0 %v10579
    %12347 = vmatprep.subr.bf16.mxu0 %v10590
    %12348 = vmatpush1.bf16.msra.mxu0 %v10589
    %12349 = vmatprep.subr.bf16.mxu0 %v10600
    %12350 = vmatpush1.bf16.msra.mxu0 %v10599
    %12351 = vmatprep.subr.bf16.mxu0 %v10610
    %12352 = vmatpush1.bf16.msra.mxu0 %v10609
    %12353 = vmatprep.subr.bf16.mxu0 %v10620
    %12354 = vmatpush1.bf16.msra.mxu0 %v10619
    %12355 = vmatprep.subr.bf16.mxu0 %v10630
    %12356 = vmatpush1.bf16.msra.mxu0 %v10629
    %12357 = vmatprep.subr.bf16.mxu0 %v10640
    %12358 = vmatpush1.bf16.msra.mxu0 %v10639
    %12359 = vmatprep.subr.bf16.mxu0 %v10650
    %12360 = vmatpush1.bf16.msra.mxu0 %v10649
    %12361 = vmatprep.subr.bf16.mxu0 %v10660
    %12362 = vmatpush1.bf16.msra.mxu0 %v10659
    %12363 = vmatprep.subr.bf16.mxu0 %v10670
    %12364 = vmatpush1.bf16.msra.mxu0 %v10669
    %12365 = vmatprep.subr.bf16.mxu0 %v10680
    %12366 = vmatpush1.bf16.msra.mxu0 %v10679
    %12367 = vmatprep.subr.bf16.mxu0 %v10690
    %12368 = vmatpush1.bf16.msra.mxu0 %v10689
    %12369 = vmatprep.subr.bf16.mxu0 %v10700
    %12370 = vmatpush1.bf16.msra.mxu0 %v10699
    %12371 = vmatprep.subr.bf16.mxu0 %v10710
    %12372 = vmatpush1.bf16.msra.mxu0 %v10709
    %12373 = vmatprep.subr.bf16.mxu0 %v10720
    %12374 = vmatpush1.bf16.msra.mxu0 %v10719
    %12375 = vmatprep.subr.bf16.mxu0 %v10730
    %12376 = vmatpush1.bf16.msra.mxu0 %v10729
    %12377 = vmatprep.mubr.bf16.mxu0 %v8638
    %12378 = vmatmul.mubr.bf16.gmra.mrb[0].mxu0 %v8637
    %v12379 = vpop.f32.mrb[0].mxu0
    %v12380 = vadd.f32 %v8602, %v12379
    %v12381 = vpop.f32.mrb[0].mxu0
    %v12382 = vadd.f32 %v8606, %v12381
    %v12383 = vpop.f32.mrb[0].mxu0
    %v12384 = vpop.f32.mrb[0].mxu0
    %12385 = vdwg.mxu0
    %12386 = vmatprep.subr.bf16.mxu0 %v10740
    %12387 = vmatpush1.bf16.msra.mxu0 %v10739
    %12388 = vmatprep.subr.bf16.mxu0 %v10750
    %12389 = vmatpush1.bf16.msra.mxu0 %v10749
    %12390 = vmatprep.subr.bf16.mxu0 %v10760
    %12391 = vmatpush1.bf16.msra.mxu0 %v10759
    %12392 = vmatprep.subr.bf16.mxu0 %v10770
    %12393 = vmatpush1.bf16.msra.mxu0 %v10769
    %12394 = vmatprep.subr.bf16.mxu0 %v10780
    %12395 = vmatpush1.bf16.msra.mxu0 %v10779
    %12396 = vmatprep.subr.bf16.mxu0 %v10790
    %12397 = vmatpush1.bf16.msra.mxu0 %v10789
    %12398 = vmatprep.subr.bf16.mxu0 %v10800
    %12399 = vmatpush1.bf16.msra.mxu0 %v10799
    %12400 = vmatprep.subr.bf16.mxu0 %v10810
    %12401 = vmatpush1.bf16.msra.mxu0 %v10809
    %12402 = vmatprep.subr.bf16.mxu0 %v10820
    %12403 = vmatpush1.bf16.msra.mxu0 %v10819
    %12404 = vmatprep.subr.bf16.mxu0 %v10830
    %12405 = vmatpush1.bf16.msra.mxu0 %v10829
    %12406 = vmatprep.subr.bf16.mxu0 %v10840
    %12407 = vmatpush1.bf16.msra.mxu0 %v10839
    %12408 = vmatprep.subr.bf16.mxu0 %v10850
    %12409 = vmatpush1.bf16.msra.mxu0 %v10849
    %12410 = vmatprep.subr.bf16.mxu0 %v10860
    %12411 = vmatpush1.bf16.msra.mxu0 %v10859
    %12412 = vmatprep.subr.bf16.mxu0 %v10870
    %12413 = vmatpush1.bf16.msra.mxu0 %v10869
    %12414 = vmatprep.subr.bf16.mxu0 %v10880
    %12415 = vmatpush1.bf16.msra.mxu0 %v10879
    %12416 = vmatprep.subr.bf16.mxu0 %v10890
    %12417 = vmatpush1.bf16.msra.mxu0 %v10889
    %12418 = vmatprep.mubr.bf16.mxu0 %v8640
    %12419 = vmatmul.mubr.bf16.gmra.mrb[0].mxu0 %v8639
    %v12420 = vpop.f32.mrb[0].mxu0
    %v12421 = vadd.f32 %v12380, %v12420
    %v12422 = vpop.f32.mrb[0].mxu0
    %v12423 = vadd.f32 %v12382, %v12422
    %v12424 = vpop.f32.mrb[0].mxu0
    %v12425 = vpop.f32.mrb[0].mxu0
    %12426 = vdwg.mxu0
    %12427 = vmatprep.subr.bf16.mxu0 %v10900
    %12428 = vmatpush1.bf16.msra.mxu0 %v10899
    %12429 = vmatprep.subr.bf16.mxu0 %v10910
    %12430 = vmatpush1.bf16.msra.mxu0 %v10909
    %12431 = vmatprep.subr.bf16.mxu0 %v10920
    %12432 = vmatpush1.bf16.msra.mxu0 %v10919
    %12433 = vmatprep.subr.bf16.mxu0 %v10930
    %12434 = vmatpush1.bf16.msra.mxu0 %v10929
    %12435 = vmatprep.subr.bf16.mxu0 %v10940
    %12436 = vmatpush1.bf16.msra.mxu0 %v10939
    %12437 = vmatprep.subr.bf16.mxu0 %v10950
    %12438 = vmatpush1.bf16.msra.mxu0 %v10949
    %12439 = vmatprep.subr.bf16.mxu0 %v10960
    %12440 = vmatpush1.bf16.msra.mxu0 %v10959
    %12441 = vmatprep.subr.bf16.mxu0 %v10970
    %12442 = vmatpush1.bf16.msra.mxu0 %v10969
    %12443 = vmatprep.subr.bf16.mxu0 %v10980
    %12444 = vmatpush1.bf16.msra.mxu0 %v10979
    %12445 = vmatprep.subr.bf16.mxu0 %v10990
    %12446 = vmatpush1.bf16.msra.mxu0 %v10989
    %12447 = vmatprep.subr.bf16.mxu0 %v11000
    %12448 = vmatpush1.bf16.msra.mxu0 %v10999
    %12449 = vmatprep.subr.bf16.mxu0 %v11010
    %12450 = vmatpush1.bf16.msra.mxu0 %v11009
    %12451 = vmatprep.subr.bf16.mxu0 %v11020
    %12452 = vmatpush1.bf16.msra.mxu0 %v11019
    %12453 = vmatprep.subr.bf16.mxu0 %v11030
    %12454 = vmatpush1.bf16.msra.mxu0 %v11029
    %12455 = vmatprep.subr.bf16.mxu0 %v11040
    %12456 = vmatpush1.bf16.msra.mxu0 %v11039
    %12457 = vmatprep.subr.bf16.mxu0 %v11050
    %12458 = vmatpush1.bf16.msra.mxu0 %v11049
    %12459 = vmatprep.mubr.bf16.mxu0 %v8642
    %12460 = vmatmul.mubr.bf16.gmra.mrb[0].mxu0 %v8641
    %v12461 = vpop.f32.mrb[0].mxu0
    %v12462 = vadd.f32 %v12421, %v12461
    %v12463 = vpop.f32.mrb[0].mxu0
    %v12464 = vadd.f32 %v12423, %v12463
    %v12465 = vpop.f32.mrb[0].mxu0
    %v12466 = vpop.f32.mrb[0].mxu0
    %12467 = vdwg.mxu0
    %12468 = vmatprep.subr.bf16.mxu0 %v11060
    %12469 = vmatpush1.bf16.msra.mxu0 %v11059
    %12470 = vmatprep.subr.bf16.mxu0 %v11070
    %12471 = vmatpush1.bf16.msra.mxu0 %v11069
    %12472 = vmatprep.subr.bf16.mxu0 %v11080
    %12473 = vmatpush1.bf16.msra.mxu0 %v11079
    %12474 = vmatprep.subr.bf16.mxu0 %v11090
    %12475 = vmatpush1.bf16.msra.mxu0 %v11089
    %12476 = vmatprep.subr.bf16.mxu0 %v11100
    %12477 = vmatpush1.bf16.msra.mxu0 %v11099
    %12478 = vmatprep.subr.bf16.mxu0 %v11110
    %12479 = vmatpush1.bf16.msra.mxu0 %v11109
    %12480 = vmatprep.subr.bf16.mxu0 %v11120
    %12481 = vmatpush1.bf16.msra.mxu0 %v11119
    %12482 = vmatprep.subr.bf16.mxu0 %v11130
    %12483 = vmatpush1.bf16.msra.mxu0 %v11129
    %12484 = vmatprep.subr.bf16.mxu0 %v11140
    %12485 = vmatpush1.bf16.msra.mxu0 %v11139
    %12486 = vmatprep.subr.bf16.mxu0 %v11150
    %12487 = vmatpush1.bf16.msra.mxu0 %v11149
    %12488 = vmatprep.subr.bf16.mxu0 %v11160
    %12489 = vmatpush1.bf16.msra.mxu0 %v11159
    %12490 = vmatprep.subr.bf16.mxu0 %v11170
    %12491 = vmatpush1.bf16.msra.mxu0 %v11169
    %12492 = vmatprep.subr.bf16.mxu0 %v11180
    %12493 = vmatpush1.bf16.msra.mxu0 %v11179
    %12494 = vmatprep.subr.bf16.mxu0 %v11190
    %12495 = vmatpush1.bf16.msra.mxu0 %v11189
    %12496 = vmatprep.subr.bf16.mxu0 %v11200
    %12497 = vmatpush1.bf16.msra.mxu0 %v11199
    %12498 = vmatprep.subr.bf16.mxu0 %v11210
    %12499 = vmatpush1.bf16.msra.mxu0 %v11209
    %12500 = vmatprep.mubr.bf16.mxu0 %v8644
    %12501 = vmatmul.mubr.bf16.gmra.mrb[0].mxu0 %v8643
    %v12502 = vpop.f32.mrb[0].mxu0
    %v12503 = vadd.f32 %v12462, %v12502
    %v12504 = vpop.f32.mrb[0].mxu0
    %v12505 = vadd.f32 %v12464, %v12504
    %v12506 = vpop.f32.mrb[0].mxu0
    %v12507 = vpop.f32.mrb[0].mxu0
    %12508 = vdwg.mxu0
    %12509 = vmatprep.subr.bf16.mxu0 %v10582
    %12510 = vmatpush1.bf16.msra.mxu0 %v10581
    %12511 = vmatprep.subr.bf16.mxu0 %v10592
    %12512 = vmatpush1.bf16.msra.mxu0 %v10591
    %12513 = vmatprep.subr.bf16.mxu0 %v10602
    %12514 = vmatpush1.bf16.msra.mxu0 %v10601
    %12515 = vmatprep.subr.bf16.mxu0 %v10612
    %12516 = vmatpush1.bf16.msra.mxu0 %v10611
    %12517 = vmatprep.subr.bf16.mxu0 %v10622
    %12518 = vmatpush1.bf16.msra.mxu0 %v10621
    %12519 = vmatprep.subr.bf16.mxu0 %v10632
    %12520 = vmatpush1.bf16.msra.mxu0 %v10631
    %12521 = vmatprep.subr.bf16.mxu0 %v10642
    %12522 = vmatpush1.bf16.msra.mxu0 %v10641
    %12523 = vmatprep.subr.bf16.mxu0 %v10652
    %12524 = vmatpush1.bf16.msra.mxu0 %v10651
    %12525 = vmatprep.subr.bf16.mxu0 %v10662
    %12526 = vmatpush1.bf16.msra.mxu0 %v10661
    %12527 = vmatprep.subr.bf16.mxu0 %v10672
    %12528 = vmatpush1.bf16.msra.mxu0 %v10671
    %12529 = vmatprep.subr.bf16.mxu0 %v10682
    %12530 = vmatpush1.bf16.msra.mxu0 %v10681
    %12531 = vmatprep.subr.bf16.mxu0 %v10692
    %12532 = vmatpush1.bf16.msra.mxu0 %v10691
    %12533 = vmatprep.subr.bf16.mxu0 %v10702
    %12534 = vmatpush1.bf16.msra.mxu0 %v10701
    %12535 = vmatprep.subr.bf16.mxu0 %v10712
    %12536 = vmatpush1.bf16.msra.mxu0 %v10711
    %12537 = vmatprep.subr.bf16.mxu0 %v10722
    %12538 = vmatpush1.bf16.msra.mxu0 %v10721
    %12539 = vmatprep.subr.bf16.mxu0 %v10732
    %12540 = vmatpush1.bf16.msra.mxu0 %v10731
    %12541 = vmatprep.mubr.bf16.mxu0 %v8638
    %12542 = vmatmul.mubr.bf16.gmra.mrb[0].mxu0 %v8637
    %v12543 = vpop.f32.mrb[0].mxu0
    %v12544 = vadd.f32 %v8610, %v12543
    %v12545 = vpop.f32.mrb[0].mxu0
    %v12546 = vadd.f32 %v8614, %v12545
    %v12547 = vpop.f32.mrb[0].mxu0
    %v12548 = vpop.f32.mrb[0].mxu0
    %12549 = vdwg.mxu0
    %12550 = vmatprep.subr.bf16.mxu0 %v10742
    %12551 = vmatpush1.bf16.msra.mxu0 %v10741
    %12552 = vmatprep.subr.bf16.mxu0 %v10752
    %12553 = vmatpush1.bf16.msra.mxu0 %v10751
    %12554 = vmatprep.subr.bf16.mxu0 %v10762
    %12555 = vmatpush1.bf16.msra.mxu0 %v10761
    %12556 = vmatprep.subr.bf16.mxu0 %v10772
    %12557 = vmatpush1.bf16.msra.mxu0 %v10771
    %12558 = vmatprep.subr.bf16.mxu0 %v10782
    %12559 = vmatpush1.bf16.msra.mxu0 %v10781
    %12560 = vmatprep.subr.bf16.mxu0 %v10792
    %12561 = vmatpush1.bf16.msra.mxu0 %v10791
    %12562 = vmatprep.subr.bf16.mxu0 %v10802
    %12563 = vmatpush1.bf16.msra.mxu0 %v10801
    %12564 = vmatprep.subr.bf16.mxu0 %v10812
    %12565 = vmatpush1.bf16.msra.mxu0 %v10811
    %12566 = vmatprep.subr.bf16.mxu0 %v10822
    %12567 = vmatpush1.bf16.msra.mxu0 %v10821
    %12568 = vmatprep.subr.bf16.mxu0 %v10832
    %12569 = vmatpush1.bf16.msra.mxu0 %v10831
    %12570 = vmatprep.subr.bf16.mxu0 %v10842
    %12571 = vmatpush1.bf16.msra.mxu0 %v10841
    %12572 = vmatprep.subr.bf16.mxu0 %v10852
    %12573 = vmatpush1.bf16.msra.mxu0 %v10851
    %12574 = vmatprep.subr.bf16.mxu0 %v10862
    %12575 = vmatpush1.bf16.msra.mxu0 %v10861
    %12576 = vmatprep.subr.bf16.mxu0 %v10872
    %12577 = vmatpush1.bf16.msra.mxu0 %v10871
    %12578 = vmatprep.subr.bf16.mxu0 %v10882
    %12579 = vmatpush1.bf16.msra.mxu0 %v10881
    %12580 = vmatprep.subr.bf16.mxu0 %v10892
    %12581 = vmatpush1.bf16.msra.mxu0 %v10891
    %12582 = vmatprep.mubr.bf16.mxu0 %v8640
    %12583 = vmatmul.mubr.bf16.gmra.mrb[0].mxu0 %v8639
    %v12584 = vpop.f32.mrb[0].mxu0
    %v12585 = vadd.f32 %v12544, %v12584
    %v12586 = vpop.f32.mrb[0].mxu0
    %v12587 = vadd.f32 %v12546, %v12586
    %v12588 = vpop.f32.mrb[0].mxu0
    %v12589 = vpop.f32.mrb[0].mxu0
    %12590 = vdwg.mxu0
    %12591 = vmatprep.subr.bf16.mxu0 %v10902
    %12592 = vmatpush1.bf16.msra.mxu0 %v10901
    %12593 = vmatprep.subr.bf16.mxu0 %v10912
    %12594 = vmatpush1.bf16.msra.mxu0 %v10911
    %12595 = vmatprep.subr.bf16.mxu0 %v10922
    %12596 = vmatpush1.bf16.msra.mxu0 %v10921
    %12597 = vmatprep.subr.bf16.mxu0 %v10932
    %12598 = vmatpush1.bf16.msra.mxu0 %v10931
    %12599 = vmatprep.subr.bf16.mxu0 %v10942
    %12600 = vmatpush1.bf16.msra.mxu0 %v10941
    %12601 = vmatprep.subr.bf16.mxu0 %v10952
    %12602 = vmatpush1.bf16.msra.mxu0 %v10951
    %12603 = vmatprep.subr.bf16.mxu0 %v10962
    %12604 = vmatpush1.bf16.msra.mxu0 %v10961
    %12605 = vmatprep.subr.bf16.mxu0 %v10972
    %12606 = vmatpush1.bf16.msra.mxu0 %v10971
    %12607 = vmatprep.subr.bf16.mxu0 %v10982
    %12608 = vmatpush1.bf16.msra.mxu0 %v10981
    %12609 = vmatprep.subr.bf16.mxu0 %v10992
    %12610 = vmatpush1.bf16.msra.mxu0 %v10991
    %12611 = vmatprep.subr.bf16.mxu0 %v11002
    %12612 = vmatpush1.bf16.msra.mxu0 %v11001
    %12613 = vmatprep.subr.bf16.mxu0 %v11012
    %12614 = vmatpush1.bf16.msra.mxu0 %v11011
    %12615 = vmatprep.subr.bf16.mxu0 %v11022
    %12616 = vmatpush1.bf16.msra.mxu0 %v11021
    %12617 = vmatprep.subr.bf16.mxu0 %v11032
    %12618 = vmatpush1.bf16.msra.mxu0 %v11031
    %12619 = vmatprep.subr.bf16.mxu0 %v11042
    %12620 = vmatpush1.bf16.msra.mxu0 %v11041
    %12621 = vmatprep.subr.bf16.mxu0 %v11052
    %12622 = vmatpush1.bf16.msra.mxu0 %v11051
    %12623 = vmatprep.mubr.bf16.mxu0 %v8642
    %12624 = vmatmul.mubr.bf16.gmra.mrb[0].mxu0 %v8641
    %v12625 = vpop.f32.mrb[0].mxu0
    %v12626 = vadd.f32 %v12585, %v12625
    %v12627 = vpop.f32.mrb[0].mxu0
    %v12628 = vadd.f32 %v12587, %v12627
    %v12629 = vpop.f32.mrb[0].mxu0
    %v12630 = vpop.f32.mrb[0].mxu0
    %12631 = vdwg.mxu0
    %12632 = vmatprep.subr.bf16.mxu0 %v11062
    %12633 = vmatpush1.bf16.msra.mxu0 %v11061
    %12634 = vmatprep.subr.bf16.mxu0 %v11072
    %12635 = vmatpush1.bf16.msra.mxu0 %v11071
    %12636 = vmatprep.subr.bf16.mxu0 %v11082
    %12637 = vmatpush1.bf16.msra.mxu0 %v11081
    %12638 = vmatprep.subr.bf16.mxu0 %v11092
    %12639 = vmatpush1.bf16.msra.mxu0 %v11091
    %12640 = vmatprep.subr.bf16.mxu0 %v11102
    %12641 = vmatpush1.bf16.msra.mxu0 %v11101
    %12642 = vmatprep.subr.bf16.mxu0 %v11112
    %12643 = vmatpush1.bf16.msra.mxu0 %v11111
    %12644 = vmatprep.subr.bf16.mxu0 %v11122
    %12645 = vmatpush1.bf16.msra.mxu0 %v11121
    %12646 = vmatprep.subr.bf16.mxu0 %v11132
    %12647 = vmatpush1.bf16.msra.mxu0 %v11131
    %12648 = vmatprep.subr.bf16.mxu0 %v11142
    %12649 = vmatpush1.bf16.msra.mxu0 %v11141
    %12650 = vmatprep.subr.bf16.mxu0 %v11152
    %12651 = vmatpush1.bf16.msra.mxu0 %v11151
    %12652 = vmatprep.subr.bf16.mxu0 %v11162
    %12653 = vmatpush1.bf16.msra.mxu0 %v11161
    %12654 = vmatprep.subr.bf16.mxu0 %v11172
    %12655 = vmatpush1.bf16.msra.mxu0 %v11171
    %12656 = vmatprep.subr.bf16.mxu0 %v11182
    %12657 = vmatpush1.bf16.msra.mxu0 %v11181
    %12658 = vmatprep.subr.bf16.mxu0 %v11192
    %12659 = vmatpush1.bf16.msra.mxu0 %v11191
    %12660 = vmatprep.subr.bf16.mxu0 %v11202
    %12661 = vmatpush1.bf16.msra.mxu0 %v11201
    %12662 = vmatprep.subr.bf16.mxu0 %v11212
    %12663 = vmatpush1.bf16.msra.mxu0 %v11211
    %12664 = vmatprep.mubr.bf16.mxu0 %v8644
    %12665 = vmatmul.mubr.bf16.gmra.mrb[0].mxu0 %v8643
    %v12666 = vpop.f32.mrb[0].mxu0
    %v12667 = vadd.f32 %v12626, %v12666
    %v12668 = vpop.f32.mrb[0].mxu0
    %v12669 = vadd.f32 %v12628, %v12668
    %v12670 = vpop.f32.mrb[0].mxu0
    %v12671 = vpop.f32.mrb[0].mxu0
    %12672 = vdwg.mxu0
    %v12673 = vpack.c.bf16 %v12011, %v12011
    %v12674 = vpack.c.bf16 %v12013, %v12013
    %v12675 = vpack.c.bf16 %v12175, %v12175
    %v12676 = vpack.c.bf16 %v12177, %v12177
    %v12677 = vpack.c.bf16 %v12339, %v12339
    %v12678 = vpack.c.bf16 %v12341, %v12341
    %v12679 = vpack.c.bf16 %v12503, %v12503
    %v12680 = vpack.c.bf16 %v12505, %v12505
    %v12681 = vpack.c.bf16 %v12667, %v12667
    %v12682 = vpack.c.bf16 %v12669, %v12669
    %12683 = vmatprep.subr.bf16.mxu0 %v12678
    %12684 = vmatpush1.bf16.xpose.msra.mxu0 %v12677
    %12685 = vmatprep.subr.bf16.mxu0 0
    %12686 = vmatpush1.bf16.xpose.msra.mxu0 0
    %12687 = vmatprep.subr.bf16.mxu0 0
    %12688 = vmatpush1.bf16.xpose.msra.mxu0 0
    %12689 = vmatprep.subr.bf16.mxu0 0
    %12690 = vmatpush1.bf16.xpose.msra.mxu0 0
    %12691 = vmatprep.subr.bf16.mxu0 0
    %12692 = vmatpush1.bf16.xpose.msra.mxu0 0
    %12693 = vmatprep.subr.bf16.mxu0 0
    %12694 = vmatpush1.bf16.xpose.msra.mxu0 0
    %12695 = vmatprep.subr.bf16.mxu0 0
    %12696 = vmatpush1.bf16.xpose.msra.mxu0 0
    %12697 = vmatprep.subr.bf16.mxu0 0
    %12698 = vmatpush1.bf16.xpose.msra.mxu0 0
    %12699 = vmatprep.subr.bf16.mxu0 0
    %12700 = vmatpush1.bf16.xpose.msra.mxu0 0
    %12701 = vmatprep.subr.bf16.mxu0 0
    %12702 = vmatpush1.bf16.xpose.msra.mxu0 0
    %12703 = vmatprep.subr.bf16.mxu0 0
    %12704 = vmatpush1.bf16.xpose.msra.mxu0 0
    %12705 = vmatprep.subr.bf16.mxu0 0
    %12706 = vmatpush1.bf16.xpose.msra.mxu0 0
    %12707 = vmatprep.subr.bf16.mxu0 0
    %12708 = vmatpush1.bf16.xpose.msra.mxu0 0
    %12709 = vmatprep.subr.bf16.mxu0 0
    %12710 = vmatpush1.bf16.xpose.msra.mxu0 0
    %12711 = vmatprep.subr.bf16.mxu0 0
    %12712 = vmatpush1.bf16.xpose.msra.mxu0 0
    %12713 = vmatprep.subr.bf16.mxu0 0
    %12714 = vmatpush1.bf16.xpose.msra.mxu0 0
    %12715 = vmatprep.mubr.bf16.mxu0 %v12674
    %12716 = vmatmul.mubr.bf16.gmra.mrb[0].mxu0 %v12673
    %v12717 = vpop.f32.mrb[0].mxu0
    %v12718 = vadd.f32 0.0, %v12717
    %v12719 = vpop.f32.mrb[0].mxu0
    %v12720 = vpop.f32.mrb[0].mxu0
    %v12721 = vpop.f32.mrb[0].mxu0
    %12722 = vdwg.mxu0
    %12723 = vmatprep.subr.bf16.mxu0 %v12680
    %12724 = vmatpush1.bf16.xpose.msra.mxu0 %v12679
    %12725 = vmatprep.subr.bf16.mxu0 0
    %12726 = vmatpush1.bf16.xpose.msra.mxu0 0
    %12727 = vmatprep.subr.bf16.mxu0 0
    %12728 = vmatpush1.bf16.xpose.msra.mxu0 0
    %12729 = vmatprep.subr.bf16.mxu0 0
    %12730 = vmatpush1.bf16.xpose.msra.mxu0 0
    %12731 = vmatprep.subr.bf16.mxu0 0
    %12732 = vmatpush1.bf16.xpose.msra.mxu0 0
    %12733 = vmatprep.subr.bf16.mxu0 0
    %12734 = vmatpush1.bf16.xpose.msra.mxu0 0
    %12735 = vmatprep.subr.bf16.mxu0 0
    %12736 = vmatpush1.bf16.xpose.msra.mxu0 0
    %12737 = vmatprep.subr.bf16.mxu0 0
    %12738 = vmatpush1.bf16.xpose.msra.mxu0 0
    %12739 = vmatprep.subr.bf16.mxu0 0
    %12740 = vmatpush1.bf16.xpose.msra.mxu0 0
    %12741 = vmatprep.subr.bf16.mxu0 0
    %12742 = vmatpush1.bf16.xpose.msra.mxu0 0
    %12743 = vmatprep.subr.bf16.mxu0 0
    %12744 = vmatpush1.bf16.xpose.msra.mxu0 0
    %12745 = vmatprep.subr.bf16.mxu0 0
    %12746 = vmatpush1.bf16.xpose.msra.mxu0 0
    %12747 = vmatprep.subr.bf16.mxu0 0
    %12748 = vmatpush1.bf16.xpose.msra.mxu0 0
    %12749 = vmatprep.subr.bf16.mxu0 0
    %12750 = vmatpush1.bf16.xpose.msra.mxu0 0
    %12751 = vmatprep.subr.bf16.mxu0 0
    %12752 = vmatpush1.bf16.xpose.msra.mxu0 0
    %12753 = vmatprep.subr.bf16.mxu0 0
    %12754 = vmatpush1.bf16.xpose.msra.mxu0 0
    %12755 = vmatprep.mubr.bf16.mxu0 %v12676
    %12756 = vmatmul.mubr.bf16.gmra.mrb[0].mxu0 %v12675
    %v12757 = vpop.f32.mrb[0].mxu0
    %v12758 = vadd.f32 %v12718, %v12757
    %v12759 = vpop.f32.mrb[0].mxu0
    %v12760 = vpop.f32.mrb[0].mxu0
    %v12761 = vpop.f32.mrb[0].mxu0
    %12762 = vdwg.mxu0
    %v12763 = vsel %vm189, -1e+30, %v12758
    %v12764 = vsel %vm397, %v12763, -inf
    %12765 = vmax.xlane.f32.xlu0 %v12764
    %v12766 = vpop.xlane.xlu0 %12765
    %v12767 = vsub.f32 %v12763, %v12766
    %v12768 = vmul.f32 %v12767, 1.442695
    %v12769 = vpow.pop %v12768
    %v12770 = vsel %vm397, %v12769, 0.0
    %12771 = vadd.xlane.f32.xlu0 %v12770
    %v12772 = vpop.xlane.xlu0 %12771
    %v12773 = vrcp.pop %v12772
    %v12774 = vmul.f32 %v12769, %v12773
    %v12775 = vpack.c.bf16 %v12774, %v12774
    %v12777 = vsel %vm397, %v12775, 0
    %v12780 = vsel %vm413, %v12681, 0
    %v12783 = vsel %vm413, %v12682, 0
    %12785 = vmatprep.subr.bf16.mxu0 %v12783
    %12786 = vmatpush1.bf16.msra.mxu0 %v12780
    %12787 = vmatprep.subr.bf16.mxu0 0
    %12788 = vmatpush1.bf16.msra.mxu0 0
    %12789 = vmatprep.subr.bf16.mxu0 0
    %12790 = vmatpush1.bf16.msra.mxu0 0
    %12791 = vmatprep.subr.bf16.mxu0 0
    %12792 = vmatpush1.bf16.msra.mxu0 0
    %12793 = vmatprep.subr.bf16.mxu0 0
    %12794 = vmatpush1.bf16.msra.mxu0 0
    %12795 = vmatprep.subr.bf16.mxu0 0
    %12796 = vmatpush1.bf16.msra.mxu0 0
    %12797 = vmatprep.subr.bf16.mxu0 0
    %12798 = vmatpush1.bf16.msra.mxu0 0
    %12799 = vmatprep.subr.bf16.mxu0 0
    %12800 = vmatpush1.bf16.msra.mxu0 0
    %12801 = vmatprep.subr.bf16.mxu0 0
    %12802 = vmatpush1.bf16.msra.mxu0 0
    %12803 = vmatprep.subr.bf16.mxu0 0
    %12804 = vmatpush1.bf16.msra.mxu0 0
    %12805 = vmatprep.subr.bf16.mxu0 0
    %12806 = vmatpush1.bf16.msra.mxu0 0
    %12807 = vmatprep.subr.bf16.mxu0 0
    %12808 = vmatpush1.bf16.msra.mxu0 0
    %12809 = vmatprep.subr.bf16.mxu0 0
    %12810 = vmatpush1.bf16.msra.mxu0 0
    %12811 = vmatprep.subr.bf16.mxu0 0
    %12812 = vmatpush1.bf16.msra.mxu0 0
    %12813 = vmatprep.subr.bf16.mxu0 0
    %12814 = vmatpush1.bf16.msra.mxu0 0
    %12815 = vmatprep.subr.bf16.mxu0 0
    %12816 = vmatpush1.bf16.msra.mxu0 0
    %12817 = vmatprep.mubr.bf16.mxu0 0
    %12818 = vmatmul.mubr.bf16.gmra.mrb[0].mxu0 %v12777
    %v12819 = vpop.f32.mrb[0].mxu0
    %v12820 = vadd.f32 0.0, %v12819
    %v12821 = vpop.f32.mrb[0].mxu0
    %v12822 = vadd.f32 0.0, %v12821
    %v12823 = vpop.f32.mrb[0].mxu0
    %v12824 = vpop.f32.mrb[0].mxu0
    %12825 = vdwg.mxu0
    %12826 = vst [vmem:[#allocation21 + $0x40] sm:$0xff] %v12820
    %12827 = vst [vmem:[#allocation21 + $0x48] sm:$0xff] %v12822
    %v12828 = vpack.c.bf16 %v12820, %v12820
    %v12829 = vpack.c.bf16 %v12822, %v12822
    %v12832 = vunpack.c.l.b16 %v12828
    %v12833 = vunpack.c.l.b16 %v12829
    %v12834 = vpack.c.b16 %v12833, %v12832
    %12836 = vst [vmem:[#allocation2 + $0x20] sm:$0xff] %v12834
    // Predicated region
    $region90: #{tpu_custom_call.1} parent=1 // pred_check
      _
    $region91: #{tpu_custom_call.1} parent=1 // pred_check_branch
      %12838 = sbr.rel (0) target = $region93
    $region92: #{tpu_custom_call.1} parent=1 // pred_region
      %s12840 = ssub.s32 1280, 1280
      %12841 = vsyncadd [#allocation5], %s12840
      %s12843 = sshll.u32 [#allocation21], 4
      %s12844 = int_to_ptr.vmem [resolvable:$true] %s12843
      %12846 = dma.vmem_to_hbm [thread:$0]  %s12844, 1280, %s11, [#allocation5]
    $region93: #{tpu_custom_call.1} parent=1 // pred_fallthru
      _
    // Predicated region
    $region94: #{tpu_custom_call.1} parent=1 // pred_check
      _
    $region95: #{tpu_custom_call.1} parent=1 // pred_check_branch
      %12848 = sbr.rel (0) target = $region97
    $region96: #{tpu_custom_call.1} parent=1 // pred_region
      %12849 = dma.done [#allocation5], 1280
    $region97: #{tpu_custom_call.1} parent=1 // pred_fallthru
      _
    %12850 = vsyncpa [#allocation4], 1
    %12851 = vsyncpa [#allocation7], 1
    %12852 = vsyncpa [#allocation10], 1
    %12853 = vsyncpa [#allocation13], 1
    %12854 = vsyncpa [#allocation16], 1
    %12855 = vsyncpa [#allocation19], 1
    %12856 = vsyncpa [#allocation5], 1

</llo_original>
